<compile_context>
chip_gen: v7x
topology: tpu7x:2x2x1
jax: 0.10.0
libtpu: 0.0.40
codegen_flags: <defaults>
</compile_context>

<pallas_src>
import functools

import jax
import jax.numpy as jnp
from jax.experimental import pallas as pl
from jax.experimental.pallas import tpu as pltpu


# ---------------------------------------------------------------------------
# Pallas kernel: tiled  out = act(A @ B + bias)
#   A, B tiles are bf16 (MXU-friendly); accumulation is f32 directly in the
#   resident output block (output BlockSpec returns same (i, j) across k).
# ---------------------------------------------------------------------------
def _matmul_bias_kernel(a_ref, b_ref, bias_ref, o_ref, *, relu):
    k = pl.program_id(2)

    @pl.when(k == 0)
    def _():
        # initialize accumulator with the (broadcast) bias -> bias add is free
        o_ref[...] = jnp.broadcast_to(bias_ref[...], o_ref.shape)

    o_ref[...] += jnp.dot(a_ref[...], b_ref[...],
                          preferred_element_type=jnp.float32)

    if relu:
        @pl.when(k == pl.num_programs(2) - 1)
        def _():
            o_ref[...] = jnp.maximum(o_ref[...], 0.0)


def _pad_to(n, m):
    return (n + m - 1) // m * m


def _choose_m_tile(m, align=16, max_tile=256, slack=0.05):
    """Pick tm (multiple of 16, bf16-tile friendly) minimising padded rows,
    preferring the largest tile among near-minimal-padding candidates."""
    cands = [(-(-m // t) * t, t) for t in range(align, max_tile + 1, align)]
    mp_min = min(mp for mp, _ in cands)
    limit = mp_min * (1.0 + slack)
    tm = max(t for mp, t in cands if mp <= limit)
    return -(-m // tm) * tm, tm


def _pick_div_tile(padded, align, max_tile):
    """Largest multiple of `align` <= max_tile that divides `padded`."""
    if padded <= max_tile:
        return padded
    t = (max_tile // align) * align
    while t >= align:
        if padded % t == 0:
            return t
        t -= align
    return align


def matmul_bias(a, b, bias, relu):
    """a: (M,K), b: (K,N) [bf16 or f32], bias: (N,) -> act(a @ b + bias) f32."""
    M, K = a.shape
    K2, N = b.shape
    assert K == K2
    Mp, tm = _choose_m_tile(M)
    Kp = _pad_to(K, 128)
    Np = _pad_to(N, 128)
    tk = _pick_div_tile(Kp, 128, 640)    # e.g. conv2 K=576 -> Kp=640, tk=640
    tn = _pick_div_tile(Np, 128, 1024)   # big lane-dense N tiles for the FCs

    a_p = a.astype(jnp.bfloat16)
    if (Mp, Kp) != (M, K):
        a_p = jnp.pad(a_p, ((0, Mp - M), (0, Kp - K)))
    b_p = b.astype(jnp.bfloat16)         # no-op when weights pre-stored bf16
    if (Kp, Np) != (K, N):
        b_p = jnp.pad(b_p, ((0, Kp - K), (0, Np - N)))
    bias_p = bias.astype(jnp.float32).reshape(1, N)
    if Np != N:
        bias_p = jnp.pad(bias_p, ((0, 0), (0, Np - N)))

    out = pl.pallas_call(
        functools.partial(_matmul_bias_kernel, relu=relu),
        out_shape=jax.ShapeDtypeStruct((Mp, Np), jnp.float32),
        grid_spec=pltpu.PrefetchScalarGridSpec(
            num_scalar_prefetch=0,
            grid=(Mp // tm, Np // tn, Kp // tk),
            in_specs=[
                pl.BlockSpec((tm, tk), lambda i, j, k: (i, k)),
                pl.BlockSpec((tk, tn), lambda i, j, k: (k, j)),
                pl.BlockSpec((1, tn), lambda i, j, k: (0, j)),
            ],
            out_specs=pl.BlockSpec((tm, tn), lambda i, j, k: (i, j)),
        ),
        compiler_params=pltpu.CompilerParams(
            dimension_semantics=("parallel", "parallel", "arbitrary")),
    )(a_p, b_p, bias_p)

    if (Mp, Np) != (M, N):
        out = out[:M, :N]
    return out


# ---------------------------------------------------------------------------
# Layer helpers (NHWC glue around the Pallas matmul kernel)
# ---------------------------------------------------------------------------
def conv2d_relu_nhwc(x, w2, b):
    """Valid 3x3 conv, stride 1, bias, ReLU.
    x: (N,H,W,C); w2: (kh*kw*Cin, Cout) prepared bf16."""
    N, H, W, C = x.shape
    kh = kw = 3
    Ho, Wo = H - kh + 1, W - kw + 1
    cols = []
    for i in range(kh):
        for j in range(kw):
            cols.append(x[:, i:i + Ho, j:j + Wo, :])     # (N,Ho,Wo,C)
    p = jnp.stack(cols, axis=3)                          # (N,Ho,Wo,kh*kw,C)
    p = p.reshape(N * Ho * Wo, kh * kw * C)              # matches w2 row order
    y = matmul_bias(p, w2, b, relu=True)                 # (N*Ho*Wo, Cout)
    return y.reshape(N, Ho, Wo, -1)


def maxpool2_nhwc(x):
    """MaxPool2d(kernel=2, stride=2) on NHWC (C on the lane axis)."""
    N, H, W, C = x.shape
    return x.reshape(N, H // 2, 2, W // 2, 2, C).max(axis=(2, 4))


def linear(x, w_io, b, relu):
    """nn.Linear with pre-transposed weight (in, out) bf16: x @ w_io + b."""
    return matmul_bias(x, w_io, b, relu=relu)


# ---------------------------------------------------------------------------
# Parameter init (torch layouts, deterministic synthetic values)
# ---------------------------------------------------------------------------
def init_params(key, input_channels, num_classes):
    sizes = [input_channels, 64, 128, 256, 2048, 2048, num_classes]
    conv2_w = conv2_h = 6
    keys = jax.random.split(key, 12)

    def winit(k, shape, fan_in):
        return jax.random.normal(k, shape, jnp.float32) / jnp.sqrt(float(fan_in))

    p = {}
    p["conv1_w"] = winit(keys[0], (sizes[1], sizes[0], 3, 3), sizes[0] * 9)
    p["conv1_b"] = winit(keys[1], (sizes[1],), sizes[0] * 9)
    p["conv2_w"] = winit(keys[2], (sizes[2], sizes[1], 3, 3), sizes[1] * 9)
    p["conv2_b"] = winit(keys[3], (sizes[2],), sizes[1] * 9)
    p["conv3_w"] = winit(keys[4], (sizes[3], sizes[2], 3, 3), sizes[2] * 9)
    p["conv3_b"] = winit(keys[5], (sizes[3],), sizes[2] * 9)
    fc1_in = conv2_w * conv2_h * sizes[3]                 # 6*6*256 = 9216
    p["fc1_w"] = winit(keys[6], (sizes[4], fc1_in), fc1_in)
    p["fc1_b"] = winit(keys[7], (sizes[4],), fc1_in)
    p["fc2_w"] = winit(keys[8], (sizes[5], sizes[4]), sizes[4])
    p["fc2_b"] = winit(keys[9], (sizes[5],), sizes[4])
    p["cls_w"] = winit(keys[10], (sizes[6], sizes[5]), sizes[5])
    p["cls_b"] = winit(keys[11], (sizes[6],), sizes[5])
    return p


def prepare_params(p):
    """One-time weight prep: bf16, im2col / (in,out) layouts, NHWC fc1 perm."""
    q = {}
    for i in (1, 2, 3):
        w = p[f"conv{i}_w"]                               # (Cout, Cin, 3, 3)
        cout = w.shape[0]
        # rows ordered (kh, kw, Cin) to match NHWC im2col patch flattening
        q[f"conv{i}_w"] = (w.transpose(2, 3, 1, 0)
                           .reshape(-1, cout).astype(jnp.bfloat16))
        q[f"conv{i}_b"] = p[f"conv{i}_b"].astype(jnp.float32)
    # fc1: torch flatten order is (C, H, W); permute its input dim to (H, W, C)
    # so the NHWC flatten needs no transpose at runtime.  Then store as (in,out).
    c3 = p["conv3_w"].shape[0]
    out1, fc1_in = p["fc1_w"].shape
    hw = int(round((fc1_in // c3) ** 0.5))
    fc1 = (p["fc1_w"].reshape(out1, c3, hw, hw)
           .transpose(0, 2, 3, 1).reshape(out1, fc1_in))
    q["fc1_w"] = fc1.T.astype(jnp.bfloat16)               # (9216, 2048)
    q["fc1_b"] = p["fc1_b"].astype(jnp.float32)
    q["fc2_w"] = p["fc2_w"].T.astype(jnp.bfloat16)        # (2048, 2048)
    q["fc2_b"] = p["fc2_b"].astype(jnp.float32)
    q["cls_w"] = p["cls_w"].T.astype(jnp.bfloat16)        # (2048, num_classes)
    q["cls_b"] = p["cls_b"].astype(jnp.float32)
    return q


# ---------------------------------------------------------------------------
# Forward pass — mirrors CNN.forward (dropout = identity, eval semantics)
# ---------------------------------------------------------------------------
@jax.jit
def cnn_forward(x_nchw, q):
    x = x_nchw.transpose(0, 2, 3, 1)                      # NCHW -> NHWC once
    f1 = conv2d_relu_nhwc(x, q["conv1_w"], q["conv1_b"])      # feature_1
    f2 = conv2d_relu_nhwc(f1, q["conv2_w"], q["conv2_b"])     # feature_2
    m2 = maxpool2_nhwc(f2)                                    # maxpool_BN_2 (no BN)
    f3 = conv2d_relu_nhwc(m2, q["conv3_w"], q["conv3_b"])     # feature_3
    f4 = f3                                                   # drop1 (eval -> identity)
    m4 = maxpool2_nhwc(f4)                                    # maxpool_BN_4 (no BN)
    flat = m4.reshape(m4.shape[0], -1)                        # fc1 weight pre-permuted
    l1 = linear(flat, q["fc1_w"], q["fc1_b"], relu=True)      # linear_layer_1
    l2 = linear(l1, q["fc2_w"], q["fc2_b"], relu=True)        # linear_layer_2 (drop2 id)
    out = linear(l2, q["cls_w"], q["cls_b"], relu=False)      # classifier (drop2 id)
    # TODO(synk): dropout layers are identity here (inference semantics); no RNG mask applied.
    to_nchw = lambda t: t.transpose(0, 3, 1, 2)               # return features in torch NCHW
    return out, to_nchw(f1), to_nchw(f2), to_nchw(f4), l1, l2


# ---------------------------------------------------------------------------
if __name__ == "__main__":
    key = jax.random.PRNGKey(0)
    k_x, k_p = jax.random.split(key)

    batch, input_channels, num_classes = 2, 3, 10
    # 32x32 input is implied by the module: 32->30->28->pool 14->12->pool 6 (= conv2_W/H).
    x = jax.random.normal(k_x, (batch, input_channels, 32, 32), jnp.float32)
    params = init_params(k_p, input_channels, num_classes)
    prepped = prepare_params(params)

    outs = cnn_forward(x, prepped)
    outs = jax.block_until_ready(outs)

    logits, f_x1, f_x2, f_x4, l_x1, l_x2 = outs
    assert logits.shape == (batch, num_classes)
    assert f_x1.shape == (batch, 64, 30, 30)
    assert f_x2.shape == (batch, 128, 28, 28)
    assert f_x4.shape == (batch, 256, 12, 12)
    assert l_x1.shape == (batch, 2048)
    assert l_x2.shape == (batch, 2048)
    print("KERNEL_OK")
</pallas_src>

<mosaic_0001>
module attributes {stable_mosaic.version = 11 : i64} {
  func.func @_matmul_bias_kernel(%arg0: i32, %arg1: i32, %arg2: i32, %arg3: memref<208x128xbf16, #tpu.memory_space<vmem>>, %arg4: memref<128x128xbf16, #tpu.memory_space<vmem>>, %arg5: memref<1x128xf32, #tpu.memory_space<vmem>>, %arg6: memref<208x128xf32, #tpu.memory_space<vmem>>) attributes {dimension_semantics = [#tpu.dimension_semantics<parallel>, #tpu.dimension_semantics<parallel>, #tpu.dimension_semantics<arbitrary>], iteration_bounds = array<i64: 9, 1, 1>, scalar_prefetch = 0 : i64, scratch_operands = 0 : i64, tpu.core_type = #tpu.core_type<tc>, window_params = [{transform_indices = @transform_0, window_bounds = array<i64: 208, 128>}, {transform_indices = @transform_1, window_bounds = array<i64: 128, 128>}, {transform_indices = @transform_2, window_bounds = array<i64: 1, 128>}, {transform_indices = @transform_3, window_bounds = array<i64: 208, 128>}]} {
    %c0_i32 = arith.constant 0 : i32
    %0 = arith.cmpi eq, %arg2, %c0_i32 : i32
    %1 = arith.extui %0 : i1 to i32
    %c0_i32_0 = arith.constant 0 : i32
    %2 = arith.cmpi ne, %1, %c0_i32_0 : i32
    scf.if %2 {
      %c0_10 = arith.constant 0 : index
      %c0_11 = arith.constant 0 : index
      %12 = vector.load %arg5[%c0_10, %c0_11] : memref<1x128xf32, #tpu.memory_space<vmem>>, vector<1x128xf32>
      %13 = vector.shape_cast %12 : vector<1x128xf32> to vector<1x128xf32>
      %14 = vector.broadcast %13 : vector<1x128xf32> to vector<208x128xf32>
      %c0_12 = arith.constant 0 : index
      %c0_13 = arith.constant 0 : index
      %15 = vector.load %arg6[%c0_12, %c0_13] : memref<208x128xf32, #tpu.memory_space<vmem>>, vector<208x128xf32>
      tpu.vector_store %arg6[%c0_12, %c0_13], %14 {strides = array<i32>} : memref<208x128xf32, #tpu.memory_space<vmem>>, vector<208x128xf32>,
    } else {
    }
    %c0 = arith.constant 0 : index
    %c0_1 = arith.constant 0 : index
    %3 = vector.load %arg6[%c0, %c0_1] : memref<208x128xf32, #tpu.memory_space<vmem>>, vector<208x128xf32>
    %c0_2 = arith.constant 0 : index
    %c0_3 = arith.constant 0 : index
    %4 = vector.load %arg3[%c0_2, %c0_3] : memref<208x128xbf16, #tpu.memory_space<vmem>>, vector<208x128xbf16>
    %c0_4 = arith.constant 0 : index
    %c0_5 = arith.constant 0 : index
    %5 = vector.load %arg4[%c0_4, %c0_5] : memref<128x128xbf16, #tpu.memory_space<vmem>>, vector<128x128xbf16>
    %cst = arith.constant dense<0.000000e+00> : vector<208x128xf32>
    %6 = tpu.matmul %4, %5, %cst {dimension_numbers = #tpu.dot_dimension_numbers<[1], [0], [0], [1], [0, 0, 1, 1], [], []>} : vector<208x128xbf16>, vector<128x128xbf16>, vector<208x128xf32> -> vector<208x128xf32>
    %7 = arith.addf %3, %6 : vector<208x128xf32>
    %c0_6 = arith.constant 0 : index
    %c0_7 = arith.constant 0 : index
    %8 = vector.load %arg6[%c0_6, %c0_7] : memref<208x128xf32, #tpu.memory_space<vmem>>, vector<208x128xf32>
    tpu.vector_store %arg6[%c0_6, %c0_7], %7 {strides = array<i32>} : memref<208x128xf32, #tpu.memory_space<vmem>>, vector<208x128xf32>,
    %c0_i32_8 = arith.constant 0 : i32
    %9 = arith.cmpi eq, %arg2, %c0_i32_8 : i32
    %10 = arith.extui %9 : i1 to i32
    %c0_i32_9 = arith.constant 0 : i32
    %11 = arith.cmpi ne, %10, %c0_i32_9 : i32
    scf.if %11 {
      %c0_10 = arith.constant 0 : index
      %c0_11 = arith.constant 0 : index
      %12 = vector.load %arg6[%c0_10, %c0_11] : memref<208x128xf32, #tpu.memory_space<vmem>>, vector<208x128xf32>
      %cst_12 = arith.constant 0.000000e+00 : f32
      %13 = vector.broadcast %cst_12 : f32 to vector<208x128xf32>
      %14 = arith.maximumf %12, %13 : vector<208x128xf32>
      %c0_13 = arith.constant 0 : index
      %c0_14 = arith.constant 0 : index
      %15 = vector.load %arg6[%c0_13, %c0_14] : memref<208x128xf32, #tpu.memory_space<vmem>>, vector<208x128xf32>
      tpu.vector_store %arg6[%c0_13, %c0_14], %14 {strides = array<i32>} : memref<208x128xf32, #tpu.memory_space<vmem>>, vector<208x128xf32>,
    } else {
    }
    return
  }
  func.func @transform_0(%arg0: i32, %arg1: i32, %arg2: i32) -> (i32, i32) {
    %c0_i32 = arith.constant 0 : i32
    return %arg0, %arg2 : i32, i32
  }
  func.func @transform_1(%arg0: i32, %arg1: i32, %arg2: i32) -> (i32, i32) {
    %c0_i32 = arith.constant 0 : i32
    return %arg2, %arg1 : i32, i32
  }
  func.func @transform_2(%arg0: i32, %arg1: i32, %arg2: i32) -> (i32, i32) {
    %c0_i32 = arith.constant 0 : i32
    %c0_i32_0 = arith.constant 0 : i32
    return %c0_i32, %arg1 : i32, i32
  }
  func.func @transform_3(%arg0: i32, %arg1: i32, %arg2: i32) -> (i32, i32) {
    %c0_i32 = arith.constant 0 : i32
    return %arg0, %arg1 : i32, i32
  }
}

module attributes {stable_mosaic.version = 11 : i64} {
  func.func @_matmul_bias_kernel(%arg0: i32, %arg1: i32, %arg2: i32, %arg3: memref<224x640xbf16, #tpu.memory_space<vmem>>, %arg4: memref<640x128xbf16, #tpu.memory_space<vmem>>, %arg5: memref<1x128xf32, #tpu.memory_space<vmem>>, %arg6: memref<224x128xf32, #tpu.memory_space<vmem>>) attributes {dimension_semantics = [#tpu.dimension_semantics<parallel>, #tpu.dimension_semantics<parallel>, #tpu.dimension_semantics<arbitrary>], iteration_bounds = array<i64: 7, 1, 1>, scalar_prefetch = 0 : i64, scratch_operands = 0 : i64, tpu.core_type = #tpu.core_type<tc>, window_params = [{transform_indices = @transform_0, window_bounds = array<i64: 224, 640>}, {transform_indices = @transform_1, window_bounds = array<i64: 640, 128>}, {transform_indices = @transform_2, window_bounds = array<i64: 1, 128>}, {transform_indices = @transform_3, window_bounds = array<i64: 224, 128>}]} {
    %c0_i32 = arith.constant 0 : i32
    %0 = arith.cmpi eq, %arg2, %c0_i32 : i32
    %1 = arith.extui %0 : i1 to i32
    %c0_i32_0 = arith.constant 0 : i32
    %2 = arith.cmpi ne, %1, %c0_i32_0 : i32
    scf.if %2 {
      %c0_10 = arith.constant 0 : index
      %c0_11 = arith.constant 0 : index
      %12 = vector.load %arg5[%c0_10, %c0_11] : memref<1x128xf32, #tpu.memory_space<vmem>>, vector<1x128xf32>
      %13 = vector.shape_cast %12 : vector<1x128xf32> to vector<1x128xf32>
      %14 = vector.broadcast %13 : vector<1x128xf32> to vector<224x128xf32>
      %c0_12 = arith.constant 0 : index
      %c0_13 = arith.constant 0 : index
      %15 = vector.load %arg6[%c0_12, %c0_13] : memref<224x128xf32, #tpu.memory_space<vmem>>, vector<224x128xf32>
      tpu.vector_store %arg6[%c0_12, %c0_13], %14 {strides = array<i32>} : memref<224x128xf32, #tpu.memory_space<vmem>>, vector<224x128xf32>,
    } else {
    }
    %c0 = arith.constant 0 : index
    %c0_1 = arith.constant 0 : index
    %3 = vector.load %arg6[%c0, %c0_1] : memref<224x128xf32, #tpu.memory_space<vmem>>, vector<224x128xf32>
    %c0_2 = arith.constant 0 : index
    %c0_3 = arith.constant 0 : index
    %4 = vector.load %arg3[%c0_2, %c0_3] : memref<224x640xbf16, #tpu.memory_space<vmem>>, vector<224x640xbf16>
    %c0_4 = arith.constant 0 : index
    %c0_5 = arith.constant 0 : index
    %5 = vector.load %arg4[%c0_4, %c0_5] : memref<640x128xbf16, #tpu.memory_space<vmem>>, vector<640x128xbf16>
    %cst = arith.constant dense<0.000000e+00> : vector<224x128xf32>
    %6 = tpu.matmul %4, %5, %cst {dimension_numbers = #tpu.dot_dimension_numbers<[1], [0], [0], [1], [0, 0, 1, 1], [], []>} : vector<224x640xbf16>, vector<640x128xbf16>, vector<224x128xf32> -> vector<224x128xf32>
    %7 = arith.addf %3, %6 : vector<224x128xf32>
    %c0_6 = arith.constant 0 : index
    %c0_7 = arith.constant 0 : index
    %8 = vector.load %arg6[%c0_6, %c0_7] : memref<224x128xf32, #tpu.memory_space<vmem>>, vector<224x128xf32>
    tpu.vector_store %arg6[%c0_6, %c0_7], %7 {strides = array<i32>} : memref<224x128xf32, #tpu.memory_space<vmem>>, vector<224x128xf32>,
    %c0_i32_8 = arith.constant 0 : i32
    %9 = arith.cmpi eq, %arg2, %c0_i32_8 : i32
    %10 = arith.extui %9 : i1 to i32
    %c0_i32_9 = arith.constant 0 : i32
    %11 = arith.cmpi ne, %10, %c0_i32_9 : i32
    scf.if %11 {
      %c0_10 = arith.constant 0 : index
      %c0_11 = arith.constant 0 : index
      %12 = vector.load %arg6[%c0_10, %c0_11] : memref<224x128xf32, #tpu.memory_space<vmem>>, vector<224x128xf32>
      %cst_12 = arith.constant 0.000000e+00 : f32
      %13 = vector.broadcast %cst_12 : f32 to vector<224x128xf32>
      %14 = arith.maximumf %12, %13 : vector<224x128xf32>
      %c0_13 = arith.constant 0 : index
      %c0_14 = arith.constant 0 : index
      %15 = vector.load %arg6[%c0_13, %c0_14] : memref<224x128xf32, #tpu.memory_space<vmem>>, vector<224x128xf32>
      tpu.vector_store %arg6[%c0_13, %c0_14], %14 {strides = array<i32>} : memref<224x128xf32, #tpu.memory_space<vmem>>, vector<224x128xf32>,
    } else {
    }
    return
  }
  func.func @transform_0(%arg0: i32, %arg1: i32, %arg2: i32) -> (i32, i32) {
    %c0_i32 = arith.constant 0 : i32
    return %arg0, %arg2 : i32, i32
  }
  func.func @transform_1(%arg0: i32, %arg1: i32, %arg2: i32) -> (i32, i32) {
    %c0_i32 = arith.constant 0 : i32
    return %arg2, %arg1 : i32, i32
  }
  func.func @transform_2(%arg0: i32, %arg1: i32, %arg2: i32) -> (i32, i32) {
    %c0_i32 = arith.constant 0 : i32
    %c0_i32_0 = arith.constant 0 : i32
    return %c0_i32, %arg1 : i32, i32
  }
  func.func @transform_3(%arg0: i32, %arg1: i32, %arg2: i32) -> (i32, i32) {
    %c0_i32 = arith.constant 0 : i32
    return %arg0, %arg1 : i32, i32
  }
}

module attributes {stable_mosaic.version = 11 : i64} {
  func.func @_matmul_bias_kernel(%arg0: i32, %arg1: i32, %arg2: i32, %arg3: memref<144x384xbf16, #tpu.memory_space<vmem>>, %arg4: memref<384x256xbf16, #tpu.memory_space<vmem>>, %arg5: memref<1x256xf32, #tpu.memory_space<vmem>>, %arg6: memref<144x256xf32, #tpu.memory_space<vmem>>) attributes {dimension_semantics = [#tpu.dimension_semantics<parallel>, #tpu.dimension_semantics<parallel>, #tpu.dimension_semantics<arbitrary>], iteration_bounds = array<i64: 2, 1, 3>, scalar_prefetch = 0 : i64, scratch_operands = 0 : i64, tpu.core_type = #tpu.core_type<tc>, window_params = [{transform_indices = @transform_0, window_bounds = array<i64: 144, 384>}, {transform_indices = @transform_1, window_bounds = array<i64: 384, 256>}, {transform_indices = @transform_2, window_bounds = array<i64: 1, 256>}, {transform_indices = @transform_3, window_bounds = array<i64: 144, 256>}]} {
    %c0_i32 = arith.constant 0 : i32
    %0 = arith.cmpi eq, %arg2, %c0_i32 : i32
    %1 = arith.extui %0 : i1 to i32
    %c0_i32_0 = arith.constant 0 : i32
    %2 = arith.cmpi ne, %1, %c0_i32_0 : i32
    scf.if %2 {
      %c0_9 = arith.constant 0 : index
      %c0_10 = arith.constant 0 : index
      %12 = vector.load %arg5[%c0_9, %c0_10] : memref<1x256xf32, #tpu.memory_space<vmem>>, vector<1x256xf32>
      %13 = vector.shape_cast %12 : vector<1x256xf32> to vector<1x256xf32>
      %14 = vector.broadcast %13 : vector<1x256xf32> to vector<144x256xf32>
      %c0_11 = arith.constant 0 : index
      %c0_12 = arith.constant 0 : index
      %15 = vector.load %arg6[%c0_11, %c0_12] : memref<144x256xf32, #tpu.memory_space<vmem>>, vector<144x256xf32>
      tpu.vector_store %arg6[%c0_11, %c0_12], %14 {strides = array<i32>} : memref<144x256xf32, #tpu.memory_space<vmem>>, vector<144x256xf32>,
    } else {
    }
    %c0 = arith.constant 0 : index
    %c0_1 = arith.constant 0 : index
    %3 = vector.load %arg6[%c0, %c0_1] : memref<144x256xf32, #tpu.memory_space<vmem>>, vector<144x256xf32>
    %c0_2 = arith.constant 0 : index
    %c0_3 = arith.constant 0 : index
    %4 = vector.load %arg3[%c0_2, %c0_3] : memref<144x384xbf16, #tpu.memory_space<vmem>>, vector<144x384xbf16>
    %c0_4 = arith.constant 0 : index
    %c0_5 = arith.constant 0 : index
    %5 = vector.load %arg4[%c0_4, %c0_5] : memref<384x256xbf16, #tpu.memory_space<vmem>>, vector<384x256xbf16>
    %cst = arith.constant dense<0.000000e+00> : vector<144x256xf32>
    %6 = tpu.matmul %4, %5, %cst {dimension_numbers = #tpu.dot_dimension_numbers<[1], [0], [0], [1], [0, 0, 1, 1], [], []>} : vector<144x384xbf16>, vector<384x256xbf16>, vector<144x256xf32> -> vector<144x256xf32>
    %7 = arith.addf %3, %6 : vector<144x256xf32>
    %c0_6 = arith.constant 0 : index
    %c0_7 = arith.constant 0 : index
    %8 = vector.load %arg6[%c0_6, %c0_7] : memref<144x256xf32, #tpu.memory_space<vmem>>, vector<144x256xf32>
    tpu.vector_store %arg6[%c0_6, %c0_7], %7 {strides = array<i32>} : memref<144x256xf32, #tpu.memory_space<vmem>>, vector<144x256xf32>,
    %c2_i32 = arith.constant 2 : i32
    %9 = arith.cmpi eq, %arg2, %c2_i32 : i32
    %10 = arith.extui %9 : i1 to i32
    %c0_i32_8 = arith.constant 0 : i32
    %11 = arith.cmpi ne, %10, %c0_i32_8 : i32
    scf.if %11 {
      %c0_9 = arith.constant 0 : index
      %c0_10 = arith.constant 0 : index
      %12 = vector.load %arg6[%c0_9, %c0_10] : memref<144x256xf32, #tpu.memory_space<vmem>>, vector<144x256xf32>
      %cst_11 = arith.constant 0.000000e+00 : f32
      %13 = vector.broadcast %cst_11 : f32 to vector<144x256xf32>
      %14 = arith.maximumf %12, %13 : vector<144x256xf32>
      %c0_12 = arith.constant 0 : index
      %c0_13 = arith.constant 0 : index
      %15 = vector.load %arg6[%c0_12, %c0_13] : memref<144x256xf32, #tpu.memory_space<vmem>>, vector<144x256xf32>
      tpu.vector_store %arg6[%c0_12, %c0_13], %14 {strides = array<i32>} : memref<144x256xf32, #tpu.memory_space<vmem>>, vector<144x256xf32>,
    } else {
    }
    return
  }
  func.func @transform_0(%arg0: i32, %arg1: i32, %arg2: i32) -> (i32, i32) {
    %c0_i32 = arith.constant 0 : i32
    return %arg0, %arg2 : i32, i32
  }
  func.func @transform_1(%arg0: i32, %arg1: i32, %arg2: i32) -> (i32, i32) {
    %c0_i32 = arith.constant 0 : i32
    return %arg2, %arg1 : i32, i32
  }
  func.func @transform_2(%arg0: i32, %arg1: i32, %arg2: i32) -> (i32, i32) {
    %c0_i32 = arith.constant 0 : i32
    %c0_i32_0 = arith.constant 0 : i32
    return %c0_i32, %arg1 : i32, i32
  }
  func.func @transform_3(%arg0: i32, %arg1: i32, %arg2: i32) -> (i32, i32) {
    %c0_i32 = arith.constant 0 : i32
    return %arg0, %arg1 : i32, i32
  }
}

module attributes {stable_mosaic.version = 11 : i64} {
  func.func @_matmul_bias_kernel(%arg0: i32, %arg1: i32, %arg2: i32, %arg3: memref<16x512xbf16, #tpu.memory_space<vmem>>, %arg4: memref<512x1024xbf16, #tpu.memory_space<vmem>>, %arg5: memref<1x1024xf32, #tpu.memory_space<vmem>>, %arg6: memref<16x1024xf32, #tpu.memory_space<vmem>>) attributes {dimension_semantics = [#tpu.dimension_semantics<parallel>, #tpu.dimension_semantics<parallel>, #tpu.dimension_semantics<arbitrary>], iteration_bounds = array<i64: 1, 2, 18>, scalar_prefetch = 0 : i64, scratch_operands = 0 : i64, tpu.core_type = #tpu.core_type<tc>, window_params = [{transform_indices = @transform_0, window_bounds = array<i64: 16, 512>}, {transform_indices = @transform_1, window_bounds = array<i64: 512, 1024>}, {transform_indices = @transform_2, window_bounds = array<i64: 1, 1024>}, {transform_indices = @transform_3, window_bounds = array<i64: 16, 1024>}]} {
    %c0_i32 = arith.constant 0 : i32
    %0 = arith.cmpi eq, %arg2, %c0_i32 : i32
    %1 = arith.extui %0 : i1 to i32
    %c0_i32_0 = arith.constant 0 : i32
    %2 = arith.cmpi ne, %1, %c0_i32_0 : i32
    scf.if %2 {
      %c0_9 = arith.constant 0 : index
      %c0_10 = arith.constant 0 : index
      %12 = vector.load %arg5[%c0_9, %c0_10] : memref<1x1024xf32, #tpu.memory_space<vmem>>, vector<1x1024xf32>
      %13 = vector.shape_cast %12 : vector<1x1024xf32> to vector<1x1024xf32>
      %14 = vector.broadcast %13 : vector<1x1024xf32> to vector<16x1024xf32>
      %c0_11 = arith.constant 0 : index
      %c0_12 = arith.constant 0 : index
      %15 = vector.load %arg6[%c0_11, %c0_12] : memref<16x1024xf32, #tpu.memory_space<vmem>>, vector<16x1024xf32>
      tpu.vector_store %arg6[%c0_11, %c0_12], %14 {strides = array<i32>} : memref<16x1024xf32, #tpu.memory_space<vmem>>, vector<16x1024xf32>,
    } else {
    }
    %c0 = arith.constant 0 : index
    %c0_1 = arith.constant 0 : index
    %3 = vector.load %arg6[%c0, %c0_1] : memref<16x1024xf32, #tpu.memory_space<vmem>>, vector<16x1024xf32>
    %c0_2 = arith.constant 0 : index
    %c0_3 = arith.constant 0 : index
    %4 = vector.load %arg3[%c0_2, %c0_3] : memref<16x512xbf16, #tpu.memory_space<vmem>>, vector<16x512xbf16>
    %c0_4 = arith.constant 0 : index
    %c0_5 = arith.constant 0 : index
    %5 = vector.load %arg4[%c0_4, %c0_5] : memref<512x1024xbf16, #tpu.memory_space<vmem>>, vector<512x1024xbf16>
    %cst = arith.constant dense<0.000000e+00> : vector<16x1024xf32>
    %6 = tpu.matmul %4, %5, %cst {dimension_numbers = #tpu.dot_dimension_numbers<[1], [0], [0], [1], [0, 0, 1, 1], [], []>} : vector<16x512xbf16>, vector<512x1024xbf16>, vector<16x1024xf32> -> vector<16x1024xf32>
    %7 = arith.addf %3, %6 : vector<16x1024xf32>
    %c0_6 = arith.constant 0 : index
    %c0_7 = arith.constant 0 : index
    %8 = vector.load %arg6[%c0_6, %c0_7] : memref<16x1024xf32, #tpu.memory_space<vmem>>, vector<16x1024xf32>
    tpu.vector_store %arg6[%c0_6, %c0_7], %7 {strides = array<i32>} : memref<16x1024xf32, #tpu.memory_space<vmem>>, vector<16x1024xf32>,
    %c17_i32 = arith.constant 17 : i32
    %9 = arith.cmpi eq, %arg2, %c17_i32 : i32
    %10 = arith.extui %9 : i1 to i32
    %c0_i32_8 = arith.constant 0 : i32
    %11 = arith.cmpi ne, %10, %c0_i32_8 : i32
    scf.if %11 {
      %c0_9 = arith.constant 0 : index
      %c0_10 = arith.constant 0 : index
      %12 = vector.load %arg6[%c0_9, %c0_10] : memref<16x1024xf32, #tpu.memory_space<vmem>>, vector<16x1024xf32>
      %cst_11 = arith.constant 0.000000e+00 : f32
      %13 = vector.broadcast %cst_11 : f32 to vector<16x1024xf32>
      %14 = arith.maximumf %12, %13 : vector<16x1024xf32>
      %c0_12 = arith.constant 0 : index
      %c0_13 = arith.constant 0 : index
      %15 = vector.load %arg6[%c0_12, %c0_13] : memref<16x1024xf32, #tpu.memory_space<vmem>>, vector<16x1024xf32>
      tpu.vector_store %arg6[%c0_12, %c0_13], %14 {strides = array<i32>} : memref<16x1024xf32, #tpu.memory_space<vmem>>, vector<16x1024xf32>,
    } else {
    }
    return
  }
  func.func @transform_0(%arg0: i32, %arg1: i32, %arg2: i32) -> (i32, i32) {
    %c0_i32 = arith.constant 0 : i32
    return %arg0, %arg2 : i32, i32
  }
  func.func @transform_1(%arg0: i32, %arg1: i32, %arg2: i32) -> (i32, i32) {
    %c0_i32 = arith.constant 0 : i32
    return %arg2, %arg1 : i32, i32
  }
  func.func @transform_2(%arg0: i32, %arg1: i32, %arg2: i32) -> (i32, i32) {
    %c0_i32 = arith.constant 0 : i32
    %c0_i32_0 = arith.constant 0 : i32
    return %c0_i32, %arg1 : i32, i32
  }
  func.func @transform_3(%arg0: i32, %arg1: i32, %arg2: i32) -> (i32, i32) {
    %c0_i32 = arith.constant 0 : i32
    return %arg0, %arg1 : i32, i32
  }
}

module attributes {stable_mosaic.version = 11 : i64} {
  func.func @_matmul_bias_kernel(%arg0: i32, %arg1: i32, %arg2: i32, %arg3: memref<16x512xbf16, #tpu.memory_space<vmem>>, %arg4: memref<512x1024xbf16, #tpu.memory_space<vmem>>, %arg5: memref<1x1024xf32, #tpu.memory_space<vmem>>, %arg6: memref<16x1024xf32, #tpu.memory_space<vmem>>) attributes {dimension_semantics = [#tpu.dimension_semantics<parallel>, #tpu.dimension_semantics<parallel>, #tpu.dimension_semantics<arbitrary>], iteration_bounds = array<i64: 1, 2, 4>, scalar_prefetch = 0 : i64, scratch_operands = 0 : i64, tpu.core_type = #tpu.core_type<tc>, window_params = [{transform_indices = @transform_0, window_bounds = array<i64: 16, 512>}, {transform_indices = @transform_1, window_bounds = array<i64: 512, 1024>}, {transform_indices = @transform_2, window_bounds = array<i64: 1, 1024>}, {transform_indices = @transform_3, window_bounds = array<i64: 16, 1024>}]} {
    %c0_i32 = arith.constant 0 : i32
    %0 = arith.cmpi eq, %arg2, %c0_i32 : i32
    %1 = arith.extui %0 : i1 to i32
    %c0_i32_0 = arith.constant 0 : i32
    %2 = arith.cmpi ne, %1, %c0_i32_0 : i32
    scf.if %2 {
      %c0_9 = arith.constant 0 : index
      %c0_10 = arith.constant 0 : index
      %12 = vector.load %arg5[%c0_9, %c0_10] : memref<1x1024xf32, #tpu.memory_space<vmem>>, vector<1x1024xf32>
      %13 = vector.shape_cast %12 : vector<1x1024xf32> to vector<1x1024xf32>
      %14 = vector.broadcast %13 : vector<1x1024xf32> to vector<16x1024xf32>
      %c0_11 = arith.constant 0 : index
      %c0_12 = arith.constant 0 : index
      %15 = vector.load %arg6[%c0_11, %c0_12] : memref<16x1024xf32, #tpu.memory_space<vmem>>, vector<16x1024xf32>
      tpu.vector_store %arg6[%c0_11, %c0_12], %14 {strides = array<i32>} : memref<16x1024xf32, #tpu.memory_space<vmem>>, vector<16x1024xf32>,
    } else {
    }
    %c0 = arith.constant 0 : index
    %c0_1 = arith.constant 0 : index
    %3 = vector.load %arg6[%c0, %c0_1] : memref<16x1024xf32, #tpu.memory_space<vmem>>, vector<16x1024xf32>
    %c0_2 = arith.constant 0 : index
    %c0_3 = arith.constant 0 : index
    %4 = vector.load %arg3[%c0_2, %c0_3] : memref<16x512xbf16, #tpu.memory_space<vmem>>, vector<16x512xbf16>
    %c0_4 = arith.constant 0 : index
    %c0_5 = arith.constant 0 : index
    %5 = vector.load %arg4[%c0_4, %c0_5] : memref<512x1024xbf16, #tpu.memory_space<vmem>>, vector<512x1024xbf16>
    %cst = arith.constant dense<0.000000e+00> : vector<16x1024xf32>
    %6 = tpu.matmul %4, %5, %cst {dimension_numbers = #tpu.dot_dimension_numbers<[1], [0], [0], [1], [0, 0, 1, 1], [], []>} : vector<16x512xbf16>, vector<512x1024xbf16>, vector<16x1024xf32> -> vector<16x1024xf32>
    %7 = arith.addf %3, %6 : vector<16x1024xf32>
    %c0_6 = arith.constant 0 : index
    %c0_7 = arith.constant 0 : index
    %8 = vector.load %arg6[%c0_6, %c0_7] : memref<16x1024xf32, #tpu.memory_space<vmem>>, vector<16x1024xf32>
    tpu.vector_store %arg6[%c0_6, %c0_7], %7 {strides = array<i32>} : memref<16x1024xf32, #tpu.memory_space<vmem>>, vector<16x1024xf32>,
    %c3_i32 = arith.constant 3 : i32
    %9 = arith.cmpi eq, %arg2, %c3_i32 : i32
    %10 = arith.extui %9 : i1 to i32
    %c0_i32_8 = arith.constant 0 : i32
    %11 = arith.cmpi ne, %10, %c0_i32_8 : i32
    scf.if %11 {
      %c0_9 = arith.constant 0 : index
      %c0_10 = arith.constant 0 : index
      %12 = vector.load %arg6[%c0_9, %c0_10] : memref<16x1024xf32, #tpu.memory_space<vmem>>, vector<16x1024xf32>
      %cst_11 = arith.constant 0.000000e+00 : f32
      %13 = vector.broadcast %cst_11 : f32 to vector<16x1024xf32>
      %14 = arith.maximumf %12, %13 : vector<16x1024xf32>
      %c0_12 = arith.constant 0 : index
      %c0_13 = arith.constant 0 : index
      %15 = vector.load %arg6[%c0_12, %c0_13] : memref<16x1024xf32, #tpu.memory_space<vmem>>, vector<16x1024xf32>
      tpu.vector_store %arg6[%c0_12, %c0_13], %14 {strides = array<i32>} : memref<16x1024xf32, #tpu.memory_space<vmem>>, vector<16x1024xf32>,
    } else {
    }
    return
  }
  func.func @transform_0(%arg0: i32, %arg1: i32, %arg2: i32) -> (i32, i32) {
    %c0_i32 = arith.constant 0 : i32
    return %arg0, %arg2 : i32, i32
  }
  func.func @transform_1(%arg0: i32, %arg1: i32, %arg2: i32) -> (i32, i32) {
    %c0_i32 = arith.constant 0 : i32
    return %arg2, %arg1 : i32, i32
  }
  func.func @transform_2(%arg0: i32, %arg1: i32, %arg2: i32) -> (i32, i32) {
    %c0_i32 = arith.constant 0 : i32
    %c0_i32_0 = arith.constant 0 : i32
    return %c0_i32, %arg1 : i32, i32
  }
  func.func @transform_3(%arg0: i32, %arg1: i32, %arg2: i32) -> (i32, i32) {
    %c0_i32 = arith.constant 0 : i32
    return %arg0, %arg1 : i32, i32
  }
}

module attributes {stable_mosaic.version = 11 : i64} {
  func.func @_matmul_bias_kernel(%arg0: i32, %arg1: i32, %arg2: i32, %arg3: memref<16x512xbf16, #tpu.memory_space<vmem>>, %arg4: memref<512x128xbf16, #tpu.memory_space<vmem>>, %arg5: memref<1x128xf32, #tpu.memory_space<vmem>>, %arg6: memref<16x128xf32, #tpu.memory_space<vmem>>) attributes {dimension_semantics = [#tpu.dimension_semantics<parallel>, #tpu.dimension_semantics<parallel>, #tpu.dimension_semantics<arbitrary>], iteration_bounds = array<i64: 1, 1, 4>, scalar_prefetch = 0 : i64, scratch_operands = 0 : i64, tpu.core_type = #tpu.core_type<tc>, window_params = [{transform_indices = @transform_0, window_bounds = array<i64: 16, 512>}, {transform_indices = @transform_1, window_bounds = array<i64: 512, 128>}, {transform_indices = @transform_2, window_bounds = array<i64: 1, 128>}, {transform_indices = @transform_3, window_bounds = array<i64: 16, 128>}]} {
    %c0_i32 = arith.constant 0 : i32
    %0 = arith.cmpi eq, %arg2, %c0_i32 : i32
    %1 = arith.extui %0 : i1 to i32
    %c0_i32_0 = arith.constant 0 : i32
    %2 = arith.cmpi ne, %1, %c0_i32_0 : i32
    scf.if %2 {
      %c0_8 = arith.constant 0 : index
      %c0_9 = arith.constant 0 : index
      %9 = vector.load %arg5[%c0_8, %c0_9] : memref<1x128xf32, #tpu.memory_space<vmem>>, vector<1x128xf32>
      %10 = vector.shape_cast %9 : vector<1x128xf32> to vector<1x128xf32>
      %11 = vector.broadcast %10 : vector<1x128xf32> to vector<16x128xf32>
      %c0_10 = arith.constant 0 : index
      %c0_11 = arith.constant 0 : index
      %12 = vector.load %arg6[%c0_10, %c0_11] : memref<16x128xf32, #tpu.memory_space<vmem>>, vector<16x128xf32>
      tpu.vector_store %arg6[%c0_10, %c0_11], %11 {strides = array<i32>} : memref<16x128xf32, #tpu.memory_space<vmem>>, vector<16x128xf32>,
    } else {
    }
    %c0 = arith.constant 0 : index
    %c0_1 = arith.constant 0 : index
    %3 = vector.load %arg6[%c0, %c0_1] : memref<16x128xf32, #tpu.memory_space<vmem>>, vector<16x128xf32>
    %c0_2 = arith.constant 0 : index
    %c0_3 = arith.constant 0 : index
    %4 = vector.load %arg3[%c0_2, %c0_3] : memref<16x512xbf16, #tpu.memory_space<vmem>>, vector<16x512xbf16>
    %c0_4 = arith.constant 0 : index
    %c0_5 = arith.constant 0 : index
    %5 = vector.load %arg4[%c0_4, %c0_5] : memref<512x128xbf16, #tpu.memory_space<vmem>>, vector<512x128xbf16>
    %cst = arith.constant dense<0.000000e+00> : vector<16x128xf32>
    %6 = tpu.matmul %4, %5, %cst {dimension_numbers = #tpu.dot_dimension_numbers<[1], [0], [0], [1], [0, 0, 1, 1], [], []>} : vector<16x512xbf16>, vector<512x128xbf16>, vector<16x128xf32> -> vector<16x128xf32>
    %7 = arith.addf %3, %6 : vector<16x128xf32>
    %c0_6 = arith.constant 0 : index
    %c0_7 = arith.constant 0 : index
    %8 = vector.load %arg6[%c0_6, %c0_7] : memref<16x128xf32, #tpu.memory_space<vmem>>, vector<16x128xf32>
    tpu.vector_store %arg6[%c0_6, %c0_7], %7 {strides = array<i32>} : memref<16x128xf32, #tpu.memory_space<vmem>>, vector<16x128xf32>,
    return
  }
  func.func @transform_0(%arg0: i32, %arg1: i32, %arg2: i32) -> (i32, i32) {
    %c0_i32 = arith.constant 0 : i32
    return %arg0, %arg2 : i32, i32
  }
  func.func @transform_1(%arg0: i32, %arg1: i32, %arg2: i32) -> (i32, i32) {
    %c0_i32 = arith.constant 0 : i32
    return %arg2, %arg1 : i32, i32
  }
  func.func @transform_2(%arg0: i32, %arg1: i32, %arg2: i32) -> (i32, i32) {
    %c0_i32 = arith.constant 0 : i32
    %c0_i32_0 = arith.constant 0 : i32
    return %c0_i32, %arg1 : i32, i32
  }
  func.func @transform_3(%arg0: i32, %arg1: i32, %arg2: i32) -> (i32, i32) {
    %c0_i32 = arith.constant 0 : i32
    return %arg0, %arg1 : i32, i32
  }
}

</mosaic_0001>

<llo_original>
// kernel: cnn_forward.6
$region0: #{cnn_forward.6}
  #allocation0 [shape = 'u32[]', space=smem, size = 0x4, offset = 0x4, fixed_abs, tag = 'smem constant byte address 0x4 - core index']
  #allocation1 [shape = 'u32[144,128]{1,0:T(1,128)}', space=vmem, size = 0x12000, scoped, tag = 'internal scratch']
  %s0 = inlined_call_operand.vmem [shape: bf16[1872,128], index: 0, kind: input, shape index: {}]
  %s1 = inlined_call_operand.vmem [shape: bf16[128,128], index: 1, kind: input, shape index: {}]
  %s2 = inlined_call_operand.vmem [shape: f32[1,128], index: 2, kind: input, shape index: {}]
  %s3 = inlined_call_operand.vmem [shape: f32[1872,128], index: 3, kind: output, shape index: {}]
  %s4 = sld [smem:[#allocation0]]
  $region53: #{cnn_forward.6} parent=0
    _
  %s6 = ssub.s32 1, %s4
  %s7 = scalar_select 0, %s6, %s4
  loop: start=0, step=1, limit=11
  $region2: #{cnn_forward.6} parent=0 // loop_pre_header
    _
  $region3: #{cnn_forward.6} parent=0 // loop_header
    %s9 = sphi 0, %s13
    %p10 = scmp.ge.s32.totalorder %s9, 11
    %s16 = sphi 0, %s35
    %s17 = sphi 0, %s31
    %s18 = sphi 0, %s27
    %s19 = sphi 0, %s16
    %s20 = sphi 0, %s17
    %s21 = sphi 0, %s18
    %s22 = sphi 0, %s19
    %s23 = sphi 0, %s20
    %s24 = sphi 0, %s21
    %s40 = sphi 0, %s42
    %s43 = sphi 0, %s40
    %s44 = sphi 0, %s43
    %s60 = sphi 0, %s44
    %s68 = sphi 0, %s70
    %s71 = sphi 0, %s68
    %s72 = sphi 0, %s71
    %s88 = sphi 0, %s72
    %s94 = sphi 0, %s96
    %s97 = sphi 0, %s94
    %s98 = sphi 0, %s97
    %s114 = sphi 0, %s98
    %s122 = sphi 0, %s124
    %s125 = sphi 0, %s122
    %s126 = sphi 0, %s125
    %s142 = sphi 0, %s126
  $region4: #{cnn_forward.6} parent=0 // loop_header_branch
    %12 = sbr.rel (%p10) target = $region8
  $region5: #{cnn_forward.6} parent=0 // loop_body
    %s14 = ssub.s32 %s9, 1
    %s15 = ssub.s32 %s9, 2
    %s25 = sadd.s32 1, %s18
    %p26 = scmp.ge.s32.totalorder %s25, 1
    %s27 = scalar_select %p26, 0, %s25
    %s28 = sadd.s32 1, %s17
    %s29 = scalar_select %p26, %s28, %s17
    %p30 = scmp.ge.s32.totalorder %s29, 1
    %s31 = scalar_select %p30, 0, %s29
    %s32 = sadd.s32 1, %s16
    %s33 = scalar_select %p30, %s32, %s16
    %p34 = scmp.ge.s32.totalorder %s33, 9
    %s35 = scalar_select %p34, 0, %s33
    %s36 = ssub.s32 %s16, %s35
    %s37 = ssub.s32 %s18, %s27
    %s38 = sor.u32 %s36, %s37
    %p39 = scmp.eq.s32.totalorder %s38, 0
    %s41 = sadd.s32 %s40, 1
    %s42 = scalar_select %p39, %s40, %s41
    %p45 = pneg %p39
    %p46 = scmp.eq.s32.totalorder %s9, 8
    %p47 = por %p45, %p46
    %p48 = scmp.ne.s32.totalorder %s40, %s43
    %p49 = scmp.eq.s32.totalorder %s9, 0
    %p50 = por %p48, %p49
    %p51 = scmp.ne.s32.totalorder %s40, %s43
    %p52 = scmp.eq.s32.totalorder %s14, 8
    %p53 = por %p51, %p52
    %p54 = scmp.ne.s32.totalorder %s43, %s44
    %p55 = scmp.eq.s32.totalorder %s14, 0
    %p56 = por %p54, %p55
    %p57 = scmp.ne.s32.totalorder %s43, %s44
    %p58 = scmp.eq.s32.totalorder %s15, 8
    %p59 = por %p57, %p58
    %p61 = scmp.ne.s32.totalorder %s44, %s60
    %p62 = scmp.eq.s32.totalorder %s15, 0
    %p63 = por %p61, %p62
    %s64 = ssub.s32 %s18, %s27
    %s65 = ssub.s32 %s17, %s31
    %s66 = sor.u32 %s64, %s65
    %p67 = scmp.eq.s32.totalorder %s66, 0
    %s69 = sadd.s32 %s68, 1
    %s70 = scalar_select %p67, %s68, %s69
    %p73 = pneg %p67
    %p74 = scmp.eq.s32.totalorder %s9, 8
    %p75 = por %p73, %p74
    %p76 = scmp.ne.s32.totalorder %s68, %s71
    %p77 = scmp.eq.s32.totalorder %s9, 0
    %p78 = por %p76, %p77
    %p79 = scmp.ne.s32.totalorder %s68, %s71
    %p80 = scmp.eq.s32.totalorder %s14, 8
    %p81 = por %p79, %p80
    %p82 = scmp.ne.s32.totalorder %s71, %s72
    %p83 = scmp.eq.s32.totalorder %s14, 0
    %p84 = por %p82, %p83
    %p85 = scmp.ne.s32.totalorder %s71, %s72
    %p86 = scmp.eq.s32.totalorder %s15, 8
    %p87 = por %p85, %p86
    %p89 = scmp.ne.s32.totalorder %s72, %s88
    %p90 = scmp.eq.s32.totalorder %s15, 0
    %p91 = por %p89, %p90
    %s92 = ssub.s32 %s17, %s31
    %p93 = scmp.eq.s32.totalorder %s92, 0
    %s95 = sadd.s32 %s94, 1
    %s96 = scalar_select %p93, %s94, %s95
    %p99 = pneg %p93
    %p100 = scmp.eq.s32.totalorder %s9, 8
    %p101 = por %p99, %p100
    %p102 = scmp.ne.s32.totalorder %s94, %s97
    %p103 = scmp.eq.s32.totalorder %s9, 0
    %p104 = por %p102, %p103
    %p105 = scmp.ne.s32.totalorder %s94, %s97
    %p106 = scmp.eq.s32.totalorder %s14, 8
    %p107 = por %p105, %p106
    %p108 = scmp.ne.s32.totalorder %s97, %s98
    %p109 = scmp.eq.s32.totalorder %s14, 0
    %p110 = por %p108, %p109
    %p111 = scmp.ne.s32.totalorder %s97, %s98
    %p112 = scmp.eq.s32.totalorder %s15, 8
    %p113 = por %p111, %p112
    %p115 = scmp.ne.s32.totalorder %s98, %s114
    %p116 = scmp.eq.s32.totalorder %s15, 0
    %p117 = por %p115, %p116
    %s118 = ssub.s32 %s16, %s35
    %s119 = ssub.s32 %s17, %s31
    %s120 = sor.u32 %s118, %s119
    %p121 = scmp.eq.s32.totalorder %s120, 0
    %s123 = sadd.s32 %s122, 1
    %s124 = scalar_select %p121, %s122, %s123
    %p127 = pneg %p121
    %p128 = scmp.eq.s32.totalorder %s9, 8
    %p129 = por %p127, %p128
    %p130 = scmp.ne.s32.totalorder %s122, %s125
    %p131 = scmp.eq.s32.totalorder %s9, 0
    %p132 = por %p130, %p131
    %p133 = scmp.ne.s32.totalorder %s122, %s125
    %p134 = scmp.eq.s32.totalorder %s14, 8
    %p135 = por %p133, %p134
    %p136 = scmp.ne.s32.totalorder %s125, %s126
    %p137 = scmp.eq.s32.totalorder %s14, 0
    %p138 = por %p136, %p137
    %p139 = scmp.ne.s32.totalorder %s125, %s126
    %p140 = scmp.eq.s32.totalorder %s15, 8
    %p141 = por %p139, %p140
    %p143 = scmp.ne.s32.totalorder %s126, %s142
    %p144 = scmp.eq.s32.totalorder %s15, 0
    %p145 = por %p143, %p144
    %p146 = scmp.le.s32.totalorder 1, %s9
    %p147 = scmp.lt.s32.totalorder %s9, 10
    %p148 = pnand %p146, %p147
    %p149 = pneg %p148
    // Predicated region
    $region9: #{cnn_forward.6} parent=5 // pred_check
      _
    $region10: #{cnn_forward.6} parent=5 // pred_check_branch
      %151 = sbr.rel (%p148) target = $region12
    $region11: #{cnn_forward.6} parent=5 // pred_region
      %s152 = ssub.s32 %s9, 1
      // Predicated region
      $region13: #{cnn_forward.6} parent=11 // pred_check
        %p153 = pneg %p84
      $region14: #{cnn_forward.6} parent=11 // pred_check_branch
        %155 = sbr.rel (%p153) target = $region16
      $region15: #{cnn_forward.6} parent=11 // pred_region
        %s156 = smul.u32 16, %s21
        %p157 = scmp.lt.s32.totalorder %s156, 15
        %s158 = scalar_select %p157, %s156, 15
        %p159 = scmp.lt.s32.totalorder %s20, 0
        %s160 = scalar_select %p159, %s20, 0
        %s161 = sadd.s32 %s160, %s158
        %s162 = smul.addr %s161, 4
        %s163 = scalar_lea.vmem %s1, %s162
        %s164 = smul.u32 16, %s21
      $region16: #{cnn_forward.6} parent=11 // pred_fallthru
        _
      // Predicated region
      $region17: #{cnn_forward.6} parent=11 // pred_check
        %p165 = pneg %p110
      $region18: #{cnn_forward.6} parent=11 // pred_check_branch
        %167 = sbr.rel (%p165) target = $region20
      $region19: #{cnn_forward.6} parent=11 // pred_region
        %p168 = scmp.lt.s32.totalorder %s20, 0
        %s169 = scalar_select %p168, %s20, 0
        %s170 = scalar_lea.vmem %s2, %s169
      $region20: #{cnn_forward.6} parent=11 // pred_fallthru
        _
    $region12: #{cnn_forward.6} parent=5 // pred_fallthru
      _
    %p171 = scmp.lt.s32.totalorder %s9, 9
    // Predicated region
    $region21: #{cnn_forward.6} parent=5 // pred_check
      %p172 = pneg %p171
    $region22: #{cnn_forward.6} parent=5 // pred_check_branch
      %174 = sbr.rel (%p172) target = $region24
    $region23: #{cnn_forward.6} parent=5 // pred_region
      // Predicated region
      $region25: #{cnn_forward.6} parent=23 // pred_check
        %p175 = pneg %p50
      $region26: #{cnn_forward.6} parent=23 // pred_check_branch
        %177 = sbr.rel (%p175) target = $region28
      $region27: #{cnn_forward.6} parent=23 // pred_region
        %s178 = smul.u32 26, %s16
        %p179 = scmp.lt.s32.totalorder %s178, 233
        %s180 = scalar_select %p179, %s178, 233
        %p181 = scmp.lt.s32.totalorder %s18, 0
        %s182 = scalar_select %p181, %s18, 0
        %s183 = sadd.s32 %s182, %s180
        %s184 = smul.addr %s183, 4
        %s185 = scalar_lea.vmem %s0, %s184
        %s186 = smul.u32 26, %s16
      $region28: #{cnn_forward.6} parent=23 // pred_fallthru
        _
    $region24: #{cnn_forward.6} parent=5 // pred_fallthru
      _
    %p187 = scmp.le.s32.totalorder 1, %s9
    %p188 = scmp.lt.s32.totalorder %s9, 10
    %p189 = pnand %p187, %p188
    %p190 = pneg %p189
    // Predicated region
    $region29: #{cnn_forward.6} parent=5 // pred_check
      _
    $region30: #{cnn_forward.6} parent=5 // pred_check_branch
      %192 = sbr.rel (%p189) target = $region32
    $region31: #{cnn_forward.6} parent=5 // pred_region
      %s193 = ssub.s32 %s9, 1
      %s194 = smul.u32 26, %s19
      %p195 = scmp.lt.s32.totalorder %s194, 233
      %s196 = scalar_select %p195, %s194, 233
      %p197 = scmp.lt.s32.totalorder %s21, 0
      %s198 = scalar_select %p197, %s21, 0
      %s199 = sadd.s32 %s198, %s196
      %s200 = smul.addr %s199, 4
      %s201 = scalar_lea.vmem %s0, %s200
      %p202 = pneg %p56
      %p203 = pneg %p53
      %s204 = smul.u32 16, %s21
      %p205 = scmp.lt.s32.totalorder %s204, 15
      %s206 = scalar_select %p205, %s204, 15
      %p207 = scmp.lt.s32.totalorder %s20, 0
      %s208 = scalar_select %p207, %s20, 0
      %s209 = sadd.s32 %s208, %s206
      %s210 = smul.addr %s209, 4
      %s211 = scalar_lea.vmem %s1, %s210
      %p212 = pneg %p84
      %p213 = pneg %p81
      %p214 = scmp.lt.s32.totalorder %s20, 0
      %s215 = scalar_select %p214, %s20, 0
      %s216 = scalar_lea.vmem %s2, %s215
      %p217 = pneg %p110
      %p218 = pneg %p107
      %p219 = pneg %p138
      %p220 = pneg %p135
      %s221 = smul.u32 26, %s19
      %p222 = scmp.lt.s32.totalorder %s221, 233
      %s223 = scalar_select %p222, %s221, 233
      %p224 = scmp.lt.s32.totalorder %s20, 0
      %s225 = scalar_select %p224, %s20, 0
      %s226 = sadd.s32 %s225, %s223
      %s227 = smul.addr %s226, 8
      %s228 = scalar_lea.vmem %s3, %s227
      %s229 = smul.u32 26, %s19
      %p230 = scmp.lt.s32.totalorder %s229, 233
      %s231 = scalar_select %p230, %s229, 233
      %p232 = scmp.lt.s32.totalorder %s21, 0
      %s233 = scalar_select %p232, %s21, 0
      %s234 = sadd.s32 %s233, %s231
      %s235 = smul.addr %s234, 4
      %s236 = scalar_lea.vmem %s0, %s235
      %s237 = smul.u32 26, %s19
      %s238 = smul.u32 16, %s21
      %p239 = scmp.lt.s32.totalorder %s238, 15
      %s240 = scalar_select %p239, %s238, 15
      %p241 = scmp.lt.s32.totalorder %s20, 0
      %s242 = scalar_select %p241, %s20, 0
      %s243 = sadd.s32 %s242, %s240
      %s244 = smul.addr %s243, 4
      %s245 = scalar_lea.vmem %s1, %s244
      %s246 = smul.u32 16, %s21
      %p247 = scmp.lt.s32.totalorder %s20, 0
      %s248 = scalar_select %p247, %s20, 0
      %s249 = scalar_lea.vmem %s2, %s248
      %s250 = smul.u32 26, %s19
      %p251 = scmp.lt.s32.totalorder %s250, 233
      %s252 = scalar_select %p251, %s250, 233
      %p253 = scmp.lt.s32.totalorder %s20, 0
      %s254 = scalar_select %p253, %s20, 0
      %s255 = sadd.s32 %s254, %s252
      %s256 = smul.addr %s255, 8
      %s257 = scalar_lea.vmem %s3, %s256
      %s258 = smul.u32 26, %s19
      %p260 = scmp.eq.s32.totalorder %s21, 0
      // Predicated region
      $region33: #{cnn_forward.6} parent=31 // pred_check
        %p261 = pneg %p260
      $region34: #{cnn_forward.6} parent=31 // pred_check_branch
        %263 = sbr.rel (%p261) target = $region36
      $region35: #{cnn_forward.6} parent=31 // pred_region
        %v264 = vld [vmem:[%s249] sm:$0x1]
        %v266 = vlaneseq
        %v267 = vshrl.u32 %v266, 7
        %v268 = vsub.s32 0, %v267
        %v269 = vrot.slane %v264, %v268
        %271 = vst [vmem:[%s257] sm:$0xff] %v269
        %272 = vst [vmem:[%s257 + $0x8] sm:$0xff] %v269
        %273 = vst [vmem:[%s257 + $0x10] sm:$0xff] %v269
        %274 = vst [vmem:[%s257 + $0x18] sm:$0xff] %v269
        %275 = vst [vmem:[%s257 + $0x20] sm:$0xff] %v269
        %276 = vst [vmem:[%s257 + $0x28] sm:$0xff] %v269
        %277 = vst [vmem:[%s257 + $0x30] sm:$0xff] %v269
        %278 = vst [vmem:[%s257 + $0x38] sm:$0xff] %v269
        %279 = vst [vmem:[%s257 + $0x40] sm:$0xff] %v269
        %280 = vst [vmem:[%s257 + $0x48] sm:$0xff] %v269
        %281 = vst [vmem:[%s257 + $0x50] sm:$0xff] %v269
        %282 = vst [vmem:[%s257 + $0x58] sm:$0xff] %v269
        %283 = vst [vmem:[%s257 + $0x60] sm:$0xff] %v269
        %284 = vst [vmem:[%s257 + $0x68] sm:$0xff] %v269
        %285 = vst [vmem:[%s257 + $0x70] sm:$0xff] %v269
        %286 = vst [vmem:[%s257 + $0x78] sm:$0xff] %v269
        %287 = vst [vmem:[%s257 + $0x80] sm:$0xff] %v269
        %288 = vst [vmem:[%s257 + $0x88] sm:$0xff] %v269
        %289 = vst [vmem:[%s257 + $0x90] sm:$0xff] %v269
        %290 = vst [vmem:[%s257 + $0x98] sm:$0xff] %v269
        %291 = vst [vmem:[%s257 + $0xa0] sm:$0xff] %v269
        %292 = vst [vmem:[%s257 + $0xa8] sm:$0xff] %v269
        %293 = vst [vmem:[%s257 + $0xb0] sm:$0xff] %v269
        %294 = vst [vmem:[%s257 + $0xb8] sm:$0xff] %v269
        %295 = vst [vmem:[%s257 + $0xc0] sm:$0xff] %v269
        %296 = vst [vmem:[%s257 + $0xc8] sm:$0xff] %v269
      $region36: #{cnn_forward.6} parent=31 // pred_fallthru
        _
      %v297 = vld [vmem:[%s257] sm:$0xff]
      %v298 = vld [vmem:[%s257 + $0x8] sm:$0xff]
      %v299 = vld [vmem:[%s257 + $0x10] sm:$0xff]
      %v300 = vld [vmem:[%s257 + $0x18] sm:$0xff]
      %v301 = vld [vmem:[%s257 + $0x20] sm:$0xff]
      %v302 = vld [vmem:[%s257 + $0x28] sm:$0xff]
      %v303 = vld [vmem:[%s257 + $0x30] sm:$0xff]
      %v304 = vld [vmem:[%s257 + $0x38] sm:$0xff]
      %v305 = vld [vmem:[%s257 + $0x40] sm:$0xff]
      %v306 = vld [vmem:[%s257 + $0x48] sm:$0xff]
      %v307 = vld [vmem:[%s257 + $0x50] sm:$0xff]
      %v308 = vld [vmem:[%s257 + $0x58] sm:$0xff]
      %v309 = vld [vmem:[%s257 + $0x60] sm:$0xff]
      %v310 = vld [vmem:[%s257 + $0x68] sm:$0xff]
      %v311 = vld [vmem:[%s257 + $0x70] sm:$0xff]
      %v312 = vld [vmem:[%s257 + $0x78] sm:$0xff]
      %v313 = vld [vmem:[%s257 + $0x80] sm:$0xff]
      %v314 = vld [vmem:[%s257 + $0x88] sm:$0xff]
      %v315 = vld [vmem:[%s257 + $0x90] sm:$0xff]
      %v316 = vld [vmem:[%s257 + $0x98] sm:$0xff]
      %v317 = vld [vmem:[%s257 + $0xa0] sm:$0xff]
      %v318 = vld [vmem:[%s257 + $0xa8] sm:$0xff]
      %v319 = vld [vmem:[%s257 + $0xb0] sm:$0xff]
      %v320 = vld [vmem:[%s257 + $0xb8] sm:$0xff]
      %v321 = vld [vmem:[%s257 + $0xc0] sm:$0xff]
      %v322 = vld [vmem:[%s257 + $0xc8] sm:$0xff]
      %v323 = vld [vmem:[%s236] sm:$0xf]
      %v324 = vld [vmem:[%s236 + $0x4] sm:$0xf]
      %v325 = vld [vmem:[%s236 + $0x8] sm:$0xf]
      %v326 = vld [vmem:[%s236 + $0xc] sm:$0xf]
      %v327 = vld [vmem:[%s236 + $0x10] sm:$0xf]
      %v328 = vld [vmem:[%s236 + $0x14] sm:$0xf]
      %v329 = vld [vmem:[%s236 + $0x18] sm:$0xf]
      %v330 = vld [vmem:[%s236 + $0x1c] sm:$0xf]
      %v331 = vld [vmem:[%s236 + $0x20] sm:$0xf]
      %v332 = vld [vmem:[%s236 + $0x24] sm:$0xf]
      %v333 = vld [vmem:[%s236 + $0x28] sm:$0xf]
      %v334 = vld [vmem:[%s236 + $0x2c] sm:$0xf]
      %v335 = vld [vmem:[%s236 + $0x30] sm:$0xf]
      %v336 = vld [vmem:[%s236 + $0x34] sm:$0xf]
      %v337 = vld [vmem:[%s236 + $0x38] sm:$0xf]
      %v338 = vld [vmem:[%s236 + $0x3c] sm:$0xf]
      %v339 = vld [vmem:[%s236 + $0x40] sm:$0xf]
      %v340 = vld [vmem:[%s236 + $0x44] sm:$0xf]
      %v341 = vld [vmem:[%s236 + $0x48] sm:$0xf]
      %v342 = vld [vmem:[%s236 + $0x4c] sm:$0xf]
      %v343 = vld [vmem:[%s236 + $0x50] sm:$0xf]
      %v344 = vld [vmem:[%s236 + $0x54] sm:$0xf]
      %v345 = vld [vmem:[%s236 + $0x58] sm:$0xf]
      %v346 = vld [vmem:[%s236 + $0x5c] sm:$0xf]
      %v347 = vld [vmem:[%s236 + $0x60] sm:$0xf]
      %v348 = vld [vmem:[%s236 + $0x64] sm:$0xf]
      %v349 = vld [vmem:[%s245] sm:$0xf]
      %v350 = vld [vmem:[%s245 + $0x4] sm:$0xf]
      %v351 = vld [vmem:[%s245 + $0x8] sm:$0xf]
      %v352 = vld [vmem:[%s245 + $0xc] sm:$0xf]
      %v353 = vld [vmem:[%s245 + $0x10] sm:$0xf]
      %v354 = vld [vmem:[%s245 + $0x14] sm:$0xf]
      %v355 = vld [vmem:[%s245 + $0x18] sm:$0xf]
      %v356 = vld [vmem:[%s245 + $0x1c] sm:$0xf]
      %v357 = vld [vmem:[%s245 + $0x20] sm:$0xf]
      %v358 = vld [vmem:[%s245 + $0x24] sm:$0xf]
      %v359 = vld [vmem:[%s245 + $0x28] sm:$0xf]
      %v360 = vld [vmem:[%s245 + $0x2c] sm:$0xf]
      %v361 = vld [vmem:[%s245 + $0x30] sm:$0xf]
      %v362 = vld [vmem:[%s245 + $0x34] sm:$0xf]
      %v363 = vld [vmem:[%s245 + $0x38] sm:$0xf]
      %v364 = vld [vmem:[%s245 + $0x3c] sm:$0xf]
      %v391 = vunpack.c.l.b16 %v323
      %v392 = vunpack.c.l.b16 %v324
      %v393 = vunpack.c.l.b16 %v325
      %v394 = vunpack.c.l.b16 %v326
      %v395 = vunpack.c.l.b16 %v327
      %v396 = vunpack.c.l.b16 %v328
      %v397 = vunpack.c.l.b16 %v329
      %v398 = vunpack.c.l.b16 %v330
      %v399 = vunpack.c.l.b16 %v331
      %v400 = vunpack.c.l.b16 %v332
      %v401 = vunpack.c.l.b16 %v333
      %v402 = vunpack.c.l.b16 %v334
      %v403 = vunpack.c.l.b16 %v335
      %v404 = vunpack.c.l.b16 %v336
      %v405 = vunpack.c.l.b16 %v337
      %v406 = vunpack.c.l.b16 %v338
      %v407 = vunpack.c.l.b16 %v339
      %v408 = vunpack.c.l.b16 %v340
      %v409 = vunpack.c.l.b16 %v341
      %v410 = vunpack.c.l.b16 %v342
      %v411 = vunpack.c.l.b16 %v343
      %v412 = vunpack.c.l.b16 %v344
      %v413 = vunpack.c.l.b16 %v345
      %v414 = vunpack.c.l.b16 %v346
      %v415 = vunpack.c.l.b16 %v347
      %v416 = vunpack.c.l.b16 %v348
      %v417 = vpack.c.b16 %v392, %v391
      %v418 = vpack.c.b16 %v394, %v393
      %v419 = vpack.c.b16 %v396, %v395
      %v420 = vpack.c.b16 %v398, %v397
      %v421 = vpack.c.b16 %v400, %v399
      %v422 = vpack.c.b16 %v402, %v401
      %v423 = vpack.c.b16 %v404, %v403
      %v424 = vpack.c.b16 %v406, %v405
      %v425 = vpack.c.b16 %v408, %v407
      %v426 = vpack.c.b16 %v410, %v409
      %v427 = vpack.c.b16 %v412, %v411
      %v428 = vpack.c.b16 %v414, %v413
      %v429 = vpack.c.b16 %v416, %v415
      %v459 = vunpack.c.l.b16 %v349
      %v460 = vunpack.c.l.b16 %v350
      %v461 = vunpack.c.l.b16 %v351
      %v462 = vunpack.c.l.b16 %v352
      %v463 = vunpack.c.l.b16 %v353
      %v464 = vunpack.c.l.b16 %v354
      %v465 = vunpack.c.l.b16 %v355
      %v466 = vunpack.c.l.b16 %v356
      %v467 = vunpack.c.l.b16 %v357
      %v468 = vunpack.c.l.b16 %v358
      %v469 = vunpack.c.l.b16 %v359
      %v470 = vunpack.c.l.b16 %v360
      %v471 = vunpack.c.l.b16 %v361
      %v472 = vunpack.c.l.b16 %v362
      %v473 = vunpack.c.l.b16 %v363
      %v474 = vunpack.c.l.b16 %v364
      %v475 = vpack.c.b16 %v460, %v459
      %v476 = vpack.c.b16 %v462, %v461
      %v477 = vpack.c.b16 %v464, %v463
      %v478 = vpack.c.b16 %v466, %v465
      %v479 = vpack.c.b16 %v468, %v467
      %v480 = vpack.c.b16 %v470, %v469
      %v481 = vpack.c.b16 %v472, %v471
      %v482 = vpack.c.b16 %v474, %v473
      %491 = vmatprep.subr.bf16.mxu0 0
      %492 = vmatpush1.bf16.msra.mxu0 %v475
      %493 = vmatprep.subr.bf16.mxu0 0
      %494 = vmatpush1.bf16.msra.mxu0 %v476
      %495 = vmatprep.subr.bf16.mxu0 0
      %496 = vmatpush1.bf16.msra.mxu0 %v477
      %497 = vmatprep.subr.bf16.mxu0 0
      %498 = vmatpush1.bf16.msra.mxu0 %v478
      %499 = vmatprep.subr.bf16.mxu0 0
      %500 = vmatpush1.bf16.msra.mxu0 %v479
      %501 = vmatprep.subr.bf16.mxu0 0
      %502 = vmatpush1.bf16.msra.mxu0 %v480
      %503 = vmatprep.subr.bf16.mxu0 0
      %504 = vmatpush1.bf16.msra.mxu0 %v481
      %505 = vmatprep.subr.bf16.mxu0 0
      %506 = vmatpush1.bf16.msra.mxu0 %v482
      %507 = vmatprep.subr.bf16.mxu0 0
      %508 = vmatpush1.bf16.msra.mxu0 0
      %509 = vmatprep.subr.bf16.mxu0 0
      %510 = vmatpush1.bf16.msra.mxu0 0
      %511 = vmatprep.subr.bf16.mxu0 0
      %512 = vmatpush1.bf16.msra.mxu0 0
      %513 = vmatprep.subr.bf16.mxu0 0
      %514 = vmatpush1.bf16.msra.mxu0 0
      %515 = vmatprep.subr.bf16.mxu0 0
      %516 = vmatpush1.bf16.msra.mxu0 0
      %517 = vmatprep.subr.bf16.mxu0 0
      %518 = vmatpush1.bf16.msra.mxu0 0
      %519 = vmatprep.subr.bf16.mxu0 0
      %520 = vmatpush1.bf16.msra.mxu0 0
      %521 = vmatprep.subr.bf16.mxu0 0
      %522 = vmatpush1.bf16.msra.mxu0 0
      %523 = vmatprep.mubr.bf16.mxu0 0
      %524 = vmatmul.mubr.bf16.gmra.mrb[0].mxu0 %v417
      %v525 = vpop.f32.mrb[0].mxu0
      %v526 = vadd.f32 0.0, %v525
      %v527 = vpop.f32.mrb[0].mxu0
      %v528 = vpop.f32.mrb[0].mxu0
      %v529 = vadd.f32 0.0, %v528
      %v530 = vpop.f32.mrb[0].mxu0
      %531 = vmatprep.mubr.bf16.mxu0 0
      %532 = vmatmul.mubr.bf16.gmra.mrb[0].mxu0 %v418
      %v533 = vpop.f32.mrb[0].mxu0
      %v534 = vadd.f32 0.0, %v533
      %v535 = vpop.f32.mrb[0].mxu0
      %v536 = vpop.f32.mrb[0].mxu0
      %v537 = vadd.f32 0.0, %v536
      %v538 = vpop.f32.mrb[0].mxu0
      %539 = vmatprep.mubr.bf16.mxu0 0
      %540 = vmatmul.mubr.bf16.gmra.mrb[0].mxu0 %v419
      %v541 = vpop.f32.mrb[0].mxu0
      %v542 = vadd.f32 0.0, %v541
      %v543 = vpop.f32.mrb[0].mxu0
      %v544 = vpop.f32.mrb[0].mxu0
      %v545 = vadd.f32 0.0, %v544
      %v546 = vpop.f32.mrb[0].mxu0
      %547 = vmatprep.mubr.bf16.mxu0 0
      %548 = vmatmul.mubr.bf16.gmra.mrb[0].mxu0 %v420
      %v549 = vpop.f32.mrb[0].mxu0
      %v550 = vadd.f32 0.0, %v549
      %v551 = vpop.f32.mrb[0].mxu0
      %v552 = vpop.f32.mrb[0].mxu0
      %v553 = vadd.f32 0.0, %v552
      %v554 = vpop.f32.mrb[0].mxu0
      %555 = vmatprep.mubr.bf16.mxu0 0
      %556 = vmatmul.mubr.bf16.gmra.mrb[0].mxu0 %v421
      %v557 = vpop.f32.mrb[0].mxu0
      %v558 = vadd.f32 0.0, %v557
      %v559 = vpop.f32.mrb[0].mxu0
      %v560 = vpop.f32.mrb[0].mxu0
      %v561 = vadd.f32 0.0, %v560
      %v562 = vpop.f32.mrb[0].mxu0
      %563 = vmatprep.mubr.bf16.mxu0 0
      %564 = vmatmul.mubr.bf16.gmra.mrb[0].mxu0 %v422
      %v565 = vpop.f32.mrb[0].mxu0
      %v566 = vadd.f32 0.0, %v565
      %v567 = vpop.f32.mrb[0].mxu0
      %v568 = vpop.f32.mrb[0].mxu0
      %v569 = vadd.f32 0.0, %v568
      %v570 = vpop.f32.mrb[0].mxu0
      %571 = vmatprep.mubr.bf16.mxu0 0
      %572 = vmatmul.mubr.bf16.gmra.mrb[0].mxu0 %v423
      %v573 = vpop.f32.mrb[0].mxu0
      %v574 = vadd.f32 0.0, %v573
      %v575 = vpop.f32.mrb[0].mxu0
      %v576 = vpop.f32.mrb[0].mxu0
      %v577 = vadd.f32 0.0, %v576
      %v578 = vpop.f32.mrb[0].mxu0
      %579 = vmatprep.mubr.bf16.mxu0 0
      %580 = vmatmul.mubr.bf16.gmra.mrb[0].mxu0 %v424
      %v581 = vpop.f32.mrb[0].mxu0
      %v582 = vadd.f32 0.0, %v581
      %v583 = vpop.f32.mrb[0].mxu0
      %v584 = vpop.f32.mrb[0].mxu0
      %v585 = vadd.f32 0.0, %v584
      %v586 = vpop.f32.mrb[0].mxu0
      %587 = vmatprep.mubr.bf16.mxu0 0
      %588 = vmatmul.mubr.bf16.gmra.mrb[0].mxu0 %v425
      %v589 = vpop.f32.mrb[0].mxu0
      %v590 = vadd.f32 0.0, %v589
      %v591 = vpop.f32.mrb[0].mxu0
      %v592 = vpop.f32.mrb[0].mxu0
      %v593 = vadd.f32 0.0, %v592
      %v594 = vpop.f32.mrb[0].mxu0
      %595 = vmatprep.mubr.bf16.mxu0 0
      %596 = vmatmul.mubr.bf16.gmra.mrb[0].mxu0 %v426
      %v597 = vpop.f32.mrb[0].mxu0
      %v598 = vadd.f32 0.0, %v597
      %v599 = vpop.f32.mrb[0].mxu0
      %v600 = vpop.f32.mrb[0].mxu0
      %v601 = vadd.f32 0.0, %v600
      %v602 = vpop.f32.mrb[0].mxu0
      %603 = vmatprep.mubr.bf16.mxu0 0
      %604 = vmatmul.mubr.bf16.gmra.mrb[0].mxu0 %v427
      %v605 = vpop.f32.mrb[0].mxu0
      %v606 = vadd.f32 0.0, %v605
      %v607 = vpop.f32.mrb[0].mxu0
      %v608 = vpop.f32.mrb[0].mxu0
      %v609 = vadd.f32 0.0, %v608
      %v610 = vpop.f32.mrb[0].mxu0
      %611 = vmatprep.mubr.bf16.mxu0 0
      %612 = vmatmul.mubr.bf16.gmra.mrb[0].mxu0 %v428
      %v613 = vpop.f32.mrb[0].mxu0
      %v614 = vadd.f32 0.0, %v613
      %v615 = vpop.f32.mrb[0].mxu0
      %v616 = vpop.f32.mrb[0].mxu0
      %v617 = vadd.f32 0.0, %v616
      %v618 = vpop.f32.mrb[0].mxu0
      %619 = vmatprep.mubr.bf16.mxu0 0
      %620 = vmatmul.mubr.bf16.gmra.mrb[0].mxu0 %v429
      %v621 = vpop.f32.mrb[0].mxu0
      %v622 = vadd.f32 0.0, %v621
      %v623 = vpop.f32.mrb[0].mxu0
      %v624 = vpop.f32.mrb[0].mxu0
      %v625 = vadd.f32 0.0, %v624
      %v626 = vpop.f32.mrb[0].mxu0
      %627 = vdwg.mxu0
      %v628 = vadd.f32 %v297, %v526
      %v629 = vadd.f32 %v298, %v529
      %v630 = vadd.f32 %v299, %v534
      %v631 = vadd.f32 %v300, %v537
      %v632 = vadd.f32 %v301, %v542
      %v633 = vadd.f32 %v302, %v545
      %v634 = vadd.f32 %v303, %v550
      %v635 = vadd.f32 %v304, %v553
      %v636 = vadd.f32 %v305, %v558
      %v637 = vadd.f32 %v306, %v561
      %v638 = vadd.f32 %v307, %v566
      %v639 = vadd.f32 %v308, %v569
      %v640 = vadd.f32 %v309, %v574
      %v641 = vadd.f32 %v310, %v577
      %v642 = vadd.f32 %v311, %v582
      %v643 = vadd.f32 %v312, %v585
      %v644 = vadd.f32 %v313, %v590
      %v645 = vadd.f32 %v314, %v593
      %v646 = vadd.f32 %v315, %v598
      %v647 = vadd.f32 %v316, %v601
      %v648 = vadd.f32 %v317, %v606
      %v649 = vadd.f32 %v318, %v609
      %v650 = vadd.f32 %v319, %v614
      %v651 = vadd.f32 %v320, %v617
      %v652 = vadd.f32 %v321, %v622
      %v653 = vadd.f32 %v322, %v625
      %654 = vst [vmem:[%s257] sm:$0xff] %v628
      %655 = vst [vmem:[%s257 + $0x8] sm:$0xff] %v629
      %656 = vst [vmem:[%s257 + $0x10] sm:$0xff] %v630
      %657 = vst [vmem:[%s257 + $0x18] sm:$0xff] %v631
      %658 = vst [vmem:[%s257 + $0x20] sm:$0xff] %v632
      %659 = vst [vmem:[%s257 + $0x28] sm:$0xff] %v633
      %660 = vst [vmem:[%s257 + $0x30] sm:$0xff] %v634
      %661 = vst [vmem:[%s257 + $0x38] sm:$0xff] %v635
      %662 = vst [vmem:[%s257 + $0x40] sm:$0xff] %v636
      %663 = vst [vmem:[%s257 + $0x48] sm:$0xff] %v637
      %664 = vst [vmem:[%s257 + $0x50] sm:$0xff] %v638
      %665 = vst [vmem:[%s257 + $0x58] sm:$0xff] %v639
      %666 = vst [vmem:[%s257 + $0x60] sm:$0xff] %v640
      %667 = vst [vmem:[%s257 + $0x68] sm:$0xff] %v641
      %668 = vst [vmem:[%s257 + $0x70] sm:$0xff] %v642
      %669 = vst [vmem:[%s257 + $0x78] sm:$0xff] %v643
      %670 = vst [vmem:[%s257 + $0x80] sm:$0xff] %v644
      %671 = vst [vmem:[%s257 + $0x88] sm:$0xff] %v645
      %672 = vst [vmem:[%s257 + $0x90] sm:$0xff] %v646
      %673 = vst [vmem:[%s257 + $0x98] sm:$0xff] %v647
      %674 = vst [vmem:[%s257 + $0xa0] sm:$0xff] %v648
      %675 = vst [vmem:[%s257 + $0xa8] sm:$0xff] %v649
      %676 = vst [vmem:[%s257 + $0xb0] sm:$0xff] %v650
      %677 = vst [vmem:[%s257 + $0xb8] sm:$0xff] %v651
      %678 = vst [vmem:[%s257 + $0xc0] sm:$0xff] %v652
      %679 = vst [vmem:[%s257 + $0xc8] sm:$0xff] %v653
      // Predicated region
      $region37: #{cnn_forward.6} parent=31 // pred_check
        %p680 = pneg %p260
      $region38: #{cnn_forward.6} parent=31 // pred_check_branch
        %682 = sbr.rel (%p680) target = $region40
      $region39: #{cnn_forward.6} parent=31 // pred_region
        %v683 = vld [vmem:[%s257] sm:$0xff]
        %v684 = vld [vmem:[%s257 + $0x8] sm:$0xff]
        %v685 = vld [vmem:[%s257 + $0x10] sm:$0xff]
        %v686 = vld [vmem:[%s257 + $0x18] sm:$0xff]
        %v687 = vld [vmem:[%s257 + $0x20] sm:$0xff]
        %v688 = vld [vmem:[%s257 + $0x28] sm:$0xff]
        %v689 = vld [vmem:[%s257 + $0x30] sm:$0xff]
        %v690 = vld [vmem:[%s257 + $0x38] sm:$0xff]
        %v691 = vld [vmem:[%s257 + $0x40] sm:$0xff]
        %v692 = vld [vmem:[%s257 + $0x48] sm:$0xff]
        %v693 = vld [vmem:[%s257 + $0x50] sm:$0xff]
        %v694 = vld [vmem:[%s257 + $0x58] sm:$0xff]
        %v695 = vld [vmem:[%s257 + $0x60] sm:$0xff]
        %v696 = vld [vmem:[%s257 + $0x68] sm:$0xff]
        %v697 = vld [vmem:[%s257 + $0x70] sm:$0xff]
        %v698 = vld [vmem:[%s257 + $0x78] sm:$0xff]
        %v699 = vld [vmem:[%s257 + $0x80] sm:$0xff]
        %v700 = vld [vmem:[%s257 + $0x88] sm:$0xff]
        %v701 = vld [vmem:[%s257 + $0x90] sm:$0xff]
        %v702 = vld [vmem:[%s257 + $0x98] sm:$0xff]
        %v703 = vld [vmem:[%s257 + $0xa0] sm:$0xff]
        %v704 = vld [vmem:[%s257 + $0xa8] sm:$0xff]
        %v705 = vld [vmem:[%s257 + $0xb0] sm:$0xff]
        %v706 = vld [vmem:[%s257 + $0xb8] sm:$0xff]
        %v707 = vld [vmem:[%s257 + $0xc0] sm:$0xff]
        %v708 = vld [vmem:[%s257 + $0xc8] sm:$0xff]
        %v709 = vmax.f32 %v683, 0.0
        %v710 = vmax.f32 %v684, 0.0
        %v711 = vmax.f32 %v685, 0.0
        %v712 = vmax.f32 %v686, 0.0
        %v713 = vmax.f32 %v687, 0.0
        %v714 = vmax.f32 %v688, 0.0
        %v715 = vmax.f32 %v689, 0.0
        %v716 = vmax.f32 %v690, 0.0
        %v717 = vmax.f32 %v691, 0.0
        %v718 = vmax.f32 %v692, 0.0
        %v719 = vmax.f32 %v693, 0.0
        %v720 = vmax.f32 %v694, 0.0
        %v721 = vmax.f32 %v695, 0.0
        %v722 = vmax.f32 %v696, 0.0
        %v723 = vmax.f32 %v697, 0.0
        %v724 = vmax.f32 %v698, 0.0
        %v725 = vmax.f32 %v699, 0.0
        %v726 = vmax.f32 %v700, 0.0
        %v727 = vmax.f32 %v701, 0.0
        %v728 = vmax.f32 %v702, 0.0
        %v729 = vmax.f32 %v703, 0.0
        %v730 = vmax.f32 %v704, 0.0
        %v731 = vmax.f32 %v705, 0.0
        %v732 = vmax.f32 %v706, 0.0
        %v733 = vmax.f32 %v707, 0.0
        %v734 = vmax.f32 %v708, 0.0
        %735 = vst [vmem:[%s257] sm:$0xff] %v709
        %736 = vst [vmem:[%s257 + $0x8] sm:$0xff] %v710
        %737 = vst [vmem:[%s257 + $0x10] sm:$0xff] %v711
        %738 = vst [vmem:[%s257 + $0x18] sm:$0xff] %v712
        %739 = vst [vmem:[%s257 + $0x20] sm:$0xff] %v713
        %740 = vst [vmem:[%s257 + $0x28] sm:$0xff] %v714
        %741 = vst [vmem:[%s257 + $0x30] sm:$0xff] %v715
        %742 = vst [vmem:[%s257 + $0x38] sm:$0xff] %v716
        %743 = vst [vmem:[%s257 + $0x40] sm:$0xff] %v717
        %744 = vst [vmem:[%s257 + $0x48] sm:$0xff] %v718
        %745 = vst [vmem:[%s257 + $0x50] sm:$0xff] %v719
        %746 = vst [vmem:[%s257 + $0x58] sm:$0xff] %v720
        %747 = vst [vmem:[%s257 + $0x60] sm:$0xff] %v721
        %748 = vst [vmem:[%s257 + $0x68] sm:$0xff] %v722
        %749 = vst [vmem:[%s257 + $0x70] sm:$0xff] %v723
        %750 = vst [vmem:[%s257 + $0x78] sm:$0xff] %v724
        %751 = vst [vmem:[%s257 + $0x80] sm:$0xff] %v725
        %752 = vst [vmem:[%s257 + $0x88] sm:$0xff] %v726
        %753 = vst [vmem:[%s257 + $0x90] sm:$0xff] %v727
        %754 = vst [vmem:[%s257 + $0x98] sm:$0xff] %v728
        %755 = vst [vmem:[%s257 + $0xa0] sm:$0xff] %v729
        %756 = vst [vmem:[%s257 + $0xa8] sm:$0xff] %v730
        %757 = vst [vmem:[%s257 + $0xb0] sm:$0xff] %v731
        %758 = vst [vmem:[%s257 + $0xb8] sm:$0xff] %v732
        %759 = vst [vmem:[%s257 + $0xc0] sm:$0xff] %v733
        %760 = vst [vmem:[%s257 + $0xc8] sm:$0xff] %v734
      $region40: #{cnn_forward.6} parent=31 // pred_fallthru
        _
      %s761 = smul.u32 26, %s19
      %p762 = scmp.lt.s32.totalorder %s761, 233
      %s763 = scalar_select %p762, %s761, 233
      %p764 = scmp.lt.s32.totalorder %s20, 0
      %s765 = scalar_select %p764, %s20, 0
      %s766 = sadd.s32 %s765, %s763
      %s767 = smul.addr %s766, 8
      %s768 = scalar_lea.vmem %s3, %s767
      // Predicated region
      $region41: #{cnn_forward.6} parent=31 // pred_check
        %p769 = pneg %p135
      $region42: #{cnn_forward.6} parent=31 // pred_check_branch
        %771 = sbr.rel (%p769) target = $region44
      $region43: #{cnn_forward.6} parent=31 // pred_region
        %s772 = smul.u32 26, %s19
      $region44: #{cnn_forward.6} parent=31 // pred_fallthru
        _
    $region32: #{cnn_forward.6} parent=5 // pred_fallthru
      _
    %p773 = scmp.le.s32.totalorder 2, %s9
    // Predicated region
    $region45: #{cnn_forward.6} parent=5 // pred_check
      %p774 = pneg %p773
    $region46: #{cnn_forward.6} parent=5 // pred_check_branch
      %776 = sbr.rel (%p774) target = $region48
    $region47: #{cnn_forward.6} parent=5 // pred_region
      %s777 = ssub.s32 %s9, 2
      // Predicated region
      $region49: #{cnn_forward.6} parent=47 // pred_check
        %p778 = pneg %p141
      $region50: #{cnn_forward.6} parent=47 // pred_check_branch
        %780 = sbr.rel (%p778) target = $region52
      $region51: #{cnn_forward.6} parent=47 // pred_region
        %s781 = smul.u32 26, %s22
        %p782 = scmp.lt.s32.totalorder %s781, 233
        %s783 = scalar_select %p782, %s781, 233
        %p784 = scmp.lt.s32.totalorder %s23, 0
        %s785 = scalar_select %p784, %s23, 0
        %s786 = sadd.s32 %s785, %s783
        %s787 = smul.addr %s786, 8
        %s788 = scalar_lea.vmem %s3, %s787
      $region52: #{cnn_forward.6} parent=47 // pred_fallthru
        _
    $region48: #{cnn_forward.6} parent=5 // pred_fallthru
      _
  $region6: #{cnn_forward.6} parent=0 // loop_footer
    %s13 = sadd.s32 1, %s9
  $region7: #{cnn_forward.6} parent=0 // loop_footer_branch
    %8 = sbr.rel target = $region3
  $region8: #{cnn_forward.6} parent=0 // loop_exit
    _

// kernel: cnn_forward.7
$region0: #{cnn_forward.7}
  #allocation0 [shape = 'u32[]', space=smem, size = 0x4, offset = 0x4, fixed_abs, tag = 'smem constant byte address 0x4 - core index']
  #allocation1 [shape = 'u32[144,128]{1,0:T(1,128)}', space=vmem, size = 0x12000, scoped, tag = 'internal scratch']
  %s0 = inlined_call_operand.vmem [shape: bf16[1568,640], index: 0, kind: input, shape index: {}]
  %s1 = inlined_call_operand.vmem [shape: bf16[640,128], index: 1, kind: input, shape index: {}]
  %s2 = inlined_call_operand.vmem [shape: f32[1,128], index: 2, kind: input, shape index: {}]
  %s3 = inlined_call_operand.vmem [shape: f32[1568,128], index: 3, kind: output, shape index: {}]
  %s4 = sld [smem:[#allocation0]]
  $region53: #{cnn_forward.7} parent=0
    _
  %s6 = ssub.s32 1, %s4
  %s7 = scalar_select 0, %s6, %s4
  loop: start=0, step=1, limit=9
  $region2: #{cnn_forward.7} parent=0 // loop_pre_header
    _
  $region3: #{cnn_forward.7} parent=0 // loop_header
    %s9 = sphi 0, %s13
    %p10 = scmp.ge.s32.totalorder %s9, 9
    %s16 = sphi 0, %s35
    %s17 = sphi 0, %s31
    %s18 = sphi 0, %s27
    %s19 = sphi 0, %s16
    %s20 = sphi 0, %s17
    %s21 = sphi 0, %s18
    %s22 = sphi 0, %s19
    %s23 = sphi 0, %s20
    %s24 = sphi 0, %s21
    %s40 = sphi 0, %s42
    %s43 = sphi 0, %s40
    %s44 = sphi 0, %s43
    %s60 = sphi 0, %s44
    %s68 = sphi 0, %s70
    %s71 = sphi 0, %s68
    %s72 = sphi 0, %s71
    %s88 = sphi 0, %s72
    %s94 = sphi 0, %s96
    %s97 = sphi 0, %s94
    %s98 = sphi 0, %s97
    %s114 = sphi 0, %s98
    %s122 = sphi 0, %s124
    %s125 = sphi 0, %s122
    %s126 = sphi 0, %s125
    %s142 = sphi 0, %s126
  $region4: #{cnn_forward.7} parent=0 // loop_header_branch
    %12 = sbr.rel (%p10) target = $region8
  $region5: #{cnn_forward.7} parent=0 // loop_body
    %s14 = ssub.s32 %s9, 1
    %s15 = ssub.s32 %s9, 2
    %s25 = sadd.s32 1, %s18
    %p26 = scmp.ge.s32.totalorder %s25, 1
    %s27 = scalar_select %p26, 0, %s25
    %s28 = sadd.s32 1, %s17
    %s29 = scalar_select %p26, %s28, %s17
    %p30 = scmp.ge.s32.totalorder %s29, 1
    %s31 = scalar_select %p30, 0, %s29
    %s32 = sadd.s32 1, %s16
    %s33 = scalar_select %p30, %s32, %s16
    %p34 = scmp.ge.s32.totalorder %s33, 7
    %s35 = scalar_select %p34, 0, %s33
    %s36 = ssub.s32 %s16, %s35
    %s37 = ssub.s32 %s18, %s27
    %s38 = sor.u32 %s36, %s37
    %p39 = scmp.eq.s32.totalorder %s38, 0
    %s41 = sadd.s32 %s40, 1
    %s42 = scalar_select %p39, %s40, %s41
    %p45 = pneg %p39
    %p46 = scmp.eq.s32.totalorder %s9, 6
    %p47 = por %p45, %p46
    %p48 = scmp.ne.s32.totalorder %s40, %s43
    %p49 = scmp.eq.s32.totalorder %s9, 0
    %p50 = por %p48, %p49
    %p51 = scmp.ne.s32.totalorder %s40, %s43
    %p52 = scmp.eq.s32.totalorder %s14, 6
    %p53 = por %p51, %p52
    %p54 = scmp.ne.s32.totalorder %s43, %s44
    %p55 = scmp.eq.s32.totalorder %s14, 0
    %p56 = por %p54, %p55
    %p57 = scmp.ne.s32.totalorder %s43, %s44
    %p58 = scmp.eq.s32.totalorder %s15, 6
    %p59 = por %p57, %p58
    %p61 = scmp.ne.s32.totalorder %s44, %s60
    %p62 = scmp.eq.s32.totalorder %s15, 0
    %p63 = por %p61, %p62
    %s64 = ssub.s32 %s18, %s27
    %s65 = ssub.s32 %s17, %s31
    %s66 = sor.u32 %s64, %s65
    %p67 = scmp.eq.s32.totalorder %s66, 0
    %s69 = sadd.s32 %s68, 1
    %s70 = scalar_select %p67, %s68, %s69
    %p73 = pneg %p67
    %p74 = scmp.eq.s32.totalorder %s9, 6
    %p75 = por %p73, %p74
    %p76 = scmp.ne.s32.totalorder %s68, %s71
    %p77 = scmp.eq.s32.totalorder %s9, 0
    %p78 = por %p76, %p77
    %p79 = scmp.ne.s32.totalorder %s68, %s71
    %p80 = scmp.eq.s32.totalorder %s14, 6
    %p81 = por %p79, %p80
    %p82 = scmp.ne.s32.totalorder %s71, %s72
    %p83 = scmp.eq.s32.totalorder %s14, 0
    %p84 = por %p82, %p83
    %p85 = scmp.ne.s32.totalorder %s71, %s72
    %p86 = scmp.eq.s32.totalorder %s15, 6
    %p87 = por %p85, %p86
    %p89 = scmp.ne.s32.totalorder %s72, %s88
    %p90 = scmp.eq.s32.totalorder %s15, 0
    %p91 = por %p89, %p90
    %s92 = ssub.s32 %s17, %s31
    %p93 = scmp.eq.s32.totalorder %s92, 0
    %s95 = sadd.s32 %s94, 1
    %s96 = scalar_select %p93, %s94, %s95
    %p99 = pneg %p93
    %p100 = scmp.eq.s32.totalorder %s9, 6
    %p101 = por %p99, %p100
    %p102 = scmp.ne.s32.totalorder %s94, %s97
    %p103 = scmp.eq.s32.totalorder %s9, 0
    %p104 = por %p102, %p103
    %p105 = scmp.ne.s32.totalorder %s94, %s97
    %p106 = scmp.eq.s32.totalorder %s14, 6
    %p107 = por %p105, %p106
    %p108 = scmp.ne.s32.totalorder %s97, %s98
    %p109 = scmp.eq.s32.totalorder %s14, 0
    %p110 = por %p108, %p109
    %p111 = scmp.ne.s32.totalorder %s97, %s98
    %p112 = scmp.eq.s32.totalorder %s15, 6
    %p113 = por %p111, %p112
    %p115 = scmp.ne.s32.totalorder %s98, %s114
    %p116 = scmp.eq.s32.totalorder %s15, 0
    %p117 = por %p115, %p116
    %s118 = ssub.s32 %s16, %s35
    %s119 = ssub.s32 %s17, %s31
    %s120 = sor.u32 %s118, %s119
    %p121 = scmp.eq.s32.totalorder %s120, 0
    %s123 = sadd.s32 %s122, 1
    %s124 = scalar_select %p121, %s122, %s123
    %p127 = pneg %p121
    %p128 = scmp.eq.s32.totalorder %s9, 6
    %p129 = por %p127, %p128
    %p130 = scmp.ne.s32.totalorder %s122, %s125
    %p131 = scmp.eq.s32.totalorder %s9, 0
    %p132 = por %p130, %p131
    %p133 = scmp.ne.s32.totalorder %s122, %s125
    %p134 = scmp.eq.s32.totalorder %s14, 6
    %p135 = por %p133, %p134
    %p136 = scmp.ne.s32.totalorder %s125, %s126
    %p137 = scmp.eq.s32.totalorder %s14, 0
    %p138 = por %p136, %p137
    %p139 = scmp.ne.s32.totalorder %s125, %s126
    %p140 = scmp.eq.s32.totalorder %s15, 6
    %p141 = por %p139, %p140
    %p143 = scmp.ne.s32.totalorder %s126, %s142
    %p144 = scmp.eq.s32.totalorder %s15, 0
    %p145 = por %p143, %p144
    %p146 = scmp.le.s32.totalorder 1, %s9
    %p147 = scmp.lt.s32.totalorder %s9, 8
    %p148 = pnand %p146, %p147
    %p149 = pneg %p148
    // Predicated region
    $region9: #{cnn_forward.7} parent=5 // pred_check
      _
    $region10: #{cnn_forward.7} parent=5 // pred_check_branch
      %151 = sbr.rel (%p148) target = $region12
    $region11: #{cnn_forward.7} parent=5 // pred_region
      %s152 = ssub.s32 %s9, 1
      // Predicated region
      $region13: #{cnn_forward.7} parent=11 // pred_check
        %p153 = pneg %p84
      $region14: #{cnn_forward.7} parent=11 // pred_check_branch
        %155 = sbr.rel (%p153) target = $region16
      $region15: #{cnn_forward.7} parent=11 // pred_region
        %s156 = smul.u32 80, %s21
        %p157 = scmp.lt.s32.totalorder %s156, 79
        %s158 = scalar_select %p157, %s156, 79
        %p159 = scmp.lt.s32.totalorder %s20, 0
        %s160 = scalar_select %p159, %s20, 0
        %s161 = sadd.s32 %s160, %s158
        %s162 = smul.addr %s161, 4
        %s163 = scalar_lea.vmem %s1, %s162
        %s164 = smul.u32 80, %s21
      $region16: #{cnn_forward.7} parent=11 // pred_fallthru
        _
      // Predicated region
      $region17: #{cnn_forward.7} parent=11 // pred_check
        %p165 = pneg %p110
      $region18: #{cnn_forward.7} parent=11 // pred_check_branch
        %167 = sbr.rel (%p165) target = $region20
      $region19: #{cnn_forward.7} parent=11 // pred_region
        %p168 = scmp.lt.s32.totalorder %s20, 0
        %s169 = scalar_select %p168, %s20, 0
        %s170 = scalar_lea.vmem %s2, %s169
      $region20: #{cnn_forward.7} parent=11 // pred_fallthru
        _
    $region12: #{cnn_forward.7} parent=5 // pred_fallthru
      _
    %p171 = scmp.lt.s32.totalorder %s9, 7
    // Predicated region
    $region21: #{cnn_forward.7} parent=5 // pred_check
      %p172 = pneg %p171
    $region22: #{cnn_forward.7} parent=5 // pred_check_branch
      %174 = sbr.rel (%p172) target = $region24
    $region23: #{cnn_forward.7} parent=5 // pred_region
      // Predicated region
      $region25: #{cnn_forward.7} parent=23 // pred_check
        %p175 = pneg %p50
      $region26: #{cnn_forward.7} parent=23 // pred_check_branch
        %177 = sbr.rel (%p175) target = $region28
      $region27: #{cnn_forward.7} parent=23 // pred_region
        %s178 = smul.u32 28, %s16
        %s179 = smul.u32 5, %s18
        %p180 = scmp.lt.s32.totalorder %s178, 195
        %s181 = scalar_select %p180, %s178, 195
        %p182 = scmp.lt.s32.totalorder %s179, 4
        %s183 = scalar_select %p182, %s179, 4
        %s184 = smul.addr %s181, 5
        %s185 = sadd.s32 %s183, %s184
        %s186 = smul.addr %s185, 4
        %s187 = scalar_lea.vmem %s0, %s186
        %s188 = smul.u32 28, %s16
        %s189 = smul.u32 5, %s18
      $region28: #{cnn_forward.7} parent=23 // pred_fallthru
        _
    $region24: #{cnn_forward.7} parent=5 // pred_fallthru
      _
    %p190 = scmp.le.s32.totalorder 1, %s9
    %p191 = scmp.lt.s32.totalorder %s9, 8
    %p192 = pnand %p190, %p191
    %p193 = pneg %p192
    // Predicated region
    $region29: #{cnn_forward.7} parent=5 // pred_check
      _
    $region30: #{cnn_forward.7} parent=5 // pred_check_branch
      %195 = sbr.rel (%p192) target = $region32
    $region31: #{cnn_forward.7} parent=5 // pred_region
      %s196 = ssub.s32 %s9, 1
      %s197 = smul.u32 28, %s19
      %s198 = smul.u32 5, %s21
      %p199 = scmp.lt.s32.totalorder %s197, 195
      %s200 = scalar_select %p199, %s197, 195
      %p201 = scmp.lt.s32.totalorder %s198, 4
      %s202 = scalar_select %p201, %s198, 4
      %s203 = smul.addr %s200, 5
      %s204 = sadd.s32 %s202, %s203
      %s205 = smul.addr %s204, 4
      %s206 = scalar_lea.vmem %s0, %s205
      %p207 = pneg %p56
      %p208 = pneg %p53
      %s209 = smul.u32 80, %s21
      %p210 = scmp.lt.s32.totalorder %s209, 79
      %s211 = scalar_select %p210, %s209, 79
      %p212 = scmp.lt.s32.totalorder %s20, 0
      %s213 = scalar_select %p212, %s20, 0
      %s214 = sadd.s32 %s213, %s211
      %s215 = smul.addr %s214, 4
      %s216 = scalar_lea.vmem %s1, %s215
      %p217 = pneg %p84
      %p218 = pneg %p81
      %p219 = scmp.lt.s32.totalorder %s20, 0
      %s220 = scalar_select %p219, %s20, 0
      %s221 = scalar_lea.vmem %s2, %s220
      %p222 = pneg %p110
      %p223 = pneg %p107
      %p224 = pneg %p138
      %p225 = pneg %p135
      %s226 = smul.u32 28, %s19
      %p227 = scmp.lt.s32.totalorder %s226, 195
      %s228 = scalar_select %p227, %s226, 195
      %p229 = scmp.lt.s32.totalorder %s20, 0
      %s230 = scalar_select %p229, %s20, 0
      %s231 = sadd.s32 %s230, %s228
      %s232 = smul.addr %s231, 8
      %s233 = scalar_lea.vmem %s3, %s232
      %s234 = smul.u32 28, %s19
      %s235 = smul.u32 5, %s21
      %p236 = scmp.lt.s32.totalorder %s234, 195
      %s237 = scalar_select %p236, %s234, 195
      %p238 = scmp.lt.s32.totalorder %s235, 4
      %s239 = scalar_select %p238, %s235, 4
      %s240 = smul.addr %s237, 5
      %s241 = sadd.s32 %s239, %s240
      %s242 = smul.addr %s241, 4
      %s243 = scalar_lea.vmem %s0, %s242
      %s244 = smul.u32 28, %s19
      %s245 = smul.u32 5, %s21
      %s246 = smul.u32 80, %s21
      %p247 = scmp.lt.s32.totalorder %s246, 79
      %s248 = scalar_select %p247, %s246, 79
      %p249 = scmp.lt.s32.totalorder %s20, 0
      %s250 = scalar_select %p249, %s20, 0
      %s251 = sadd.s32 %s250, %s248
      %s252 = smul.addr %s251, 4
      %s253 = scalar_lea.vmem %s1, %s252
      %s254 = smul.u32 80, %s21
      %p255 = scmp.lt.s32.totalorder %s20, 0
      %s256 = scalar_select %p255, %s20, 0
      %s257 = scalar_lea.vmem %s2, %s256
      %s258 = smul.u32 28, %s19
      %p259 = scmp.lt.s32.totalorder %s258, 195
      %s260 = scalar_select %p259, %s258, 195
      %p261 = scmp.lt.s32.totalorder %s20, 0
      %s262 = scalar_select %p261, %s20, 0
      %s263 = sadd.s32 %s262, %s260
      %s264 = smul.addr %s263, 8
      %s265 = scalar_lea.vmem %s3, %s264
      %s266 = smul.u32 28, %s19
      %p268 = scmp.eq.s32.totalorder %s21, 0
      // Predicated region
      $region33: #{cnn_forward.7} parent=31 // pred_check
        %p269 = pneg %p268
      $region34: #{cnn_forward.7} parent=31 // pred_check_branch
        %271 = sbr.rel (%p269) target = $region36
      $region35: #{cnn_forward.7} parent=31 // pred_region
        %v272 = vld [vmem:[%s257] sm:$0x1]
        %v274 = vlaneseq
        %v275 = vshrl.u32 %v274, 7
        %v276 = vsub.s32 0, %v275
        %v277 = vrot.slane %v272, %v276
        %279 = vst [vmem:[%s265] sm:$0xff] %v277
        %280 = vst [vmem:[%s265 + $0x8] sm:$0xff] %v277
        %281 = vst [vmem:[%s265 + $0x10] sm:$0xff] %v277
        %282 = vst [vmem:[%s265 + $0x18] sm:$0xff] %v277
        %283 = vst [vmem:[%s265 + $0x20] sm:$0xff] %v277
        %284 = vst [vmem:[%s265 + $0x28] sm:$0xff] %v277
        %285 = vst [vmem:[%s265 + $0x30] sm:$0xff] %v277
        %286 = vst [vmem:[%s265 + $0x38] sm:$0xff] %v277
        %287 = vst [vmem:[%s265 + $0x40] sm:$0xff] %v277
        %288 = vst [vmem:[%s265 + $0x48] sm:$0xff] %v277
        %289 = vst [vmem:[%s265 + $0x50] sm:$0xff] %v277
        %290 = vst [vmem:[%s265 + $0x58] sm:$0xff] %v277
        %291 = vst [vmem:[%s265 + $0x60] sm:$0xff] %v277
        %292 = vst [vmem:[%s265 + $0x68] sm:$0xff] %v277
        %293 = vst [vmem:[%s265 + $0x70] sm:$0xff] %v277
        %294 = vst [vmem:[%s265 + $0x78] sm:$0xff] %v277
        %295 = vst [vmem:[%s265 + $0x80] sm:$0xff] %v277
        %296 = vst [vmem:[%s265 + $0x88] sm:$0xff] %v277
        %297 = vst [vmem:[%s265 + $0x90] sm:$0xff] %v277
        %298 = vst [vmem:[%s265 + $0x98] sm:$0xff] %v277
        %299 = vst [vmem:[%s265 + $0xa0] sm:$0xff] %v277
        %300 = vst [vmem:[%s265 + $0xa8] sm:$0xff] %v277
        %301 = vst [vmem:[%s265 + $0xb0] sm:$0xff] %v277
        %302 = vst [vmem:[%s265 + $0xb8] sm:$0xff] %v277
        %303 = vst [vmem:[%s265 + $0xc0] sm:$0xff] %v277
        %304 = vst [vmem:[%s265 + $0xc8] sm:$0xff] %v277
        %305 = vst [vmem:[%s265 + $0xd0] sm:$0xff] %v277
        %306 = vst [vmem:[%s265 + $0xd8] sm:$0xff] %v277
      $region36: #{cnn_forward.7} parent=31 // pred_fallthru
        _
      %v307 = vld [vmem:[%s265] sm:$0xff]
      %v308 = vld [vmem:[%s265 + $0x8] sm:$0xff]
      %v309 = vld [vmem:[%s265 + $0x10] sm:$0xff]
      %v310 = vld [vmem:[%s265 + $0x18] sm:$0xff]
      %v311 = vld [vmem:[%s265 + $0x20] sm:$0xff]
      %v312 = vld [vmem:[%s265 + $0x28] sm:$0xff]
      %v313 = vld [vmem:[%s265 + $0x30] sm:$0xff]
      %v314 = vld [vmem:[%s265 + $0x38] sm:$0xff]
      %v315 = vld [vmem:[%s265 + $0x40] sm:$0xff]
      %v316 = vld [vmem:[%s265 + $0x48] sm:$0xff]
      %v317 = vld [vmem:[%s265 + $0x50] sm:$0xff]
      %v318 = vld [vmem:[%s265 + $0x58] sm:$0xff]
      %v319 = vld [vmem:[%s265 + $0x60] sm:$0xff]
      %v320 = vld [vmem:[%s265 + $0x68] sm:$0xff]
      %v321 = vld [vmem:[%s265 + $0x70] sm:$0xff]
      %v322 = vld [vmem:[%s265 + $0x78] sm:$0xff]
      %v323 = vld [vmem:[%s265 + $0x80] sm:$0xff]
      %v324 = vld [vmem:[%s265 + $0x88] sm:$0xff]
      %v325 = vld [vmem:[%s265 + $0x90] sm:$0xff]
      %v326 = vld [vmem:[%s265 + $0x98] sm:$0xff]
      %v327 = vld [vmem:[%s265 + $0xa0] sm:$0xff]
      %v328 = vld [vmem:[%s265 + $0xa8] sm:$0xff]
      %v329 = vld [vmem:[%s265 + $0xb0] sm:$0xff]
      %v330 = vld [vmem:[%s265 + $0xb8] sm:$0xff]
      %v331 = vld [vmem:[%s265 + $0xc0] sm:$0xff]
      %v332 = vld [vmem:[%s265 + $0xc8] sm:$0xff]
      %v333 = vld [vmem:[%s265 + $0xd0] sm:$0xff]
      %v334 = vld [vmem:[%s265 + $0xd8] sm:$0xff]
      %v335 = vld [vmem:[%s243] sm:$0xff]
      %v336 = vld [vmem:[%s243 + $0x8] sm:$0xff]
      %v337 = vld [vmem:[%s243 + $0x10] sm:$0xf]
      %v338 = vld [vmem:[%s243 + $0x14] sm:$0xff]
      %v339 = vld [vmem:[%s243 + $0x1c] sm:$0xff]
      %v340 = vld [vmem:[%s243 + $0x24] sm:$0xf]
      %v341 = vld [vmem:[%s243 + $0x28] sm:$0xff]
      %v342 = vld [vmem:[%s243 + $0x30] sm:$0xff]
      %v343 = vld [vmem:[%s243 + $0x38] sm:$0xf]
      %v344 = vld [vmem:[%s243 + $0x3c] sm:$0xff]
      %v345 = vld [vmem:[%s243 + $0x44] sm:$0xff]
      %v346 = vld [vmem:[%s243 + $0x4c] sm:$0xf]
      %v347 = vld [vmem:[%s243 + $0x50] sm:$0xff]
      %v348 = vld [vmem:[%s243 + $0x58] sm:$0xff]
      %v349 = vld [vmem:[%s243 + $0x60] sm:$0xf]
      %v350 = vld [vmem:[%s243 + $0x64] sm:$0xff]
      %v351 = vld [vmem:[%s243 + $0x6c] sm:$0xff]
      %v352 = vld [vmem:[%s243 + $0x74] sm:$0xf]
      %v353 = vld [vmem:[%s243 + $0x78] sm:$0xff]
      %v354 = vld [vmem:[%s243 + $0x80] sm:$0xff]
      %v355 = vld [vmem:[%s243 + $0x88] sm:$0xf]
      %v356 = vld [vmem:[%s243 + $0x8c] sm:$0xff]
      %v357 = vld [vmem:[%s243 + $0x94] sm:$0xff]
      %v358 = vld [vmem:[%s243 + $0x9c] sm:$0xf]
      %v359 = vld [vmem:[%s243 + $0xa0] sm:$0xff]
      %v360 = vld [vmem:[%s243 + $0xa8] sm:$0xff]
      %v361 = vld [vmem:[%s243 + $0xb0] sm:$0xf]
      %v362 = vld [vmem:[%s243 + $0xb4] sm:$0xff]
      %v363 = vld [vmem:[%s243 + $0xbc] sm:$0xff]
      %v364 = vld [vmem:[%s243 + $0xc4] sm:$0xf]
      %v365 = vld [vmem:[%s243 + $0xc8] sm:$0xff]
      %v366 = vld [vmem:[%s243 + $0xd0] sm:$0xff]
      %v367 = vld [vmem:[%s243 + $0xd8] sm:$0xf]
      %v368 = vld [vmem:[%s243 + $0xdc] sm:$0xff]
      %v369 = vld [vmem:[%s243 + $0xe4] sm:$0xff]
      %v370 = vld [vmem:[%s243 + $0xec] sm:$0xf]
      %v371 = vld [vmem:[%s243 + $0xf0] sm:$0xff]
      %v372 = vld [vmem:[%s243 + $0xf8] sm:$0xff]
      %v373 = vld [vmem:[%s243 + $0x100] sm:$0xf]
      %v374 = vld [vmem:[%s243 + $0x104] sm:$0xff]
      %v375 = vld [vmem:[%s243 + $0x10c] sm:$0xff]
      %v376 = vld [vmem:[%s243 + $0x114] sm:$0xf]
      %v377 = vld [vmem:[%s243 + $0x118] sm:$0xff]
      %v378 = vld [vmem:[%s243 + $0x120] sm:$0xff]
      %v379 = vld [vmem:[%s243 + $0x128] sm:$0xf]
      %v380 = vld [vmem:[%s243 + $0x12c] sm:$0xff]
      %v381 = vld [vmem:[%s243 + $0x134] sm:$0xff]
      %v382 = vld [vmem:[%s243 + $0x13c] sm:$0xf]
      %v383 = vld [vmem:[%s243 + $0x140] sm:$0xff]
      %v384 = vld [vmem:[%s243 + $0x148] sm:$0xff]
      %v385 = vld [vmem:[%s243 + $0x150] sm:$0xf]
      %v386 = vld [vmem:[%s243 + $0x154] sm:$0xff]
      %v387 = vld [vmem:[%s243 + $0x15c] sm:$0xff]
      %v388 = vld [vmem:[%s243 + $0x164] sm:$0xf]
      %v389 = vld [vmem:[%s243 + $0x168] sm:$0xff]
      %v390 = vld [vmem:[%s243 + $0x170] sm:$0xff]
      %v391 = vld [vmem:[%s243 + $0x178] sm:$0xf]
      %v392 = vld [vmem:[%s243 + $0x17c] sm:$0xff]
      %v393 = vld [vmem:[%s243 + $0x184] sm:$0xff]
      %v394 = vld [vmem:[%s243 + $0x18c] sm:$0xf]
      %v395 = vld [vmem:[%s243 + $0x190] sm:$0xff]
      %v396 = vld [vmem:[%s243 + $0x198] sm:$0xff]
      %v397 = vld [vmem:[%s243 + $0x1a0] sm:$0xf]
      %v398 = vld [vmem:[%s243 + $0x1a4] sm:$0xff]
      %v399 = vld [vmem:[%s243 + $0x1ac] sm:$0xff]
      %v400 = vld [vmem:[%s243 + $0x1b4] sm:$0xf]
      %v401 = vld [vmem:[%s243 + $0x1b8] sm:$0xff]
      %v402 = vld [vmem:[%s243 + $0x1c0] sm:$0xff]
      %v403 = vld [vmem:[%s243 + $0x1c8] sm:$0xf]
      %v404 = vld [vmem:[%s243 + $0x1cc] sm:$0xff]
      %v405 = vld [vmem:[%s243 + $0x1d4] sm:$0xff]
      %v406 = vld [vmem:[%s243 + $0x1dc] sm:$0xf]
      %v407 = vld [vmem:[%s243 + $0x1e0] sm:$0xff]
      %v408 = vld [vmem:[%s243 + $0x1e8] sm:$0xff]
      %v409 = vld [vmem:[%s243 + $0x1f0] sm:$0xf]
      %v410 = vld [vmem:[%s243 + $0x1f4] sm:$0xff]
      %v411 = vld [vmem:[%s243 + $0x1fc] sm:$0xff]
      %v412 = vld [vmem:[%s243 + $0x204] sm:$0xf]
      %v413 = vld [vmem:[%s243 + $0x208] sm:$0xff]
      %v414 = vld [vmem:[%s243 + $0x210] sm:$0xff]
      %v415 = vld [vmem:[%s243 + $0x218] sm:$0xf]
      %v416 = vld [vmem:[%s243 + $0x21c] sm:$0xff]
      %v417 = vld [vmem:[%s243 + $0x224] sm:$0xff]
      %v418 = vld [vmem:[%s243 + $0x22c] sm:$0xf]
      %v419 = vld [vmem:[%s253] sm:$0xf]
      %v420 = vld [vmem:[%s253 + $0x4] sm:$0xf]
      %v421 = vld [vmem:[%s253 + $0x8] sm:$0xf]
      %v422 = vld [vmem:[%s253 + $0xc] sm:$0xf]
      %v423 = vld [vmem:[%s253 + $0x10] sm:$0xf]
      %v424 = vld [vmem:[%s253 + $0x14] sm:$0xf]
      %v425 = vld [vmem:[%s253 + $0x18] sm:$0xf]
      %v426 = vld [vmem:[%s253 + $0x1c] sm:$0xf]
      %v427 = vld [vmem:[%s253 + $0x20] sm:$0xf]
      %v428 = vld [vmem:[%s253 + $0x24] sm:$0xf]
      %v429 = vld [vmem:[%s253 + $0x28] sm:$0xf]
      %v430 = vld [vmem:[%s253 + $0x2c] sm:$0xf]
      %v431 = vld [vmem:[%s253 + $0x30] sm:$0xf]
      %v432 = vld [vmem:[%s253 + $0x34] sm:$0xf]
      %v433 = vld [vmem:[%s253 + $0x38] sm:$0xf]
      %v434 = vld [vmem:[%s253 + $0x3c] sm:$0xf]
      %v435 = vld [vmem:[%s253 + $0x40] sm:$0xf]
      %v436 = vld [vmem:[%s253 + $0x44] sm:$0xf]
      %v437 = vld [vmem:[%s253 + $0x48] sm:$0xf]
      %v438 = vld [vmem:[%s253 + $0x4c] sm:$0xf]
      %v439 = vld [vmem:[%s253 + $0x50] sm:$0xf]
      %v440 = vld [vmem:[%s253 + $0x54] sm:$0xf]
      %v441 = vld [vmem:[%s253 + $0x58] sm:$0xf]
      %v442 = vld [vmem:[%s253 + $0x5c] sm:$0xf]
      %v443 = vld [vmem:[%s253 + $0x60] sm:$0xf]
      %v444 = vld [vmem:[%s253 + $0x64] sm:$0xf]
      %v445 = vld [vmem:[%s253 + $0x68] sm:$0xf]
      %v446 = vld [vmem:[%s253 + $0x6c] sm:$0xf]
      %v447 = vld [vmem:[%s253 + $0x70] sm:$0xf]
      %v448 = vld [vmem:[%s253 + $0x74] sm:$0xf]
      %v449 = vld [vmem:[%s253 + $0x78] sm:$0xf]
      %v450 = vld [vmem:[%s253 + $0x7c] sm:$0xf]
      %v451 = vld [vmem:[%s253 + $0x80] sm:$0xf]
      %v452 = vld [vmem:[%s253 + $0x84] sm:$0xf]
      %v453 = vld [vmem:[%s253 + $0x88] sm:$0xf]
      %v454 = vld [vmem:[%s253 + $0x8c] sm:$0xf]
      %v455 = vld [vmem:[%s253 + $0x90] sm:$0xf]
      %v456 = vld [vmem:[%s253 + $0x94] sm:$0xf]
      %v457 = vld [vmem:[%s253 + $0x98] sm:$0xf]
      %v458 = vld [vmem:[%s253 + $0x9c] sm:$0xf]
      %v459 = vld [vmem:[%s253 + $0xa0] sm:$0xf]
      %v460 = vld [vmem:[%s253 + $0xa4] sm:$0xf]
      %v461 = vld [vmem:[%s253 + $0xa8] sm:$0xf]
      %v462 = vld [vmem:[%s253 + $0xac] sm:$0xf]
      %v463 = vld [vmem:[%s253 + $0xb0] sm:$0xf]
      %v464 = vld [vmem:[%s253 + $0xb4] sm:$0xf]
      %v465 = vld [vmem:[%s253 + $0xb8] sm:$0xf]
      %v466 = vld [vmem:[%s253 + $0xbc] sm:$0xf]
      %v467 = vld [vmem:[%s253 + $0xc0] sm:$0xf]
      %v468 = vld [vmem:[%s253 + $0xc4] sm:$0xf]
      %v469 = vld [vmem:[%s253 + $0xc8] sm:$0xf]
      %v470 = vld [vmem:[%s253 + $0xcc] sm:$0xf]
      %v471 = vld [vmem:[%s253 + $0xd0] sm:$0xf]
      %v472 = vld [vmem:[%s253 + $0xd4] sm:$0xf]
      %v473 = vld [vmem:[%s253 + $0xd8] sm:$0xf]
      %v474 = vld [vmem:[%s253 + $0xdc] sm:$0xf]
      %v475 = vld [vmem:[%s253 + $0xe0] sm:$0xf]
      %v476 = vld [vmem:[%s253 + $0xe4] sm:$0xf]
      %v477 = vld [vmem:[%s253 + $0xe8] sm:$0xf]
      %v478 = vld [vmem:[%s253 + $0xec] sm:$0xf]
      %v479 = vld [vmem:[%s253 + $0xf0] sm:$0xf]
      %v480 = vld [vmem:[%s253 + $0xf4] sm:$0xf]
      %v481 = vld [vmem:[%s253 + $0xf8] sm:$0xf]
      %v482 = vld [vmem:[%s253 + $0xfc] sm:$0xf]
      %v483 = vld [vmem:[%s253 + $0x100] sm:$0xf]
      %v484 = vld [vmem:[%s253 + $0x104] sm:$0xf]
      %v485 = vld [vmem:[%s253 + $0x108] sm:$0xf]
      %v486 = vld [vmem:[%s253 + $0x10c] sm:$0xf]
      %v487 = vld [vmem:[%s253 + $0x110] sm:$0xf]
      %v488 = vld [vmem:[%s253 + $0x114] sm:$0xf]
      %v489 = vld [vmem:[%s253 + $0x118] sm:$0xf]
      %v490 = vld [vmem:[%s253 + $0x11c] sm:$0xf]
      %v491 = vld [vmem:[%s253 + $0x120] sm:$0xf]
      %v492 = vld [vmem:[%s253 + $0x124] sm:$0xf]
      %v493 = vld [vmem:[%s253 + $0x128] sm:$0xf]
      %v494 = vld [vmem:[%s253 + $0x12c] sm:$0xf]
      %v495 = vld [vmem:[%s253 + $0x130] sm:$0xf]
      %v496 = vld [vmem:[%s253 + $0x134] sm:$0xf]
      %v497 = vld [vmem:[%s253 + $0x138] sm:$0xf]
      %v498 = vld [vmem:[%s253 + $0x13c] sm:$0xf]
      %v583 = vunpack.c.l.b16 %v335
      %v584 = vunpack.c.h.b16 %v335
      %v585 = vunpack.c.l.b16 %v336
      %v586 = vunpack.c.h.b16 %v336
      %v587 = vunpack.c.l.b16 %v337
      %v588 = vunpack.c.l.b16 %v338
      %v589 = vunpack.c.h.b16 %v338
      %v590 = vunpack.c.l.b16 %v339
      %v591 = vunpack.c.h.b16 %v339
      %v592 = vunpack.c.l.b16 %v340
      %v593 = vunpack.c.l.b16 %v341
      %v594 = vunpack.c.h.b16 %v341
      %v595 = vunpack.c.l.b16 %v342
      %v596 = vunpack.c.h.b16 %v342
      %v597 = vunpack.c.l.b16 %v343
      %v598 = vunpack.c.l.b16 %v344
      %v599 = vunpack.c.h.b16 %v344
      %v600 = vunpack.c.l.b16 %v345
      %v601 = vunpack.c.h.b16 %v345
      %v602 = vunpack.c.l.b16 %v346
      %v603 = vunpack.c.l.b16 %v347
      %v604 = vunpack.c.h.b16 %v347
      %v605 = vunpack.c.l.b16 %v348
      %v606 = vunpack.c.h.b16 %v348
      %v607 = vunpack.c.l.b16 %v349
      %v608 = vunpack.c.l.b16 %v350
      %v609 = vunpack.c.h.b16 %v350
      %v610 = vunpack.c.l.b16 %v351
      %v611 = vunpack.c.h.b16 %v351
      %v612 = vunpack.c.l.b16 %v352
      %v613 = vunpack.c.l.b16 %v353
      %v614 = vunpack.c.h.b16 %v353
      %v615 = vunpack.c.l.b16 %v354
      %v616 = vunpack.c.h.b16 %v354
      %v617 = vunpack.c.l.b16 %v355
      %v618 = vunpack.c.l.b16 %v356
      %v619 = vunpack.c.h.b16 %v356
      %v620 = vunpack.c.l.b16 %v357
      %v621 = vunpack.c.h.b16 %v357
      %v622 = vunpack.c.l.b16 %v358
      %v623 = vunpack.c.l.b16 %v359
      %v624 = vunpack.c.h.b16 %v359
      %v625 = vunpack.c.l.b16 %v360
      %v626 = vunpack.c.h.b16 %v360
      %v627 = vunpack.c.l.b16 %v361
      %v628 = vunpack.c.l.b16 %v362
      %v629 = vunpack.c.h.b16 %v362
      %v630 = vunpack.c.l.b16 %v363
      %v631 = vunpack.c.h.b16 %v363
      %v632 = vunpack.c.l.b16 %v364
      %v633 = vunpack.c.l.b16 %v365
      %v634 = vunpack.c.h.b16 %v365
      %v635 = vunpack.c.l.b16 %v366
      %v636 = vunpack.c.h.b16 %v366
      %v637 = vunpack.c.l.b16 %v367
      %v638 = vunpack.c.l.b16 %v368
      %v639 = vunpack.c.h.b16 %v368
      %v640 = vunpack.c.l.b16 %v369
      %v641 = vunpack.c.h.b16 %v369
      %v642 = vunpack.c.l.b16 %v370
      %v643 = vunpack.c.l.b16 %v371
      %v644 = vunpack.c.h.b16 %v371
      %v645 = vunpack.c.l.b16 %v372
      %v646 = vunpack.c.h.b16 %v372
      %v647 = vunpack.c.l.b16 %v373
      %v648 = vunpack.c.l.b16 %v374
      %v649 = vunpack.c.h.b16 %v374
      %v650 = vunpack.c.l.b16 %v375
      %v651 = vunpack.c.h.b16 %v375
      %v652 = vunpack.c.l.b16 %v376
      %v653 = vunpack.c.l.b16 %v377
      %v654 = vunpack.c.h.b16 %v377
      %v655 = vunpack.c.l.b16 %v378
      %v656 = vunpack.c.h.b16 %v378
      %v657 = vunpack.c.l.b16 %v379
      %v658 = vunpack.c.l.b16 %v380
      %v659 = vunpack.c.h.b16 %v380
      %v660 = vunpack.c.l.b16 %v381
      %v661 = vunpack.c.h.b16 %v381
      %v662 = vunpack.c.l.b16 %v382
      %v663 = vunpack.c.l.b16 %v383
      %v664 = vunpack.c.h.b16 %v383
      %v665 = vunpack.c.l.b16 %v384
      %v666 = vunpack.c.h.b16 %v384
      %v667 = vunpack.c.l.b16 %v385
      %v668 = vunpack.c.l.b16 %v386
      %v669 = vunpack.c.h.b16 %v386
      %v670 = vunpack.c.l.b16 %v387
      %v671 = vunpack.c.h.b16 %v387
      %v672 = vunpack.c.l.b16 %v388
      %v673 = vunpack.c.l.b16 %v389
      %v674 = vunpack.c.h.b16 %v389
      %v675 = vunpack.c.l.b16 %v390
      %v676 = vunpack.c.h.b16 %v390
      %v677 = vunpack.c.l.b16 %v391
      %v678 = vunpack.c.l.b16 %v392
      %v679 = vunpack.c.h.b16 %v392
      %v680 = vunpack.c.l.b16 %v393
      %v681 = vunpack.c.h.b16 %v393
      %v682 = vunpack.c.l.b16 %v394
      %v683 = vunpack.c.l.b16 %v395
      %v684 = vunpack.c.h.b16 %v395
      %v685 = vunpack.c.l.b16 %v396
      %v686 = vunpack.c.h.b16 %v396
      %v687 = vunpack.c.l.b16 %v397
      %v688 = vunpack.c.l.b16 %v398
      %v689 = vunpack.c.h.b16 %v398
      %v690 = vunpack.c.l.b16 %v399
      %v691 = vunpack.c.h.b16 %v399
      %v692 = vunpack.c.l.b16 %v400
      %v693 = vunpack.c.l.b16 %v401
      %v694 = vunpack.c.h.b16 %v401
      %v695 = vunpack.c.l.b16 %v402
      %v696 = vunpack.c.h.b16 %v402
      %v697 = vunpack.c.l.b16 %v403
      %v698 = vunpack.c.l.b16 %v404
      %v699 = vunpack.c.h.b16 %v404
      %v700 = vunpack.c.l.b16 %v405
      %v701 = vunpack.c.h.b16 %v405
      %v702 = vunpack.c.l.b16 %v406
      %v703 = vunpack.c.l.b16 %v407
      %v704 = vunpack.c.h.b16 %v407
      %v705 = vunpack.c.l.b16 %v408
      %v706 = vunpack.c.h.b16 %v408
      %v707 = vunpack.c.l.b16 %v409
      %v708 = vunpack.c.l.b16 %v410
      %v709 = vunpack.c.h.b16 %v410
      %v710 = vunpack.c.l.b16 %v411
      %v711 = vunpack.c.h.b16 %v411
      %v712 = vunpack.c.l.b16 %v412
      %v713 = vunpack.c.l.b16 %v413
      %v714 = vunpack.c.h.b16 %v413
      %v715 = vunpack.c.l.b16 %v414
      %v716 = vunpack.c.h.b16 %v414
      %v717 = vunpack.c.l.b16 %v415
      %v718 = vunpack.c.l.b16 %v416
      %v719 = vunpack.c.h.b16 %v416
      %v720 = vunpack.c.l.b16 %v417
      %v721 = vunpack.c.h.b16 %v417
      %v722 = vunpack.c.l.b16 %v418
      %v723 = vpack.c.b16 %v588, %v583
      %v724 = vpack.c.b16 %v589, %v584
      %v725 = vpack.c.b16 %v590, %v585
      %v726 = vpack.c.b16 %v591, %v586
      %v727 = vpack.c.b16 %v592, %v587
      %v728 = vpack.c.b16 %v598, %v593
      %v729 = vpack.c.b16 %v599, %v594
      %v730 = vpack.c.b16 %v600, %v595
      %v731 = vpack.c.b16 %v601, %v596
      %v732 = vpack.c.b16 %v602, %v597
      %v733 = vpack.c.b16 %v608, %v603
      %v734 = vpack.c.b16 %v609, %v604
      %v735 = vpack.c.b16 %v610, %v605
      %v736 = vpack.c.b16 %v611, %v606
      %v737 = vpack.c.b16 %v612, %v607
      %v738 = vpack.c.b16 %v618, %v613
      %v739 = vpack.c.b16 %v619, %v614
      %v740 = vpack.c.b16 %v620, %v615
      %v741 = vpack.c.b16 %v621, %v616
      %v742 = vpack.c.b16 %v622, %v617
      %v743 = vpack.c.b16 %v628, %v623
      %v744 = vpack.c.b16 %v629, %v624
      %v745 = vpack.c.b16 %v630, %v625
      %v746 = vpack.c.b16 %v631, %v626
      %v747 = vpack.c.b16 %v632, %v627
      %v748 = vpack.c.b16 %v638, %v633
      %v749 = vpack.c.b16 %v639, %v634
      %v750 = vpack.c.b16 %v640, %v635
      %v751 = vpack.c.b16 %v641, %v636
      %v752 = vpack.c.b16 %v642, %v637
      %v753 = vpack.c.b16 %v648, %v643
      %v754 = vpack.c.b16 %v649, %v644
      %v755 = vpack.c.b16 %v650, %v645
      %v756 = vpack.c.b16 %v651, %v646
      %v757 = vpack.c.b16 %v652, %v647
      %v758 = vpack.c.b16 %v658, %v653
      %v759 = vpack.c.b16 %v659, %v654
      %v760 = vpack.c.b16 %v660, %v655
      %v761 = vpack.c.b16 %v661, %v656
      %v762 = vpack.c.b16 %v662, %v657
      %v763 = vpack.c.b16 %v668, %v663
      %v764 = vpack.c.b16 %v669, %v664
      %v765 = vpack.c.b16 %v670, %v665
      %v766 = vpack.c.b16 %v671, %v666
      %v767 = vpack.c.b16 %v672, %v667
      %v768 = vpack.c.b16 %v678, %v673
      %v769 = vpack.c.b16 %v679, %v674
      %v770 = vpack.c.b16 %v680, %v675
      %v771 = vpack.c.b16 %v681, %v676
      %v772 = vpack.c.b16 %v682, %v677
      %v773 = vpack.c.b16 %v688, %v683
      %v774 = vpack.c.b16 %v689, %v684
      %v775 = vpack.c.b16 %v690, %v685
      %v776 = vpack.c.b16 %v691, %v686
      %v777 = vpack.c.b16 %v692, %v687
      %v778 = vpack.c.b16 %v698, %v693
      %v779 = vpack.c.b16 %v699, %v694
      %v780 = vpack.c.b16 %v700, %v695
      %v781 = vpack.c.b16 %v701, %v696
      %v782 = vpack.c.b16 %v702, %v697
      %v783 = vpack.c.b16 %v708, %v703
      %v784 = vpack.c.b16 %v709, %v704
      %v785 = vpack.c.b16 %v710, %v705
      %v786 = vpack.c.b16 %v711, %v706
      %v787 = vpack.c.b16 %v712, %v707
      %v788 = vpack.c.b16 %v718, %v713
      %v789 = vpack.c.b16 %v719, %v714
      %v790 = vpack.c.b16 %v720, %v715
      %v791 = vpack.c.b16 %v721, %v716
      %v792 = vpack.c.b16 %v722, %v717
      %v943 = vunpack.c.l.b16 %v419
      %v944 = vunpack.c.l.b16 %v420
      %v945 = vunpack.c.l.b16 %v421
      %v946 = vunpack.c.l.b16 %v422
      %v947 = vunpack.c.l.b16 %v423
      %v948 = vunpack.c.l.b16 %v424
      %v949 = vunpack.c.l.b16 %v425
      %v950 = vunpack.c.l.b16 %v426
      %v951 = vunpack.c.l.b16 %v427
      %v952 = vunpack.c.l.b16 %v428
      %v953 = vunpack.c.l.b16 %v429
      %v954 = vunpack.c.l.b16 %v430
      %v955 = vunpack.c.l.b16 %v431
      %v956 = vunpack.c.l.b16 %v432
      %v957 = vunpack.c.l.b16 %v433
      %v958 = vunpack.c.l.b16 %v434
      %v959 = vunpack.c.l.b16 %v435
      %v960 = vunpack.c.l.b16 %v436
      %v961 = vunpack.c.l.b16 %v437
      %v962 = vunpack.c.l.b16 %v438
      %v963 = vunpack.c.l.b16 %v439
      %v964 = vunpack.c.l.b16 %v440
      %v965 = vunpack.c.l.b16 %v441
      %v966 = vunpack.c.l.b16 %v442
      %v967 = vunpack.c.l.b16 %v443
      %v968 = vunpack.c.l.b16 %v444
      %v969 = vunpack.c.l.b16 %v445
      %v970 = vunpack.c.l.b16 %v446
      %v971 = vunpack.c.l.b16 %v447
      %v972 = vunpack.c.l.b16 %v448
      %v973 = vunpack.c.l.b16 %v449
      %v974 = vunpack.c.l.b16 %v450
      %v975 = vunpack.c.l.b16 %v451
      %v976 = vunpack.c.l.b16 %v452
      %v977 = vunpack.c.l.b16 %v453
      %v978 = vunpack.c.l.b16 %v454
      %v979 = vunpack.c.l.b16 %v455
      %v980 = vunpack.c.l.b16 %v456
      %v981 = vunpack.c.l.b16 %v457
      %v982 = vunpack.c.l.b16 %v458
      %v983 = vunpack.c.l.b16 %v459
      %v984 = vunpack.c.l.b16 %v460
      %v985 = vunpack.c.l.b16 %v461
      %v986 = vunpack.c.l.b16 %v462
      %v987 = vunpack.c.l.b16 %v463
      %v988 = vunpack.c.l.b16 %v464
      %v989 = vunpack.c.l.b16 %v465
      %v990 = vunpack.c.l.b16 %v466
      %v991 = vunpack.c.l.b16 %v467
      %v992 = vunpack.c.l.b16 %v468
      %v993 = vunpack.c.l.b16 %v469
      %v994 = vunpack.c.l.b16 %v470
      %v995 = vunpack.c.l.b16 %v471
      %v996 = vunpack.c.l.b16 %v472
      %v997 = vunpack.c.l.b16 %v473
      %v998 = vunpack.c.l.b16 %v474
      %v999 = vunpack.c.l.b16 %v475
      %v1000 = vunpack.c.l.b16 %v476
      %v1001 = vunpack.c.l.b16 %v477
      %v1002 = vunpack.c.l.b16 %v478
      %v1003 = vunpack.c.l.b16 %v479
      %v1004 = vunpack.c.l.b16 %v480
      %v1005 = vunpack.c.l.b16 %v481
      %v1006 = vunpack.c.l.b16 %v482
      %v1007 = vunpack.c.l.b16 %v483
      %v1008 = vunpack.c.l.b16 %v484
      %v1009 = vunpack.c.l.b16 %v485
      %v1010 = vunpack.c.l.b16 %v486
      %v1011 = vunpack.c.l.b16 %v487
      %v1012 = vunpack.c.l.b16 %v488
      %v1013 = vunpack.c.l.b16 %v489
      %v1014 = vunpack.c.l.b16 %v490
      %v1015 = vunpack.c.l.b16 %v491
      %v1016 = vunpack.c.l.b16 %v492
      %v1017 = vunpack.c.l.b16 %v493
      %v1018 = vunpack.c.l.b16 %v494
      %v1019 = vunpack.c.l.b16 %v495
      %v1020 = vunpack.c.l.b16 %v496
      %v1021 = vunpack.c.l.b16 %v497
      %v1022 = vunpack.c.l.b16 %v498
      %v1023 = vpack.c.b16 %v944, %v943
      %v1024 = vpack.c.b16 %v946, %v945
      %v1025 = vpack.c.b16 %v948, %v947
      %v1026 = vpack.c.b16 %v950, %v949
      %v1027 = vpack.c.b16 %v952, %v951
      %v1028 = vpack.c.b16 %v954, %v953
      %v1029 = vpack.c.b16 %v956, %v955
      %v1030 = vpack.c.b16 %v958, %v957
      %v1031 = vpack.c.b16 %v960, %v959
      %v1032 = vpack.c.b16 %v962, %v961
      %v1033 = vpack.c.b16 %v964, %v963
      %v1034 = vpack.c.b16 %v966, %v965
      %v1035 = vpack.c.b16 %v968, %v967
      %v1036 = vpack.c.b16 %v970, %v969
      %v1037 = vpack.c.b16 %v972, %v971
      %v1038 = vpack.c.b16 %v974, %v973
      %v1039 = vpack.c.b16 %v976, %v975
      %v1040 = vpack.c.b16 %v978, %v977
      %v1041 = vpack.c.b16 %v980, %v979
      %v1042 = vpack.c.b16 %v982, %v981
      %v1043 = vpack.c.b16 %v984, %v983
      %v1044 = vpack.c.b16 %v986, %v985
      %v1045 = vpack.c.b16 %v988, %v987
      %v1046 = vpack.c.b16 %v990, %v989
      %v1047 = vpack.c.b16 %v992, %v991
      %v1048 = vpack.c.b16 %v994, %v993
      %v1049 = vpack.c.b16 %v996, %v995
      %v1050 = vpack.c.b16 %v998, %v997
      %v1051 = vpack.c.b16 %v1000, %v999
      %v1052 = vpack.c.b16 %v1002, %v1001
      %v1053 = vpack.c.b16 %v1004, %v1003
      %v1054 = vpack.c.b16 %v1006, %v1005
      %v1055 = vpack.c.b16 %v1008, %v1007
      %v1056 = vpack.c.b16 %v1010, %v1009
      %v1057 = vpack.c.b16 %v1012, %v1011
      %v1058 = vpack.c.b16 %v1014, %v1013
      %v1059 = vpack.c.b16 %v1016, %v1015
      %v1060 = vpack.c.b16 %v1018, %v1017
      %v1061 = vpack.c.b16 %v1020, %v1019
      %v1062 = vpack.c.b16 %v1022, %v1021
      %1103 = vmatprep.subr.bf16.mxu0 0
      %1104 = vmatpush1.bf16.msra.mxu0 %v1023
      %1105 = vmatprep.subr.bf16.mxu0 0
      %1106 = vmatpush1.bf16.msra.mxu0 %v1024
      %1107 = vmatprep.subr.bf16.mxu0 0
      %1108 = vmatpush1.bf16.msra.mxu0 %v1025
      %1109 = vmatprep.subr.bf16.mxu0 0
      %1110 = vmatpush1.bf16.msra.mxu0 %v1026
      %1111 = vmatprep.subr.bf16.mxu0 0
      %1112 = vmatpush1.bf16.msra.mxu0 %v1027
      %1113 = vmatprep.subr.bf16.mxu0 0
      %1114 = vmatpush1.bf16.msra.mxu0 %v1028
      %1115 = vmatprep.subr.bf16.mxu0 0
      %1116 = vmatpush1.bf16.msra.mxu0 %v1029
      %1117 = vmatprep.subr.bf16.mxu0 0
      %1118 = vmatpush1.bf16.msra.mxu0 %v1030
      %1119 = vmatprep.subr.bf16.mxu0 0
      %1120 = vmatpush1.bf16.msra.mxu0 %v1031
      %1121 = vmatprep.subr.bf16.mxu0 0
      %1122 = vmatpush1.bf16.msra.mxu0 %v1032
      %1123 = vmatprep.subr.bf16.mxu0 0
      %1124 = vmatpush1.bf16.msra.mxu0 %v1033
      %1125 = vmatprep.subr.bf16.mxu0 0
      %1126 = vmatpush1.bf16.msra.mxu0 %v1034
      %1127 = vmatprep.subr.bf16.mxu0 0
      %1128 = vmatpush1.bf16.msra.mxu0 %v1035
      %1129 = vmatprep.subr.bf16.mxu0 0
      %1130 = vmatpush1.bf16.msra.mxu0 %v1036
      %1131 = vmatprep.subr.bf16.mxu0 0
      %1132 = vmatpush1.bf16.msra.mxu0 %v1037
      %1133 = vmatprep.subr.bf16.mxu0 0
      %1134 = vmatpush1.bf16.msra.mxu0 %v1038
      %1135 = vmatprep.mubr.bf16.mxu0 %v724
      %1136 = vmatmul.mubr.bf16.gmra.mrb[0].mxu0 %v723
      %v1137 = vpop.f32.mrb[0].mxu0
      %v1138 = vadd.f32 0.0, %v1137
      %v1139 = vpop.f32.mrb[0].mxu0
      %v1140 = vpop.f32.mrb[0].mxu0
      %v1141 = vadd.f32 0.0, %v1140
      %v1142 = vpop.f32.mrb[0].mxu0
      %1143 = vmatprep.mubr.bf16.mxu0 %v729
      %1144 = vmatmul.mubr.bf16.gmra.mrb[0].mxu0 %v728
      %v1145 = vpop.f32.mrb[0].mxu0
      %v1146 = vadd.f32 0.0, %v1145
      %v1147 = vpop.f32.mrb[0].mxu0
      %v1148 = vpop.f32.mrb[0].mxu0
      %v1149 = vadd.f32 0.0, %v1148
      %v1150 = vpop.f32.mrb[0].mxu0
      %1151 = vmatprep.mubr.bf16.mxu0 %v734
      %1152 = vmatmul.mubr.bf16.gmra.mrb[0].mxu0 %v733
      %v1153 = vpop.f32.mrb[0].mxu0
      %v1154 = vadd.f32 0.0, %v1153
      %v1155 = vpop.f32.mrb[0].mxu0
      %v1156 = vpop.f32.mrb[0].mxu0
      %v1157 = vadd.f32 0.0, %v1156
      %v1158 = vpop.f32.mrb[0].mxu0
      %1159 = vmatprep.mubr.bf16.mxu0 %v739
      %1160 = vmatmul.mubr.bf16.gmra.mrb[0].mxu0 %v738
      %v1161 = vpop.f32.mrb[0].mxu0
      %v1162 = vadd.f32 0.0, %v1161
      %v1163 = vpop.f32.mrb[0].mxu0
      %v1164 = vpop.f32.mrb[0].mxu0
      %v1165 = vadd.f32 0.0, %v1164
      %v1166 = vpop.f32.mrb[0].mxu0
      %1167 = vmatprep.mubr.bf16.mxu0 %v744
      %1168 = vmatmul.mubr.bf16.gmra.mrb[0].mxu0 %v743
      %v1169 = vpop.f32.mrb[0].mxu0
      %v1170 = vadd.f32 0.0, %v1169
      %v1171 = vpop.f32.mrb[0].mxu0
      %v1172 = vpop.f32.mrb[0].mxu0
      %v1173 = vadd.f32 0.0, %v1172
      %v1174 = vpop.f32.mrb[0].mxu0
      %1175 = vmatprep.mubr.bf16.mxu0 %v749
      %1176 = vmatmul.mubr.bf16.gmra.mrb[0].mxu0 %v748
      %v1177 = vpop.f32.mrb[0].mxu0
      %v1178 = vadd.f32 0.0, %v1177
      %v1179 = vpop.f32.mrb[0].mxu0
      %v1180 = vpop.f32.mrb[0].mxu0
      %v1181 = vadd.f32 0.0, %v1180
      %v1182 = vpop.f32.mrb[0].mxu0
      %1183 = vmatprep.mubr.bf16.mxu0 %v754
      %1184 = vmatmul.mubr.bf16.gmra.mrb[0].mxu0 %v753
      %v1185 = vpop.f32.mrb[0].mxu0
      %v1186 = vadd.f32 0.0, %v1185
      %v1187 = vpop.f32.mrb[0].mxu0
      %v1188 = vpop.f32.mrb[0].mxu0
      %v1189 = vadd.f32 0.0, %v1188
      %v1190 = vpop.f32.mrb[0].mxu0
      %1191 = vmatprep.mubr.bf16.mxu0 %v759
      %1192 = vmatmul.mubr.bf16.gmra.mrb[0].mxu0 %v758
      %v1193 = vpop.f32.mrb[0].mxu0
      %v1194 = vadd.f32 0.0, %v1193
      %v1195 = vpop.f32.mrb[0].mxu0
      %v1196 = vpop.f32.mrb[0].mxu0
      %v1197 = vadd.f32 0.0, %v1196
      %v1198 = vpop.f32.mrb[0].mxu0
      %1199 = vmatprep.mubr.bf16.mxu0 %v764
      %1200 = vmatmul.mubr.bf16.gmra.mrb[0].mxu0 %v763
      %v1201 = vpop.f32.mrb[0].mxu0
      %v1202 = vadd.f32 0.0, %v1201
      %v1203 = vpop.f32.mrb[0].mxu0
      %v1204 = vpop.f32.mrb[0].mxu0
      %v1205 = vadd.f32 0.0, %v1204
      %v1206 = vpop.f32.mrb[0].mxu0
      %1207 = vmatprep.mubr.bf16.mxu0 %v769
      %1208 = vmatmul.mubr.bf16.gmra.mrb[0].mxu0 %v768
      %v1209 = vpop.f32.mrb[0].mxu0
      %v1210 = vadd.f32 0.0, %v1209
      %v1211 = vpop.f32.mrb[0].mxu0
      %v1212 = vpop.f32.mrb[0].mxu0
      %v1213 = vadd.f32 0.0, %v1212
      %v1214 = vpop.f32.mrb[0].mxu0
      %1215 = vmatprep.mubr.bf16.mxu0 %v774
      %1216 = vmatmul.mubr.bf16.gmra.mrb[0].mxu0 %v773
      %v1217 = vpop.f32.mrb[0].mxu0
      %v1218 = vadd.f32 0.0, %v1217
      %v1219 = vpop.f32.mrb[0].mxu0
      %v1220 = vpop.f32.mrb[0].mxu0
      %v1221 = vadd.f32 0.0, %v1220
      %v1222 = vpop.f32.mrb[0].mxu0
      %1223 = vmatprep.mubr.bf16.mxu0 %v779
      %1224 = vmatmul.mubr.bf16.gmra.mrb[0].mxu0 %v778
      %v1225 = vpop.f32.mrb[0].mxu0
      %v1226 = vadd.f32 0.0, %v1225
      %v1227 = vpop.f32.mrb[0].mxu0
      %v1228 = vpop.f32.mrb[0].mxu0
      %v1229 = vadd.f32 0.0, %v1228
      %v1230 = vpop.f32.mrb[0].mxu0
      %1231 = vmatprep.mubr.bf16.mxu0 %v784
      %1232 = vmatmul.mubr.bf16.gmra.mrb[0].mxu0 %v783
      %v1233 = vpop.f32.mrb[0].mxu0
      %v1234 = vadd.f32 0.0, %v1233
      %v1235 = vpop.f32.mrb[0].mxu0
      %v1236 = vpop.f32.mrb[0].mxu0
      %v1237 = vadd.f32 0.0, %v1236
      %v1238 = vpop.f32.mrb[0].mxu0
      %1239 = vmatprep.mubr.bf16.mxu0 %v789
      %1240 = vmatmul.mubr.bf16.gmra.mrb[0].mxu0 %v788
      %v1241 = vpop.f32.mrb[0].mxu0
      %v1242 = vadd.f32 0.0, %v1241
      %v1243 = vpop.f32.mrb[0].mxu0
      %v1244 = vpop.f32.mrb[0].mxu0
      %v1245 = vadd.f32 0.0, %v1244
      %v1246 = vpop.f32.mrb[0].mxu0
      %1247 = vdwg.mxu0
      %1248 = vmatprep.subr.bf16.mxu0 0
      %1249 = vmatpush1.bf16.msra.mxu0 %v1039
      %1250 = vmatprep.subr.bf16.mxu0 0
      %1251 = vmatpush1.bf16.msra.mxu0 %v1040
      %1252 = vmatprep.subr.bf16.mxu0 0
      %1253 = vmatpush1.bf16.msra.mxu0 %v1041
      %1254 = vmatprep.subr.bf16.mxu0 0
      %1255 = vmatpush1.bf16.msra.mxu0 %v1042
      %1256 = vmatprep.subr.bf16.mxu0 0
      %1257 = vmatpush1.bf16.msra.mxu0 %v1043
      %1258 = vmatprep.subr.bf16.mxu0 0
      %1259 = vmatpush1.bf16.msra.mxu0 %v1044
      %1260 = vmatprep.subr.bf16.mxu0 0
      %1261 = vmatpush1.bf16.msra.mxu0 %v1045
      %1262 = vmatprep.subr.bf16.mxu0 0
      %1263 = vmatpush1.bf16.msra.mxu0 %v1046
      %1264 = vmatprep.subr.bf16.mxu0 0
      %1265 = vmatpush1.bf16.msra.mxu0 %v1047
      %1266 = vmatprep.subr.bf16.mxu0 0
      %1267 = vmatpush1.bf16.msra.mxu0 %v1048
      %1268 = vmatprep.subr.bf16.mxu0 0
      %1269 = vmatpush1.bf16.msra.mxu0 %v1049
      %1270 = vmatprep.subr.bf16.mxu0 0
      %1271 = vmatpush1.bf16.msra.mxu0 %v1050
      %1272 = vmatprep.subr.bf16.mxu0 0
      %1273 = vmatpush1.bf16.msra.mxu0 %v1051
      %1274 = vmatprep.subr.bf16.mxu0 0
      %1275 = vmatpush1.bf16.msra.mxu0 %v1052
      %1276 = vmatprep.subr.bf16.mxu0 0
      %1277 = vmatpush1.bf16.msra.mxu0 %v1053
      %1278 = vmatprep.subr.bf16.mxu0 0
      %1279 = vmatpush1.bf16.msra.mxu0 %v1054
      %1280 = vmatprep.mubr.bf16.mxu0 %v726
      %1281 = vmatmul.mubr.bf16.gmra.mrb[0].mxu0 %v725
      %v1282 = vpop.f32.mrb[0].mxu0
      %v1283 = vadd.f32 %v1138, %v1282
      %v1284 = vpop.f32.mrb[0].mxu0
      %v1285 = vpop.f32.mrb[0].mxu0
      %v1286 = vadd.f32 %v1141, %v1285
      %v1287 = vpop.f32.mrb[0].mxu0
      %1288 = vmatprep.mubr.bf16.mxu0 %v731
      %1289 = vmatmul.mubr.bf16.gmra.mrb[0].mxu0 %v730
      %v1290 = vpop.f32.mrb[0].mxu0
      %v1291 = vadd.f32 %v1146, %v1290
      %v1292 = vpop.f32.mrb[0].mxu0
      %v1293 = vpop.f32.mrb[0].mxu0
      %v1294 = vadd.f32 %v1149, %v1293
      %v1295 = vpop.f32.mrb[0].mxu0
      %1296 = vmatprep.mubr.bf16.mxu0 %v736
      %1297 = vmatmul.mubr.bf16.gmra.mrb[0].mxu0 %v735
      %v1298 = vpop.f32.mrb[0].mxu0
      %v1299 = vadd.f32 %v1154, %v1298
      %v1300 = vpop.f32.mrb[0].mxu0
      %v1301 = vpop.f32.mrb[0].mxu0
      %v1302 = vadd.f32 %v1157, %v1301
      %v1303 = vpop.f32.mrb[0].mxu0
      %1304 = vmatprep.mubr.bf16.mxu0 %v741
      %1305 = vmatmul.mubr.bf16.gmra.mrb[0].mxu0 %v740
      %v1306 = vpop.f32.mrb[0].mxu0
      %v1307 = vadd.f32 %v1162, %v1306
      %v1308 = vpop.f32.mrb[0].mxu0
      %v1309 = vpop.f32.mrb[0].mxu0
      %v1310 = vadd.f32 %v1165, %v1309
      %v1311 = vpop.f32.mrb[0].mxu0
      %1312 = vmatprep.mubr.bf16.mxu0 %v746
      %1313 = vmatmul.mubr.bf16.gmra.mrb[0].mxu0 %v745
      %v1314 = vpop.f32.mrb[0].mxu0
      %v1315 = vadd.f32 %v1170, %v1314
      %v1316 = vpop.f32.mrb[0].mxu0
      %v1317 = vpop.f32.mrb[0].mxu0
      %v1318 = vadd.f32 %v1173, %v1317
      %v1319 = vpop.f32.mrb[0].mxu0
      %1320 = vmatprep.mubr.bf16.mxu0 %v751
      %1321 = vmatmul.mubr.bf16.gmra.mrb[0].mxu0 %v750
      %v1322 = vpop.f32.mrb[0].mxu0
      %v1323 = vadd.f32 %v1178, %v1322
      %v1324 = vpop.f32.mrb[0].mxu0
      %v1325 = vpop.f32.mrb[0].mxu0
      %v1326 = vadd.f32 %v1181, %v1325
      %v1327 = vpop.f32.mrb[0].mxu0
      %1328 = vmatprep.mubr.bf16.mxu0 %v756
      %1329 = vmatmul.mubr.bf16.gmra.mrb[0].mxu0 %v755
      %v1330 = vpop.f32.mrb[0].mxu0
      %v1331 = vadd.f32 %v1186, %v1330
      %v1332 = vpop.f32.mrb[0].mxu0
      %v1333 = vpop.f32.mrb[0].mxu0
      %v1334 = vadd.f32 %v1189, %v1333
      %v1335 = vpop.f32.mrb[0].mxu0
      %1336 = vmatprep.mubr.bf16.mxu0 %v761
      %1337 = vmatmul.mubr.bf16.gmra.mrb[0].mxu0 %v760
      %v1338 = vpop.f32.mrb[0].mxu0
      %v1339 = vadd.f32 %v1194, %v1338
      %v1340 = vpop.f32.mrb[0].mxu0
      %v1341 = vpop.f32.mrb[0].mxu0
      %v1342 = vadd.f32 %v1197, %v1341
      %v1343 = vpop.f32.mrb[0].mxu0
      %1344 = vmatprep.mubr.bf16.mxu0 %v766
      %1345 = vmatmul.mubr.bf16.gmra.mrb[0].mxu0 %v765
      %v1346 = vpop.f32.mrb[0].mxu0
      %v1347 = vadd.f32 %v1202, %v1346
      %v1348 = vpop.f32.mrb[0].mxu0
      %v1349 = vpop.f32.mrb[0].mxu0
      %v1350 = vadd.f32 %v1205, %v1349
      %v1351 = vpop.f32.mrb[0].mxu0
      %1352 = vmatprep.mubr.bf16.mxu0 %v771
      %1353 = vmatmul.mubr.bf16.gmra.mrb[0].mxu0 %v770
      %v1354 = vpop.f32.mrb[0].mxu0
      %v1355 = vadd.f32 %v1210, %v1354
      %v1356 = vpop.f32.mrb[0].mxu0
      %v1357 = vpop.f32.mrb[0].mxu0
      %v1358 = vadd.f32 %v1213, %v1357
      %v1359 = vpop.f32.mrb[0].mxu0
      %1360 = vmatprep.mubr.bf16.mxu0 %v776
      %1361 = vmatmul.mubr.bf16.gmra.mrb[0].mxu0 %v775
      %v1362 = vpop.f32.mrb[0].mxu0
      %v1363 = vadd.f32 %v1218, %v1362
      %v1364 = vpop.f32.mrb[0].mxu0
      %v1365 = vpop.f32.mrb[0].mxu0
      %v1366 = vadd.f32 %v1221, %v1365
      %v1367 = vpop.f32.mrb[0].mxu0
      %1368 = vmatprep.mubr.bf16.mxu0 %v781
      %1369 = vmatmul.mubr.bf16.gmra.mrb[0].mxu0 %v780
      %v1370 = vpop.f32.mrb[0].mxu0
      %v1371 = vadd.f32 %v1226, %v1370
      %v1372 = vpop.f32.mrb[0].mxu0
      %v1373 = vpop.f32.mrb[0].mxu0
      %v1374 = vadd.f32 %v1229, %v1373
      %v1375 = vpop.f32.mrb[0].mxu0
      %1376 = vmatprep.mubr.bf16.mxu0 %v786
      %1377 = vmatmul.mubr.bf16.gmra.mrb[0].mxu0 %v785
      %v1378 = vpop.f32.mrb[0].mxu0
      %v1379 = vadd.f32 %v1234, %v1378
      %v1380 = vpop.f32.mrb[0].mxu0
      %v1381 = vpop.f32.mrb[0].mxu0
      %v1382 = vadd.f32 %v1237, %v1381
      %v1383 = vpop.f32.mrb[0].mxu0
      %1384 = vmatprep.mubr.bf16.mxu0 %v791
      %1385 = vmatmul.mubr.bf16.gmra.mrb[0].mxu0 %v790
      %v1386 = vpop.f32.mrb[0].mxu0
      %v1387 = vadd.f32 %v1242, %v1386
      %v1388 = vpop.f32.mrb[0].mxu0
      %v1389 = vpop.f32.mrb[0].mxu0
      %v1390 = vadd.f32 %v1245, %v1389
      %v1391 = vpop.f32.mrb[0].mxu0
      %1392 = vdwg.mxu0
      %1393 = vmatprep.subr.bf16.mxu0 0
      %1394 = vmatpush1.bf16.msra.mxu0 %v1055
      %1395 = vmatprep.subr.bf16.mxu0 0
      %1396 = vmatpush1.bf16.msra.mxu0 %v1056
      %1397 = vmatprep.subr.bf16.mxu0 0
      %1398 = vmatpush1.bf16.msra.mxu0 %v1057
      %1399 = vmatprep.subr.bf16.mxu0 0
      %1400 = vmatpush1.bf16.msra.mxu0 %v1058
      %1401 = vmatprep.subr.bf16.mxu0 0
      %1402 = vmatpush1.bf16.msra.mxu0 %v1059
      %1403 = vmatprep.subr.bf16.mxu0 0
      %1404 = vmatpush1.bf16.msra.mxu0 %v1060
      %1405 = vmatprep.subr.bf16.mxu0 0
      %1406 = vmatpush1.bf16.msra.mxu0 %v1061
      %1407 = vmatprep.subr.bf16.mxu0 0
      %1408 = vmatpush1.bf16.msra.mxu0 %v1062
      %1409 = vmatprep.subr.bf16.mxu0 0
      %1410 = vmatpush1.bf16.msra.mxu0 0
      %1411 = vmatprep.subr.bf16.mxu0 0
      %1412 = vmatpush1.bf16.msra.mxu0 0
      %1413 = vmatprep.subr.bf16.mxu0 0
      %1414 = vmatpush1.bf16.msra.mxu0 0
      %1415 = vmatprep.subr.bf16.mxu0 0
      %1416 = vmatpush1.bf16.msra.mxu0 0
      %1417 = vmatprep.subr.bf16.mxu0 0
      %1418 = vmatpush1.bf16.msra.mxu0 0
      %1419 = vmatprep.subr.bf16.mxu0 0
      %1420 = vmatpush1.bf16.msra.mxu0 0
      %1421 = vmatprep.subr.bf16.mxu0 0
      %1422 = vmatpush1.bf16.msra.mxu0 0
      %1423 = vmatprep.subr.bf16.mxu0 0
      %1424 = vmatpush1.bf16.msra.mxu0 0
      %1425 = vmatprep.mubr.bf16.mxu0 0
      %1426 = vmatmul.mubr.bf16.gmra.mrb[0].mxu0 %v727
      %v1427 = vpop.f32.mrb[0].mxu0
      %v1428 = vadd.f32 %v1283, %v1427
      %v1429 = vpop.f32.mrb[0].mxu0
      %v1430 = vpop.f32.mrb[0].mxu0
      %v1431 = vadd.f32 %v1286, %v1430
      %v1432 = vpop.f32.mrb[0].mxu0
      %1433 = vmatprep.mubr.bf16.mxu0 0
      %1434 = vmatmul.mubr.bf16.gmra.mrb[0].mxu0 %v732
      %v1435 = vpop.f32.mrb[0].mxu0
      %v1436 = vadd.f32 %v1291, %v1435
      %v1437 = vpop.f32.mrb[0].mxu0
      %v1438 = vpop.f32.mrb[0].mxu0
      %v1439 = vadd.f32 %v1294, %v1438
      %v1440 = vpop.f32.mrb[0].mxu0
      %1441 = vmatprep.mubr.bf16.mxu0 0
      %1442 = vmatmul.mubr.bf16.gmra.mrb[0].mxu0 %v737
      %v1443 = vpop.f32.mrb[0].mxu0
      %v1444 = vadd.f32 %v1299, %v1443
      %v1445 = vpop.f32.mrb[0].mxu0
      %v1446 = vpop.f32.mrb[0].mxu0
      %v1447 = vadd.f32 %v1302, %v1446
      %v1448 = vpop.f32.mrb[0].mxu0
      %1449 = vmatprep.mubr.bf16.mxu0 0
      %1450 = vmatmul.mubr.bf16.gmra.mrb[0].mxu0 %v742
      %v1451 = vpop.f32.mrb[0].mxu0
      %v1452 = vadd.f32 %v1307, %v1451
      %v1453 = vpop.f32.mrb[0].mxu0
      %v1454 = vpop.f32.mrb[0].mxu0
      %v1455 = vadd.f32 %v1310, %v1454
      %v1456 = vpop.f32.mrb[0].mxu0
      %1457 = vmatprep.mubr.bf16.mxu0 0
      %1458 = vmatmul.mubr.bf16.gmra.mrb[0].mxu0 %v747
      %v1459 = vpop.f32.mrb[0].mxu0
      %v1460 = vadd.f32 %v1315, %v1459
      %v1461 = vpop.f32.mrb[0].mxu0
      %v1462 = vpop.f32.mrb[0].mxu0
      %v1463 = vadd.f32 %v1318, %v1462
      %v1464 = vpop.f32.mrb[0].mxu0
      %1465 = vmatprep.mubr.bf16.mxu0 0
      %1466 = vmatmul.mubr.bf16.gmra.mrb[0].mxu0 %v752
      %v1467 = vpop.f32.mrb[0].mxu0
      %v1468 = vadd.f32 %v1323, %v1467
      %v1469 = vpop.f32.mrb[0].mxu0
      %v1470 = vpop.f32.mrb[0].mxu0
      %v1471 = vadd.f32 %v1326, %v1470
      %v1472 = vpop.f32.mrb[0].mxu0
      %1473 = vmatprep.mubr.bf16.mxu0 0
      %1474 = vmatmul.mubr.bf16.gmra.mrb[0].mxu0 %v757
      %v1475 = vpop.f32.mrb[0].mxu0
      %v1476 = vadd.f32 %v1331, %v1475
      %v1477 = vpop.f32.mrb[0].mxu0
      %v1478 = vpop.f32.mrb[0].mxu0
      %v1479 = vadd.f32 %v1334, %v1478
      %v1480 = vpop.f32.mrb[0].mxu0
      %1481 = vmatprep.mubr.bf16.mxu0 0
      %1482 = vmatmul.mubr.bf16.gmra.mrb[0].mxu0 %v762
      %v1483 = vpop.f32.mrb[0].mxu0
      %v1484 = vadd.f32 %v1339, %v1483
      %v1485 = vpop.f32.mrb[0].mxu0
      %v1486 = vpop.f32.mrb[0].mxu0
      %v1487 = vadd.f32 %v1342, %v1486
      %v1488 = vpop.f32.mrb[0].mxu0
      %1489 = vmatprep.mubr.bf16.mxu0 0
      %1490 = vmatmul.mubr.bf16.gmra.mrb[0].mxu0 %v767
      %v1491 = vpop.f32.mrb[0].mxu0
      %v1492 = vadd.f32 %v1347, %v1491
      %v1493 = vpop.f32.mrb[0].mxu0
      %v1494 = vpop.f32.mrb[0].mxu0
      %v1495 = vadd.f32 %v1350, %v1494
      %v1496 = vpop.f32.mrb[0].mxu0
      %1497 = vmatprep.mubr.bf16.mxu0 0
      %1498 = vmatmul.mubr.bf16.gmra.mrb[0].mxu0 %v772
      %v1499 = vpop.f32.mrb[0].mxu0
      %v1500 = vadd.f32 %v1355, %v1499
      %v1501 = vpop.f32.mrb[0].mxu0
      %v1502 = vpop.f32.mrb[0].mxu0
      %v1503 = vadd.f32 %v1358, %v1502
      %v1504 = vpop.f32.mrb[0].mxu0
      %1505 = vmatprep.mubr.bf16.mxu0 0
      %1506 = vmatmul.mubr.bf16.gmra.mrb[0].mxu0 %v777
      %v1507 = vpop.f32.mrb[0].mxu0
      %v1508 = vadd.f32 %v1363, %v1507
      %v1509 = vpop.f32.mrb[0].mxu0
      %v1510 = vpop.f32.mrb[0].mxu0
      %v1511 = vadd.f32 %v1366, %v1510
      %v1512 = vpop.f32.mrb[0].mxu0
      %1513 = vmatprep.mubr.bf16.mxu0 0
      %1514 = vmatmul.mubr.bf16.gmra.mrb[0].mxu0 %v782
      %v1515 = vpop.f32.mrb[0].mxu0
      %v1516 = vadd.f32 %v1371, %v1515
      %v1517 = vpop.f32.mrb[0].mxu0
      %v1518 = vpop.f32.mrb[0].mxu0
      %v1519 = vadd.f32 %v1374, %v1518
      %v1520 = vpop.f32.mrb[0].mxu0
      %1521 = vmatprep.mubr.bf16.mxu0 0
      %1522 = vmatmul.mubr.bf16.gmra.mrb[0].mxu0 %v787
      %v1523 = vpop.f32.mrb[0].mxu0
      %v1524 = vadd.f32 %v1379, %v1523
      %v1525 = vpop.f32.mrb[0].mxu0
      %v1526 = vpop.f32.mrb[0].mxu0
      %v1527 = vadd.f32 %v1382, %v1526
      %v1528 = vpop.f32.mrb[0].mxu0
      %1529 = vmatprep.mubr.bf16.mxu0 0
      %1530 = vmatmul.mubr.bf16.gmra.mrb[0].mxu0 %v792
      %v1531 = vpop.f32.mrb[0].mxu0
      %v1532 = vadd.f32 %v1387, %v1531
      %v1533 = vpop.f32.mrb[0].mxu0
      %v1534 = vpop.f32.mrb[0].mxu0
      %v1535 = vadd.f32 %v1390, %v1534
      %v1536 = vpop.f32.mrb[0].mxu0
      %1537 = vdwg.mxu0
      %v1538 = vadd.f32 %v307, %v1428
      %v1539 = vadd.f32 %v308, %v1431
      %v1540 = vadd.f32 %v309, %v1436
      %v1541 = vadd.f32 %v310, %v1439
      %v1542 = vadd.f32 %v311, %v1444
      %v1543 = vadd.f32 %v312, %v1447
      %v1544 = vadd.f32 %v313, %v1452
      %v1545 = vadd.f32 %v314, %v1455
      %v1546 = vadd.f32 %v315, %v1460
      %v1547 = vadd.f32 %v316, %v1463
      %v1548 = vadd.f32 %v317, %v1468
      %v1549 = vadd.f32 %v318, %v1471
      %v1550 = vadd.f32 %v319, %v1476
      %v1551 = vadd.f32 %v320, %v1479
      %v1552 = vadd.f32 %v321, %v1484
      %v1553 = vadd.f32 %v322, %v1487
      %v1554 = vadd.f32 %v323, %v1492
      %v1555 = vadd.f32 %v324, %v1495
      %v1556 = vadd.f32 %v325, %v1500
      %v1557 = vadd.f32 %v326, %v1503
      %v1558 = vadd.f32 %v327, %v1508
      %v1559 = vadd.f32 %v328, %v1511
      %v1560 = vadd.f32 %v329, %v1516
      %v1561 = vadd.f32 %v330, %v1519
      %v1562 = vadd.f32 %v331, %v1524
      %v1563 = vadd.f32 %v332, %v1527
      %v1564 = vadd.f32 %v333, %v1532
      %v1565 = vadd.f32 %v334, %v1535
      %1566 = vst [vmem:[%s265] sm:$0xff] %v1538
      %1567 = vst [vmem:[%s265 + $0x8] sm:$0xff] %v1539
      %1568 = vst [vmem:[%s265 + $0x10] sm:$0xff] %v1540
      %1569 = vst [vmem:[%s265 + $0x18] sm:$0xff] %v1541
      %1570 = vst [vmem:[%s265 + $0x20] sm:$0xff] %v1542
      %1571 = vst [vmem:[%s265 + $0x28] sm:$0xff] %v1543
      %1572 = vst [vmem:[%s265 + $0x30] sm:$0xff] %v1544
      %1573 = vst [vmem:[%s265 + $0x38] sm:$0xff] %v1545
      %1574 = vst [vmem:[%s265 + $0x40] sm:$0xff] %v1546
      %1575 = vst [vmem:[%s265 + $0x48] sm:$0xff] %v1547
      %1576 = vst [vmem:[%s265 + $0x50] sm:$0xff] %v1548
      %1577 = vst [vmem:[%s265 + $0x58] sm:$0xff] %v1549
      %1578 = vst [vmem:[%s265 + $0x60] sm:$0xff] %v1550
      %1579 = vst [vmem:[%s265 + $0x68] sm:$0xff] %v1551
      %1580 = vst [vmem:[%s265 + $0x70] sm:$0xff] %v1552
      %1581 = vst [vmem:[%s265 + $0x78] sm:$0xff] %v1553
      %1582 = vst [vmem:[%s265 + $0x80] sm:$0xff] %v1554
      %1583 = vst [vmem:[%s265 + $0x88] sm:$0xff] %v1555
      %1584 = vst [vmem:[%s265 + $0x90] sm:$0xff] %v1556
      %1585 = vst [vmem:[%s265 + $0x98] sm:$0xff] %v1557
      %1586 = vst [vmem:[%s265 + $0xa0] sm:$0xff] %v1558
      %1587 = vst [vmem:[%s265 + $0xa8] sm:$0xff] %v1559
      %1588 = vst [vmem:[%s265 + $0xb0] sm:$0xff] %v1560
      %1589 = vst [vmem:[%s265 + $0xb8] sm:$0xff] %v1561
      %1590 = vst [vmem:[%s265 + $0xc0] sm:$0xff] %v1562
      %1591 = vst [vmem:[%s265 + $0xc8] sm:$0xff] %v1563
      %1592 = vst [vmem:[%s265 + $0xd0] sm:$0xff] %v1564
      %1593 = vst [vmem:[%s265 + $0xd8] sm:$0xff] %v1565
      // Predicated region
      $region37: #{cnn_forward.7} parent=31 // pred_check
        %p1594 = pneg %p268
      $region38: #{cnn_forward.7} parent=31 // pred_check_branch
        %1596 = sbr.rel (%p1594) target = $region40
      $region39: #{cnn_forward.7} parent=31 // pred_region
        %v1597 = vld [vmem:[%s265] sm:$0xff]
        %v1598 = vld [vmem:[%s265 + $0x8] sm:$0xff]
        %v1599 = vld [vmem:[%s265 + $0x10] sm:$0xff]
        %v1600 = vld [vmem:[%s265 + $0x18] sm:$0xff]
        %v1601 = vld [vmem:[%s265 + $0x20] sm:$0xff]
        %v1602 = vld [vmem:[%s265 + $0x28] sm:$0xff]
        %v1603 = vld [vmem:[%s265 + $0x30] sm:$0xff]
        %v1604 = vld [vmem:[%s265 + $0x38] sm:$0xff]
        %v1605 = vld [vmem:[%s265 + $0x40] sm:$0xff]
        %v1606 = vld [vmem:[%s265 + $0x48] sm:$0xff]
        %v1607 = vld [vmem:[%s265 + $0x50] sm:$0xff]
        %v1608 = vld [vmem:[%s265 + $0x58] sm:$0xff]
        %v1609 = vld [vmem:[%s265 + $0x60] sm:$0xff]
        %v1610 = vld [vmem:[%s265 + $0x68] sm:$0xff]
        %v1611 = vld [vmem:[%s265 + $0x70] sm:$0xff]
        %v1612 = vld [vmem:[%s265 + $0x78] sm:$0xff]
        %v1613 = vld [vmem:[%s265 + $0x80] sm:$0xff]
        %v1614 = vld [vmem:[%s265 + $0x88] sm:$0xff]
        %v1615 = vld [vmem:[%s265 + $0x90] sm:$0xff]
        %v1616 = vld [vmem:[%s265 + $0x98] sm:$0xff]
        %v1617 = vld [vmem:[%s265 + $0xa0] sm:$0xff]
        %v1618 = vld [vmem:[%s265 + $0xa8] sm:$0xff]
        %v1619 = vld [vmem:[%s265 + $0xb0] sm:$0xff]
        %v1620 = vld [vmem:[%s265 + $0xb8] sm:$0xff]
        %v1621 = vld [vmem:[%s265 + $0xc0] sm:$0xff]
        %v1622 = vld [vmem:[%s265 + $0xc8] sm:$0xff]
        %v1623 = vld [vmem:[%s265 + $0xd0] sm:$0xff]
        %v1624 = vld [vmem:[%s265 + $0xd8] sm:$0xff]
        %v1625 = vmax.f32 %v1597, 0.0
        %v1626 = vmax.f32 %v1598, 0.0
        %v1627 = vmax.f32 %v1599, 0.0
        %v1628 = vmax.f32 %v1600, 0.0
        %v1629 = vmax.f32 %v1601, 0.0
        %v1630 = vmax.f32 %v1602, 0.0
        %v1631 = vmax.f32 %v1603, 0.0
        %v1632 = vmax.f32 %v1604, 0.0
        %v1633 = vmax.f32 %v1605, 0.0
        %v1634 = vmax.f32 %v1606, 0.0
        %v1635 = vmax.f32 %v1607, 0.0
        %v1636 = vmax.f32 %v1608, 0.0
        %v1637 = vmax.f32 %v1609, 0.0
        %v1638 = vmax.f32 %v1610, 0.0
        %v1639 = vmax.f32 %v1611, 0.0
        %v1640 = vmax.f32 %v1612, 0.0
        %v1641 = vmax.f32 %v1613, 0.0
        %v1642 = vmax.f32 %v1614, 0.0
        %v1643 = vmax.f32 %v1615, 0.0
        %v1644 = vmax.f32 %v1616, 0.0
        %v1645 = vmax.f32 %v1617, 0.0
        %v1646 = vmax.f32 %v1618, 0.0
        %v1647 = vmax.f32 %v1619, 0.0
        %v1648 = vmax.f32 %v1620, 0.0
        %v1649 = vmax.f32 %v1621, 0.0
        %v1650 = vmax.f32 %v1622, 0.0
        %v1651 = vmax.f32 %v1623, 0.0
        %v1652 = vmax.f32 %v1624, 0.0
        %1653 = vst [vmem:[%s265] sm:$0xff] %v1625
        %1654 = vst [vmem:[%s265 + $0x8] sm:$0xff] %v1626
        %1655 = vst [vmem:[%s265 + $0x10] sm:$0xff] %v1627
        %1656 = vst [vmem:[%s265 + $0x18] sm:$0xff] %v1628
        %1657 = vst [vmem:[%s265 + $0x20] sm:$0xff] %v1629
        %1658 = vst [vmem:[%s265 + $0x28] sm:$0xff] %v1630
        %1659 = vst [vmem:[%s265 + $0x30] sm:$0xff] %v1631
        %1660 = vst [vmem:[%s265 + $0x38] sm:$0xff] %v1632
        %1661 = vst [vmem:[%s265 + $0x40] sm:$0xff] %v1633
        %1662 = vst [vmem:[%s265 + $0x48] sm:$0xff] %v1634
        %1663 = vst [vmem:[%s265 + $0x50] sm:$0xff] %v1635
        %1664 = vst [vmem:[%s265 + $0x58] sm:$0xff] %v1636
        %1665 = vst [vmem:[%s265 + $0x60] sm:$0xff] %v1637
        %1666 = vst [vmem:[%s265 + $0x68] sm:$0xff] %v1638
        %1667 = vst [vmem:[%s265 + $0x70] sm:$0xff] %v1639
        %1668 = vst [vmem:[%s265 + $0x78] sm:$0xff] %v1640
        %1669 = vst [vmem:[%s265 + $0x80] sm:$0xff] %v1641
        %1670 = vst [vmem:[%s265 + $0x88] sm:$0xff] %v1642
        %1671 = vst [vmem:[%s265 + $0x90] sm:$0xff] %v1643
        %1672 = vst [vmem:[%s265 + $0x98] sm:$0xff] %v1644
        %1673 = vst [vmem:[%s265 + $0xa0] sm:$0xff] %v1645
        %1674 = vst [vmem:[%s265 + $0xa8] sm:$0xff] %v1646
        %1675 = vst [vmem:[%s265 + $0xb0] sm:$0xff] %v1647
        %1676 = vst [vmem:[%s265 + $0xb8] sm:$0xff] %v1648
        %1677 = vst [vmem:[%s265 + $0xc0] sm:$0xff] %v1649
        %1678 = vst [vmem:[%s265 + $0xc8] sm:$0xff] %v1650
        %1679 = vst [vmem:[%s265 + $0xd0] sm:$0xff] %v1651
        %1680 = vst [vmem:[%s265 + $0xd8] sm:$0xff] %v1652
      $region40: #{cnn_forward.7} parent=31 // pred_fallthru
        _
      %s1681 = smul.u32 28, %s19
      %p1682 = scmp.lt.s32.totalorder %s1681, 195
      %s1683 = scalar_select %p1682, %s1681, 195
      %p1684 = scmp.lt.s32.totalorder %s20, 0
      %s1685 = scalar_select %p1684, %s20, 0
      %s1686 = sadd.s32 %s1685, %s1683
      %s1687 = smul.addr %s1686, 8
      %s1688 = scalar_lea.vmem %s3, %s1687
      // Predicated region
      $region41: #{cnn_forward.7} parent=31 // pred_check
        %p1689 = pneg %p135
      $region42: #{cnn_forward.7} parent=31 // pred_check_branch
        %1691 = sbr.rel (%p1689) target = $region44
      $region43: #{cnn_forward.7} parent=31 // pred_region
        %s1692 = smul.u32 28, %s19
      $region44: #{cnn_forward.7} parent=31 // pred_fallthru
        _
    $region32: #{cnn_forward.7} parent=5 // pred_fallthru
      _
    %p1693 = scmp.le.s32.totalorder 2, %s9
    // Predicated region
    $region45: #{cnn_forward.7} parent=5 // pred_check
      %p1694 = pneg %p1693
    $region46: #{cnn_forward.7} parent=5 // pred_check_branch
      %1696 = sbr.rel (%p1694) target = $region48
    $region47: #{cnn_forward.7} parent=5 // pred_region
      %s1697 = ssub.s32 %s9, 2
      // Predicated region
      $region49: #{cnn_forward.7} parent=47 // pred_check
        %p1698 = pneg %p141
      $region50: #{cnn_forward.7} parent=47 // pred_check_branch
        %1700 = sbr.rel (%p1698) target = $region52
      $region51: #{cnn_forward.7} parent=47 // pred_region
        %s1701 = smul.u32 28, %s22
        %p1702 = scmp.lt.s32.totalorder %s1701, 195
        %s1703 = scalar_select %p1702, %s1701, 195
        %p1704 = scmp.lt.s32.totalorder %s23, 0
        %s1705 = scalar_select %p1704, %s23, 0
        %s1706 = sadd.s32 %s1705, %s1703
        %s1707 = smul.addr %s1706, 8
        %s1708 = scalar_lea.vmem %s3, %s1707
      $region52: #{cnn_forward.7} parent=47 // pred_fallthru
        _
    $region48: #{cnn_forward.7} parent=5 // pred_fallthru
      _
  $region6: #{cnn_forward.7} parent=0 // loop_footer
    %s13 = sadd.s32 1, %s9
  $region7: #{cnn_forward.7} parent=0 // loop_footer_branch
    %8 = sbr.rel target = $region3
  $region8: #{cnn_forward.7} parent=0 // loop_exit
    _

// kernel: cnn_forward.8
$region0: #{cnn_forward.8}
  #allocation0 [shape = 'u32[]', space=smem, size = 0x4, offset = 0x4, fixed_abs, tag = 'smem constant byte address 0x4 - core index']
  #allocation1 [shape = 'u32[144,128]{1,0:T(1,128)}', space=vmem, size = 0x12000, scoped, tag = 'internal scratch']
  %s0 = inlined_call_operand.vmem [shape: bf16[288,1152], index: 0, kind: input, shape index: {}]
  %s1 = inlined_call_operand.vmem [shape: bf16[1152,256], index: 1, kind: input, shape index: {}]
  %s2 = inlined_call_operand.vmem [shape: f32[1,256], index: 2, kind: input, shape index: {}]
  %s3 = inlined_call_operand.vmem [shape: f32[288,256], index: 3, kind: output, shape index: {}]
  %s4 = sld [smem:[#allocation0]]
  $region79: #{cnn_forward.8} parent=0
    _
  %s6 = ssub.s32 1, %s4
  %s7 = scalar_select 0, %s6, %s4
  $region1: #{cnn_forward.8} parent=0
    #allocation2 [shape = 'u8[221184]{0}', space=vmem, size = 0x36000, scoped, tag = 'input window, operand 0']
    loop: start=0, step=1, limit=8
    $region2: #{cnn_forward.8} parent=1 // loop_pre_header
      _
    $region3: #{cnn_forward.8} parent=1 // loop_header
      %s9 = sphi 0, %s13
      %p10 = scmp.ge.s32.totalorder %s9, 8
      %s16 = sphi 0, %s35
      %s17 = sphi 0, %s31
      %s18 = sphi 0, %s27
      %s19 = sphi 0, %s16
      %s20 = sphi 0, %s17
      %s21 = sphi 0, %s18
      %s22 = sphi 0, %s19
      %s23 = sphi 0, %s20
      %s24 = sphi 0, %s21
      %s40 = sphi 0, %s42
      %s43 = sphi 0, %s40
      %s44 = sphi 0, %s43
      %s60 = sphi 0, %s44
      %s68 = sphi 0, %s70
      %s71 = sphi 0, %s68
      %s72 = sphi 0, %s71
      %s88 = sphi 0, %s72
      %s94 = sphi 0, %s96
      %s97 = sphi 0, %s94
      %s98 = sphi 0, %s97
      %s114 = sphi 0, %s98
      %s122 = sphi 0, %s124
      %s125 = sphi 0, %s122
      %s126 = sphi 0, %s125
      %s142 = sphi 0, %s126
    $region4: #{cnn_forward.8} parent=1 // loop_header_branch
      %12 = sbr.rel (%p10) target = $region8
    $region5: #{cnn_forward.8} parent=1 // loop_body
      %s14 = ssub.s32 %s9, 1
      %s15 = ssub.s32 %s9, 2
      %s25 = sadd.s32 1, %s18
      %p26 = scmp.ge.s32.totalorder %s25, 3
      %s27 = scalar_select %p26, 0, %s25
      %s28 = sadd.s32 1, %s17
      %s29 = scalar_select %p26, %s28, %s17
      %p30 = scmp.ge.s32.totalorder %s29, 1
      %s31 = scalar_select %p30, 0, %s29
      %s32 = sadd.s32 1, %s16
      %s33 = scalar_select %p30, %s32, %s16
      %p34 = scmp.ge.s32.totalorder %s33, 2
      %s35 = scalar_select %p34, 0, %s33
      %s36 = ssub.s32 %s16, %s35
      %s37 = ssub.s32 %s18, %s27
      %s38 = sor.u32 %s36, %s37
      %p39 = scmp.eq.s32.totalorder %s38, 0
      %s41 = sadd.s32 %s40, 1
      %s42 = scalar_select %p39, %s40, %s41
      %p45 = pneg %p39
      %p46 = scmp.eq.s32.totalorder %s9, 5
      %p47 = por %p45, %p46
      %p48 = scmp.ne.s32.totalorder %s40, %s43
      %p49 = scmp.eq.s32.totalorder %s9, 0
      %p50 = por %p48, %p49
      %p51 = scmp.ne.s32.totalorder %s40, %s43
      %p52 = scmp.eq.s32.totalorder %s14, 5
      %p53 = por %p51, %p52
      %p54 = scmp.ne.s32.totalorder %s43, %s44
      %p55 = scmp.eq.s32.totalorder %s14, 0
      %p56 = por %p54, %p55
      %p57 = scmp.ne.s32.totalorder %s43, %s44
      %p58 = scmp.eq.s32.totalorder %s15, 5
      %p59 = por %p57, %p58
      %p61 = scmp.ne.s32.totalorder %s44, %s60
      %p62 = scmp.eq.s32.totalorder %s15, 0
      %p63 = por %p61, %p62
      %s64 = ssub.s32 %s18, %s27
      %s65 = ssub.s32 %s17, %s31
      %s66 = sor.u32 %s64, %s65
      %p67 = scmp.eq.s32.totalorder %s66, 0
      %s69 = sadd.s32 %s68, 1
      %s70 = scalar_select %p67, %s68, %s69
      %p73 = pneg %p67
      %p74 = scmp.eq.s32.totalorder %s9, 5
      %p75 = por %p73, %p74
      %p76 = scmp.ne.s32.totalorder %s68, %s71
      %p77 = scmp.eq.s32.totalorder %s9, 0
      %p78 = por %p76, %p77
      %p79 = scmp.ne.s32.totalorder %s68, %s71
      %p80 = scmp.eq.s32.totalorder %s14, 5
      %p81 = por %p79, %p80
      %p82 = scmp.ne.s32.totalorder %s71, %s72
      %p83 = scmp.eq.s32.totalorder %s14, 0
      %p84 = por %p82, %p83
      %p85 = scmp.ne.s32.totalorder %s71, %s72
      %p86 = scmp.eq.s32.totalorder %s15, 5
      %p87 = por %p85, %p86
      %p89 = scmp.ne.s32.totalorder %s72, %s88
      %p90 = scmp.eq.s32.totalorder %s15, 0
      %p91 = por %p89, %p90
      %s92 = ssub.s32 %s17, %s31
      %p93 = scmp.eq.s32.totalorder %s92, 0
      %s95 = sadd.s32 %s94, 1
      %s96 = scalar_select %p93, %s94, %s95
      %p99 = pneg %p93
      %p100 = scmp.eq.s32.totalorder %s9, 5
      %p101 = por %p99, %p100
      %p102 = scmp.ne.s32.totalorder %s94, %s97
      %p103 = scmp.eq.s32.totalorder %s9, 0
      %p104 = por %p102, %p103
      %p105 = scmp.ne.s32.totalorder %s94, %s97
      %p106 = scmp.eq.s32.totalorder %s14, 5
      %p107 = por %p105, %p106
      %p108 = scmp.ne.s32.totalorder %s97, %s98
      %p109 = scmp.eq.s32.totalorder %s14, 0
      %p110 = por %p108, %p109
      %p111 = scmp.ne.s32.totalorder %s97, %s98
      %p112 = scmp.eq.s32.totalorder %s15, 5
      %p113 = por %p111, %p112
      %p115 = scmp.ne.s32.totalorder %s98, %s114
      %p116 = scmp.eq.s32.totalorder %s15, 0
      %p117 = por %p115, %p116
      %s118 = ssub.s32 %s16, %s35
      %s119 = ssub.s32 %s17, %s31
      %s120 = sor.u32 %s118, %s119
      %p121 = scmp.eq.s32.totalorder %s120, 0
      %s123 = sadd.s32 %s122, 1
      %s124 = scalar_select %p121, %s122, %s123
      %p127 = pneg %p121
      %p128 = scmp.eq.s32.totalorder %s9, 5
      %p129 = por %p127, %p128
      %p130 = scmp.ne.s32.totalorder %s122, %s125
      %p131 = scmp.eq.s32.totalorder %s9, 0
      %p132 = por %p130, %p131
      %p133 = scmp.ne.s32.totalorder %s122, %s125
      %p134 = scmp.eq.s32.totalorder %s14, 5
      %p135 = por %p133, %p134
      %p136 = scmp.ne.s32.totalorder %s125, %s126
      %p137 = scmp.eq.s32.totalorder %s14, 0
      %p138 = por %p136, %p137
      %p139 = scmp.ne.s32.totalorder %s125, %s126
      %p140 = scmp.eq.s32.totalorder %s15, 5
      %p141 = por %p139, %p140
      %p143 = scmp.ne.s32.totalorder %s126, %s142
      %p144 = scmp.eq.s32.totalorder %s15, 0
      %p145 = por %p143, %p144
      %p146 = scmp.le.s32.totalorder 1, %s9
      %p147 = scmp.lt.s32.totalorder %s9, 7
      %p148 = pnand %p146, %p147
      %p149 = pneg %p148
      // Predicated region
      $region9: #{cnn_forward.8} parent=5 // pred_check
        _
      $region10: #{cnn_forward.8} parent=5 // pred_check_branch
        %151 = sbr.rel (%p148) target = $region12
      $region11: #{cnn_forward.8} parent=5 // pred_region
        %s152 = ssub.s32 %s9, 1
        // Predicated region
        $region13: #{cnn_forward.8} parent=11 // pred_check
          %p153 = pneg %p110
        $region14: #{cnn_forward.8} parent=11 // pred_check_branch
          %155 = sbr.rel (%p153) target = $region16
        $region15: #{cnn_forward.8} parent=11 // pred_region
          %s156 = smul.u32 2, %s20
          %p157 = scmp.lt.s32.totalorder %s156, 1
          %s158 = scalar_select %p157, %s156, 1
          %s159 = scalar_lea.vmem %s2, %s158
          %s160 = smul.u32 2, %s20
        $region16: #{cnn_forward.8} parent=11 // pred_fallthru
          _
      $region12: #{cnn_forward.8} parent=5 // pred_fallthru
        _
      %p161 = scmp.lt.s32.totalorder %s9, 6
      // Predicated region
      $region17: #{cnn_forward.8} parent=5 // pred_check
        %p162 = pneg %p161
      $region18: #{cnn_forward.8} parent=5 // pred_check_branch
        %164 = sbr.rel (%p162) target = $region20
      $region19: #{cnn_forward.8} parent=5 // pred_region
        // Predicated region
        $region21: #{cnn_forward.8} parent=19 // pred_check
          %p165 = pneg %p50
        $region22: #{cnn_forward.8} parent=19 // pred_check_branch
          %167 = sbr.rel (%p165) target = $region24
        $region23: #{cnn_forward.8} parent=19 // pred_region
          %s168 = sand.u32 %s40, 1
          %s169 = sand.u32 %s40, 1
          %s170 = smul.addr %s169, 216
          %s171 = scalar_lea.vmem [#allocation2], %s170
          %s172 = smul.u32 18, %s16
          %s173 = smul.u32 3, %s18
          %s174 = smul.addr %s172, 9
          %s175 = sadd.s32 %s173, %s174
          %s176 = smul.addr %s175, 4
          %s177 = scalar_lea.vmem %s0, %s176
          // Predicated region
          $region25: #{cnn_forward.8} parent=23 // pred_check
            _
          $region26: #{cnn_forward.8} parent=23 // pred_check_branch
            %179 = sbr.rel (0) target = $region28
          $region27: #{cnn_forward.8} parent=23 // pred_region
            // Predicated region
            $region29: #{cnn_forward.8} parent=27 // pred_check
              _
            $region30: #{cnn_forward.8} parent=27 // pred_check_branch
              %181 = sbr.rel (0) target = $region32
            $region31: #{cnn_forward.8} parent=27 // pred_region
              %s182 = scalar_lea.vmem %s177, 8
              %s183 = scalar_lea.vmem %s171, 8 [#allocation2]
              loop: start=0, step=1, limit=1
              $region33: #{cnn_forward.8} parent=31 // loop_pre_header
                _
              $region34: #{cnn_forward.8} parent=31 // loop_header
                %s185 = sphi 0, %s189
                %p186 = scmp.ge.s32.totalorder %s185, 1
                %s190 = sphi %s177, %s177
                %s191 = sphi %s171, %s171
              $region35: #{cnn_forward.8} parent=31 // loop_header_branch
                %188 = sbr.rel (%p186) target = $region39
              $region36: #{cnn_forward.8} parent=31 // loop_body
                %v192 = vld [vmem:[%s190] sm:$0xff]
                %193 = vst [vmem:[%s191] sm:$0xff] %v192
                %v194 = vld [vmem:[%s190 + $0x24] sm:$0xff]
                %195 = vst [vmem:[%s191 + $0xc] sm:$0xff] %v194
                %v196 = vld [vmem:[%s190 + $0x48] sm:$0xff]
                %197 = vst [vmem:[%s191 + $0x18] sm:$0xff] %v196
                %v198 = vld [vmem:[%s190 + $0x6c] sm:$0xff]
                %199 = vst [vmem:[%s191 + $0x24] sm:$0xff] %v198
                %v200 = vld [vmem:[%s190 + $0x90] sm:$0xff]
                %201 = vst [vmem:[%s191 + $0x30] sm:$0xff] %v200
                %v202 = vld [vmem:[%s190 + $0xb4] sm:$0xff]
                %203 = vst [vmem:[%s191 + $0x3c] sm:$0xff] %v202
                %v204 = vld [vmem:[%s190 + $0xd8] sm:$0xff]
                %205 = vst [vmem:[%s191 + $0x48] sm:$0xff] %v204
                %v206 = vld [vmem:[%s190 + $0xfc] sm:$0xff]
                %207 = vst [vmem:[%s191 + $0x54] sm:$0xff] %v206
                %v208 = vld [vmem:[%s190 + $0x120] sm:$0xff]
                %209 = vst [vmem:[%s191 + $0x60] sm:$0xff] %v208
                %v210 = vld [vmem:[%s190 + $0x144] sm:$0xff]
                %211 = vst [vmem:[%s191 + $0x6c] sm:$0xff] %v210
                %v212 = vld [vmem:[%s190 + $0x168] sm:$0xff]
                %213 = vst [vmem:[%s191 + $0x78] sm:$0xff] %v212
                %v214 = vld [vmem:[%s190 + $0x18c] sm:$0xff]
                %215 = vst [vmem:[%s191 + $0x84] sm:$0xff] %v214
                %v216 = vld [vmem:[%s190 + $0x1b0] sm:$0xff]
                %217 = vst [vmem:[%s191 + $0x90] sm:$0xff] %v216
                %v218 = vld [vmem:[%s190 + $0x1d4] sm:$0xff]
                %219 = vst [vmem:[%s191 + $0x9c] sm:$0xff] %v218
                %v220 = vld [vmem:[%s190 + $0x1f8] sm:$0xff]
                %221 = vst [vmem:[%s191 + $0xa8] sm:$0xff] %v220
                %v222 = vld [vmem:[%s190 + $0x21c] sm:$0xff]
                %223 = vst [vmem:[%s191 + $0xb4] sm:$0xff] %v222
                %v224 = vld [vmem:[%s190 + $0x240] sm:$0xff]
                %225 = vst [vmem:[%s191 + $0xc0] sm:$0xff] %v224
                %v226 = vld [vmem:[%s190 + $0x264] sm:$0xff]
                %227 = vst [vmem:[%s191 + $0xcc] sm:$0xff] %v226
              $region37: #{cnn_forward.8} parent=31 // loop_footer
                %s189 = sadd.s32 1, %s185
              $region38: #{cnn_forward.8} parent=31 // loop_footer_branch
                %184 = sbr.rel target = $region34
              $region39: #{cnn_forward.8} parent=31 // loop_exit
                _
              loop: start=0, step=1, limit=1
              $region40: #{cnn_forward.8} parent=31 // loop_pre_header
                _
              $region41: #{cnn_forward.8} parent=31 // loop_header
                %s230 = sphi 0, %s234
                %p231 = scmp.ge.s32.totalorder %s230, 1
                %s235 = sphi %s182, %s182
                %s236 = sphi %s183, %s183
              $region42: #{cnn_forward.8} parent=31 // loop_header_branch
                %233 = sbr.rel (%p231) target = $region46
              $region43: #{cnn_forward.8} parent=31 // loop_body
                %v237 = vld [vmem:[%s235] sm:$0xf]
                %238 = vst [vmem:[%s236] sm:$0xf] %v237
                %v239 = vld [vmem:[%s235 + $0x24] sm:$0xf]
                %240 = vst [vmem:[%s236 + $0xc] sm:$0xf] %v239
                %v241 = vld [vmem:[%s235 + $0x48] sm:$0xf]
                %242 = vst [vmem:[%s236 + $0x18] sm:$0xf] %v241
                %v243 = vld [vmem:[%s235 + $0x6c] sm:$0xf]
                %244 = vst [vmem:[%s236 + $0x24] sm:$0xf] %v243
                %v245 = vld [vmem:[%s235 + $0x90] sm:$0xf]
                %246 = vst [vmem:[%s236 + $0x30] sm:$0xf] %v245
                %v247 = vld [vmem:[%s235 + $0xb4] sm:$0xf]
                %248 = vst [vmem:[%s236 + $0x3c] sm:$0xf] %v247
                %v249 = vld [vmem:[%s235 + $0xd8] sm:$0xf]
                %250 = vst [vmem:[%s236 + $0x48] sm:$0xf] %v249
                %v251 = vld [vmem:[%s235 + $0xfc] sm:$0xf]
                %252 = vst [vmem:[%s236 + $0x54] sm:$0xf] %v251
                %v253 = vld [vmem:[%s235 + $0x120] sm:$0xf]
                %254 = vst [vmem:[%s236 + $0x60] sm:$0xf] %v253
                %v255 = vld [vmem:[%s235 + $0x144] sm:$0xf]
                %256 = vst [vmem:[%s236 + $0x6c] sm:$0xf] %v255
                %v257 = vld [vmem:[%s235 + $0x168] sm:$0xf]
                %258 = vst [vmem:[%s236 + $0x78] sm:$0xf] %v257
                %v259 = vld [vmem:[%s235 + $0x18c] sm:$0xf]
                %260 = vst [vmem:[%s236 + $0x84] sm:$0xf] %v259
                %v261 = vld [vmem:[%s235 + $0x1b0] sm:$0xf]
                %262 = vst [vmem:[%s236 + $0x90] sm:$0xf] %v261
                %v263 = vld [vmem:[%s235 + $0x1d4] sm:$0xf]
                %264 = vst [vmem:[%s236 + $0x9c] sm:$0xf] %v263
                %v265 = vld [vmem:[%s235 + $0x1f8] sm:$0xf]
                %266 = vst [vmem:[%s236 + $0xa8] sm:$0xf] %v265
                %v267 = vld [vmem:[%s235 + $0x21c] sm:$0xf]
                %268 = vst [vmem:[%s236 + $0xb4] sm:$0xf] %v267
                %v269 = vld [vmem:[%s235 + $0x240] sm:$0xf]
                %270 = vst [vmem:[%s236 + $0xc0] sm:$0xf] %v269
                %v271 = vld [vmem:[%s235 + $0x264] sm:$0xf]
                %272 = vst [vmem:[%s236 + $0xcc] sm:$0xf] %v271
              $region44: #{cnn_forward.8} parent=31 // loop_footer
                %s234 = sadd.s32 1, %s230
              $region45: #{cnn_forward.8} parent=31 // loop_footer_branch
                %229 = sbr.rel target = $region41
              $region46: #{cnn_forward.8} parent=31 // loop_exit
                _
            $region32: #{cnn_forward.8} parent=27 // pred_fallthru
              _
          $region28: #{cnn_forward.8} parent=23 // pred_fallthru
            _
          %273 = vnop
        $region24: #{cnn_forward.8} parent=19 // pred_fallthru
          _
        // Predicated region
        $region47: #{cnn_forward.8} parent=19 // pred_check
          %p274 = pneg %p78
        $region48: #{cnn_forward.8} parent=19 // pred_check_branch
          %276 = sbr.rel (%p274) target = $region50
        $region49: #{cnn_forward.8} parent=19 // pred_region
          %s277 = smul.u32 48, %s18
          %s278 = smul.u32 2, %s17
          %p279 = scmp.lt.s32.totalorder %s277, 143
          %s280 = scalar_select %p279, %s277, 143
          %p281 = scmp.lt.s32.totalorder %s278, 1
          %s282 = scalar_select %p281, %s278, 1
          %s283 = smul.addr %s280, 2
          %s284 = sadd.s32 %s282, %s283
          %s285 = smul.addr %s284, 4
          %s286 = scalar_lea.vmem %s1, %s285
          %s287 = smul.u32 48, %s18
          %s288 = smul.u32 2, %s17
        $region50: #{cnn_forward.8} parent=19 // pred_fallthru
          _
      $region20: #{cnn_forward.8} parent=5 // pred_fallthru
        _
      %p289 = scmp.le.s32.totalorder 1, %s9
      %p290 = scmp.lt.s32.totalorder %s9, 7
      %p291 = pnand %p289, %p290
      %p292 = pneg %p291
      // Predicated region
      $region51: #{cnn_forward.8} parent=5 // pred_check
        _
      $region52: #{cnn_forward.8} parent=5 // pred_check_branch
        %294 = sbr.rel (%p291) target = $region54
      $region53: #{cnn_forward.8} parent=5 // pred_region
        %s295 = ssub.s32 %s9, 1
        %s296 = sand.u32 %s43, 1
        %s297 = sand.u32 %s43, 1
        %s298 = smul.addr %s297, 216
        %s299 = scalar_lea.vmem [#allocation2], %s298
        // Predicated region
        $region55: #{cnn_forward.8} parent=53 // pred_check
          %p300 = pneg %p56
        $region56: #{cnn_forward.8} parent=53 // pred_check_branch
          %302 = sbr.rel (%p300) target = $region58
        $region57: #{cnn_forward.8} parent=53 // pred_region
          _
        $region58: #{cnn_forward.8} parent=53 // pred_fallthru
          _
        %s303 = sand.u32 %s43, 1
        %s304 = sand.u32 %s43, 1
        %s305 = smul.addr %s304, 216
        %s306 = scalar_lea.vmem [#allocation2], %s305
        %p307 = pneg %p56
        %p308 = pneg %p53
        %s309 = smul.u32 48, %s21
        %s310 = smul.u32 2, %s20
        %p311 = scmp.lt.s32.totalorder %s309, 143
        %s312 = scalar_select %p311, %s309, 143
        %p313 = scmp.lt.s32.totalorder %s310, 1
        %s314 = scalar_select %p313, %s310, 1
        %s315 = smul.addr %s312, 2
        %s316 = sadd.s32 %s314, %s315
        %s317 = smul.addr %s316, 4
        %s318 = scalar_lea.vmem %s1, %s317
        %p319 = pneg %p84
        %p320 = pneg %p81
        %s321 = smul.u32 2, %s20
        %p322 = scmp.lt.s32.totalorder %s321, 1
        %s323 = scalar_select %p322, %s321, 1
        %s324 = scalar_lea.vmem %s2, %s323
        %p325 = pneg %p110
        %p326 = pneg %p107
        %p327 = pneg %p138
        %p328 = pneg %p135
        %s329 = smul.u32 18, %s19
        %s330 = smul.u32 2, %s20
        %p331 = scmp.lt.s32.totalorder %s329, 35
        %s332 = scalar_select %p331, %s329, 35
        %p333 = scmp.lt.s32.totalorder %s330, 1
        %s334 = scalar_select %p333, %s330, 1
        %s335 = smul.addr %s332, 2
        %s336 = sadd.s32 %s334, %s335
        %s337 = smul.addr %s336, 8
        %s338 = scalar_lea.vmem %s3, %s337
        %s339 = smul.u32 18, %s19
        %s340 = smul.u32 3, %s21
        %s341 = smul.u32 48, %s21
        %s342 = smul.u32 2, %s20
        %p343 = scmp.lt.s32.totalorder %s341, 143
        %s344 = scalar_select %p343, %s341, 143
        %p345 = scmp.lt.s32.totalorder %s342, 1
        %s346 = scalar_select %p345, %s342, 1
        %s347 = smul.addr %s344, 2
        %s348 = sadd.s32 %s346, %s347
        %s349 = smul.addr %s348, 4
        %s350 = scalar_lea.vmem %s1, %s349
        %s351 = smul.u32 48, %s21
        %s352 = smul.u32 2, %s20
        %s353 = smul.u32 2, %s20
        %p354 = scmp.lt.s32.totalorder %s353, 1
        %s355 = scalar_select %p354, %s353, 1
        %s356 = scalar_lea.vmem %s2, %s355
        %s357 = smul.u32 2, %s20
        %s358 = smul.u32 18, %s19
        %s359 = smul.u32 2, %s20
        %p360 = scmp.lt.s32.totalorder %s358, 35
        %s361 = scalar_select %p360, %s358, 35
        %p362 = scmp.lt.s32.totalorder %s359, 1
        %s363 = scalar_select %p362, %s359, 1
        %s364 = smul.addr %s361, 2
        %s365 = sadd.s32 %s363, %s364
        %s366 = smul.addr %s365, 8
        %s367 = scalar_lea.vmem %s3, %s366
        %s368 = smul.u32 18, %s19
        %s369 = smul.u32 2, %s20
        %p371 = scmp.eq.s32.totalorder %s21, 0
        // Predicated region
        $region59: #{cnn_forward.8} parent=53 // pred_check
          %p372 = pneg %p371
        $region60: #{cnn_forward.8} parent=53 // pred_check_branch
          %374 = sbr.rel (%p372) target = $region62
        $region61: #{cnn_forward.8} parent=53 // pred_region
          %v375 = vld [vmem:[%s356] sm:$0x3]
          %v377 = vlaneseq
          %v378 = vshrl.u32 %v377, 7
          %v379 = vsub.s32 0, %v378
          %v380 = vrot.slane %v375, %v379
          %v381 = vlaneseq
          %v382 = vshrl.u32 %v381, 7
          %v383 = vsub.s32 1, %v382
          %v384 = vrot.slane %v375, %v383
          %387 = vst [vmem:[%s367] sm:$0xff] %v380
          %388 = vst [vmem:[%s367 + $0x8] sm:$0xff] %v384
          %389 = vst [vmem:[%s367 + $0x10] sm:$0xff] %v380
          %390 = vst [vmem:[%s367 + $0x18] sm:$0xff] %v384
          %391 = vst [vmem:[%s367 + $0x20] sm:$0xff] %v380
          %392 = vst [vmem:[%s367 + $0x28] sm:$0xff] %v384
          %393 = vst [vmem:[%s367 + $0x30] sm:$0xff] %v380
          %394 = vst [vmem:[%s367 + $0x38] sm:$0xff] %v384
          %395 = vst [vmem:[%s367 + $0x40] sm:$0xff] %v380
          %396 = vst [vmem:[%s367 + $0x48] sm:$0xff] %v384
          %397 = vst [vmem:[%s367 + $0x50] sm:$0xff] %v380
          %398 = vst [vmem:[%s367 + $0x58] sm:$0xff] %v384
          %399 = vst [vmem:[%s367 + $0x60] sm:$0xff] %v380
          %400 = vst [vmem:[%s367 + $0x68] sm:$0xff] %v384
          %401 = vst [vmem:[%s367 + $0x70] sm:$0xff] %v380
          %402 = vst [vmem:[%s367 + $0x78] sm:$0xff] %v384
          %403 = vst [vmem:[%s367 + $0x80] sm:$0xff] %v380
          %404 = vst [vmem:[%s367 + $0x88] sm:$0xff] %v384
          %405 = vst [vmem:[%s367 + $0x90] sm:$0xff] %v380
          %406 = vst [vmem:[%s367 + $0x98] sm:$0xff] %v384
          %407 = vst [vmem:[%s367 + $0xa0] sm:$0xff] %v380
          %408 = vst [vmem:[%s367 + $0xa8] sm:$0xff] %v384
          %409 = vst [vmem:[%s367 + $0xb0] sm:$0xff] %v380
          %410 = vst [vmem:[%s367 + $0xb8] sm:$0xff] %v384
          %411 = vst [vmem:[%s367 + $0xc0] sm:$0xff] %v380
          %412 = vst [vmem:[%s367 + $0xc8] sm:$0xff] %v384
          %413 = vst [vmem:[%s367 + $0xd0] sm:$0xff] %v380
          %414 = vst [vmem:[%s367 + $0xd8] sm:$0xff] %v384
          %415 = vst [vmem:[%s367 + $0xe0] sm:$0xff] %v380
          %416 = vst [vmem:[%s367 + $0xe8] sm:$0xff] %v384
          %417 = vst [vmem:[%s367 + $0xf0] sm:$0xff] %v380
          %418 = vst [vmem:[%s367 + $0xf8] sm:$0xff] %v384
          %419 = vst [vmem:[%s367 + $0x100] sm:$0xff] %v380
          %420 = vst [vmem:[%s367 + $0x108] sm:$0xff] %v384
          %421 = vst [vmem:[%s367 + $0x110] sm:$0xff] %v380
          %422 = vst [vmem:[%s367 + $0x118] sm:$0xff] %v384
        $region62: #{cnn_forward.8} parent=53 // pred_fallthru
          _
        %v423 = vld [vmem:[%s367] sm:$0xff]
        %v424 = vld [vmem:[%s367 + $0x8] sm:$0xff]
        %v425 = vld [vmem:[%s367 + $0x10] sm:$0xff]
        %v426 = vld [vmem:[%s367 + $0x18] sm:$0xff]
        %v427 = vld [vmem:[%s367 + $0x20] sm:$0xff]
        %v428 = vld [vmem:[%s367 + $0x28] sm:$0xff]
        %v429 = vld [vmem:[%s367 + $0x30] sm:$0xff]
        %v430 = vld [vmem:[%s367 + $0x38] sm:$0xff]
        %v431 = vld [vmem:[%s367 + $0x40] sm:$0xff]
        %v432 = vld [vmem:[%s367 + $0x48] sm:$0xff]
        %v433 = vld [vmem:[%s367 + $0x50] sm:$0xff]
        %v434 = vld [vmem:[%s367 + $0x58] sm:$0xff]
        %v435 = vld [vmem:[%s367 + $0x60] sm:$0xff]
        %v436 = vld [vmem:[%s367 + $0x68] sm:$0xff]
        %v437 = vld [vmem:[%s367 + $0x70] sm:$0xff]
        %v438 = vld [vmem:[%s367 + $0x78] sm:$0xff]
        %v439 = vld [vmem:[%s367 + $0x80] sm:$0xff]
        %v440 = vld [vmem:[%s367 + $0x88] sm:$0xff]
        %v441 = vld [vmem:[%s367 + $0x90] sm:$0xff]
        %v442 = vld [vmem:[%s367 + $0x98] sm:$0xff]
        %v443 = vld [vmem:[%s367 + $0xa0] sm:$0xff]
        %v444 = vld [vmem:[%s367 + $0xa8] sm:$0xff]
        %v445 = vld [vmem:[%s367 + $0xb0] sm:$0xff]
        %v446 = vld [vmem:[%s367 + $0xb8] sm:$0xff]
        %v447 = vld [vmem:[%s367 + $0xc0] sm:$0xff]
        %v448 = vld [vmem:[%s367 + $0xc8] sm:$0xff]
        %v449 = vld [vmem:[%s367 + $0xd0] sm:$0xff]
        %v450 = vld [vmem:[%s367 + $0xd8] sm:$0xff]
        %v451 = vld [vmem:[%s367 + $0xe0] sm:$0xff]
        %v452 = vld [vmem:[%s367 + $0xe8] sm:$0xff]
        %v453 = vld [vmem:[%s367 + $0xf0] sm:$0xff]
        %v454 = vld [vmem:[%s367 + $0xf8] sm:$0xff]
        %v455 = vld [vmem:[%s367 + $0x100] sm:$0xff]
        %v456 = vld [vmem:[%s367 + $0x108] sm:$0xff]
        %v457 = vld [vmem:[%s367 + $0x110] sm:$0xff]
        %v458 = vld [vmem:[%s367 + $0x118] sm:$0xff]
        %v459 = vld [vmem:[%s299] sm:$0xff]
        %v460 = vld [vmem:[%s299 + $0x8] sm:$0xf]
        %v461 = vld [vmem:[%s299 + $0xc] sm:$0xff]
        %v462 = vld [vmem:[%s299 + $0x14] sm:$0xf]
        %v463 = vld [vmem:[%s299 + $0x18] sm:$0xff]
        %v464 = vld [vmem:[%s299 + $0x20] sm:$0xf]
        %v465 = vld [vmem:[%s299 + $0x24] sm:$0xff]
        %v466 = vld [vmem:[%s299 + $0x2c] sm:$0xf]
        %v467 = vld [vmem:[%s299 + $0x30] sm:$0xff]
        %v468 = vld [vmem:[%s299 + $0x38] sm:$0xf]
        %v469 = vld [vmem:[%s299 + $0x3c] sm:$0xff]
        %v470 = vld [vmem:[%s299 + $0x44] sm:$0xf]
        %v471 = vld [vmem:[%s299 + $0x48] sm:$0xff]
        %v472 = vld [vmem:[%s299 + $0x50] sm:$0xf]
        %v473 = vld [vmem:[%s299 + $0x54] sm:$0xff]
        %v474 = vld [vmem:[%s299 + $0x5c] sm:$0xf]
        %v475 = vld [vmem:[%s299 + $0x60] sm:$0xff]
        %v476 = vld [vmem:[%s299 + $0x68] sm:$0xf]
        %v477 = vld [vmem:[%s299 + $0x6c] sm:$0xff]
        %v478 = vld [vmem:[%s299 + $0x74] sm:$0xf]
        %v479 = vld [vmem:[%s299 + $0x78] sm:$0xff]
        %v480 = vld [vmem:[%s299 + $0x80] sm:$0xf]
        %v481 = vld [vmem:[%s299 + $0x84] sm:$0xff]
        %v482 = vld [vmem:[%s299 + $0x8c] sm:$0xf]
        %v483 = vld [vmem:[%s299 + $0x90] sm:$0xff]
        %v484 = vld [vmem:[%s299 + $0x98] sm:$0xf]
        %v485 = vld [vmem:[%s299 + $0x9c] sm:$0xff]
        %v486 = vld [vmem:[%s299 + $0xa4] sm:$0xf]
        %v487 = vld [vmem:[%s299 + $0xa8] sm:$0xff]
        %v488 = vld [vmem:[%s299 + $0xb0] sm:$0xf]
        %v489 = vld [vmem:[%s299 + $0xb4] sm:$0xff]
        %v490 = vld [vmem:[%s299 + $0xbc] sm:$0xf]
        %v491 = vld [vmem:[%s299 + $0xc0] sm:$0xff]
        %v492 = vld [vmem:[%s299 + $0xc8] sm:$0xf]
        %v493 = vld [vmem:[%s299 + $0xcc] sm:$0xff]
        %v494 = vld [vmem:[%s299 + $0xd4] sm:$0xf]
        %v495 = vld [vmem:[%s350] sm:$0xff]
        %v496 = vld [vmem:[%s350 + $0x8] sm:$0xff]
        %v497 = vld [vmem:[%s350 + $0x10] sm:$0xff]
        %v498 = vld [vmem:[%s350 + $0x18] sm:$0xff]
        %v499 = vld [vmem:[%s350 + $0x20] sm:$0xff]
        %v500 = vld [vmem:[%s350 + $0x28] sm:$0xff]
        %v501 = vld [vmem:[%s350 + $0x30] sm:$0xff]
        %v502 = vld [vmem:[%s350 + $0x38] sm:$0xff]
        %v503 = vld [vmem:[%s350 + $0x40] sm:$0xff]
        %v504 = vld [vmem:[%s350 + $0x48] sm:$0xff]
        %v505 = vld [vmem:[%s350 + $0x50] sm:$0xff]
        %v506 = vld [vmem:[%s350 + $0x58] sm:$0xff]
        %v507 = vld [vmem:[%s350 + $0x60] sm:$0xff]
        %v508 = vld [vmem:[%s350 + $0x68] sm:$0xff]
        %v509 = vld [vmem:[%s350 + $0x70] sm:$0xff]
        %v510 = vld [vmem:[%s350 + $0x78] sm:$0xff]
        %v511 = vld [vmem:[%s350 + $0x80] sm:$0xff]
        %v512 = vld [vmem:[%s350 + $0x88] sm:$0xff]
        %v513 = vld [vmem:[%s350 + $0x90] sm:$0xff]
        %v514 = vld [vmem:[%s350 + $0x98] sm:$0xff]
        %v515 = vld [vmem:[%s350 + $0xa0] sm:$0xff]
        %v516 = vld [vmem:[%s350 + $0xa8] sm:$0xff]
        %v517 = vld [vmem:[%s350 + $0xb0] sm:$0xff]
        %v518 = vld [vmem:[%s350 + $0xb8] sm:$0xff]
        %v519 = vld [vmem:[%s350 + $0xc0] sm:$0xff]
        %v520 = vld [vmem:[%s350 + $0xc8] sm:$0xff]
        %v521 = vld [vmem:[%s350 + $0xd0] sm:$0xff]
        %v522 = vld [vmem:[%s350 + $0xd8] sm:$0xff]
        %v523 = vld [vmem:[%s350 + $0xe0] sm:$0xff]
        %v524 = vld [vmem:[%s350 + $0xe8] sm:$0xff]
        %v525 = vld [vmem:[%s350 + $0xf0] sm:$0xff]
        %v526 = vld [vmem:[%s350 + $0xf8] sm:$0xff]
        %v527 = vld [vmem:[%s350 + $0x100] sm:$0xff]
        %v528 = vld [vmem:[%s350 + $0x108] sm:$0xff]
        %v529 = vld [vmem:[%s350 + $0x110] sm:$0xff]
        %v530 = vld [vmem:[%s350 + $0x118] sm:$0xff]
        %v531 = vld [vmem:[%s350 + $0x120] sm:$0xff]
        %v532 = vld [vmem:[%s350 + $0x128] sm:$0xff]
        %v533 = vld [vmem:[%s350 + $0x130] sm:$0xff]
        %v534 = vld [vmem:[%s350 + $0x138] sm:$0xff]
        %v535 = vld [vmem:[%s350 + $0x140] sm:$0xff]
        %v536 = vld [vmem:[%s350 + $0x148] sm:$0xff]
        %v537 = vld [vmem:[%s350 + $0x150] sm:$0xff]
        %v538 = vld [vmem:[%s350 + $0x158] sm:$0xff]
        %v539 = vld [vmem:[%s350 + $0x160] sm:$0xff]
        %v540 = vld [vmem:[%s350 + $0x168] sm:$0xff]
        %v541 = vld [vmem:[%s350 + $0x170] sm:$0xff]
        %v542 = vld [vmem:[%s350 + $0x178] sm:$0xff]
        %v579 = vunpack.c.l.b16 %v459
        %v580 = vunpack.c.h.b16 %v459
        %v581 = vunpack.c.l.b16 %v460
        %v582 = vunpack.c.l.b16 %v461
        %v583 = vunpack.c.h.b16 %v461
        %v584 = vunpack.c.l.b16 %v462
        %v585 = vunpack.c.l.b16 %v463
        %v586 = vunpack.c.h.b16 %v463
        %v587 = vunpack.c.l.b16 %v464
        %v588 = vunpack.c.l.b16 %v465
        %v589 = vunpack.c.h.b16 %v465
        %v590 = vunpack.c.l.b16 %v466
        %v591 = vunpack.c.l.b16 %v467
        %v592 = vunpack.c.h.b16 %v467
        %v593 = vunpack.c.l.b16 %v468
        %v594 = vunpack.c.l.b16 %v469
        %v595 = vunpack.c.h.b16 %v469
        %v596 = vunpack.c.l.b16 %v470
        %v597 = vunpack.c.l.b16 %v471
        %v598 = vunpack.c.h.b16 %v471
        %v599 = vunpack.c.l.b16 %v472
        %v600 = vunpack.c.l.b16 %v473
        %v601 = vunpack.c.h.b16 %v473
        %v602 = vunpack.c.l.b16 %v474
        %v603 = vunpack.c.l.b16 %v475
        %v604 = vunpack.c.h.b16 %v475
        %v605 = vunpack.c.l.b16 %v476
        %v606 = vunpack.c.l.b16 %v477
        %v607 = vunpack.c.h.b16 %v477
        %v608 = vunpack.c.l.b16 %v478
        %v609 = vunpack.c.l.b16 %v479
        %v610 = vunpack.c.h.b16 %v479
        %v611 = vunpack.c.l.b16 %v480
        %v612 = vunpack.c.l.b16 %v481
        %v613 = vunpack.c.h.b16 %v481
        %v614 = vunpack.c.l.b16 %v482
        %v615 = vunpack.c.l.b16 %v483
        %v616 = vunpack.c.h.b16 %v483
        %v617 = vunpack.c.l.b16 %v484
        %v618 = vunpack.c.l.b16 %v485
        %v619 = vunpack.c.h.b16 %v485
        %v620 = vunpack.c.l.b16 %v486
        %v621 = vunpack.c.l.b16 %v487
        %v622 = vunpack.c.h.b16 %v487
        %v623 = vunpack.c.l.b16 %v488
        %v624 = vunpack.c.l.b16 %v489
        %v625 = vunpack.c.h.b16 %v489
        %v626 = vunpack.c.l.b16 %v490
        %v627 = vunpack.c.l.b16 %v491
        %v628 = vunpack.c.h.b16 %v491
        %v629 = vunpack.c.l.b16 %v492
        %v630 = vunpack.c.l.b16 %v493
        %v631 = vunpack.c.h.b16 %v493
        %v632 = vunpack.c.l.b16 %v494
        %v633 = vpack.c.b16 %v582, %v579
        %v634 = vpack.c.b16 %v583, %v580
        %v635 = vpack.c.b16 %v584, %v581
        %v636 = vpack.c.b16 %v588, %v585
        %v637 = vpack.c.b16 %v589, %v586
        %v638 = vpack.c.b16 %v590, %v587
        %v639 = vpack.c.b16 %v594, %v591
        %v640 = vpack.c.b16 %v595, %v592
        %v641 = vpack.c.b16 %v596, %v593
        %v642 = vpack.c.b16 %v600, %v597
        %v643 = vpack.c.b16 %v601, %v598
        %v644 = vpack.c.b16 %v602, %v599
        %v645 = vpack.c.b16 %v606, %v603
        %v646 = vpack.c.b16 %v607, %v604
        %v647 = vpack.c.b16 %v608, %v605
        %v648 = vpack.c.b16 %v612, %v609
        %v649 = vpack.c.b16 %v613, %v610
        %v650 = vpack.c.b16 %v614, %v611
        %v651 = vpack.c.b16 %v618, %v615
        %v652 = vpack.c.b16 %v619, %v616
        %v653 = vpack.c.b16 %v620, %v617
        %v654 = vpack.c.b16 %v624, %v621
        %v655 = vpack.c.b16 %v625, %v622
        %v656 = vpack.c.b16 %v626, %v623
        %v657 = vpack.c.b16 %v630, %v627
        %v658 = vpack.c.b16 %v631, %v628
        %v659 = vpack.c.b16 %v632, %v629
        %v735 = vunpack.c.l.b16 %v495
        %v736 = vunpack.c.h.b16 %v495
        %v737 = vunpack.c.l.b16 %v496
        %v738 = vunpack.c.h.b16 %v496
        %v739 = vunpack.c.l.b16 %v497
        %v740 = vunpack.c.h.b16 %v497
        %v741 = vunpack.c.l.b16 %v498
        %v742 = vunpack.c.h.b16 %v498
        %v743 = vunpack.c.l.b16 %v499
        %v744 = vunpack.c.h.b16 %v499
        %v745 = vunpack.c.l.b16 %v500
        %v746 = vunpack.c.h.b16 %v500
        %v747 = vunpack.c.l.b16 %v501
        %v748 = vunpack.c.h.b16 %v501
        %v749 = vunpack.c.l.b16 %v502
        %v750 = vunpack.c.h.b16 %v502
        %v751 = vunpack.c.l.b16 %v503
        %v752 = vunpack.c.h.b16 %v503
        %v753 = vunpack.c.l.b16 %v504
        %v754 = vunpack.c.h.b16 %v504
        %v755 = vunpack.c.l.b16 %v505
        %v756 = vunpack.c.h.b16 %v505
        %v757 = vunpack.c.l.b16 %v506
        %v758 = vunpack.c.h.b16 %v506
        %v759 = vunpack.c.l.b16 %v507
        %v760 = vunpack.c.h.b16 %v507
        %v761 = vunpack.c.l.b16 %v508
        %v762 = vunpack.c.h.b16 %v508
        %v763 = vunpack.c.l.b16 %v509
        %v764 = vunpack.c.h.b16 %v509
        %v765 = vunpack.c.l.b16 %v510
        %v766 = vunpack.c.h.b16 %v510
        %v767 = vunpack.c.l.b16 %v511
        %v768 = vunpack.c.h.b16 %v511
        %v769 = vunpack.c.l.b16 %v512
        %v770 = vunpack.c.h.b16 %v512
        %v771 = vunpack.c.l.b16 %v513
        %v772 = vunpack.c.h.b16 %v513
        %v773 = vunpack.c.l.b16 %v514
        %v774 = vunpack.c.h.b16 %v514
        %v775 = vunpack.c.l.b16 %v515
        %v776 = vunpack.c.h.b16 %v515
        %v777 = vunpack.c.l.b16 %v516
        %v778 = vunpack.c.h.b16 %v516
        %v779 = vunpack.c.l.b16 %v517
        %v780 = vunpack.c.h.b16 %v517
        %v781 = vunpack.c.l.b16 %v518
        %v782 = vunpack.c.h.b16 %v518
        %v783 = vunpack.c.l.b16 %v519
        %v784 = vunpack.c.h.b16 %v519
        %v785 = vunpack.c.l.b16 %v520
        %v786 = vunpack.c.h.b16 %v520
        %v787 = vunpack.c.l.b16 %v521
        %v788 = vunpack.c.h.b16 %v521
        %v789 = vunpack.c.l.b16 %v522
        %v790 = vunpack.c.h.b16 %v522
        %v791 = vunpack.c.l.b16 %v523
        %v792 = vunpack.c.h.b16 %v523
        %v793 = vunpack.c.l.b16 %v524
        %v794 = vunpack.c.h.b16 %v524
        %v795 = vunpack.c.l.b16 %v525
        %v796 = vunpack.c.h.b16 %v525
        %v797 = vunpack.c.l.b16 %v526
        %v798 = vunpack.c.h.b16 %v526
        %v799 = vunpack.c.l.b16 %v527
        %v800 = vunpack.c.h.b16 %v527
        %v801 = vunpack.c.l.b16 %v528
        %v802 = vunpack.c.h.b16 %v528
        %v803 = vunpack.c.l.b16 %v529
        %v804 = vunpack.c.h.b16 %v529
        %v805 = vunpack.c.l.b16 %v530
        %v806 = vunpack.c.h.b16 %v530
        %v807 = vunpack.c.l.b16 %v531
        %v808 = vunpack.c.h.b16 %v531
        %v809 = vunpack.c.l.b16 %v532
        %v810 = vunpack.c.h.b16 %v532
        %v811 = vunpack.c.l.b16 %v533
        %v812 = vunpack.c.h.b16 %v533
        %v813 = vunpack.c.l.b16 %v534
        %v814 = vunpack.c.h.b16 %v534
        %v815 = vunpack.c.l.b16 %v535
        %v816 = vunpack.c.h.b16 %v535
        %v817 = vunpack.c.l.b16 %v536
        %v818 = vunpack.c.h.b16 %v536
        %v819 = vunpack.c.l.b16 %v537
        %v820 = vunpack.c.h.b16 %v537
        %v821 = vunpack.c.l.b16 %v538
        %v822 = vunpack.c.h.b16 %v538
        %v823 = vunpack.c.l.b16 %v539
        %v824 = vunpack.c.h.b16 %v539
        %v825 = vunpack.c.l.b16 %v540
        %v826 = vunpack.c.h.b16 %v540
        %v827 = vunpack.c.l.b16 %v541
        %v828 = vunpack.c.h.b16 %v541
        %v829 = vunpack.c.l.b16 %v542
        %v830 = vunpack.c.h.b16 %v542
        %v831 = vpack.c.b16 %v737, %v735
        %v832 = vpack.c.b16 %v738, %v736
        %v833 = vpack.c.b16 %v741, %v739
        %v834 = vpack.c.b16 %v742, %v740
        %v835 = vpack.c.b16 %v745, %v743
        %v836 = vpack.c.b16 %v746, %v744
        %v837 = vpack.c.b16 %v749, %v747
        %v838 = vpack.c.b16 %v750, %v748
        %v839 = vpack.c.b16 %v753, %v751
        %v840 = vpack.c.b16 %v754, %v752
        %v841 = vpack.c.b16 %v757, %v755
        %v842 = vpack.c.b16 %v758, %v756
        %v843 = vpack.c.b16 %v761, %v759
        %v844 = vpack.c.b16 %v762, %v760
        %v845 = vpack.c.b16 %v765, %v763
        %v846 = vpack.c.b16 %v766, %v764
        %v847 = vpack.c.b16 %v769, %v767
        %v848 = vpack.c.b16 %v770, %v768
        %v849 = vpack.c.b16 %v773, %v771
        %v850 = vpack.c.b16 %v774, %v772
        %v851 = vpack.c.b16 %v777, %v775
        %v852 = vpack.c.b16 %v778, %v776
        %v853 = vpack.c.b16 %v781, %v779
        %v854 = vpack.c.b16 %v782, %v780
        %v855 = vpack.c.b16 %v785, %v783
        %v856 = vpack.c.b16 %v786, %v784
        %v857 = vpack.c.b16 %v789, %v787
        %v858 = vpack.c.b16 %v790, %v788
        %v859 = vpack.c.b16 %v793, %v791
        %v860 = vpack.c.b16 %v794, %v792
        %v861 = vpack.c.b16 %v797, %v795
        %v862 = vpack.c.b16 %v798, %v796
        %v863 = vpack.c.b16 %v801, %v799
        %v864 = vpack.c.b16 %v802, %v800
        %v865 = vpack.c.b16 %v805, %v803
        %v866 = vpack.c.b16 %v806, %v804
        %v867 = vpack.c.b16 %v809, %v807
        %v868 = vpack.c.b16 %v810, %v808
        %v869 = vpack.c.b16 %v813, %v811
        %v870 = vpack.c.b16 %v814, %v812
        %v871 = vpack.c.b16 %v817, %v815
        %v872 = vpack.c.b16 %v818, %v816
        %v873 = vpack.c.b16 %v821, %v819
        %v874 = vpack.c.b16 %v822, %v820
        %v875 = vpack.c.b16 %v825, %v823
        %v876 = vpack.c.b16 %v826, %v824
        %v877 = vpack.c.b16 %v829, %v827
        %v878 = vpack.c.b16 %v830, %v828
        %927 = vmatprep.subr.bf16.mxu0 %v832
        %928 = vmatpush1.bf16.msra.mxu0 %v831
        %929 = vmatprep.subr.bf16.mxu0 %v834
        %930 = vmatpush1.bf16.msra.mxu0 %v833
        %931 = vmatprep.subr.bf16.mxu0 %v836
        %932 = vmatpush1.bf16.msra.mxu0 %v835
        %933 = vmatprep.subr.bf16.mxu0 %v838
        %934 = vmatpush1.bf16.msra.mxu0 %v837
        %935 = vmatprep.subr.bf16.mxu0 %v840
        %936 = vmatpush1.bf16.msra.mxu0 %v839
        %937 = vmatprep.subr.bf16.mxu0 %v842
        %938 = vmatpush1.bf16.msra.mxu0 %v841
        %939 = vmatprep.subr.bf16.mxu0 %v844
        %940 = vmatpush1.bf16.msra.mxu0 %v843
        %941 = vmatprep.subr.bf16.mxu0 %v846
        %942 = vmatpush1.bf16.msra.mxu0 %v845
        %943 = vmatprep.subr.bf16.mxu0 %v848
        %944 = vmatpush1.bf16.msra.mxu0 %v847
        %945 = vmatprep.subr.bf16.mxu0 %v850
        %946 = vmatpush1.bf16.msra.mxu0 %v849
        %947 = vmatprep.subr.bf16.mxu0 %v852
        %948 = vmatpush1.bf16.msra.mxu0 %v851
        %949 = vmatprep.subr.bf16.mxu0 %v854
        %950 = vmatpush1.bf16.msra.mxu0 %v853
        %951 = vmatprep.subr.bf16.mxu0 %v856
        %952 = vmatpush1.bf16.msra.mxu0 %v855
        %953 = vmatprep.subr.bf16.mxu0 %v858
        %954 = vmatpush1.bf16.msra.mxu0 %v857
        %955 = vmatprep.subr.bf16.mxu0 %v860
        %956 = vmatpush1.bf16.msra.mxu0 %v859
        %957 = vmatprep.subr.bf16.mxu0 %v862
        %958 = vmatpush1.bf16.msra.mxu0 %v861
        %959 = vmatprep.mubr.bf16.mxu0 %v634
        %960 = vmatmul.mubr.bf16.gmra.mrb[0].mxu0 %v633
        %v961 = vpop.f32.mrb[0].mxu0
        %v962 = vadd.f32 0.0, %v961
        %v963 = vpop.f32.mrb[0].mxu0
        %v964 = vadd.f32 0.0, %v963
        %v965 = vpop.f32.mrb[0].mxu0
        %v966 = vadd.f32 0.0, %v965
        %v967 = vpop.f32.mrb[0].mxu0
        %v968 = vadd.f32 0.0, %v967
        %969 = vmatprep.mubr.bf16.mxu0 %v637
        %970 = vmatmul.mubr.bf16.gmra.mrb[0].mxu0 %v636
        %v971 = vpop.f32.mrb[0].mxu0
        %v972 = vadd.f32 0.0, %v971
        %v973 = vpop.f32.mrb[0].mxu0
        %v974 = vadd.f32 0.0, %v973
        %v975 = vpop.f32.mrb[0].mxu0
        %v976 = vadd.f32 0.0, %v975
        %v977 = vpop.f32.mrb[0].mxu0
        %v978 = vadd.f32 0.0, %v977
        %979 = vmatprep.mubr.bf16.mxu0 %v640
        %980 = vmatmul.mubr.bf16.gmra.mrb[0].mxu0 %v639
        %v981 = vpop.f32.mrb[0].mxu0
        %v982 = vadd.f32 0.0, %v981
        %v983 = vpop.f32.mrb[0].mxu0
        %v984 = vadd.f32 0.0, %v983
        %v985 = vpop.f32.mrb[0].mxu0
        %v986 = vadd.f32 0.0, %v985
        %v987 = vpop.f32.mrb[0].mxu0
        %v988 = vadd.f32 0.0, %v987
        %989 = vmatprep.mubr.bf16.mxu0 %v643
        %990 = vmatmul.mubr.bf16.gmra.mrb[0].mxu0 %v642
        %v991 = vpop.f32.mrb[0].mxu0
        %v992 = vadd.f32 0.0, %v991
        %v993 = vpop.f32.mrb[0].mxu0
        %v994 = vadd.f32 0.0, %v993
        %v995 = vpop.f32.mrb[0].mxu0
        %v996 = vadd.f32 0.0, %v995
        %v997 = vpop.f32.mrb[0].mxu0
        %v998 = vadd.f32 0.0, %v997
        %999 = vmatprep.mubr.bf16.mxu0 %v646
        %1000 = vmatmul.mubr.bf16.gmra.mrb[0].mxu0 %v645
        %v1001 = vpop.f32.mrb[0].mxu0
        %v1002 = vadd.f32 0.0, %v1001
        %v1003 = vpop.f32.mrb[0].mxu0
        %v1004 = vadd.f32 0.0, %v1003
        %v1005 = vpop.f32.mrb[0].mxu0
        %v1006 = vadd.f32 0.0, %v1005
        %v1007 = vpop.f32.mrb[0].mxu0
        %v1008 = vadd.f32 0.0, %v1007
        %1009 = vmatprep.mubr.bf16.mxu0 %v649
        %1010 = vmatmul.mubr.bf16.gmra.mrb[0].mxu0 %v648
        %v1011 = vpop.f32.mrb[0].mxu0
        %v1012 = vadd.f32 0.0, %v1011
        %v1013 = vpop.f32.mrb[0].mxu0
        %v1014 = vadd.f32 0.0, %v1013
        %v1015 = vpop.f32.mrb[0].mxu0
        %v1016 = vadd.f32 0.0, %v1015
        %v1017 = vpop.f32.mrb[0].mxu0
        %v1018 = vadd.f32 0.0, %v1017
        %1019 = vmatprep.mubr.bf16.mxu0 %v652
        %1020 = vmatmul.mubr.bf16.gmra.mrb[0].mxu0 %v651
        %v1021 = vpop.f32.mrb[0].mxu0
        %v1022 = vadd.f32 0.0, %v1021
        %v1023 = vpop.f32.mrb[0].mxu0
        %v1024 = vadd.f32 0.0, %v1023
        %v1025 = vpop.f32.mrb[0].mxu0
        %v1026 = vadd.f32 0.0, %v1025
        %v1027 = vpop.f32.mrb[0].mxu0
        %v1028 = vadd.f32 0.0, %v1027
        %1029 = vmatprep.mubr.bf16.mxu0 %v655
        %1030 = vmatmul.mubr.bf16.gmra.mrb[0].mxu0 %v654
        %v1031 = vpop.f32.mrb[0].mxu0
        %v1032 = vadd.f32 0.0, %v1031
        %v1033 = vpop.f32.mrb[0].mxu0
        %v1034 = vadd.f32 0.0, %v1033
        %v1035 = vpop.f32.mrb[0].mxu0
        %v1036 = vadd.f32 0.0, %v1035
        %v1037 = vpop.f32.mrb[0].mxu0
        %v1038 = vadd.f32 0.0, %v1037
        %1039 = vmatprep.mubr.bf16.mxu0 %v658
        %1040 = vmatmul.mubr.bf16.gmra.mrb[0].mxu0 %v657
        %v1041 = vpop.f32.mrb[0].mxu0
        %v1042 = vadd.f32 0.0, %v1041
        %v1043 = vpop.f32.mrb[0].mxu0
        %v1044 = vadd.f32 0.0, %v1043
        %v1045 = vpop.f32.mrb[0].mxu0
        %v1046 = vadd.f32 0.0, %v1045
        %v1047 = vpop.f32.mrb[0].mxu0
        %v1048 = vadd.f32 0.0, %v1047
        %1049 = vdwg.mxu0
        %1050 = vmatprep.subr.bf16.mxu0 %v864
        %1051 = vmatpush1.bf16.msra.mxu0 %v863
        %1052 = vmatprep.subr.bf16.mxu0 %v866
        %1053 = vmatpush1.bf16.msra.mxu0 %v865
        %1054 = vmatprep.subr.bf16.mxu0 %v868
        %1055 = vmatpush1.bf16.msra.mxu0 %v867
        %1056 = vmatprep.subr.bf16.mxu0 %v870
        %1057 = vmatpush1.bf16.msra.mxu0 %v869
        %1058 = vmatprep.subr.bf16.mxu0 %v872
        %1059 = vmatpush1.bf16.msra.mxu0 %v871
        %1060 = vmatprep.subr.bf16.mxu0 %v874
        %1061 = vmatpush1.bf16.msra.mxu0 %v873
        %1062 = vmatprep.subr.bf16.mxu0 %v876
        %1063 = vmatpush1.bf16.msra.mxu0 %v875
        %1064 = vmatprep.subr.bf16.mxu0 %v878
        %1065 = vmatpush1.bf16.msra.mxu0 %v877
        %1066 = vmatprep.subr.bf16.mxu0 0
        %1067 = vmatpush1.bf16.msra.mxu0 0
        %1068 = vmatprep.subr.bf16.mxu0 0
        %1069 = vmatpush1.bf16.msra.mxu0 0
        %1070 = vmatprep.subr.bf16.mxu0 0
        %1071 = vmatpush1.bf16.msra.mxu0 0
        %1072 = vmatprep.subr.bf16.mxu0 0
        %1073 = vmatpush1.bf16.msra.mxu0 0
        %1074 = vmatprep.subr.bf16.mxu0 0
        %1075 = vmatpush1.bf16.msra.mxu0 0
        %1076 = vmatprep.subr.bf16.mxu0 0
        %1077 = vmatpush1.bf16.msra.mxu0 0
        %1078 = vmatprep.subr.bf16.mxu0 0
        %1079 = vmatpush1.bf16.msra.mxu0 0
        %1080 = vmatprep.subr.bf16.mxu0 0
        %1081 = vmatpush1.bf16.msra.mxu0 0
        %1082 = vmatprep.mubr.bf16.mxu0 0
        %1083 = vmatmul.mubr.bf16.gmra.mrb[0].mxu0 %v635
        %v1084 = vpop.f32.mrb[0].mxu0
        %v1085 = vadd.f32 %v962, %v1084
        %v1086 = vpop.f32.mrb[0].mxu0
        %v1087 = vadd.f32 %v964, %v1086
        %v1088 = vpop.f32.mrb[0].mxu0
        %v1089 = vadd.f32 %v966, %v1088
        %v1090 = vpop.f32.mrb[0].mxu0
        %v1091 = vadd.f32 %v968, %v1090
        %1092 = vmatprep.mubr.bf16.mxu0 0
        %1093 = vmatmul.mubr.bf16.gmra.mrb[0].mxu0 %v638
        %v1094 = vpop.f32.mrb[0].mxu0
        %v1095 = vadd.f32 %v972, %v1094
        %v1096 = vpop.f32.mrb[0].mxu0
        %v1097 = vadd.f32 %v974, %v1096
        %v1098 = vpop.f32.mrb[0].mxu0
        %v1099 = vadd.f32 %v976, %v1098
        %v1100 = vpop.f32.mrb[0].mxu0
        %v1101 = vadd.f32 %v978, %v1100
        %1102 = vmatprep.mubr.bf16.mxu0 0
        %1103 = vmatmul.mubr.bf16.gmra.mrb[0].mxu0 %v641
        %v1104 = vpop.f32.mrb[0].mxu0
        %v1105 = vadd.f32 %v982, %v1104
        %v1106 = vpop.f32.mrb[0].mxu0
        %v1107 = vadd.f32 %v984, %v1106
        %v1108 = vpop.f32.mrb[0].mxu0
        %v1109 = vadd.f32 %v986, %v1108
        %v1110 = vpop.f32.mrb[0].mxu0
        %v1111 = vadd.f32 %v988, %v1110
        %1112 = vmatprep.mubr.bf16.mxu0 0
        %1113 = vmatmul.mubr.bf16.gmra.mrb[0].mxu0 %v644
        %v1114 = vpop.f32.mrb[0].mxu0
        %v1115 = vadd.f32 %v992, %v1114
        %v1116 = vpop.f32.mrb[0].mxu0
        %v1117 = vadd.f32 %v994, %v1116
        %v1118 = vpop.f32.mrb[0].mxu0
        %v1119 = vadd.f32 %v996, %v1118
        %v1120 = vpop.f32.mrb[0].mxu0
        %v1121 = vadd.f32 %v998, %v1120
        %1122 = vmatprep.mubr.bf16.mxu0 0
        %1123 = vmatmul.mubr.bf16.gmra.mrb[0].mxu0 %v647
        %v1124 = vpop.f32.mrb[0].mxu0
        %v1125 = vadd.f32 %v1002, %v1124
        %v1126 = vpop.f32.mrb[0].mxu0
        %v1127 = vadd.f32 %v1004, %v1126
        %v1128 = vpop.f32.mrb[0].mxu0
        %v1129 = vadd.f32 %v1006, %v1128
        %v1130 = vpop.f32.mrb[0].mxu0
        %v1131 = vadd.f32 %v1008, %v1130
        %1132 = vmatprep.mubr.bf16.mxu0 0
        %1133 = vmatmul.mubr.bf16.gmra.mrb[0].mxu0 %v650
        %v1134 = vpop.f32.mrb[0].mxu0
        %v1135 = vadd.f32 %v1012, %v1134
        %v1136 = vpop.f32.mrb[0].mxu0
        %v1137 = vadd.f32 %v1014, %v1136
        %v1138 = vpop.f32.mrb[0].mxu0
        %v1139 = vadd.f32 %v1016, %v1138
        %v1140 = vpop.f32.mrb[0].mxu0
        %v1141 = vadd.f32 %v1018, %v1140
        %1142 = vmatprep.mubr.bf16.mxu0 0
        %1143 = vmatmul.mubr.bf16.gmra.mrb[0].mxu0 %v653
        %v1144 = vpop.f32.mrb[0].mxu0
        %v1145 = vadd.f32 %v1022, %v1144
        %v1146 = vpop.f32.mrb[0].mxu0
        %v1147 = vadd.f32 %v1024, %v1146
        %v1148 = vpop.f32.mrb[0].mxu0
        %v1149 = vadd.f32 %v1026, %v1148
        %v1150 = vpop.f32.mrb[0].mxu0
        %v1151 = vadd.f32 %v1028, %v1150
        %1152 = vmatprep.mubr.bf16.mxu0 0
        %1153 = vmatmul.mubr.bf16.gmra.mrb[0].mxu0 %v656
        %v1154 = vpop.f32.mrb[0].mxu0
        %v1155 = vadd.f32 %v1032, %v1154
        %v1156 = vpop.f32.mrb[0].mxu0
        %v1157 = vadd.f32 %v1034, %v1156
        %v1158 = vpop.f32.mrb[0].mxu0
        %v1159 = vadd.f32 %v1036, %v1158
        %v1160 = vpop.f32.mrb[0].mxu0
        %v1161 = vadd.f32 %v1038, %v1160
        %1162 = vmatprep.mubr.bf16.mxu0 0
        %1163 = vmatmul.mubr.bf16.gmra.mrb[0].mxu0 %v659
        %v1164 = vpop.f32.mrb[0].mxu0
        %v1165 = vadd.f32 %v1042, %v1164
        %v1166 = vpop.f32.mrb[0].mxu0
        %v1167 = vadd.f32 %v1044, %v1166
        %v1168 = vpop.f32.mrb[0].mxu0
        %v1169 = vadd.f32 %v1046, %v1168
        %v1170 = vpop.f32.mrb[0].mxu0
        %v1171 = vadd.f32 %v1048, %v1170
        %1172 = vdwg.mxu0
        %v1173 = vadd.f32 %v423, %v1085
        %v1174 = vadd.f32 %v424, %v1087
        %v1175 = vadd.f32 %v425, %v1089
        %v1176 = vadd.f32 %v426, %v1091
        %v1177 = vadd.f32 %v427, %v1095
        %v1178 = vadd.f32 %v428, %v1097
        %v1179 = vadd.f32 %v429, %v1099
        %v1180 = vadd.f32 %v430, %v1101
        %v1181 = vadd.f32 %v431, %v1105
        %v1182 = vadd.f32 %v432, %v1107
        %v1183 = vadd.f32 %v433, %v1109
        %v1184 = vadd.f32 %v434, %v1111
        %v1185 = vadd.f32 %v435, %v1115
        %v1186 = vadd.f32 %v436, %v1117
        %v1187 = vadd.f32 %v437, %v1119
        %v1188 = vadd.f32 %v438, %v1121
        %v1189 = vadd.f32 %v439, %v1125
        %v1190 = vadd.f32 %v440, %v1127
        %v1191 = vadd.f32 %v441, %v1129
        %v1192 = vadd.f32 %v442, %v1131
        %v1193 = vadd.f32 %v443, %v1135
        %v1194 = vadd.f32 %v444, %v1137
        %v1195 = vadd.f32 %v445, %v1139
        %v1196 = vadd.f32 %v446, %v1141
        %v1197 = vadd.f32 %v447, %v1145
        %v1198 = vadd.f32 %v448, %v1147
        %v1199 = vadd.f32 %v449, %v1149
        %v1200 = vadd.f32 %v450, %v1151
        %v1201 = vadd.f32 %v451, %v1155
        %v1202 = vadd.f32 %v452, %v1157
        %v1203 = vadd.f32 %v453, %v1159
        %v1204 = vadd.f32 %v454, %v1161
        %v1205 = vadd.f32 %v455, %v1165
        %v1206 = vadd.f32 %v456, %v1167
        %v1207 = vadd.f32 %v457, %v1169
        %v1208 = vadd.f32 %v458, %v1171
        %1209 = vst [vmem:[%s367] sm:$0xff] %v1173
        %1210 = vst [vmem:[%s367 + $0x8] sm:$0xff] %v1174
        %1211 = vst [vmem:[%s367 + $0x10] sm:$0xff] %v1175
        %1212 = vst [vmem:[%s367 + $0x18] sm:$0xff] %v1176
        %1213 = vst [vmem:[%s367 + $0x20] sm:$0xff] %v1177
        %1214 = vst [vmem:[%s367 + $0x28] sm:$0xff] %v1178
        %1215 = vst [vmem:[%s367 + $0x30] sm:$0xff] %v1179
        %1216 = vst [vmem:[%s367 + $0x38] sm:$0xff] %v1180
        %1217 = vst [vmem:[%s367 + $0x40] sm:$0xff] %v1181
        %1218 = vst [vmem:[%s367 + $0x48] sm:$0xff] %v1182
        %1219 = vst [vmem:[%s367 + $0x50] sm:$0xff] %v1183
        %1220 = vst [vmem:[%s367 + $0x58] sm:$0xff] %v1184
        %1221 = vst [vmem:[%s367 + $0x60] sm:$0xff] %v1185
        %1222 = vst [vmem:[%s367 + $0x68] sm:$0xff] %v1186
        %1223 = vst [vmem:[%s367 + $0x70] sm:$0xff] %v1187
        %1224 = vst [vmem:[%s367 + $0x78] sm:$0xff] %v1188
        %1225 = vst [vmem:[%s367 + $0x80] sm:$0xff] %v1189
        %1226 = vst [vmem:[%s367 + $0x88] sm:$0xff] %v1190
        %1227 = vst [vmem:[%s367 + $0x90] sm:$0xff] %v1191
        %1228 = vst [vmem:[%s367 + $0x98] sm:$0xff] %v1192
        %1229 = vst [vmem:[%s367 + $0xa0] sm:$0xff] %v1193
        %1230 = vst [vmem:[%s367 + $0xa8] sm:$0xff] %v1194
        %1231 = vst [vmem:[%s367 + $0xb0] sm:$0xff] %v1195
        %1232 = vst [vmem:[%s367 + $0xb8] sm:$0xff] %v1196
        %1233 = vst [vmem:[%s367 + $0xc0] sm:$0xff] %v1197
        %1234 = vst [vmem:[%s367 + $0xc8] sm:$0xff] %v1198
        %1235 = vst [vmem:[%s367 + $0xd0] sm:$0xff] %v1199
        %1236 = vst [vmem:[%s367 + $0xd8] sm:$0xff] %v1200
        %1237 = vst [vmem:[%s367 + $0xe0] sm:$0xff] %v1201
        %1238 = vst [vmem:[%s367 + $0xe8] sm:$0xff] %v1202
        %1239 = vst [vmem:[%s367 + $0xf0] sm:$0xff] %v1203
        %1240 = vst [vmem:[%s367 + $0xf8] sm:$0xff] %v1204
        %1241 = vst [vmem:[%s367 + $0x100] sm:$0xff] %v1205
        %1242 = vst [vmem:[%s367 + $0x108] sm:$0xff] %v1206
        %1243 = vst [vmem:[%s367 + $0x110] sm:$0xff] %v1207
        %1244 = vst [vmem:[%s367 + $0x118] sm:$0xff] %v1208
        %p1245 = scmp.eq.s32.totalorder %s21, 2
        // Predicated region
        $region63: #{cnn_forward.8} parent=53 // pred_check
          %p1246 = pneg %p1245
        $region64: #{cnn_forward.8} parent=53 // pred_check_branch
          %1248 = sbr.rel (%p1246) target = $region66
        $region65: #{cnn_forward.8} parent=53 // pred_region
          %v1249 = vld [vmem:[%s367] sm:$0xff]
          %v1250 = vld [vmem:[%s367 + $0x8] sm:$0xff]
          %v1251 = vld [vmem:[%s367 + $0x10] sm:$0xff]
          %v1252 = vld [vmem:[%s367 + $0x18] sm:$0xff]
          %v1253 = vld [vmem:[%s367 + $0x20] sm:$0xff]
          %v1254 = vld [vmem:[%s367 + $0x28] sm:$0xff]
          %v1255 = vld [vmem:[%s367 + $0x30] sm:$0xff]
          %v1256 = vld [vmem:[%s367 + $0x38] sm:$0xff]
          %v1257 = vld [vmem:[%s367 + $0x40] sm:$0xff]
          %v1258 = vld [vmem:[%s367 + $0x48] sm:$0xff]
          %v1259 = vld [vmem:[%s367 + $0x50] sm:$0xff]
          %v1260 = vld [vmem:[%s367 + $0x58] sm:$0xff]
          %v1261 = vld [vmem:[%s367 + $0x60] sm:$0xff]
          %v1262 = vld [vmem:[%s367 + $0x68] sm:$0xff]
          %v1263 = vld [vmem:[%s367 + $0x70] sm:$0xff]
          %v1264 = vld [vmem:[%s367 + $0x78] sm:$0xff]
          %v1265 = vld [vmem:[%s367 + $0x80] sm:$0xff]
          %v1266 = vld [vmem:[%s367 + $0x88] sm:$0xff]
          %v1267 = vld [vmem:[%s367 + $0x90] sm:$0xff]
          %v1268 = vld [vmem:[%s367 + $0x98] sm:$0xff]
          %v1269 = vld [vmem:[%s367 + $0xa0] sm:$0xff]
          %v1270 = vld [vmem:[%s367 + $0xa8] sm:$0xff]
          %v1271 = vld [vmem:[%s367 + $0xb0] sm:$0xff]
          %v1272 = vld [vmem:[%s367 + $0xb8] sm:$0xff]
          %v1273 = vld [vmem:[%s367 + $0xc0] sm:$0xff]
          %v1274 = vld [vmem:[%s367 + $0xc8] sm:$0xff]
          %v1275 = vld [vmem:[%s367 + $0xd0] sm:$0xff]
          %v1276 = vld [vmem:[%s367 + $0xd8] sm:$0xff]
          %v1277 = vld [vmem:[%s367 + $0xe0] sm:$0xff]
          %v1278 = vld [vmem:[%s367 + $0xe8] sm:$0xff]
          %v1279 = vld [vmem:[%s367 + $0xf0] sm:$0xff]
          %v1280 = vld [vmem:[%s367 + $0xf8] sm:$0xff]
          %v1281 = vld [vmem:[%s367 + $0x100] sm:$0xff]
          %v1282 = vld [vmem:[%s367 + $0x108] sm:$0xff]
          %v1283 = vld [vmem:[%s367 + $0x110] sm:$0xff]
          %v1284 = vld [vmem:[%s367 + $0x118] sm:$0xff]
          %v1285 = vmax.f32 %v1249, 0.0
          %v1286 = vmax.f32 %v1250, 0.0
          %v1287 = vmax.f32 %v1251, 0.0
          %v1288 = vmax.f32 %v1252, 0.0
          %v1289 = vmax.f32 %v1253, 0.0
          %v1290 = vmax.f32 %v1254, 0.0
          %v1291 = vmax.f32 %v1255, 0.0
          %v1292 = vmax.f32 %v1256, 0.0
          %v1293 = vmax.f32 %v1257, 0.0
          %v1294 = vmax.f32 %v1258, 0.0
          %v1295 = vmax.f32 %v1259, 0.0
          %v1296 = vmax.f32 %v1260, 0.0
          %v1297 = vmax.f32 %v1261, 0.0
          %v1298 = vmax.f32 %v1262, 0.0
          %v1299 = vmax.f32 %v1263, 0.0
          %v1300 = vmax.f32 %v1264, 0.0
          %v1301 = vmax.f32 %v1265, 0.0
          %v1302 = vmax.f32 %v1266, 0.0
          %v1303 = vmax.f32 %v1267, 0.0
          %v1304 = vmax.f32 %v1268, 0.0
          %v1305 = vmax.f32 %v1269, 0.0
          %v1306 = vmax.f32 %v1270, 0.0
          %v1307 = vmax.f32 %v1271, 0.0
          %v1308 = vmax.f32 %v1272, 0.0
          %v1309 = vmax.f32 %v1273, 0.0
          %v1310 = vmax.f32 %v1274, 0.0
          %v1311 = vmax.f32 %v1275, 0.0
          %v1312 = vmax.f32 %v1276, 0.0
          %v1313 = vmax.f32 %v1277, 0.0
          %v1314 = vmax.f32 %v1278, 0.0
          %v1315 = vmax.f32 %v1279, 0.0
          %v1316 = vmax.f32 %v1280, 0.0
          %v1317 = vmax.f32 %v1281, 0.0
          %v1318 = vmax.f32 %v1282, 0.0
          %v1319 = vmax.f32 %v1283, 0.0
          %v1320 = vmax.f32 %v1284, 0.0
          %1321 = vst [vmem:[%s367] sm:$0xff] %v1285
          %1322 = vst [vmem:[%s367 + $0x8] sm:$0xff] %v1286
          %1323 = vst [vmem:[%s367 + $0x10] sm:$0xff] %v1287
          %1324 = vst [vmem:[%s367 + $0x18] sm:$0xff] %v1288
          %1325 = vst [vmem:[%s367 + $0x20] sm:$0xff] %v1289
          %1326 = vst [vmem:[%s367 + $0x28] sm:$0xff] %v1290
          %1327 = vst [vmem:[%s367 + $0x30] sm:$0xff] %v1291
          %1328 = vst [vmem:[%s367 + $0x38] sm:$0xff] %v1292
          %1329 = vst [vmem:[%s367 + $0x40] sm:$0xff] %v1293
          %1330 = vst [vmem:[%s367 + $0x48] sm:$0xff] %v1294
          %1331 = vst [vmem:[%s367 + $0x50] sm:$0xff] %v1295
          %1332 = vst [vmem:[%s367 + $0x58] sm:$0xff] %v1296
          %1333 = vst [vmem:[%s367 + $0x60] sm:$0xff] %v1297
          %1334 = vst [vmem:[%s367 + $0x68] sm:$0xff] %v1298
          %1335 = vst [vmem:[%s367 + $0x70] sm:$0xff] %v1299
          %1336 = vst [vmem:[%s367 + $0x78] sm:$0xff] %v1300
          %1337 = vst [vmem:[%s367 + $0x80] sm:$0xff] %v1301
          %1338 = vst [vmem:[%s367 + $0x88] sm:$0xff] %v1302
          %1339 = vst [vmem:[%s367 + $0x90] sm:$0xff] %v1303
          %1340 = vst [vmem:[%s367 + $0x98] sm:$0xff] %v1304
          %1341 = vst [vmem:[%s367 + $0xa0] sm:$0xff] %v1305
          %1342 = vst [vmem:[%s367 + $0xa8] sm:$0xff] %v1306
          %1343 = vst [vmem:[%s367 + $0xb0] sm:$0xff] %v1307
          %1344 = vst [vmem:[%s367 + $0xb8] sm:$0xff] %v1308
          %1345 = vst [vmem:[%s367 + $0xc0] sm:$0xff] %v1309
          %1346 = vst [vmem:[%s367 + $0xc8] sm:$0xff] %v1310
          %1347 = vst [vmem:[%s367 + $0xd0] sm:$0xff] %v1311
          %1348 = vst [vmem:[%s367 + $0xd8] sm:$0xff] %v1312
          %1349 = vst [vmem:[%s367 + $0xe0] sm:$0xff] %v1313
          %1350 = vst [vmem:[%s367 + $0xe8] sm:$0xff] %v1314
          %1351 = vst [vmem:[%s367 + $0xf0] sm:$0xff] %v1315
          %1352 = vst [vmem:[%s367 + $0xf8] sm:$0xff] %v1316
          %1353 = vst [vmem:[%s367 + $0x100] sm:$0xff] %v1317
          %1354 = vst [vmem:[%s367 + $0x108] sm:$0xff] %v1318
          %1355 = vst [vmem:[%s367 + $0x110] sm:$0xff] %v1319
          %1356 = vst [vmem:[%s367 + $0x118] sm:$0xff] %v1320
        $region66: #{cnn_forward.8} parent=53 // pred_fallthru
          _
        %s1357 = smul.u32 18, %s19
        %s1358 = smul.u32 2, %s20
        %p1359 = scmp.lt.s32.totalorder %s1357, 35
        %s1360 = scalar_select %p1359, %s1357, 35
        %p1361 = scmp.lt.s32.totalorder %s1358, 1
        %s1362 = scalar_select %p1361, %s1358, 1
        %s1363 = smul.addr %s1360, 2
        %s1364 = sadd.s32 %s1362, %s1363
        %s1365 = smul.addr %s1364, 8
        %s1366 = scalar_lea.vmem %s3, %s1365
        // Predicated region
        $region67: #{cnn_forward.8} parent=53 // pred_check
          %p1367 = pneg %p135
        $region68: #{cnn_forward.8} parent=53 // pred_check_branch
          %1369 = sbr.rel (%p1367) target = $region70
        $region69: #{cnn_forward.8} parent=53 // pred_region
          %s1370 = smul.u32 18, %s19
          %s1371 = smul.u32 2, %s20
        $region70: #{cnn_forward.8} parent=53 // pred_fallthru
          _
      $region54: #{cnn_forward.8} parent=5 // pred_fallthru
        _
      %p1372 = scmp.le.s32.totalorder 2, %s9
      // Predicated region
      $region71: #{cnn_forward.8} parent=5 // pred_check
        %p1373 = pneg %p1372
      $region72: #{cnn_forward.8} parent=5 // pred_check_branch
        %1375 = sbr.rel (%p1373) target = $region74
      $region73: #{cnn_forward.8} parent=5 // pred_region
        %s1376 = ssub.s32 %s9, 2
        // Predicated region
        $region75: #{cnn_forward.8} parent=73 // pred_check
          %p1377 = pneg %p141
        $region76: #{cnn_forward.8} parent=73 // pred_check_branch
          %1379 = sbr.rel (%p1377) target = $region78
        $region77: #{cnn_forward.8} parent=73 // pred_region
          %s1380 = smul.u32 18, %s22
          %s1381 = smul.u32 2, %s23
          %p1382 = scmp.lt.s32.totalorder %s1380, 35
          %s1383 = scalar_select %p1382, %s1380, 35
          %p1384 = scmp.lt.s32.totalorder %s1381, 1
          %s1385 = scalar_select %p1384, %s1381, 1
          %s1386 = smul.addr %s1383, 2
          %s1387 = sadd.s32 %s1385, %s1386
          %s1388 = smul.addr %s1387, 8
          %s1389 = scalar_lea.vmem %s3, %s1388
        $region78: #{cnn_forward.8} parent=73 // pred_fallthru
          _
      $region74: #{cnn_forward.8} parent=5 // pred_fallthru
        _
    $region6: #{cnn_forward.8} parent=1 // loop_footer
      %s13 = sadd.s32 1, %s9
    $region7: #{cnn_forward.8} parent=1 // loop_footer_branch
      %8 = sbr.rel target = $region3
    $region8: #{cnn_forward.8} parent=1 // loop_exit
      _

// kernel: cnn_forward.10
$region0: #{cnn_forward.10}
  #allocation0 [shape = 'u32[]', space=smem, size = 0x4, offset = 0x4, fixed_abs, tag = 'smem constant byte address 0x4 - core index']
  #allocation1 [shape = 'u32[144,128]{1,0:T(1,128)}', space=vmem, size = 0x12000, scoped, tag = 'internal scratch']
  %s0 = inlined_call_operand.vmem [shape: bf16[16,2048], index: 0, kind: input, shape index: {}]
  %s1 = inlined_call_operand.vmem [shape: bf16[2048,2048], index: 1, kind: input, shape index: {}]
  %s2 = inlined_call_operand.vmem [shape: f32[1,2048], index: 2, kind: input, shape index: {}]
  %s3 = inlined_call_operand.vmem [shape: f32[16,2048], index: 3, kind: output, shape index: {}]
  %s4 = sld [smem:[#allocation0]]
  $region118: #{cnn_forward.10} parent=0
    _
  %s6 = ssub.s32 1, %s4
  %s7 = scalar_select 0, %s6, %s4
  $region1: #{cnn_forward.10} parent=0
    #allocation2 [shape = 'u8[32768]{0}', space=vmem, size = 0x8000, scoped, tag = 'input window, operand 0']
    #allocation3 [shape = 'u8[2097152]{0}', space=vmem, size = 0x200000, scoped, tag = 'input window, operand 1']
    #allocation4 [shape = 'u8[131072]{0}', space=vmem, size = 0x20000, scoped, tag = 'output window, operand 0']
    loop: start=0, step=1, limit=10
    $region2: #{cnn_forward.10} parent=1 // loop_pre_header
      _
    $region3: #{cnn_forward.10} parent=1 // loop_header
      %s9 = sphi 0, %s13
      %p10 = scmp.ge.s32.totalorder %s9, 10
      %s16 = sphi 0, %s35
      %s17 = sphi 0, %s31
      %s18 = sphi 0, %s27
      %s19 = sphi 0, %s16
      %s20 = sphi 0, %s17
      %s21 = sphi 0, %s18
      %s22 = sphi 0, %s19
      %s23 = sphi 0, %s20
      %s24 = sphi 0, %s21
      %s40 = sphi 0, %s42
      %s43 = sphi 0, %s40
      %s44 = sphi 0, %s43
      %s60 = sphi 0, %s44
      %s68 = sphi 0, %s70
      %s71 = sphi 0, %s68
      %s72 = sphi 0, %s71
      %s88 = sphi 0, %s72
      %s94 = sphi 0, %s96
      %s97 = sphi 0, %s94
      %s98 = sphi 0, %s97
      %s114 = sphi 0, %s98
      %s122 = sphi 0, %s124
      %s125 = sphi 0, %s122
      %s126 = sphi 0, %s125
      %s142 = sphi 0, %s126
    $region4: #{cnn_forward.10} parent=1 // loop_header_branch
      %12 = sbr.rel (%p10) target = $region8
    $region5: #{cnn_forward.10} parent=1 // loop_body
      %s14 = ssub.s32 %s9, 1
      %s15 = ssub.s32 %s9, 2
      %s25 = sadd.s32 1, %s18
      %p26 = scmp.ge.s32.totalorder %s25, 4
      %s27 = scalar_select %p26, 0, %s25
      %s28 = sadd.s32 1, %s17
      %s29 = scalar_select %p26, %s28, %s17
      %p30 = scmp.ge.s32.totalorder %s29, 2
      %s31 = scalar_select %p30, 0, %s29
      %s32 = sadd.s32 1, %s16
      %s33 = scalar_select %p30, %s32, %s16
      %p34 = scmp.ge.s32.totalorder %s33, 1
      %s35 = scalar_select %p34, 0, %s33
      %s36 = ssub.s32 %s16, %s35
      %s37 = ssub.s32 %s18, %s27
      %s38 = sor.u32 %s36, %s37
      %p39 = scmp.eq.s32.totalorder %s38, 0
      %s41 = sadd.s32 %s40, 1
      %s42 = scalar_select %p39, %s40, %s41
      %p45 = pneg %p39
      %p46 = scmp.eq.s32.totalorder %s9, 7
      %p47 = por %p45, %p46
      %p48 = scmp.ne.s32.totalorder %s40, %s43
      %p49 = scmp.eq.s32.totalorder %s9, 0
      %p50 = por %p48, %p49
      %p51 = scmp.ne.s32.totalorder %s40, %s43
      %p52 = scmp.eq.s32.totalorder %s14, 7
      %p53 = por %p51, %p52
      %p54 = scmp.ne.s32.totalorder %s43, %s44
      %p55 = scmp.eq.s32.totalorder %s14, 0
      %p56 = por %p54, %p55
      %p57 = scmp.ne.s32.totalorder %s43, %s44
      %p58 = scmp.eq.s32.totalorder %s15, 7
      %p59 = por %p57, %p58
      %p61 = scmp.ne.s32.totalorder %s44, %s60
      %p62 = scmp.eq.s32.totalorder %s15, 0
      %p63 = por %p61, %p62
      %s64 = ssub.s32 %s18, %s27
      %s65 = ssub.s32 %s17, %s31
      %s66 = sor.u32 %s64, %s65
      %p67 = scmp.eq.s32.totalorder %s66, 0
      %s69 = sadd.s32 %s68, 1
      %s70 = scalar_select %p67, %s68, %s69
      %p73 = pneg %p67
      %p74 = scmp.eq.s32.totalorder %s9, 7
      %p75 = por %p73, %p74
      %p76 = scmp.ne.s32.totalorder %s68, %s71
      %p77 = scmp.eq.s32.totalorder %s9, 0
      %p78 = por %p76, %p77
      %p79 = scmp.ne.s32.totalorder %s68, %s71
      %p80 = scmp.eq.s32.totalorder %s14, 7
      %p81 = por %p79, %p80
      %p82 = scmp.ne.s32.totalorder %s71, %s72
      %p83 = scmp.eq.s32.totalorder %s14, 0
      %p84 = por %p82, %p83
      %p85 = scmp.ne.s32.totalorder %s71, %s72
      %p86 = scmp.eq.s32.totalorder %s15, 7
      %p87 = por %p85, %p86
      %p89 = scmp.ne.s32.totalorder %s72, %s88
      %p90 = scmp.eq.s32.totalorder %s15, 0
      %p91 = por %p89, %p90
      %s92 = ssub.s32 %s17, %s31
      %p93 = scmp.eq.s32.totalorder %s92, 0
      %s95 = sadd.s32 %s94, 1
      %s96 = scalar_select %p93, %s94, %s95
      %p99 = pneg %p93
      %p100 = scmp.eq.s32.totalorder %s9, 7
      %p101 = por %p99, %p100
      %p102 = scmp.ne.s32.totalorder %s94, %s97
      %p103 = scmp.eq.s32.totalorder %s9, 0
      %p104 = por %p102, %p103
      %p105 = scmp.ne.s32.totalorder %s94, %s97
      %p106 = scmp.eq.s32.totalorder %s14, 7
      %p107 = por %p105, %p106
      %p108 = scmp.ne.s32.totalorder %s97, %s98
      %p109 = scmp.eq.s32.totalorder %s14, 0
      %p110 = por %p108, %p109
      %p111 = scmp.ne.s32.totalorder %s97, %s98
      %p112 = scmp.eq.s32.totalorder %s15, 7
      %p113 = por %p111, %p112
      %p115 = scmp.ne.s32.totalorder %s98, %s114
      %p116 = scmp.eq.s32.totalorder %s15, 0
      %p117 = por %p115, %p116
      %s118 = ssub.s32 %s16, %s35
      %s119 = ssub.s32 %s17, %s31
      %s120 = sor.u32 %s118, %s119
      %p121 = scmp.eq.s32.totalorder %s120, 0
      %s123 = sadd.s32 %s122, 1
      %s124 = scalar_select %p121, %s122, %s123
      %p127 = pneg %p121
      %p128 = scmp.eq.s32.totalorder %s9, 7
      %p129 = por %p127, %p128
      %p130 = scmp.ne.s32.totalorder %s122, %s125
      %p131 = scmp.eq.s32.totalorder %s9, 0
      %p132 = por %p130, %p131
      %p133 = scmp.ne.s32.totalorder %s122, %s125
      %p134 = scmp.eq.s32.totalorder %s14, 7
      %p135 = por %p133, %p134
      %p136 = scmp.ne.s32.totalorder %s125, %s126
      %p137 = scmp.eq.s32.totalorder %s14, 0
      %p138 = por %p136, %p137
      %p139 = scmp.ne.s32.totalorder %s125, %s126
      %p140 = scmp.eq.s32.totalorder %s15, 7
      %p141 = por %p139, %p140
      %p143 = scmp.ne.s32.totalorder %s126, %s142
      %p144 = scmp.eq.s32.totalorder %s15, 0
      %p145 = por %p143, %p144
      %p146 = scmp.le.s32.totalorder 1, %s9
      %p147 = scmp.lt.s32.totalorder %s9, 9
      %p148 = pnand %p146, %p147
      %p149 = pneg %p148
      // Predicated region
      $region9: #{cnn_forward.10} parent=5 // pred_check
        _
      $region10: #{cnn_forward.10} parent=5 // pred_check_branch
        %151 = sbr.rel (%p148) target = $region12
      $region11: #{cnn_forward.10} parent=5 // pred_region
        %s152 = ssub.s32 %s9, 1
      $region12: #{cnn_forward.10} parent=5 // pred_fallthru
        _
      %p153 = scmp.lt.s32.totalorder %s9, 8
      // Predicated region
      $region13: #{cnn_forward.10} parent=5 // pred_check
        %p154 = pneg %p153
      $region14: #{cnn_forward.10} parent=5 // pred_check_branch
        %156 = sbr.rel (%p154) target = $region16
      $region15: #{cnn_forward.10} parent=5 // pred_region
        // Predicated region
        $region17: #{cnn_forward.10} parent=15 // pred_check
          %p157 = pneg %p50
        $region18: #{cnn_forward.10} parent=15 // pred_check_branch
          %159 = sbr.rel (%p157) target = $region20
        $region19: #{cnn_forward.10} parent=15 // pred_region
          %s160 = sand.u32 %s40, 1
          %s161 = sand.u32 %s40, 1
          %s162 = smul.addr %s161, 32
          %s163 = scalar_lea.vmem [#allocation2], %s162
          %s164 = smul.u32 2, %s16
          %s165 = smul.u32 4, %s18
          %s166 = smul.addr %s164, 16
          %s167 = sadd.s32 %s165, %s166
          %s168 = smul.addr %s167, 4
          %s169 = scalar_lea.vmem %s0, %s168
          // Predicated region
          $region21: #{cnn_forward.10} parent=19 // pred_check
            _
          $region22: #{cnn_forward.10} parent=19 // pred_check_branch
            %171 = sbr.rel (0) target = $region24
          $region23: #{cnn_forward.10} parent=19 // pred_region
            // Predicated region
            $region25: #{cnn_forward.10} parent=23 // pred_check
              _
            $region26: #{cnn_forward.10} parent=23 // pred_check_branch
              %173 = sbr.rel (0) target = $region28
            $region27: #{cnn_forward.10} parent=23 // pred_region
              loop: start=0, step=1, limit=1
              $region29: #{cnn_forward.10} parent=27 // loop_pre_header
                _
              $region30: #{cnn_forward.10} parent=27 // loop_header
                %s175 = sphi 0, %s179
                %p176 = scmp.ge.s32.totalorder %s175, 1
                %s180 = sphi %s169, %s169
                %s181 = sphi %s163, %s163
              $region31: #{cnn_forward.10} parent=27 // loop_header_branch
                %178 = sbr.rel (%p176) target = $region35
              $region32: #{cnn_forward.10} parent=27 // loop_body
                %v182 = vld [vmem:[%s180] sm:$0xff]
                %183 = vst [vmem:[%s181] sm:$0xff] %v182
                %v184 = vld [vmem:[%s180 + $0x8] sm:$0xff]
                %185 = vst [vmem:[%s181 + $0x8] sm:$0xff] %v184
                %v186 = vld [vmem:[%s180 + $0x40] sm:$0xff]
                %187 = vst [vmem:[%s181 + $0x10] sm:$0xff] %v186
                %v188 = vld [vmem:[%s180 + $0x48] sm:$0xff]
                %189 = vst [vmem:[%s181 + $0x18] sm:$0xff] %v188
              $region33: #{cnn_forward.10} parent=27 // loop_footer
                %s179 = sadd.s32 1, %s175
              $region34: #{cnn_forward.10} parent=27 // loop_footer_branch
                %174 = sbr.rel target = $region30
              $region35: #{cnn_forward.10} parent=27 // loop_exit
                _
            $region28: #{cnn_forward.10} parent=23 // pred_fallthru
              _
            // Predicated region
            $region36: #{cnn_forward.10} parent=23 // pred_check
              _
            $region37: #{cnn_forward.10} parent=23 // pred_check_branch
              %191 = sbr.rel target = $region39
            $region38: #{cnn_forward.10} parent=23 // pred_region
              _
            $region39: #{cnn_forward.10} parent=23 // pred_fallthru
              _
          $region24: #{cnn_forward.10} parent=19 // pred_fallthru
            _
          %192 = vnop
        $region20: #{cnn_forward.10} parent=15 // pred_fallthru
          _
        // Predicated region
        $region40: #{cnn_forward.10} parent=15 // pred_check
          %p193 = pneg %p78
        $region41: #{cnn_forward.10} parent=15 // pred_check_branch
          %195 = sbr.rel (%p193) target = $region43
        $region42: #{cnn_forward.10} parent=15 // pred_region
          %s196 = sand.u32 %s68, 1
          %s197 = sand.u32 %s68, 1
          %s198 = smul.addr %s197, 2048
          %s199 = scalar_lea.vmem [#allocation3], %s198
          %s200 = smul.u32 64, %s18
          %s201 = smul.u32 8, %s17
          %s202 = smul.addr %s200, 16
          %s203 = sadd.s32 %s201, %s202
          %s204 = smul.addr %s203, 4
          %s205 = scalar_lea.vmem %s1, %s204
          // Predicated region
          $region44: #{cnn_forward.10} parent=42 // pred_check
            _
          $region45: #{cnn_forward.10} parent=42 // pred_check_branch
            %207 = sbr.rel (0) target = $region47
          $region46: #{cnn_forward.10} parent=42 // pred_region
            // Predicated region
            $region48: #{cnn_forward.10} parent=46 // pred_check
              _
            $region49: #{cnn_forward.10} parent=46 // pred_check_branch
              %209 = sbr.rel (0) target = $region51
            $region50: #{cnn_forward.10} parent=46 // pred_region
              loop: start=0, step=1, limit=1
              $region52: #{cnn_forward.10} parent=50 // loop_pre_header
                _
              $region53: #{cnn_forward.10} parent=50 // loop_header
                %s211 = sphi 0, %s215
                %p212 = scmp.ge.s32.totalorder %s211, 1
                %s216 = sphi %s205, %s205
                %s217 = sphi %s199, %s199
              $region54: #{cnn_forward.10} parent=50 // loop_header_branch
                %214 = sbr.rel (%p212) target = $region58
              $region55: #{cnn_forward.10} parent=50 // loop_body
                %v218 = vld [vmem:[%s216] sm:$0xff]
                %219 = vst [vmem:[%s217] sm:$0xff] %v218
                %v220 = vld [vmem:[%s216 + $0x8] sm:$0xff]
                %221 = vst [vmem:[%s217 + $0x8] sm:$0xff] %v220
                %v222 = vld [vmem:[%s216 + $0x10] sm:$0xff]
                %223 = vst [vmem:[%s217 + $0x10] sm:$0xff] %v222
                %v224 = vld [vmem:[%s216 + $0x18] sm:$0xff]
                %225 = vst [vmem:[%s217 + $0x18] sm:$0xff] %v224
                %v226 = vld [vmem:[%s216 + $0x40] sm:$0xff]
                %227 = vst [vmem:[%s217 + $0x20] sm:$0xff] %v226
                %v228 = vld [vmem:[%s216 + $0x48] sm:$0xff]
                %229 = vst [vmem:[%s217 + $0x28] sm:$0xff] %v228
                %v230 = vld [vmem:[%s216 + $0x50] sm:$0xff]
                %231 = vst [vmem:[%s217 + $0x30] sm:$0xff] %v230
                %v232 = vld [vmem:[%s216 + $0x58] sm:$0xff]
                %233 = vst [vmem:[%s217 + $0x38] sm:$0xff] %v232
                %v234 = vld [vmem:[%s216 + $0x80] sm:$0xff]
                %235 = vst [vmem:[%s217 + $0x40] sm:$0xff] %v234
                %v236 = vld [vmem:[%s216 + $0x88] sm:$0xff]
                %237 = vst [vmem:[%s217 + $0x48] sm:$0xff] %v236
                %v238 = vld [vmem:[%s216 + $0x90] sm:$0xff]
                %239 = vst [vmem:[%s217 + $0x50] sm:$0xff] %v238
                %v240 = vld [vmem:[%s216 + $0x98] sm:$0xff]
                %241 = vst [vmem:[%s217 + $0x58] sm:$0xff] %v240
                %v242 = vld [vmem:[%s216 + $0xc0] sm:$0xff]
                %243 = vst [vmem:[%s217 + $0x60] sm:$0xff] %v242
                %v244 = vld [vmem:[%s216 + $0xc8] sm:$0xff]
                %245 = vst [vmem:[%s217 + $0x68] sm:$0xff] %v244
                %v246 = vld [vmem:[%s216 + $0xd0] sm:$0xff]
                %247 = vst [vmem:[%s217 + $0x70] sm:$0xff] %v246
                %v248 = vld [vmem:[%s216 + $0xd8] sm:$0xff]
                %249 = vst [vmem:[%s217 + $0x78] sm:$0xff] %v248
                %v250 = vld [vmem:[%s216 + $0x100] sm:$0xff]
                %251 = vst [vmem:[%s217 + $0x80] sm:$0xff] %v250
                %v252 = vld [vmem:[%s216 + $0x108] sm:$0xff]
                %253 = vst [vmem:[%s217 + $0x88] sm:$0xff] %v252
                %v254 = vld [vmem:[%s216 + $0x110] sm:$0xff]
                %255 = vst [vmem:[%s217 + $0x90] sm:$0xff] %v254
                %v256 = vld [vmem:[%s216 + $0x118] sm:$0xff]
                %257 = vst [vmem:[%s217 + $0x98] sm:$0xff] %v256
                %v258 = vld [vmem:[%s216 + $0x140] sm:$0xff]
                %259 = vst [vmem:[%s217 + $0xa0] sm:$0xff] %v258
                %v260 = vld [vmem:[%s216 + $0x148] sm:$0xff]
                %261 = vst [vmem:[%s217 + $0xa8] sm:$0xff] %v260
                %v262 = vld [vmem:[%s216 + $0x150] sm:$0xff]
                %263 = vst [vmem:[%s217 + $0xb0] sm:$0xff] %v262
                %v264 = vld [vmem:[%s216 + $0x158] sm:$0xff]
                %265 = vst [vmem:[%s217 + $0xb8] sm:$0xff] %v264
                %v266 = vld [vmem:[%s216 + $0x180] sm:$0xff]
                %267 = vst [vmem:[%s217 + $0xc0] sm:$0xff] %v266
                %v268 = vld [vmem:[%s216 + $0x188] sm:$0xff]
                %269 = vst [vmem:[%s217 + $0xc8] sm:$0xff] %v268
                %v270 = vld [vmem:[%s216 + $0x190] sm:$0xff]
                %271 = vst [vmem:[%s217 + $0xd0] sm:$0xff] %v270
                %v272 = vld [vmem:[%s216 + $0x198] sm:$0xff]
                %273 = vst [vmem:[%s217 + $0xd8] sm:$0xff] %v272
                %v274 = vld [vmem:[%s216 + $0x1c0] sm:$0xff]
                %275 = vst [vmem:[%s217 + $0xe0] sm:$0xff] %v274
                %v276 = vld [vmem:[%s216 + $0x1c8] sm:$0xff]
                %277 = vst [vmem:[%s217 + $0xe8] sm:$0xff] %v276
                %v278 = vld [vmem:[%s216 + $0x1d0] sm:$0xff]
                %279 = vst [vmem:[%s217 + $0xf0] sm:$0xff] %v278
                %v280 = vld [vmem:[%s216 + $0x1d8] sm:$0xff]
                %281 = vst [vmem:[%s217 + $0xf8] sm:$0xff] %v280
                %v282 = vld [vmem:[%s216 + $0x200] sm:$0xff]
                %283 = vst [vmem:[%s217 + $0x100] sm:$0xff] %v282
                %v284 = vld [vmem:[%s216 + $0x208] sm:$0xff]
                %285 = vst [vmem:[%s217 + $0x108] sm:$0xff] %v284
                %v286 = vld [vmem:[%s216 + $0x210] sm:$0xff]
                %287 = vst [vmem:[%s217 + $0x110] sm:$0xff] %v286
                %v288 = vld [vmem:[%s216 + $0x218] sm:$0xff]
                %289 = vst [vmem:[%s217 + $0x118] sm:$0xff] %v288
                %v290 = vld [vmem:[%s216 + $0x240] sm:$0xff]
                %291 = vst [vmem:[%s217 + $0x120] sm:$0xff] %v290
                %v292 = vld [vmem:[%s216 + $0x248] sm:$0xff]
                %293 = vst [vmem:[%s217 + $0x128] sm:$0xff] %v292
                %v294 = vld [vmem:[%s216 + $0x250] sm:$0xff]
                %295 = vst [vmem:[%s217 + $0x130] sm:$0xff] %v294
                %v296 = vld [vmem:[%s216 + $0x258] sm:$0xff]
                %297 = vst [vmem:[%s217 + $0x138] sm:$0xff] %v296
                %v298 = vld [vmem:[%s216 + $0x280] sm:$0xff]
                %299 = vst [vmem:[%s217 + $0x140] sm:$0xff] %v298
                %v300 = vld [vmem:[%s216 + $0x288] sm:$0xff]
                %301 = vst [vmem:[%s217 + $0x148] sm:$0xff] %v300
                %v302 = vld [vmem:[%s216 + $0x290] sm:$0xff]
                %303 = vst [vmem:[%s217 + $0x150] sm:$0xff] %v302
                %v304 = vld [vmem:[%s216 + $0x298] sm:$0xff]
                %305 = vst [vmem:[%s217 + $0x158] sm:$0xff] %v304
                %v306 = vld [vmem:[%s216 + $0x2c0] sm:$0xff]
                %307 = vst [vmem:[%s217 + $0x160] sm:$0xff] %v306
                %v308 = vld [vmem:[%s216 + $0x2c8] sm:$0xff]
                %309 = vst [vmem:[%s217 + $0x168] sm:$0xff] %v308
                %v310 = vld [vmem:[%s216 + $0x2d0] sm:$0xff]
                %311 = vst [vmem:[%s217 + $0x170] sm:$0xff] %v310
                %v312 = vld [vmem:[%s216 + $0x2d8] sm:$0xff]
                %313 = vst [vmem:[%s217 + $0x178] sm:$0xff] %v312
                %v314 = vld [vmem:[%s216 + $0x300] sm:$0xff]
                %315 = vst [vmem:[%s217 + $0x180] sm:$0xff] %v314
                %v316 = vld [vmem:[%s216 + $0x308] sm:$0xff]
                %317 = vst [vmem:[%s217 + $0x188] sm:$0xff] %v316
                %v318 = vld [vmem:[%s216 + $0x310] sm:$0xff]
                %319 = vst [vmem:[%s217 + $0x190] sm:$0xff] %v318
                %v320 = vld [vmem:[%s216 + $0x318] sm:$0xff]
                %321 = vst [vmem:[%s217 + $0x198] sm:$0xff] %v320
                %v322 = vld [vmem:[%s216 + $0x340] sm:$0xff]
                %323 = vst [vmem:[%s217 + $0x1a0] sm:$0xff] %v322
                %v324 = vld [vmem:[%s216 + $0x348] sm:$0xff]
                %325 = vst [vmem:[%s217 + $0x1a8] sm:$0xff] %v324
                %v326 = vld [vmem:[%s216 + $0x350] sm:$0xff]
                %327 = vst [vmem:[%s217 + $0x1b0] sm:$0xff] %v326
                %v328 = vld [vmem:[%s216 + $0x358] sm:$0xff]
                %329 = vst [vmem:[%s217 + $0x1b8] sm:$0xff] %v328
                %v330 = vld [vmem:[%s216 + $0x380] sm:$0xff]
                %331 = vst [vmem:[%s217 + $0x1c0] sm:$0xff] %v330
                %v332 = vld [vmem:[%s216 + $0x388] sm:$0xff]
                %333 = vst [vmem:[%s217 + $0x1c8] sm:$0xff] %v332
                %v334 = vld [vmem:[%s216 + $0x390] sm:$0xff]
                %335 = vst [vmem:[%s217 + $0x1d0] sm:$0xff] %v334
                %v336 = vld [vmem:[%s216 + $0x398] sm:$0xff]
                %337 = vst [vmem:[%s217 + $0x1d8] sm:$0xff] %v336
                %v338 = vld [vmem:[%s216 + $0x3c0] sm:$0xff]
                %339 = vst [vmem:[%s217 + $0x1e0] sm:$0xff] %v338
                %v340 = vld [vmem:[%s216 + $0x3c8] sm:$0xff]
                %341 = vst [vmem:[%s217 + $0x1e8] sm:$0xff] %v340
                %v342 = vld [vmem:[%s216 + $0x3d0] sm:$0xff]
                %343 = vst [vmem:[%s217 + $0x1f0] sm:$0xff] %v342
                %v344 = vld [vmem:[%s216 + $0x3d8] sm:$0xff]
                %345 = vst [vmem:[%s217 + $0x1f8] sm:$0xff] %v344
                %v346 = vld [vmem:[%s216 + $0x400] sm:$0xff]
                %347 = vst [vmem:[%s217 + $0x200] sm:$0xff] %v346
                %v348 = vld [vmem:[%s216 + $0x408] sm:$0xff]
                %349 = vst [vmem:[%s217 + $0x208] sm:$0xff] %v348
                %v350 = vld [vmem:[%s216 + $0x410] sm:$0xff]
                %351 = vst [vmem:[%s217 + $0x210] sm:$0xff] %v350
                %v352 = vld [vmem:[%s216 + $0x418] sm:$0xff]
                %353 = vst [vmem:[%s217 + $0x218] sm:$0xff] %v352
                %v354 = vld [vmem:[%s216 + $0x440] sm:$0xff]
                %355 = vst [vmem:[%s217 + $0x220] sm:$0xff] %v354
                %v356 = vld [vmem:[%s216 + $0x448] sm:$0xff]
                %357 = vst [vmem:[%s217 + $0x228] sm:$0xff] %v356
                %v358 = vld [vmem:[%s216 + $0x450] sm:$0xff]
                %359 = vst [vmem:[%s217 + $0x230] sm:$0xff] %v358
                %v360 = vld [vmem:[%s216 + $0x458] sm:$0xff]
                %361 = vst [vmem:[%s217 + $0x238] sm:$0xff] %v360
                %v362 = vld [vmem:[%s216 + $0x480] sm:$0xff]
                %363 = vst [vmem:[%s217 + $0x240] sm:$0xff] %v362
                %v364 = vld [vmem:[%s216 + $0x488] sm:$0xff]
                %365 = vst [vmem:[%s217 + $0x248] sm:$0xff] %v364
                %v366 = vld [vmem:[%s216 + $0x490] sm:$0xff]
                %367 = vst [vmem:[%s217 + $0x250] sm:$0xff] %v366
                %v368 = vld [vmem:[%s216 + $0x498] sm:$0xff]
                %369 = vst [vmem:[%s217 + $0x258] sm:$0xff] %v368
                %v370 = vld [vmem:[%s216 + $0x4c0] sm:$0xff]
                %371 = vst [vmem:[%s217 + $0x260] sm:$0xff] %v370
                %v372 = vld [vmem:[%s216 + $0x4c8] sm:$0xff]
                %373 = vst [vmem:[%s217 + $0x268] sm:$0xff] %v372
                %v374 = vld [vmem:[%s216 + $0x4d0] sm:$0xff]
                %375 = vst [vmem:[%s217 + $0x270] sm:$0xff] %v374
                %v376 = vld [vmem:[%s216 + $0x4d8] sm:$0xff]
                %377 = vst [vmem:[%s217 + $0x278] sm:$0xff] %v376
                %v378 = vld [vmem:[%s216 + $0x500] sm:$0xff]
                %379 = vst [vmem:[%s217 + $0x280] sm:$0xff] %v378
                %v380 = vld [vmem:[%s216 + $0x508] sm:$0xff]
                %381 = vst [vmem:[%s217 + $0x288] sm:$0xff] %v380
                %v382 = vld [vmem:[%s216 + $0x510] sm:$0xff]
                %383 = vst [vmem:[%s217 + $0x290] sm:$0xff] %v382
                %v384 = vld [vmem:[%s216 + $0x518] sm:$0xff]
                %385 = vst [vmem:[%s217 + $0x298] sm:$0xff] %v384
                %v386 = vld [vmem:[%s216 + $0x540] sm:$0xff]
                %387 = vst [vmem:[%s217 + $0x2a0] sm:$0xff] %v386
                %v388 = vld [vmem:[%s216 + $0x548] sm:$0xff]
                %389 = vst [vmem:[%s217 + $0x2a8] sm:$0xff] %v388
                %v390 = vld [vmem:[%s216 + $0x550] sm:$0xff]
                %391 = vst [vmem:[%s217 + $0x2b0] sm:$0xff] %v390
                %v392 = vld [vmem:[%s216 + $0x558] sm:$0xff]
                %393 = vst [vmem:[%s217 + $0x2b8] sm:$0xff] %v392
                %v394 = vld [vmem:[%s216 + $0x580] sm:$0xff]
                %395 = vst [vmem:[%s217 + $0x2c0] sm:$0xff] %v394
                %v396 = vld [vmem:[%s216 + $0x588] sm:$0xff]
                %397 = vst [vmem:[%s217 + $0x2c8] sm:$0xff] %v396
                %v398 = vld [vmem:[%s216 + $0x590] sm:$0xff]
                %399 = vst [vmem:[%s217 + $0x2d0] sm:$0xff] %v398
                %v400 = vld [vmem:[%s216 + $0x598] sm:$0xff]
                %401 = vst [vmem:[%s217 + $0x2d8] sm:$0xff] %v400
                %v402 = vld [vmem:[%s216 + $0x5c0] sm:$0xff]
                %403 = vst [vmem:[%s217 + $0x2e0] sm:$0xff] %v402
                %v404 = vld [vmem:[%s216 + $0x5c8] sm:$0xff]
                %405 = vst [vmem:[%s217 + $0x2e8] sm:$0xff] %v404
                %v406 = vld [vmem:[%s216 + $0x5d0] sm:$0xff]
                %407 = vst [vmem:[%s217 + $0x2f0] sm:$0xff] %v406
                %v408 = vld [vmem:[%s216 + $0x5d8] sm:$0xff]
                %409 = vst [vmem:[%s217 + $0x2f8] sm:$0xff] %v408
                %v410 = vld [vmem:[%s216 + $0x600] sm:$0xff]
                %411 = vst [vmem:[%s217 + $0x300] sm:$0xff] %v410
                %v412 = vld [vmem:[%s216 + $0x608] sm:$0xff]
                %413 = vst [vmem:[%s217 + $0x308] sm:$0xff] %v412
                %v414 = vld [vmem:[%s216 + $0x610] sm:$0xff]
                %415 = vst [vmem:[%s217 + $0x310] sm:$0xff] %v414
                %v416 = vld [vmem:[%s216 + $0x618] sm:$0xff]
                %417 = vst [vmem:[%s217 + $0x318] sm:$0xff] %v416
                %v418 = vld [vmem:[%s216 + $0x640] sm:$0xff]
                %419 = vst [vmem:[%s217 + $0x320] sm:$0xff] %v418
                %v420 = vld [vmem:[%s216 + $0x648] sm:$0xff]
                %421 = vst [vmem:[%s217 + $0x328] sm:$0xff] %v420
                %v422 = vld [vmem:[%s216 + $0x650] sm:$0xff]
                %423 = vst [vmem:[%s217 + $0x330] sm:$0xff] %v422
                %v424 = vld [vmem:[%s216 + $0x658] sm:$0xff]
                %425 = vst [vmem:[%s217 + $0x338] sm:$0xff] %v424
                %v426 = vld [vmem:[%s216 + $0x680] sm:$0xff]
                %427 = vst [vmem:[%s217 + $0x340] sm:$0xff] %v426
                %v428 = vld [vmem:[%s216 + $0x688] sm:$0xff]
                %429 = vst [vmem:[%s217 + $0x348] sm:$0xff] %v428
                %v430 = vld [vmem:[%s216 + $0x690] sm:$0xff]
                %431 = vst [vmem:[%s217 + $0x350] sm:$0xff] %v430
                %v432 = vld [vmem:[%s216 + $0x698] sm:$0xff]
                %433 = vst [vmem:[%s217 + $0x358] sm:$0xff] %v432
                %v434 = vld [vmem:[%s216 + $0x6c0] sm:$0xff]
                %435 = vst [vmem:[%s217 + $0x360] sm:$0xff] %v434
                %v436 = vld [vmem:[%s216 + $0x6c8] sm:$0xff]
                %437 = vst [vmem:[%s217 + $0x368] sm:$0xff] %v436
                %v438 = vld [vmem:[%s216 + $0x6d0] sm:$0xff]
                %439 = vst [vmem:[%s217 + $0x370] sm:$0xff] %v438
                %v440 = vld [vmem:[%s216 + $0x6d8] sm:$0xff]
                %441 = vst [vmem:[%s217 + $0x378] sm:$0xff] %v440
                %v442 = vld [vmem:[%s216 + $0x700] sm:$0xff]
                %443 = vst [vmem:[%s217 + $0x380] sm:$0xff] %v442
                %v444 = vld [vmem:[%s216 + $0x708] sm:$0xff]
                %445 = vst [vmem:[%s217 + $0x388] sm:$0xff] %v444
                %v446 = vld [vmem:[%s216 + $0x710] sm:$0xff]
                %447 = vst [vmem:[%s217 + $0x390] sm:$0xff] %v446
                %v448 = vld [vmem:[%s216 + $0x718] sm:$0xff]
                %449 = vst [vmem:[%s217 + $0x398] sm:$0xff] %v448
                %v450 = vld [vmem:[%s216 + $0x740] sm:$0xff]
                %451 = vst [vmem:[%s217 + $0x3a0] sm:$0xff] %v450
                %v452 = vld [vmem:[%s216 + $0x748] sm:$0xff]
                %453 = vst [vmem:[%s217 + $0x3a8] sm:$0xff] %v452
                %v454 = vld [vmem:[%s216 + $0x750] sm:$0xff]
                %455 = vst [vmem:[%s217 + $0x3b0] sm:$0xff] %v454
                %v456 = vld [vmem:[%s216 + $0x758] sm:$0xff]
                %457 = vst [vmem:[%s217 + $0x3b8] sm:$0xff] %v456
                %v458 = vld [vmem:[%s216 + $0x780] sm:$0xff]
                %459 = vst [vmem:[%s217 + $0x3c0] sm:$0xff] %v458
                %v460 = vld [vmem:[%s216 + $0x788] sm:$0xff]
                %461 = vst [vmem:[%s217 + $0x3c8] sm:$0xff] %v460
                %v462 = vld [vmem:[%s216 + $0x790] sm:$0xff]
                %463 = vst [vmem:[%s217 + $0x3d0] sm:$0xff] %v462
                %v464 = vld [vmem:[%s216 + $0x798] sm:$0xff]
                %465 = vst [vmem:[%s217 + $0x3d8] sm:$0xff] %v464
                %v466 = vld [vmem:[%s216 + $0x7c0] sm:$0xff]
                %467 = vst [vmem:[%s217 + $0x3e0] sm:$0xff] %v466
                %v468 = vld [vmem:[%s216 + $0x7c8] sm:$0xff]
                %469 = vst [vmem:[%s217 + $0x3e8] sm:$0xff] %v468
                %v470 = vld [vmem:[%s216 + $0x7d0] sm:$0xff]
                %471 = vst [vmem:[%s217 + $0x3f0] sm:$0xff] %v470
                %v472 = vld [vmem:[%s216 + $0x7d8] sm:$0xff]
                %473 = vst [vmem:[%s217 + $0x3f8] sm:$0xff] %v472
                %v474 = vld [vmem:[%s216 + $0x800] sm:$0xff]
                %475 = vst [vmem:[%s217 + $0x400] sm:$0xff] %v474
                %v476 = vld [vmem:[%s216 + $0x808] sm:$0xff]
                %477 = vst [vmem:[%s217 + $0x408] sm:$0xff] %v476
                %v478 = vld [vmem:[%s216 + $0x810] sm:$0xff]
                %479 = vst [vmem:[%s217 + $0x410] sm:$0xff] %v478
                %v480 = vld [vmem:[%s216 + $0x818] sm:$0xff]
                %481 = vst [vmem:[%s217 + $0x418] sm:$0xff] %v480
                %v482 = vld [vmem:[%s216 + $0x840] sm:$0xff]
                %483 = vst [vmem:[%s217 + $0x420] sm:$0xff] %v482
                %v484 = vld [vmem:[%s216 + $0x848] sm:$0xff]
                %485 = vst [vmem:[%s217 + $0x428] sm:$0xff] %v484
                %v486 = vld [vmem:[%s216 + $0x850] sm:$0xff]
                %487 = vst [vmem:[%s217 + $0x430] sm:$0xff] %v486
                %v488 = vld [vmem:[%s216 + $0x858] sm:$0xff]
                %489 = vst [vmem:[%s217 + $0x438] sm:$0xff] %v488
                %v490 = vld [vmem:[%s216 + $0x880] sm:$0xff]
                %491 = vst [vmem:[%s217 + $0x440] sm:$0xff] %v490
                %v492 = vld [vmem:[%s216 + $0x888] sm:$0xff]
                %493 = vst [vmem:[%s217 + $0x448] sm:$0xff] %v492
                %v494 = vld [vmem:[%s216 + $0x890] sm:$0xff]
                %495 = vst [vmem:[%s217 + $0x450] sm:$0xff] %v494
                %v496 = vld [vmem:[%s216 + $0x898] sm:$0xff]
                %497 = vst [vmem:[%s217 + $0x458] sm:$0xff] %v496
                %v498 = vld [vmem:[%s216 + $0x8c0] sm:$0xff]
                %499 = vst [vmem:[%s217 + $0x460] sm:$0xff] %v498
                %v500 = vld [vmem:[%s216 + $0x8c8] sm:$0xff]
                %501 = vst [vmem:[%s217 + $0x468] sm:$0xff] %v500
                %v502 = vld [vmem:[%s216 + $0x8d0] sm:$0xff]
                %503 = vst [vmem:[%s217 + $0x470] sm:$0xff] %v502
                %v504 = vld [vmem:[%s216 + $0x8d8] sm:$0xff]
                %505 = vst [vmem:[%s217 + $0x478] sm:$0xff] %v504
                %v506 = vld [vmem:[%s216 + $0x900] sm:$0xff]
                %507 = vst [vmem:[%s217 + $0x480] sm:$0xff] %v506
                %v508 = vld [vmem:[%s216 + $0x908] sm:$0xff]
                %509 = vst [vmem:[%s217 + $0x488] sm:$0xff] %v508
                %v510 = vld [vmem:[%s216 + $0x910] sm:$0xff]
                %511 = vst [vmem:[%s217 + $0x490] sm:$0xff] %v510
                %v512 = vld [vmem:[%s216 + $0x918] sm:$0xff]
                %513 = vst [vmem:[%s217 + $0x498] sm:$0xff] %v512
                %v514 = vld [vmem:[%s216 + $0x940] sm:$0xff]
                %515 = vst [vmem:[%s217 + $0x4a0] sm:$0xff] %v514
                %v516 = vld [vmem:[%s216 + $0x948] sm:$0xff]
                %517 = vst [vmem:[%s217 + $0x4a8] sm:$0xff] %v516
                %v518 = vld [vmem:[%s216 + $0x950] sm:$0xff]
                %519 = vst [vmem:[%s217 + $0x4b0] sm:$0xff] %v518
                %v520 = vld [vmem:[%s216 + $0x958] sm:$0xff]
                %521 = vst [vmem:[%s217 + $0x4b8] sm:$0xff] %v520
                %v522 = vld [vmem:[%s216 + $0x980] sm:$0xff]
                %523 = vst [vmem:[%s217 + $0x4c0] sm:$0xff] %v522
                %v524 = vld [vmem:[%s216 + $0x988] sm:$0xff]
                %525 = vst [vmem:[%s217 + $0x4c8] sm:$0xff] %v524
                %v526 = vld [vmem:[%s216 + $0x990] sm:$0xff]
                %527 = vst [vmem:[%s217 + $0x4d0] sm:$0xff] %v526
                %v528 = vld [vmem:[%s216 + $0x998] sm:$0xff]
                %529 = vst [vmem:[%s217 + $0x4d8] sm:$0xff] %v528
                %v530 = vld [vmem:[%s216 + $0x9c0] sm:$0xff]
                %531 = vst [vmem:[%s217 + $0x4e0] sm:$0xff] %v530
                %v532 = vld [vmem:[%s216 + $0x9c8] sm:$0xff]
                %533 = vst [vmem:[%s217 + $0x4e8] sm:$0xff] %v532
                %v534 = vld [vmem:[%s216 + $0x9d0] sm:$0xff]
                %535 = vst [vmem:[%s217 + $0x4f0] sm:$0xff] %v534
                %v536 = vld [vmem:[%s216 + $0x9d8] sm:$0xff]
                %537 = vst [vmem:[%s217 + $0x4f8] sm:$0xff] %v536
                %v538 = vld [vmem:[%s216 + $0xa00] sm:$0xff]
                %539 = vst [vmem:[%s217 + $0x500] sm:$0xff] %v538
                %v540 = vld [vmem:[%s216 + $0xa08] sm:$0xff]
                %541 = vst [vmem:[%s217 + $0x508] sm:$0xff] %v540
                %v542 = vld [vmem:[%s216 + $0xa10] sm:$0xff]
                %543 = vst [vmem:[%s217 + $0x510] sm:$0xff] %v542
                %v544 = vld [vmem:[%s216 + $0xa18] sm:$0xff]
                %545 = vst [vmem:[%s217 + $0x518] sm:$0xff] %v544
                %v546 = vld [vmem:[%s216 + $0xa40] sm:$0xff]
                %547 = vst [vmem:[%s217 + $0x520] sm:$0xff] %v546
                %v548 = vld [vmem:[%s216 + $0xa48] sm:$0xff]
                %549 = vst [vmem:[%s217 + $0x528] sm:$0xff] %v548
                %v550 = vld [vmem:[%s216 + $0xa50] sm:$0xff]
                %551 = vst [vmem:[%s217 + $0x530] sm:$0xff] %v550
                %v552 = vld [vmem:[%s216 + $0xa58] sm:$0xff]
                %553 = vst [vmem:[%s217 + $0x538] sm:$0xff] %v552
                %v554 = vld [vmem:[%s216 + $0xa80] sm:$0xff]
                %555 = vst [vmem:[%s217 + $0x540] sm:$0xff] %v554
                %v556 = vld [vmem:[%s216 + $0xa88] sm:$0xff]
                %557 = vst [vmem:[%s217 + $0x548] sm:$0xff] %v556
                %v558 = vld [vmem:[%s216 + $0xa90] sm:$0xff]
                %559 = vst [vmem:[%s217 + $0x550] sm:$0xff] %v558
                %v560 = vld [vmem:[%s216 + $0xa98] sm:$0xff]
                %561 = vst [vmem:[%s217 + $0x558] sm:$0xff] %v560
                %v562 = vld [vmem:[%s216 + $0xac0] sm:$0xff]
                %563 = vst [vmem:[%s217 + $0x560] sm:$0xff] %v562
                %v564 = vld [vmem:[%s216 + $0xac8] sm:$0xff]
                %565 = vst [vmem:[%s217 + $0x568] sm:$0xff] %v564
                %v566 = vld [vmem:[%s216 + $0xad0] sm:$0xff]
                %567 = vst [vmem:[%s217 + $0x570] sm:$0xff] %v566
                %v568 = vld [vmem:[%s216 + $0xad8] sm:$0xff]
                %569 = vst [vmem:[%s217 + $0x578] sm:$0xff] %v568
                %v570 = vld [vmem:[%s216 + $0xb00] sm:$0xff]
                %571 = vst [vmem:[%s217 + $0x580] sm:$0xff] %v570
                %v572 = vld [vmem:[%s216 + $0xb08] sm:$0xff]
                %573 = vst [vmem:[%s217 + $0x588] sm:$0xff] %v572
                %v574 = vld [vmem:[%s216 + $0xb10] sm:$0xff]
                %575 = vst [vmem:[%s217 + $0x590] sm:$0xff] %v574
                %v576 = vld [vmem:[%s216 + $0xb18] sm:$0xff]
                %577 = vst [vmem:[%s217 + $0x598] sm:$0xff] %v576
                %v578 = vld [vmem:[%s216 + $0xb40] sm:$0xff]
                %579 = vst [vmem:[%s217 + $0x5a0] sm:$0xff] %v578
                %v580 = vld [vmem:[%s216 + $0xb48] sm:$0xff]
                %581 = vst [vmem:[%s217 + $0x5a8] sm:$0xff] %v580
                %v582 = vld [vmem:[%s216 + $0xb50] sm:$0xff]
                %583 = vst [vmem:[%s217 + $0x5b0] sm:$0xff] %v582
                %v584 = vld [vmem:[%s216 + $0xb58] sm:$0xff]
                %585 = vst [vmem:[%s217 + $0x5b8] sm:$0xff] %v584
                %v586 = vld [vmem:[%s216 + $0xb80] sm:$0xff]
                %587 = vst [vmem:[%s217 + $0x5c0] sm:$0xff] %v586
                %v588 = vld [vmem:[%s216 + $0xb88] sm:$0xff]
                %589 = vst [vmem:[%s217 + $0x5c8] sm:$0xff] %v588
                %v590 = vld [vmem:[%s216 + $0xb90] sm:$0xff]
                %591 = vst [vmem:[%s217 + $0x5d0] sm:$0xff] %v590
                %v592 = vld [vmem:[%s216 + $0xb98] sm:$0xff]
                %593 = vst [vmem:[%s217 + $0x5d8] sm:$0xff] %v592
                %v594 = vld [vmem:[%s216 + $0xbc0] sm:$0xff]
                %595 = vst [vmem:[%s217 + $0x5e0] sm:$0xff] %v594
                %v596 = vld [vmem:[%s216 + $0xbc8] sm:$0xff]
                %597 = vst [vmem:[%s217 + $0x5e8] sm:$0xff] %v596
                %v598 = vld [vmem:[%s216 + $0xbd0] sm:$0xff]
                %599 = vst [vmem:[%s217 + $0x5f0] sm:$0xff] %v598
                %v600 = vld [vmem:[%s216 + $0xbd8] sm:$0xff]
                %601 = vst [vmem:[%s217 + $0x5f8] sm:$0xff] %v600
                %v602 = vld [vmem:[%s216 + $0xc00] sm:$0xff]
                %603 = vst [vmem:[%s217 + $0x600] sm:$0xff] %v602
                %v604 = vld [vmem:[%s216 + $0xc08] sm:$0xff]
                %605 = vst [vmem:[%s217 + $0x608] sm:$0xff] %v604
                %v606 = vld [vmem:[%s216 + $0xc10] sm:$0xff]
                %607 = vst [vmem:[%s217 + $0x610] sm:$0xff] %v606
                %v608 = vld [vmem:[%s216 + $0xc18] sm:$0xff]
                %609 = vst [vmem:[%s217 + $0x618] sm:$0xff] %v608
                %v610 = vld [vmem:[%s216 + $0xc40] sm:$0xff]
                %611 = vst [vmem:[%s217 + $0x620] sm:$0xff] %v610
                %v612 = vld [vmem:[%s216 + $0xc48] sm:$0xff]
                %613 = vst [vmem:[%s217 + $0x628] sm:$0xff] %v612
                %v614 = vld [vmem:[%s216 + $0xc50] sm:$0xff]
                %615 = vst [vmem:[%s217 + $0x630] sm:$0xff] %v614
                %v616 = vld [vmem:[%s216 + $0xc58] sm:$0xff]
                %617 = vst [vmem:[%s217 + $0x638] sm:$0xff] %v616
                %v618 = vld [vmem:[%s216 + $0xc80] sm:$0xff]
                %619 = vst [vmem:[%s217 + $0x640] sm:$0xff] %v618
                %v620 = vld [vmem:[%s216 + $0xc88] sm:$0xff]
                %621 = vst [vmem:[%s217 + $0x648] sm:$0xff] %v620
                %v622 = vld [vmem:[%s216 + $0xc90] sm:$0xff]
                %623 = vst [vmem:[%s217 + $0x650] sm:$0xff] %v622
                %v624 = vld [vmem:[%s216 + $0xc98] sm:$0xff]
                %625 = vst [vmem:[%s217 + $0x658] sm:$0xff] %v624
                %v626 = vld [vmem:[%s216 + $0xcc0] sm:$0xff]
                %627 = vst [vmem:[%s217 + $0x660] sm:$0xff] %v626
                %v628 = vld [vmem:[%s216 + $0xcc8] sm:$0xff]
                %629 = vst [vmem:[%s217 + $0x668] sm:$0xff] %v628
                %v630 = vld [vmem:[%s216 + $0xcd0] sm:$0xff]
                %631 = vst [vmem:[%s217 + $0x670] sm:$0xff] %v630
                %v632 = vld [vmem:[%s216 + $0xcd8] sm:$0xff]
                %633 = vst [vmem:[%s217 + $0x678] sm:$0xff] %v632
                %v634 = vld [vmem:[%s216 + $0xd00] sm:$0xff]
                %635 = vst [vmem:[%s217 + $0x680] sm:$0xff] %v634
                %v636 = vld [vmem:[%s216 + $0xd08] sm:$0xff]
                %637 = vst [vmem:[%s217 + $0x688] sm:$0xff] %v636
                %v638 = vld [vmem:[%s216 + $0xd10] sm:$0xff]
                %639 = vst [vmem:[%s217 + $0x690] sm:$0xff] %v638
                %v640 = vld [vmem:[%s216 + $0xd18] sm:$0xff]
                %641 = vst [vmem:[%s217 + $0x698] sm:$0xff] %v640
                %v642 = vld [vmem:[%s216 + $0xd40] sm:$0xff]
                %643 = vst [vmem:[%s217 + $0x6a0] sm:$0xff] %v642
                %v644 = vld [vmem:[%s216 + $0xd48] sm:$0xff]
                %645 = vst [vmem:[%s217 + $0x6a8] sm:$0xff] %v644
                %v646 = vld [vmem:[%s216 + $0xd50] sm:$0xff]
                %647 = vst [vmem:[%s217 + $0x6b0] sm:$0xff] %v646
                %v648 = vld [vmem:[%s216 + $0xd58] sm:$0xff]
                %649 = vst [vmem:[%s217 + $0x6b8] sm:$0xff] %v648
                %v650 = vld [vmem:[%s216 + $0xd80] sm:$0xff]
                %651 = vst [vmem:[%s217 + $0x6c0] sm:$0xff] %v650
                %v652 = vld [vmem:[%s216 + $0xd88] sm:$0xff]
                %653 = vst [vmem:[%s217 + $0x6c8] sm:$0xff] %v652
                %v654 = vld [vmem:[%s216 + $0xd90] sm:$0xff]
                %655 = vst [vmem:[%s217 + $0x6d0] sm:$0xff] %v654
                %v656 = vld [vmem:[%s216 + $0xd98] sm:$0xff]
                %657 = vst [vmem:[%s217 + $0x6d8] sm:$0xff] %v656
                %v658 = vld [vmem:[%s216 + $0xdc0] sm:$0xff]
                %659 = vst [vmem:[%s217 + $0x6e0] sm:$0xff] %v658
                %v660 = vld [vmem:[%s216 + $0xdc8] sm:$0xff]
                %661 = vst [vmem:[%s217 + $0x6e8] sm:$0xff] %v660
                %v662 = vld [vmem:[%s216 + $0xdd0] sm:$0xff]
                %663 = vst [vmem:[%s217 + $0x6f0] sm:$0xff] %v662
                %v664 = vld [vmem:[%s216 + $0xdd8] sm:$0xff]
                %665 = vst [vmem:[%s217 + $0x6f8] sm:$0xff] %v664
                %v666 = vld [vmem:[%s216 + $0xe00] sm:$0xff]
                %667 = vst [vmem:[%s217 + $0x700] sm:$0xff] %v666
                %v668 = vld [vmem:[%s216 + $0xe08] sm:$0xff]
                %669 = vst [vmem:[%s217 + $0x708] sm:$0xff] %v668
                %v670 = vld [vmem:[%s216 + $0xe10] sm:$0xff]
                %671 = vst [vmem:[%s217 + $0x710] sm:$0xff] %v670
                %v672 = vld [vmem:[%s216 + $0xe18] sm:$0xff]
                %673 = vst [vmem:[%s217 + $0x718] sm:$0xff] %v672
                %v674 = vld [vmem:[%s216 + $0xe40] sm:$0xff]
                %675 = vst [vmem:[%s217 + $0x720] sm:$0xff] %v674
                %v676 = vld [vmem:[%s216 + $0xe48] sm:$0xff]
                %677 = vst [vmem:[%s217 + $0x728] sm:$0xff] %v676
                %v678 = vld [vmem:[%s216 + $0xe50] sm:$0xff]
                %679 = vst [vmem:[%s217 + $0x730] sm:$0xff] %v678
                %v680 = vld [vmem:[%s216 + $0xe58] sm:$0xff]
                %681 = vst [vmem:[%s217 + $0x738] sm:$0xff] %v680
                %v682 = vld [vmem:[%s216 + $0xe80] sm:$0xff]
                %683 = vst [vmem:[%s217 + $0x740] sm:$0xff] %v682
                %v684 = vld [vmem:[%s216 + $0xe88] sm:$0xff]
                %685 = vst [vmem:[%s217 + $0x748] sm:$0xff] %v684
                %v686 = vld [vmem:[%s216 + $0xe90] sm:$0xff]
                %687 = vst [vmem:[%s217 + $0x750] sm:$0xff] %v686
                %v688 = vld [vmem:[%s216 + $0xe98] sm:$0xff]
                %689 = vst [vmem:[%s217 + $0x758] sm:$0xff] %v688
                %v690 = vld [vmem:[%s216 + $0xec0] sm:$0xff]
                %691 = vst [vmem:[%s217 + $0x760] sm:$0xff] %v690
                %v692 = vld [vmem:[%s216 + $0xec8] sm:$0xff]
                %693 = vst [vmem:[%s217 + $0x768] sm:$0xff] %v692
                %v694 = vld [vmem:[%s216 + $0xed0] sm:$0xff]
                %695 = vst [vmem:[%s217 + $0x770] sm:$0xff] %v694
                %v696 = vld [vmem:[%s216 + $0xed8] sm:$0xff]
                %697 = vst [vmem:[%s217 + $0x778] sm:$0xff] %v696
                %v698 = vld [vmem:[%s216 + $0xf00] sm:$0xff]
                %699 = vst [vmem:[%s217 + $0x780] sm:$0xff] %v698
                %v700 = vld [vmem:[%s216 + $0xf08] sm:$0xff]
                %701 = vst [vmem:[%s217 + $0x788] sm:$0xff] %v700
                %v702 = vld [vmem:[%s216 + $0xf10] sm:$0xff]
                %703 = vst [vmem:[%s217 + $0x790] sm:$0xff] %v702
                %v704 = vld [vmem:[%s216 + $0xf18] sm:$0xff]
                %705 = vst [vmem:[%s217 + $0x798] sm:$0xff] %v704
                %v706 = vld [vmem:[%s216 + $0xf40] sm:$0xff]
                %707 = vst [vmem:[%s217 + $0x7a0] sm:$0xff] %v706
                %v708 = vld [vmem:[%s216 + $0xf48] sm:$0xff]
                %709 = vst [vmem:[%s217 + $0x7a8] sm:$0xff] %v708
                %v710 = vld [vmem:[%s216 + $0xf50] sm:$0xff]
                %711 = vst [vmem:[%s217 + $0x7b0] sm:$0xff] %v710
                %v712 = vld [vmem:[%s216 + $0xf58] sm:$0xff]
                %713 = vst [vmem:[%s217 + $0x7b8] sm:$0xff] %v712
                %v714 = vld [vmem:[%s216 + $0xf80] sm:$0xff]
                %715 = vst [vmem:[%s217 + $0x7c0] sm:$0xff] %v714
                %v716 = vld [vmem:[%s216 + $0xf88] sm:$0xff]
                %717 = vst [vmem:[%s217 + $0x7c8] sm:$0xff] %v716
                %v718 = vld [vmem:[%s216 + $0xf90] sm:$0xff]
                %719 = vst [vmem:[%s217 + $0x7d0] sm:$0xff] %v718
                %v720 = vld [vmem:[%s216 + $0xf98] sm:$0xff]
                %721 = vst [vmem:[%s217 + $0x7d8] sm:$0xff] %v720
                %v722 = vld [vmem:[%s216 + $0xfc0] sm:$0xff]
                %723 = vst [vmem:[%s217 + $0x7e0] sm:$0xff] %v722
                %v724 = vld [vmem:[%s216 + $0xfc8] sm:$0xff]
                %725 = vst [vmem:[%s217 + $0x7e8] sm:$0xff] %v724
                %v726 = vld [vmem:[%s216 + $0xfd0] sm:$0xff]
                %727 = vst [vmem:[%s217 + $0x7f0] sm:$0xff] %v726
                %v728 = vld [vmem:[%s216 + $0xfd8] sm:$0xff]
                %729 = vst [vmem:[%s217 + $0x7f8] sm:$0xff] %v728
              $region56: #{cnn_forward.10} parent=50 // loop_footer
                %s215 = sadd.s32 1, %s211
              $region57: #{cnn_forward.10} parent=50 // loop_footer_branch
                %210 = sbr.rel target = $region53
              $region58: #{cnn_forward.10} parent=50 // loop_exit
                _
            $region51: #{cnn_forward.10} parent=46 // pred_fallthru
              _
            // Predicated region
            $region59: #{cnn_forward.10} parent=46 // pred_check
              _
            $region60: #{cnn_forward.10} parent=46 // pred_check_branch
              %731 = sbr.rel target = $region62
            $region61: #{cnn_forward.10} parent=46 // pred_region
              _
            $region62: #{cnn_forward.10} parent=46 // pred_fallthru
              _
          $region47: #{cnn_forward.10} parent=42 // pred_fallthru
            _
          %732 = vnop
        $region43: #{cnn_forward.10} parent=15 // pred_fallthru
          _
        // Predicated region
        $region63: #{cnn_forward.10} parent=15 // pred_check
          %p733 = pneg %p104
        $region64: #{cnn_forward.10} parent=15 // pred_check_branch
          %735 = sbr.rel (%p733) target = $region66
        $region65: #{cnn_forward.10} parent=15 // pred_region
          %s736 = smul.u32 8, %s17
          %p737 = scmp.lt.s32.totalorder %s736, 15
          %s738 = scalar_select %p737, %s736, 15
          %s739 = scalar_lea.vmem %s2, %s738
          %s740 = smul.u32 8, %s17
        $region66: #{cnn_forward.10} parent=15 // pred_fallthru
          _
      $region16: #{cnn_forward.10} parent=5 // pred_fallthru
        _
      %p741 = scmp.le.s32.totalorder 1, %s9
      %p742 = scmp.lt.s32.totalorder %s9, 9
      %p743 = pnand %p741, %p742
      %p744 = pneg %p743
      // Predicated region
      $region67: #{cnn_forward.10} parent=5 // pred_check
        _
      $region68: #{cnn_forward.10} parent=5 // pred_check_branch
        %746 = sbr.rel (%p743) target = $region70
      $region69: #{cnn_forward.10} parent=5 // pred_region
        %s747 = ssub.s32 %s9, 1
        %s748 = sand.u32 %s43, 1
        %s749 = sand.u32 %s43, 1
        %s750 = smul.addr %s749, 32
        %s751 = scalar_lea.vmem [#allocation2], %s750
        // Predicated region
        $region71: #{cnn_forward.10} parent=69 // pred_check
          %p752 = pneg %p56
        $region72: #{cnn_forward.10} parent=69 // pred_check_branch
          %754 = sbr.rel (%p752) target = $region74
        $region73: #{cnn_forward.10} parent=69 // pred_region
          _
        $region74: #{cnn_forward.10} parent=69 // pred_fallthru
          _
        %s755 = sand.u32 %s71, 1
        %s756 = sand.u32 %s71, 1
        %s757 = smul.addr %s756, 2048
        %s758 = scalar_lea.vmem [#allocation3], %s757
        // Predicated region
        $region75: #{cnn_forward.10} parent=69 // pred_check
          %p759 = pneg %p84
        $region76: #{cnn_forward.10} parent=69 // pred_check_branch
          %761 = sbr.rel (%p759) target = $region78
        $region77: #{cnn_forward.10} parent=69 // pred_region
          _
        $region78: #{cnn_forward.10} parent=69 // pred_fallthru
          _
        %s762 = sand.u32 %s43, 1
        %s763 = sand.u32 %s43, 1
        %s764 = smul.addr %s763, 32
        %s765 = scalar_lea.vmem [#allocation2], %s764
        %p766 = pneg %p56
        %p767 = pneg %p53
        %s768 = sand.u32 %s71, 1
        %s769 = sand.u32 %s71, 1
        %s770 = smul.addr %s769, 2048
        %s771 = scalar_lea.vmem [#allocation3], %s770
        %p772 = pneg %p84
        %p773 = pneg %p81
        %s774 = smul.u32 8, %s20
        %p775 = scmp.lt.s32.totalorder %s774, 15
        %s776 = scalar_select %p775, %s774, 15
        %s777 = scalar_lea.vmem %s2, %s776
        %p778 = pneg %p110
        %p779 = pneg %p107
        %p780 = pneg %p138
        %p781 = pneg %p135
        %s782 = sand.u32 %s125, 1
        %s783 = sand.u32 %s125, 1
        %s784 = smul.addr %s783, 128
        %s785 = scalar_lea.vmem [#allocation4], %s784
        %s786 = smul.u32 2, %s19
        %s787 = smul.u32 4, %s21
        %s788 = smul.u32 64, %s21
        %s789 = smul.u32 8, %s20
        %s790 = smul.u32 8, %s20
        %p791 = scmp.lt.s32.totalorder %s790, 15
        %s792 = scalar_select %p791, %s790, 15
        %s793 = scalar_lea.vmem %s2, %s792
        %s794 = smul.u32 8, %s20
        %s795 = smul.u32 2, %s19
        %s796 = smul.u32 8, %s20
        %p797 = scmp.eq.s32.totalorder %s21, 0
        // Predicated region
        $region79: #{cnn_forward.10} parent=69 // pred_check
          %p798 = pneg %p797
        $region80: #{cnn_forward.10} parent=69 // pred_check_branch
          %800 = sbr.rel (%p798) target = $region82
        $region81: #{cnn_forward.10} parent=69 // pred_region
          %v801 = vld [vmem:[%s793] sm:$0xff]
          %v803 = vlaneseq
          %v804 = vshrl.u32 %v803, 7
          %v805 = vsub.s32 0, %v804
          %v806 = vrot.slane %v801, %v805
          %v807 = vlaneseq
          %v808 = vshrl.u32 %v807, 7
          %v809 = vsub.s32 1, %v808
          %v810 = vrot.slane %v801, %v809
          %v811 = vlaneseq
          %v812 = vshrl.u32 %v811, 7
          %v813 = vsub.s32 2, %v812
          %v814 = vrot.slane %v801, %v813
          %v815 = vlaneseq
          %v816 = vshrl.u32 %v815, 7
          %v817 = vsub.s32 3, %v816
          %v818 = vrot.slane %v801, %v817
          %v819 = vlaneseq
          %v820 = vshrl.u32 %v819, 7
          %v821 = vsub.s32 4, %v820
          %v822 = vrot.slane %v801, %v821
          %v823 = vlaneseq
          %v824 = vshrl.u32 %v823, 7
          %v825 = vsub.s32 5, %v824
          %v826 = vrot.slane %v801, %v825
          %v827 = vlaneseq
          %v828 = vshrl.u32 %v827, 7
          %v829 = vsub.s32 6, %v828
          %v830 = vrot.slane %v801, %v829
          %v831 = vlaneseq
          %v832 = vshrl.u32 %v831, 7
          %v833 = vsub.s32 7, %v832
          %v834 = vrot.slane %v801, %v833
          %843 = vst [vmem:[%s785] sm:$0xff] %v806
          %844 = vst [vmem:[%s785 + $0x8] sm:$0xff] %v810
          %845 = vst [vmem:[%s785 + $0x10] sm:$0xff] %v814
          %846 = vst [vmem:[%s785 + $0x18] sm:$0xff] %v818
          %847 = vst [vmem:[%s785 + $0x20] sm:$0xff] %v822
          %848 = vst [vmem:[%s785 + $0x28] sm:$0xff] %v826
          %849 = vst [vmem:[%s785 + $0x30] sm:$0xff] %v830
          %850 = vst [vmem:[%s785 + $0x38] sm:$0xff] %v834
          %851 = vst [vmem:[%s785 + $0x40] sm:$0xff] %v806
          %852 = vst [vmem:[%s785 + $0x48] sm:$0xff] %v810
          %853 = vst [vmem:[%s785 + $0x50] sm:$0xff] %v814
          %854 = vst [vmem:[%s785 + $0x58] sm:$0xff] %v818
          %855 = vst [vmem:[%s785 + $0x60] sm:$0xff] %v822
          %856 = vst [vmem:[%s785 + $0x68] sm:$0xff] %v826
          %857 = vst [vmem:[%s785 + $0x70] sm:$0xff] %v830
          %858 = vst [vmem:[%s785 + $0x78] sm:$0xff] %v834
        $region82: #{cnn_forward.10} parent=69 // pred_fallthru
          _
        %v859 = vld [vmem:[%s785] sm:$0xff]
        %v860 = vld [vmem:[%s785 + $0x8] sm:$0xff]
        %v861 = vld [vmem:[%s785 + $0x10] sm:$0xff]
        %v862 = vld [vmem:[%s785 + $0x18] sm:$0xff]
        %v863 = vld [vmem:[%s785 + $0x20] sm:$0xff]
        %v864 = vld [vmem:[%s785 + $0x28] sm:$0xff]
        %v865 = vld [vmem:[%s785 + $0x30] sm:$0xff]
        %v866 = vld [vmem:[%s785 + $0x38] sm:$0xff]
        %v867 = vld [vmem:[%s785 + $0x40] sm:$0xff]
        %v868 = vld [vmem:[%s785 + $0x48] sm:$0xff]
        %v869 = vld [vmem:[%s785 + $0x50] sm:$0xff]
        %v870 = vld [vmem:[%s785 + $0x58] sm:$0xff]
        %v871 = vld [vmem:[%s785 + $0x60] sm:$0xff]
        %v872 = vld [vmem:[%s785 + $0x68] sm:$0xff]
        %v873 = vld [vmem:[%s785 + $0x70] sm:$0xff]
        %v874 = vld [vmem:[%s785 + $0x78] sm:$0xff]
        %v875 = vld [vmem:[%s751] sm:$0xff]
        %v876 = vld [vmem:[%s751 + $0x8] sm:$0xff]
        %v877 = vld [vmem:[%s751 + $0x10] sm:$0xff]
        %v878 = vld [vmem:[%s751 + $0x18] sm:$0xff]
        %v879 = vld [vmem:[%s758] sm:$0xff]
        %v880 = vld [vmem:[%s758 + $0x8] sm:$0xff]
        %v881 = vld [vmem:[%s758 + $0x10] sm:$0xff]
        %v882 = vld [vmem:[%s758 + $0x18] sm:$0xff]
        %v883 = vld [vmem:[%s758 + $0x20] sm:$0xff]
        %v884 = vld [vmem:[%s758 + $0x28] sm:$0xff]
        %v885 = vld [vmem:[%s758 + $0x30] sm:$0xff]
        %v886 = vld [vmem:[%s758 + $0x38] sm:$0xff]
        %v887 = vld [vmem:[%s758 + $0x40] sm:$0xff]
        %v888 = vld [vmem:[%s758 + $0x48] sm:$0xff]
        %v889 = vld [vmem:[%s758 + $0x50] sm:$0xff]
        %v890 = vld [vmem:[%s758 + $0x58] sm:$0xff]
        %v891 = vld [vmem:[%s758 + $0x60] sm:$0xff]
        %v892 = vld [vmem:[%s758 + $0x68] sm:$0xff]
        %v893 = vld [vmem:[%s758 + $0x70] sm:$0xff]
        %v894 = vld [vmem:[%s758 + $0x78] sm:$0xff]
        %v895 = vld [vmem:[%s758 + $0x80] sm:$0xff]
        %v896 = vld [vmem:[%s758 + $0x88] sm:$0xff]
        %v897 = vld [vmem:[%s758 + $0x90] sm:$0xff]
        %v898 = vld [vmem:[%s758 + $0x98] sm:$0xff]
        %v899 = vld [vmem:[%s758 + $0xa0] sm:$0xff]
        %v900 = vld [vmem:[%s758 + $0xa8] sm:$0xff]
        %v901 = vld [vmem:[%s758 + $0xb0] sm:$0xff]
        %v902 = vld [vmem:[%s758 + $0xb8] sm:$0xff]
        %v903 = vld [vmem:[%s758 + $0xc0] sm:$0xff]
        %v904 = vld [vmem:[%s758 + $0xc8] sm:$0xff]
        %v905 = vld [vmem:[%s758 + $0xd0] sm:$0xff]
        %v906 = vld [vmem:[%s758 + $0xd8] sm:$0xff]
        %v907 = vld [vmem:[%s758 + $0xe0] sm:$0xff]
        %v908 = vld [vmem:[%s758 + $0xe8] sm:$0xff]
        %v909 = vld [vmem:[%s758 + $0xf0] sm:$0xff]
        %v910 = vld [vmem:[%s758 + $0xf8] sm:$0xff]
        %v911 = vld [vmem:[%s758 + $0x100] sm:$0xff]
        %v912 = vld [vmem:[%s758 + $0x108] sm:$0xff]
        %v913 = vld [vmem:[%s758 + $0x110] sm:$0xff]
        %v914 = vld [vmem:[%s758 + $0x118] sm:$0xff]
        %v915 = vld [vmem:[%s758 + $0x120] sm:$0xff]
        %v916 = vld [vmem:[%s758 + $0x128] sm:$0xff]
        %v917 = vld [vmem:[%s758 + $0x130] sm:$0xff]
        %v918 = vld [vmem:[%s758 + $0x138] sm:$0xff]
        %v919 = vld [vmem:[%s758 + $0x140] sm:$0xff]
        %v920 = vld [vmem:[%s758 + $0x148] sm:$0xff]
        %v921 = vld [vmem:[%s758 + $0x150] sm:$0xff]
        %v922 = vld [vmem:[%s758 + $0x158] sm:$0xff]
        %v923 = vld [vmem:[%s758 + $0x160] sm:$0xff]
        %v924 = vld [vmem:[%s758 + $0x168] sm:$0xff]
        %v925 = vld [vmem:[%s758 + $0x170] sm:$0xff]
        %v926 = vld [vmem:[%s758 + $0x178] sm:$0xff]
        %v927 = vld [vmem:[%s758 + $0x180] sm:$0xff]
        %v928 = vld [vmem:[%s758 + $0x188] sm:$0xff]
        %v929 = vld [vmem:[%s758 + $0x190] sm:$0xff]
        %v930 = vld [vmem:[%s758 + $0x198] sm:$0xff]
        %v931 = vld [vmem:[%s758 + $0x1a0] sm:$0xff]
        %v932 = vld [vmem:[%s758 + $0x1a8] sm:$0xff]
        %v933 = vld [vmem:[%s758 + $0x1b0] sm:$0xff]
        %v934 = vld [vmem:[%s758 + $0x1b8] sm:$0xff]
        %v935 = vld [vmem:[%s758 + $0x1c0] sm:$0xff]
        %v936 = vld [vmem:[%s758 + $0x1c8] sm:$0xff]
        %v937 = vld [vmem:[%s758 + $0x1d0] sm:$0xff]
        %v938 = vld [vmem:[%s758 + $0x1d8] sm:$0xff]
        %v939 = vld [vmem:[%s758 + $0x1e0] sm:$0xff]
        %v940 = vld [vmem:[%s758 + $0x1e8] sm:$0xff]
        %v941 = vld [vmem:[%s758 + $0x1f0] sm:$0xff]
        %v942 = vld [vmem:[%s758 + $0x1f8] sm:$0xff]
        %v943 = vld [vmem:[%s758 + $0x200] sm:$0xff]
        %v944 = vld [vmem:[%s758 + $0x208] sm:$0xff]
        %v945 = vld [vmem:[%s758 + $0x210] sm:$0xff]
        %v946 = vld [vmem:[%s758 + $0x218] sm:$0xff]
        %v947 = vld [vmem:[%s758 + $0x220] sm:$0xff]
        %v948 = vld [vmem:[%s758 + $0x228] sm:$0xff]
        %v949 = vld [vmem:[%s758 + $0x230] sm:$0xff]
        %v950 = vld [vmem:[%s758 + $0x238] sm:$0xff]
        %v951 = vld [vmem:[%s758 + $0x240] sm:$0xff]
        %v952 = vld [vmem:[%s758 + $0x248] sm:$0xff]
        %v953 = vld [vmem:[%s758 + $0x250] sm:$0xff]
        %v954 = vld [vmem:[%s758 + $0x258] sm:$0xff]
        %v955 = vld [vmem:[%s758 + $0x260] sm:$0xff]
        %v956 = vld [vmem:[%s758 + $0x268] sm:$0xff]
        %v957 = vld [vmem:[%s758 + $0x270] sm:$0xff]
        %v958 = vld [vmem:[%s758 + $0x278] sm:$0xff]
        %v959 = vld [vmem:[%s758 + $0x280] sm:$0xff]
        %v960 = vld [vmem:[%s758 + $0x288] sm:$0xff]
        %v961 = vld [vmem:[%s758 + $0x290] sm:$0xff]
        %v962 = vld [vmem:[%s758 + $0x298] sm:$0xff]
        %v963 = vld [vmem:[%s758 + $0x2a0] sm:$0xff]
        %v964 = vld [vmem:[%s758 + $0x2a8] sm:$0xff]
        %v965 = vld [vmem:[%s758 + $0x2b0] sm:$0xff]
        %v966 = vld [vmem:[%s758 + $0x2b8] sm:$0xff]
        %v967 = vld [vmem:[%s758 + $0x2c0] sm:$0xff]
        %v968 = vld [vmem:[%s758 + $0x2c8] sm:$0xff]
        %v969 = vld [vmem:[%s758 + $0x2d0] sm:$0xff]
        %v970 = vld [vmem:[%s758 + $0x2d8] sm:$0xff]
        %v971 = vld [vmem:[%s758 + $0x2e0] sm:$0xff]
        %v972 = vld [vmem:[%s758 + $0x2e8] sm:$0xff]
        %v973 = vld [vmem:[%s758 + $0x2f0] sm:$0xff]
        %v974 = vld [vmem:[%s758 + $0x2f8] sm:$0xff]
        %v975 = vld [vmem:[%s758 + $0x300] sm:$0xff]
        %v976 = vld [vmem:[%s758 + $0x308] sm:$0xff]
        %v977 = vld [vmem:[%s758 + $0x310] sm:$0xff]
        %v978 = vld [vmem:[%s758 + $0x318] sm:$0xff]
        %v979 = vld [vmem:[%s758 + $0x320] sm:$0xff]
        %v980 = vld [vmem:[%s758 + $0x328] sm:$0xff]
        %v981 = vld [vmem:[%s758 + $0x330] sm:$0xff]
        %v982 = vld [vmem:[%s758 + $0x338] sm:$0xff]
        %v983 = vld [vmem:[%s758 + $0x340] sm:$0xff]
        %v984 = vld [vmem:[%s758 + $0x348] sm:$0xff]
        %v985 = vld [vmem:[%s758 + $0x350] sm:$0xff]
        %v986 = vld [vmem:[%s758 + $0x358] sm:$0xff]
        %v987 = vld [vmem:[%s758 + $0x360] sm:$0xff]
        %v988 = vld [vmem:[%s758 + $0x368] sm:$0xff]
        %v989 = vld [vmem:[%s758 + $0x370] sm:$0xff]
        %v990 = vld [vmem:[%s758 + $0x378] sm:$0xff]
        %v991 = vld [vmem:[%s758 + $0x380] sm:$0xff]
        %v992 = vld [vmem:[%s758 + $0x388] sm:$0xff]
        %v993 = vld [vmem:[%s758 + $0x390] sm:$0xff]
        %v994 = vld [vmem:[%s758 + $0x398] sm:$0xff]
        %v995 = vld [vmem:[%s758 + $0x3a0] sm:$0xff]
        %v996 = vld [vmem:[%s758 + $0x3a8] sm:$0xff]
        %v997 = vld [vmem:[%s758 + $0x3b0] sm:$0xff]
        %v998 = vld [vmem:[%s758 + $0x3b8] sm:$0xff]
        %v999 = vld [vmem:[%s758 + $0x3c0] sm:$0xff]
        %v1000 = vld [vmem:[%s758 + $0x3c8] sm:$0xff]
        %v1001 = vld [vmem:[%s758 + $0x3d0] sm:$0xff]
        %v1002 = vld [vmem:[%s758 + $0x3d8] sm:$0xff]
        %v1003 = vld [vmem:[%s758 + $0x3e0] sm:$0xff]
        %v1004 = vld [vmem:[%s758 + $0x3e8] sm:$0xff]
        %v1005 = vld [vmem:[%s758 + $0x3f0] sm:$0xff]
        %v1006 = vld [vmem:[%s758 + $0x3f8] sm:$0xff]
        %v1007 = vld [vmem:[%s758 + $0x400] sm:$0xff]
        %v1008 = vld [vmem:[%s758 + $0x408] sm:$0xff]
        %v1009 = vld [vmem:[%s758 + $0x410] sm:$0xff]
        %v1010 = vld [vmem:[%s758 + $0x418] sm:$0xff]
        %v1011 = vld [vmem:[%s758 + $0x420] sm:$0xff]
        %v1012 = vld [vmem:[%s758 + $0x428] sm:$0xff]
        %v1013 = vld [vmem:[%s758 + $0x430] sm:$0xff]
        %v1014 = vld [vmem:[%s758 + $0x438] sm:$0xff]
        %v1015 = vld [vmem:[%s758 + $0x440] sm:$0xff]
        %v1016 = vld [vmem:[%s758 + $0x448] sm:$0xff]
        %v1017 = vld [vmem:[%s758 + $0x450] sm:$0xff]
        %v1018 = vld [vmem:[%s758 + $0x458] sm:$0xff]
        %v1019 = vld [vmem:[%s758 + $0x460] sm:$0xff]
        %v1020 = vld [vmem:[%s758 + $0x468] sm:$0xff]
        %v1021 = vld [vmem:[%s758 + $0x470] sm:$0xff]
        %v1022 = vld [vmem:[%s758 + $0x478] sm:$0xff]
        %v1023 = vld [vmem:[%s758 + $0x480] sm:$0xff]
        %v1024 = vld [vmem:[%s758 + $0x488] sm:$0xff]
        %v1025 = vld [vmem:[%s758 + $0x490] sm:$0xff]
        %v1026 = vld [vmem:[%s758 + $0x498] sm:$0xff]
        %v1027 = vld [vmem:[%s758 + $0x4a0] sm:$0xff]
        %v1028 = vld [vmem:[%s758 + $0x4a8] sm:$0xff]
        %v1029 = vld [vmem:[%s758 + $0x4b0] sm:$0xff]
        %v1030 = vld [vmem:[%s758 + $0x4b8] sm:$0xff]
        %v1031 = vld [vmem:[%s758 + $0x4c0] sm:$0xff]
        %v1032 = vld [vmem:[%s758 + $0x4c8] sm:$0xff]
        %v1033 = vld [vmem:[%s758 + $0x4d0] sm:$0xff]
        %v1034 = vld [vmem:[%s758 + $0x4d8] sm:$0xff]
        %v1035 = vld [vmem:[%s758 + $0x4e0] sm:$0xff]
        %v1036 = vld [vmem:[%s758 + $0x4e8] sm:$0xff]
        %v1037 = vld [vmem:[%s758 + $0x4f0] sm:$0xff]
        %v1038 = vld [vmem:[%s758 + $0x4f8] sm:$0xff]
        %v1039 = vld [vmem:[%s758 + $0x500] sm:$0xff]
        %v1040 = vld [vmem:[%s758 + $0x508] sm:$0xff]
        %v1041 = vld [vmem:[%s758 + $0x510] sm:$0xff]
        %v1042 = vld [vmem:[%s758 + $0x518] sm:$0xff]
        %v1043 = vld [vmem:[%s758 + $0x520] sm:$0xff]
        %v1044 = vld [vmem:[%s758 + $0x528] sm:$0xff]
        %v1045 = vld [vmem:[%s758 + $0x530] sm:$0xff]
        %v1046 = vld [vmem:[%s758 + $0x538] sm:$0xff]
        %v1047 = vld [vmem:[%s758 + $0x540] sm:$0xff]
        %v1048 = vld [vmem:[%s758 + $0x548] sm:$0xff]
        %v1049 = vld [vmem:[%s758 + $0x550] sm:$0xff]
        %v1050 = vld [vmem:[%s758 + $0x558] sm:$0xff]
        %v1051 = vld [vmem:[%s758 + $0x560] sm:$0xff]
        %v1052 = vld [vmem:[%s758 + $0x568] sm:$0xff]
        %v1053 = vld [vmem:[%s758 + $0x570] sm:$0xff]
        %v1054 = vld [vmem:[%s758 + $0x578] sm:$0xff]
        %v1055 = vld [vmem:[%s758 + $0x580] sm:$0xff]
        %v1056 = vld [vmem:[%s758 + $0x588] sm:$0xff]
        %v1057 = vld [vmem:[%s758 + $0x590] sm:$0xff]
        %v1058 = vld [vmem:[%s758 + $0x598] sm:$0xff]
        %v1059 = vld [vmem:[%s758 + $0x5a0] sm:$0xff]
        %v1060 = vld [vmem:[%s758 + $0x5a8] sm:$0xff]
        %v1061 = vld [vmem:[%s758 + $0x5b0] sm:$0xff]
        %v1062 = vld [vmem:[%s758 + $0x5b8] sm:$0xff]
        %v1063 = vld [vmem:[%s758 + $0x5c0] sm:$0xff]
        %v1064 = vld [vmem:[%s758 + $0x5c8] sm:$0xff]
        %v1065 = vld [vmem:[%s758 + $0x5d0] sm:$0xff]
        %v1066 = vld [vmem:[%s758 + $0x5d8] sm:$0xff]
        %v1067 = vld [vmem:[%s758 + $0x5e0] sm:$0xff]
        %v1068 = vld [vmem:[%s758 + $0x5e8] sm:$0xff]
        %v1069 = vld [vmem:[%s758 + $0x5f0] sm:$0xff]
        %v1070 = vld [vmem:[%s758 + $0x5f8] sm:$0xff]
        %v1071 = vld [vmem:[%s758 + $0x600] sm:$0xff]
        %v1072 = vld [vmem:[%s758 + $0x608] sm:$0xff]
        %v1073 = vld [vmem:[%s758 + $0x610] sm:$0xff]
        %v1074 = vld [vmem:[%s758 + $0x618] sm:$0xff]
        %v1075 = vld [vmem:[%s758 + $0x620] sm:$0xff]
        %v1076 = vld [vmem:[%s758 + $0x628] sm:$0xff]
        %v1077 = vld [vmem:[%s758 + $0x630] sm:$0xff]
        %v1078 = vld [vmem:[%s758 + $0x638] sm:$0xff]
        %v1079 = vld [vmem:[%s758 + $0x640] sm:$0xff]
        %v1080 = vld [vmem:[%s758 + $0x648] sm:$0xff]
        %v1081 = vld [vmem:[%s758 + $0x650] sm:$0xff]
        %v1082 = vld [vmem:[%s758 + $0x658] sm:$0xff]
        %v1083 = vld [vmem:[%s758 + $0x660] sm:$0xff]
        %v1084 = vld [vmem:[%s758 + $0x668] sm:$0xff]
        %v1085 = vld [vmem:[%s758 + $0x670] sm:$0xff]
        %v1086 = vld [vmem:[%s758 + $0x678] sm:$0xff]
        %v1087 = vld [vmem:[%s758 + $0x680] sm:$0xff]
        %v1088 = vld [vmem:[%s758 + $0x688] sm:$0xff]
        %v1089 = vld [vmem:[%s758 + $0x690] sm:$0xff]
        %v1090 = vld [vmem:[%s758 + $0x698] sm:$0xff]
        %v1091 = vld [vmem:[%s758 + $0x6a0] sm:$0xff]
        %v1092 = vld [vmem:[%s758 + $0x6a8] sm:$0xff]
        %v1093 = vld [vmem:[%s758 + $0x6b0] sm:$0xff]
        %v1094 = vld [vmem:[%s758 + $0x6b8] sm:$0xff]
        %v1095 = vld [vmem:[%s758 + $0x6c0] sm:$0xff]
        %v1096 = vld [vmem:[%s758 + $0x6c8] sm:$0xff]
        %v1097 = vld [vmem:[%s758 + $0x6d0] sm:$0xff]
        %v1098 = vld [vmem:[%s758 + $0x6d8] sm:$0xff]
        %v1099 = vld [vmem:[%s758 + $0x6e0] sm:$0xff]
        %v1100 = vld [vmem:[%s758 + $0x6e8] sm:$0xff]
        %v1101 = vld [vmem:[%s758 + $0x6f0] sm:$0xff]
        %v1102 = vld [vmem:[%s758 + $0x6f8] sm:$0xff]
        %v1103 = vld [vmem:[%s758 + $0x700] sm:$0xff]
        %v1104 = vld [vmem:[%s758 + $0x708] sm:$0xff]
        %v1105 = vld [vmem:[%s758 + $0x710] sm:$0xff]
        %v1106 = vld [vmem:[%s758 + $0x718] sm:$0xff]
        %v1107 = vld [vmem:[%s758 + $0x720] sm:$0xff]
        %v1108 = vld [vmem:[%s758 + $0x728] sm:$0xff]
        %v1109 = vld [vmem:[%s758 + $0x730] sm:$0xff]
        %v1110 = vld [vmem:[%s758 + $0x738] sm:$0xff]
        %v1111 = vld [vmem:[%s758 + $0x740] sm:$0xff]
        %v1112 = vld [vmem:[%s758 + $0x748] sm:$0xff]
        %v1113 = vld [vmem:[%s758 + $0x750] sm:$0xff]
        %v1114 = vld [vmem:[%s758 + $0x758] sm:$0xff]
        %v1115 = vld [vmem:[%s758 + $0x760] sm:$0xff]
        %v1116 = vld [vmem:[%s758 + $0x768] sm:$0xff]
        %v1117 = vld [vmem:[%s758 + $0x770] sm:$0xff]
        %v1118 = vld [vmem:[%s758 + $0x778] sm:$0xff]
        %v1119 = vld [vmem:[%s758 + $0x780] sm:$0xff]
        %v1120 = vld [vmem:[%s758 + $0x788] sm:$0xff]
        %v1121 = vld [vmem:[%s758 + $0x790] sm:$0xff]
        %v1122 = vld [vmem:[%s758 + $0x798] sm:$0xff]
        %v1123 = vld [vmem:[%s758 + $0x7a0] sm:$0xff]
        %v1124 = vld [vmem:[%s758 + $0x7a8] sm:$0xff]
        %v1125 = vld [vmem:[%s758 + $0x7b0] sm:$0xff]
        %v1126 = vld [vmem:[%s758 + $0x7b8] sm:$0xff]
        %v1127 = vld [vmem:[%s758 + $0x7c0] sm:$0xff]
        %v1128 = vld [vmem:[%s758 + $0x7c8] sm:$0xff]
        %v1129 = vld [vmem:[%s758 + $0x7d0] sm:$0xff]
        %v1130 = vld [vmem:[%s758 + $0x7d8] sm:$0xff]
        %v1131 = vld [vmem:[%s758 + $0x7e0] sm:$0xff]
        %v1132 = vld [vmem:[%s758 + $0x7e8] sm:$0xff]
        %v1133 = vld [vmem:[%s758 + $0x7f0] sm:$0xff]
        %v1134 = vld [vmem:[%s758 + $0x7f8] sm:$0xff]
        %v1139 = vunpack.c.l.b16 %v875
        %v1140 = vunpack.c.h.b16 %v875
        %v1141 = vunpack.c.l.b16 %v876
        %v1142 = vunpack.c.h.b16 %v876
        %v1143 = vunpack.c.l.b16 %v877
        %v1144 = vunpack.c.h.b16 %v877
        %v1145 = vunpack.c.l.b16 %v878
        %v1146 = vunpack.c.h.b16 %v878
        %v1147 = vpack.c.b16 %v1143, %v1139
        %v1148 = vpack.c.b16 %v1144, %v1140
        %v1149 = vpack.c.b16 %v1145, %v1141
        %v1150 = vpack.c.b16 %v1146, %v1142
        %v1411 = vunpack.c.l.b16 %v879
        %v1412 = vunpack.c.h.b16 %v879
        %v1413 = vunpack.c.l.b16 %v880
        %v1414 = vunpack.c.h.b16 %v880
        %v1415 = vunpack.c.l.b16 %v881
        %v1416 = vunpack.c.h.b16 %v881
        %v1417 = vunpack.c.l.b16 %v882
        %v1418 = vunpack.c.h.b16 %v882
        %v1419 = vunpack.c.l.b16 %v883
        %v1420 = vunpack.c.h.b16 %v883
        %v1421 = vunpack.c.l.b16 %v884
        %v1422 = vunpack.c.h.b16 %v884
        %v1423 = vunpack.c.l.b16 %v885
        %v1424 = vunpack.c.h.b16 %v885
        %v1425 = vunpack.c.l.b16 %v886
        %v1426 = vunpack.c.h.b16 %v886
        %v1427 = vunpack.c.l.b16 %v887
        %v1428 = vunpack.c.h.b16 %v887
        %v1429 = vunpack.c.l.b16 %v888
        %v1430 = vunpack.c.h.b16 %v888
        %v1431 = vunpack.c.l.b16 %v889
        %v1432 = vunpack.c.h.b16 %v889
        %v1433 = vunpack.c.l.b16 %v890
        %v1434 = vunpack.c.h.b16 %v890
        %v1435 = vunpack.c.l.b16 %v891
        %v1436 = vunpack.c.h.b16 %v891
        %v1437 = vunpack.c.l.b16 %v892
        %v1438 = vunpack.c.h.b16 %v892
        %v1439 = vunpack.c.l.b16 %v893
        %v1440 = vunpack.c.h.b16 %v893
        %v1441 = vunpack.c.l.b16 %v894
        %v1442 = vunpack.c.h.b16 %v894
        %v1443 = vunpack.c.l.b16 %v895
        %v1444 = vunpack.c.h.b16 %v895
        %v1445 = vunpack.c.l.b16 %v896
        %v1446 = vunpack.c.h.b16 %v896
        %v1447 = vunpack.c.l.b16 %v897
        %v1448 = vunpack.c.h.b16 %v897
        %v1449 = vunpack.c.l.b16 %v898
        %v1450 = vunpack.c.h.b16 %v898
        %v1451 = vunpack.c.l.b16 %v899
        %v1452 = vunpack.c.h.b16 %v899
        %v1453 = vunpack.c.l.b16 %v900
        %v1454 = vunpack.c.h.b16 %v900
        %v1455 = vunpack.c.l.b16 %v901
        %v1456 = vunpack.c.h.b16 %v901
        %v1457 = vunpack.c.l.b16 %v902
        %v1458 = vunpack.c.h.b16 %v902
        %v1459 = vunpack.c.l.b16 %v903
        %v1460 = vunpack.c.h.b16 %v903
        %v1461 = vunpack.c.l.b16 %v904
        %v1462 = vunpack.c.h.b16 %v904
        %v1463 = vunpack.c.l.b16 %v905
        %v1464 = vunpack.c.h.b16 %v905
        %v1465 = vunpack.c.l.b16 %v906
        %v1466 = vunpack.c.h.b16 %v906
        %v1467 = vunpack.c.l.b16 %v907
        %v1468 = vunpack.c.h.b16 %v907
        %v1469 = vunpack.c.l.b16 %v908
        %v1470 = vunpack.c.h.b16 %v908
        %v1471 = vunpack.c.l.b16 %v909
        %v1472 = vunpack.c.h.b16 %v909
        %v1473 = vunpack.c.l.b16 %v910
        %v1474 = vunpack.c.h.b16 %v910
        %v1475 = vunpack.c.l.b16 %v911
        %v1476 = vunpack.c.h.b16 %v911
        %v1477 = vunpack.c.l.b16 %v912
        %v1478 = vunpack.c.h.b16 %v912
        %v1479 = vunpack.c.l.b16 %v913
        %v1480 = vunpack.c.h.b16 %v913
        %v1481 = vunpack.c.l.b16 %v914
        %v1482 = vunpack.c.h.b16 %v914
        %v1483 = vunpack.c.l.b16 %v915
        %v1484 = vunpack.c.h.b16 %v915
        %v1485 = vunpack.c.l.b16 %v916
        %v1486 = vunpack.c.h.b16 %v916
        %v1487 = vunpack.c.l.b16 %v917
        %v1488 = vunpack.c.h.b16 %v917
        %v1489 = vunpack.c.l.b16 %v918
        %v1490 = vunpack.c.h.b16 %v918
        %v1491 = vunpack.c.l.b16 %v919
        %v1492 = vunpack.c.h.b16 %v919
        %v1493 = vunpack.c.l.b16 %v920
        %v1494 = vunpack.c.h.b16 %v920
        %v1495 = vunpack.c.l.b16 %v921
        %v1496 = vunpack.c.h.b16 %v921
        %v1497 = vunpack.c.l.b16 %v922
        %v1498 = vunpack.c.h.b16 %v922
        %v1499 = vunpack.c.l.b16 %v923
        %v1500 = vunpack.c.h.b16 %v923
        %v1501 = vunpack.c.l.b16 %v924
        %v1502 = vunpack.c.h.b16 %v924
        %v1503 = vunpack.c.l.b16 %v925
        %v1504 = vunpack.c.h.b16 %v925
        %v1505 = vunpack.c.l.b16 %v926
        %v1506 = vunpack.c.h.b16 %v926
        %v1507 = vunpack.c.l.b16 %v927
        %v1508 = vunpack.c.h.b16 %v927
        %v1509 = vunpack.c.l.b16 %v928
        %v1510 = vunpack.c.h.b16 %v928
        %v1511 = vunpack.c.l.b16 %v929
        %v1512 = vunpack.c.h.b16 %v929
        %v1513 = vunpack.c.l.b16 %v930
        %v1514 = vunpack.c.h.b16 %v930
        %v1515 = vunpack.c.l.b16 %v931
        %v1516 = vunpack.c.h.b16 %v931
        %v1517 = vunpack.c.l.b16 %v932
        %v1518 = vunpack.c.h.b16 %v932
        %v1519 = vunpack.c.l.b16 %v933
        %v1520 = vunpack.c.h.b16 %v933
        %v1521 = vunpack.c.l.b16 %v934
        %v1522 = vunpack.c.h.b16 %v934
        %v1523 = vunpack.c.l.b16 %v935
        %v1524 = vunpack.c.h.b16 %v935
        %v1525 = vunpack.c.l.b16 %v936
        %v1526 = vunpack.c.h.b16 %v936
        %v1527 = vunpack.c.l.b16 %v937
        %v1528 = vunpack.c.h.b16 %v937
        %v1529 = vunpack.c.l.b16 %v938
        %v1530 = vunpack.c.h.b16 %v938
        %v1531 = vunpack.c.l.b16 %v939
        %v1532 = vunpack.c.h.b16 %v939
        %v1533 = vunpack.c.l.b16 %v940
        %v1534 = vunpack.c.h.b16 %v940
        %v1535 = vunpack.c.l.b16 %v941
        %v1536 = vunpack.c.h.b16 %v941
        %v1537 = vunpack.c.l.b16 %v942
        %v1538 = vunpack.c.h.b16 %v942
        %v1539 = vunpack.c.l.b16 %v943
        %v1540 = vunpack.c.h.b16 %v943
        %v1541 = vunpack.c.l.b16 %v944
        %v1542 = vunpack.c.h.b16 %v944
        %v1543 = vunpack.c.l.b16 %v945
        %v1544 = vunpack.c.h.b16 %v945
        %v1545 = vunpack.c.l.b16 %v946
        %v1546 = vunpack.c.h.b16 %v946
        %v1547 = vunpack.c.l.b16 %v947
        %v1548 = vunpack.c.h.b16 %v947
        %v1549 = vunpack.c.l.b16 %v948
        %v1550 = vunpack.c.h.b16 %v948
        %v1551 = vunpack.c.l.b16 %v949
        %v1552 = vunpack.c.h.b16 %v949
        %v1553 = vunpack.c.l.b16 %v950
        %v1554 = vunpack.c.h.b16 %v950
        %v1555 = vunpack.c.l.b16 %v951
        %v1556 = vunpack.c.h.b16 %v951
        %v1557 = vunpack.c.l.b16 %v952
        %v1558 = vunpack.c.h.b16 %v952
        %v1559 = vunpack.c.l.b16 %v953
        %v1560 = vunpack.c.h.b16 %v953
        %v1561 = vunpack.c.l.b16 %v954
        %v1562 = vunpack.c.h.b16 %v954
        %v1563 = vunpack.c.l.b16 %v955
        %v1564 = vunpack.c.h.b16 %v955
        %v1565 = vunpack.c.l.b16 %v956
        %v1566 = vunpack.c.h.b16 %v956
        %v1567 = vunpack.c.l.b16 %v957
        %v1568 = vunpack.c.h.b16 %v957
        %v1569 = vunpack.c.l.b16 %v958
        %v1570 = vunpack.c.h.b16 %v958
        %v1571 = vunpack.c.l.b16 %v959
        %v1572 = vunpack.c.h.b16 %v959
        %v1573 = vunpack.c.l.b16 %v960
        %v1574 = vunpack.c.h.b16 %v960
        %v1575 = vunpack.c.l.b16 %v961
        %v1576 = vunpack.c.h.b16 %v961
        %v1577 = vunpack.c.l.b16 %v962
        %v1578 = vunpack.c.h.b16 %v962
        %v1579 = vunpack.c.l.b16 %v963
        %v1580 = vunpack.c.h.b16 %v963
        %v1581 = vunpack.c.l.b16 %v964
        %v1582 = vunpack.c.h.b16 %v964
        %v1583 = vunpack.c.l.b16 %v965
        %v1584 = vunpack.c.h.b16 %v965
        %v1585 = vunpack.c.l.b16 %v966
        %v1586 = vunpack.c.h.b16 %v966
        %v1587 = vunpack.c.l.b16 %v967
        %v1588 = vunpack.c.h.b16 %v967
        %v1589 = vunpack.c.l.b16 %v968
        %v1590 = vunpack.c.h.b16 %v968
        %v1591 = vunpack.c.l.b16 %v969
        %v1592 = vunpack.c.h.b16 %v969
        %v1593 = vunpack.c.l.b16 %v970
        %v1594 = vunpack.c.h.b16 %v970
        %v1595 = vunpack.c.l.b16 %v971
        %v1596 = vunpack.c.h.b16 %v971
        %v1597 = vunpack.c.l.b16 %v972
        %v1598 = vunpack.c.h.b16 %v972
        %v1599 = vunpack.c.l.b16 %v973
        %v1600 = vunpack.c.h.b16 %v973
        %v1601 = vunpack.c.l.b16 %v974
        %v1602 = vunpack.c.h.b16 %v974
        %v1603 = vunpack.c.l.b16 %v975
        %v1604 = vunpack.c.h.b16 %v975
        %v1605 = vunpack.c.l.b16 %v976
        %v1606 = vunpack.c.h.b16 %v976
        %v1607 = vunpack.c.l.b16 %v977
        %v1608 = vunpack.c.h.b16 %v977
        %v1609 = vunpack.c.l.b16 %v978
        %v1610 = vunpack.c.h.b16 %v978
        %v1611 = vunpack.c.l.b16 %v979
        %v1612 = vunpack.c.h.b16 %v979
        %v1613 = vunpack.c.l.b16 %v980
        %v1614 = vunpack.c.h.b16 %v980
        %v1615 = vunpack.c.l.b16 %v981
        %v1616 = vunpack.c.h.b16 %v981
        %v1617 = vunpack.c.l.b16 %v982
        %v1618 = vunpack.c.h.b16 %v982
        %v1619 = vunpack.c.l.b16 %v983
        %v1620 = vunpack.c.h.b16 %v983
        %v1621 = vunpack.c.l.b16 %v984
        %v1622 = vunpack.c.h.b16 %v984
        %v1623 = vunpack.c.l.b16 %v985
        %v1624 = vunpack.c.h.b16 %v985
        %v1625 = vunpack.c.l.b16 %v986
        %v1626 = vunpack.c.h.b16 %v986
        %v1627 = vunpack.c.l.b16 %v987
        %v1628 = vunpack.c.h.b16 %v987
        %v1629 = vunpack.c.l.b16 %v988
        %v1630 = vunpack.c.h.b16 %v988
        %v1631 = vunpack.c.l.b16 %v989
        %v1632 = vunpack.c.h.b16 %v989
        %v1633 = vunpack.c.l.b16 %v990
        %v1634 = vunpack.c.h.b16 %v990
        %v1635 = vunpack.c.l.b16 %v991
        %v1636 = vunpack.c.h.b16 %v991
        %v1637 = vunpack.c.l.b16 %v992
        %v1638 = vunpack.c.h.b16 %v992
        %v1639 = vunpack.c.l.b16 %v993
        %v1640 = vunpack.c.h.b16 %v993
        %v1641 = vunpack.c.l.b16 %v994
        %v1642 = vunpack.c.h.b16 %v994
        %v1643 = vunpack.c.l.b16 %v995
        %v1644 = vunpack.c.h.b16 %v995
        %v1645 = vunpack.c.l.b16 %v996
        %v1646 = vunpack.c.h.b16 %v996
        %v1647 = vunpack.c.l.b16 %v997
        %v1648 = vunpack.c.h.b16 %v997
        %v1649 = vunpack.c.l.b16 %v998
        %v1650 = vunpack.c.h.b16 %v998
        %v1651 = vunpack.c.l.b16 %v999
        %v1652 = vunpack.c.h.b16 %v999
        %v1653 = vunpack.c.l.b16 %v1000
        %v1654 = vunpack.c.h.b16 %v1000
        %v1655 = vunpack.c.l.b16 %v1001
        %v1656 = vunpack.c.h.b16 %v1001
        %v1657 = vunpack.c.l.b16 %v1002
        %v1658 = vunpack.c.h.b16 %v1002
        %v1659 = vunpack.c.l.b16 %v1003
        %v1660 = vunpack.c.h.b16 %v1003
        %v1661 = vunpack.c.l.b16 %v1004
        %v1662 = vunpack.c.h.b16 %v1004
        %v1663 = vunpack.c.l.b16 %v1005
        %v1664 = vunpack.c.h.b16 %v1005
        %v1665 = vunpack.c.l.b16 %v1006
        %v1666 = vunpack.c.h.b16 %v1006
        %v1667 = vunpack.c.l.b16 %v1007
        %v1668 = vunpack.c.h.b16 %v1007
        %v1669 = vunpack.c.l.b16 %v1008
        %v1670 = vunpack.c.h.b16 %v1008
        %v1671 = vunpack.c.l.b16 %v1009
        %v1672 = vunpack.c.h.b16 %v1009
        %v1673 = vunpack.c.l.b16 %v1010
        %v1674 = vunpack.c.h.b16 %v1010
        %v1675 = vunpack.c.l.b16 %v1011
        %v1676 = vunpack.c.h.b16 %v1011
        %v1677 = vunpack.c.l.b16 %v1012
        %v1678 = vunpack.c.h.b16 %v1012
        %v1679 = vunpack.c.l.b16 %v1013
        %v1680 = vunpack.c.h.b16 %v1013
        %v1681 = vunpack.c.l.b16 %v1014
        %v1682 = vunpack.c.h.b16 %v1014
        %v1683 = vunpack.c.l.b16 %v1015
        %v1684 = vunpack.c.h.b16 %v1015
        %v1685 = vunpack.c.l.b16 %v1016
        %v1686 = vunpack.c.h.b16 %v1016
        %v1687 = vunpack.c.l.b16 %v1017
        %v1688 = vunpack.c.h.b16 %v1017
        %v1689 = vunpack.c.l.b16 %v1018
        %v1690 = vunpack.c.h.b16 %v1018
        %v1691 = vunpack.c.l.b16 %v1019
        %v1692 = vunpack.c.h.b16 %v1019
        %v1693 = vunpack.c.l.b16 %v1020
        %v1694 = vunpack.c.h.b16 %v1020
        %v1695 = vunpack.c.l.b16 %v1021
        %v1696 = vunpack.c.h.b16 %v1021
        %v1697 = vunpack.c.l.b16 %v1022
        %v1698 = vunpack.c.h.b16 %v1022
        %v1699 = vunpack.c.l.b16 %v1023
        %v1700 = vunpack.c.h.b16 %v1023
        %v1701 = vunpack.c.l.b16 %v1024
        %v1702 = vunpack.c.h.b16 %v1024
        %v1703 = vunpack.c.l.b16 %v1025
        %v1704 = vunpack.c.h.b16 %v1025
        %v1705 = vunpack.c.l.b16 %v1026
        %v1706 = vunpack.c.h.b16 %v1026
        %v1707 = vunpack.c.l.b16 %v1027
        %v1708 = vunpack.c.h.b16 %v1027
        %v1709 = vunpack.c.l.b16 %v1028
        %v1710 = vunpack.c.h.b16 %v1028
        %v1711 = vunpack.c.l.b16 %v1029
        %v1712 = vunpack.c.h.b16 %v1029
        %v1713 = vunpack.c.l.b16 %v1030
        %v1714 = vunpack.c.h.b16 %v1030
        %v1715 = vunpack.c.l.b16 %v1031
        %v1716 = vunpack.c.h.b16 %v1031
        %v1717 = vunpack.c.l.b16 %v1032
        %v1718 = vunpack.c.h.b16 %v1032
        %v1719 = vunpack.c.l.b16 %v1033
        %v1720 = vunpack.c.h.b16 %v1033
        %v1721 = vunpack.c.l.b16 %v1034
        %v1722 = vunpack.c.h.b16 %v1034
        %v1723 = vunpack.c.l.b16 %v1035
        %v1724 = vunpack.c.h.b16 %v1035
        %v1725 = vunpack.c.l.b16 %v1036
        %v1726 = vunpack.c.h.b16 %v1036
        %v1727 = vunpack.c.l.b16 %v1037
        %v1728 = vunpack.c.h.b16 %v1037
        %v1729 = vunpack.c.l.b16 %v1038
        %v1730 = vunpack.c.h.b16 %v1038
        %v1731 = vunpack.c.l.b16 %v1039
        %v1732 = vunpack.c.h.b16 %v1039
        %v1733 = vunpack.c.l.b16 %v1040
        %v1734 = vunpack.c.h.b16 %v1040
        %v1735 = vunpack.c.l.b16 %v1041
        %v1736 = vunpack.c.h.b16 %v1041
        %v1737 = vunpack.c.l.b16 %v1042
        %v1738 = vunpack.c.h.b16 %v1042
        %v1739 = vunpack.c.l.b16 %v1043
        %v1740 = vunpack.c.h.b16 %v1043
        %v1741 = vunpack.c.l.b16 %v1044
        %v1742 = vunpack.c.h.b16 %v1044
        %v1743 = vunpack.c.l.b16 %v1045
        %v1744 = vunpack.c.h.b16 %v1045
        %v1745 = vunpack.c.l.b16 %v1046
        %v1746 = vunpack.c.h.b16 %v1046
        %v1747 = vunpack.c.l.b16 %v1047
        %v1748 = vunpack.c.h.b16 %v1047
        %v1749 = vunpack.c.l.b16 %v1048
        %v1750 = vunpack.c.h.b16 %v1048
        %v1751 = vunpack.c.l.b16 %v1049
        %v1752 = vunpack.c.h.b16 %v1049
        %v1753 = vunpack.c.l.b16 %v1050
        %v1754 = vunpack.c.h.b16 %v1050
        %v1755 = vunpack.c.l.b16 %v1051
        %v1756 = vunpack.c.h.b16 %v1051
        %v1757 = vunpack.c.l.b16 %v1052
        %v1758 = vunpack.c.h.b16 %v1052
        %v1759 = vunpack.c.l.b16 %v1053
        %v1760 = vunpack.c.h.b16 %v1053
        %v1761 = vunpack.c.l.b16 %v1054
        %v1762 = vunpack.c.h.b16 %v1054
        %v1763 = vunpack.c.l.b16 %v1055
        %v1764 = vunpack.c.h.b16 %v1055
        %v1765 = vunpack.c.l.b16 %v1056
        %v1766 = vunpack.c.h.b16 %v1056
        %v1767 = vunpack.c.l.b16 %v1057
        %v1768 = vunpack.c.h.b16 %v1057
        %v1769 = vunpack.c.l.b16 %v1058
        %v1770 = vunpack.c.h.b16 %v1058
        %v1771 = vunpack.c.l.b16 %v1059
        %v1772 = vunpack.c.h.b16 %v1059
        %v1773 = vunpack.c.l.b16 %v1060
        %v1774 = vunpack.c.h.b16 %v1060
        %v1775 = vunpack.c.l.b16 %v1061
        %v1776 = vunpack.c.h.b16 %v1061
        %v1777 = vunpack.c.l.b16 %v1062
        %v1778 = vunpack.c.h.b16 %v1062
        %v1779 = vunpack.c.l.b16 %v1063
        %v1780 = vunpack.c.h.b16 %v1063
        %v1781 = vunpack.c.l.b16 %v1064
        %v1782 = vunpack.c.h.b16 %v1064
        %v1783 = vunpack.c.l.b16 %v1065
        %v1784 = vunpack.c.h.b16 %v1065
        %v1785 = vunpack.c.l.b16 %v1066
        %v1786 = vunpack.c.h.b16 %v1066
        %v1787 = vunpack.c.l.b16 %v1067
        %v1788 = vunpack.c.h.b16 %v1067
        %v1789 = vunpack.c.l.b16 %v1068
        %v1790 = vunpack.c.h.b16 %v1068
        %v1791 = vunpack.c.l.b16 %v1069
        %v1792 = vunpack.c.h.b16 %v1069
        %v1793 = vunpack.c.l.b16 %v1070
        %v1794 = vunpack.c.h.b16 %v1070
        %v1795 = vunpack.c.l.b16 %v1071
        %v1796 = vunpack.c.h.b16 %v1071
        %v1797 = vunpack.c.l.b16 %v1072
        %v1798 = vunpack.c.h.b16 %v1072
        %v1799 = vunpack.c.l.b16 %v1073
        %v1800 = vunpack.c.h.b16 %v1073
        %v1801 = vunpack.c.l.b16 %v1074
        %v1802 = vunpack.c.h.b16 %v1074
        %v1803 = vunpack.c.l.b16 %v1075
        %v1804 = vunpack.c.h.b16 %v1075
        %v1805 = vunpack.c.l.b16 %v1076
        %v1806 = vunpack.c.h.b16 %v1076
        %v1807 = vunpack.c.l.b16 %v1077
        %v1808 = vunpack.c.h.b16 %v1077
        %v1809 = vunpack.c.l.b16 %v1078
        %v1810 = vunpack.c.h.b16 %v1078
        %v1811 = vunpack.c.l.b16 %v1079
        %v1812 = vunpack.c.h.b16 %v1079
        %v1813 = vunpack.c.l.b16 %v1080
        %v1814 = vunpack.c.h.b16 %v1080
        %v1815 = vunpack.c.l.b16 %v1081
        %v1816 = vunpack.c.h.b16 %v1081
        %v1817 = vunpack.c.l.b16 %v1082
        %v1818 = vunpack.c.h.b16 %v1082
        %v1819 = vunpack.c.l.b16 %v1083
        %v1820 = vunpack.c.h.b16 %v1083
        %v1821 = vunpack.c.l.b16 %v1084
        %v1822 = vunpack.c.h.b16 %v1084
        %v1823 = vunpack.c.l.b16 %v1085
        %v1824 = vunpack.c.h.b16 %v1085
        %v1825 = vunpack.c.l.b16 %v1086
        %v1826 = vunpack.c.h.b16 %v1086
        %v1827 = vunpack.c.l.b16 %v1087
        %v1828 = vunpack.c.h.b16 %v1087
        %v1829 = vunpack.c.l.b16 %v1088
        %v1830 = vunpack.c.h.b16 %v1088
        %v1831 = vunpack.c.l.b16 %v1089
        %v1832 = vunpack.c.h.b16 %v1089
        %v1833 = vunpack.c.l.b16 %v1090
        %v1834 = vunpack.c.h.b16 %v1090
        %v1835 = vunpack.c.l.b16 %v1091
        %v1836 = vunpack.c.h.b16 %v1091
        %v1837 = vunpack.c.l.b16 %v1092
        %v1838 = vunpack.c.h.b16 %v1092
        %v1839 = vunpack.c.l.b16 %v1093
        %v1840 = vunpack.c.h.b16 %v1093
        %v1841 = vunpack.c.l.b16 %v1094
        %v1842 = vunpack.c.h.b16 %v1094
        %v1843 = vunpack.c.l.b16 %v1095
        %v1844 = vunpack.c.h.b16 %v1095
        %v1845 = vunpack.c.l.b16 %v1096
        %v1846 = vunpack.c.h.b16 %v1096
        %v1847 = vunpack.c.l.b16 %v1097
        %v1848 = vunpack.c.h.b16 %v1097
        %v1849 = vunpack.c.l.b16 %v1098
        %v1850 = vunpack.c.h.b16 %v1098
        %v1851 = vunpack.c.l.b16 %v1099
        %v1852 = vunpack.c.h.b16 %v1099
        %v1853 = vunpack.c.l.b16 %v1100
        %v1854 = vunpack.c.h.b16 %v1100
        %v1855 = vunpack.c.l.b16 %v1101
        %v1856 = vunpack.c.h.b16 %v1101
        %v1857 = vunpack.c.l.b16 %v1102
        %v1858 = vunpack.c.h.b16 %v1102
        %v1859 = vunpack.c.l.b16 %v1103
        %v1860 = vunpack.c.h.b16 %v1103
        %v1861 = vunpack.c.l.b16 %v1104
        %v1862 = vunpack.c.h.b16 %v1104
        %v1863 = vunpack.c.l.b16 %v1105
        %v1864 = vunpack.c.h.b16 %v1105
        %v1865 = vunpack.c.l.b16 %v1106
        %v1866 = vunpack.c.h.b16 %v1106
        %v1867 = vunpack.c.l.b16 %v1107
        %v1868 = vunpack.c.h.b16 %v1107
        %v1869 = vunpack.c.l.b16 %v1108
        %v1870 = vunpack.c.h.b16 %v1108
        %v1871 = vunpack.c.l.b16 %v1109
        %v1872 = vunpack.c.h.b16 %v1109
        %v1873 = vunpack.c.l.b16 %v1110
        %v1874 = vunpack.c.h.b16 %v1110
        %v1875 = vunpack.c.l.b16 %v1111
        %v1876 = vunpack.c.h.b16 %v1111
        %v1877 = vunpack.c.l.b16 %v1112
        %v1878 = vunpack.c.h.b16 %v1112
        %v1879 = vunpack.c.l.b16 %v1113
        %v1880 = vunpack.c.h.b16 %v1113
        %v1881 = vunpack.c.l.b16 %v1114
        %v1882 = vunpack.c.h.b16 %v1114
        %v1883 = vunpack.c.l.b16 %v1115
        %v1884 = vunpack.c.h.b16 %v1115
        %v1885 = vunpack.c.l.b16 %v1116
        %v1886 = vunpack.c.h.b16 %v1116
        %v1887 = vunpack.c.l.b16 %v1117
        %v1888 = vunpack.c.h.b16 %v1117
        %v1889 = vunpack.c.l.b16 %v1118
        %v1890 = vunpack.c.h.b16 %v1118
        %v1891 = vunpack.c.l.b16 %v1119
        %v1892 = vunpack.c.h.b16 %v1119
        %v1893 = vunpack.c.l.b16 %v1120
        %v1894 = vunpack.c.h.b16 %v1120
        %v1895 = vunpack.c.l.b16 %v1121
        %v1896 = vunpack.c.h.b16 %v1121
        %v1897 = vunpack.c.l.b16 %v1122
        %v1898 = vunpack.c.h.b16 %v1122
        %v1899 = vunpack.c.l.b16 %v1123
        %v1900 = vunpack.c.h.b16 %v1123
        %v1901 = vunpack.c.l.b16 %v1124
        %v1902 = vunpack.c.h.b16 %v1124
        %v1903 = vunpack.c.l.b16 %v1125
        %v1904 = vunpack.c.h.b16 %v1125
        %v1905 = vunpack.c.l.b16 %v1126
        %v1906 = vunpack.c.h.b16 %v1126
        %v1907 = vunpack.c.l.b16 %v1127
        %v1908 = vunpack.c.h.b16 %v1127
        %v1909 = vunpack.c.l.b16 %v1128
        %v1910 = vunpack.c.h.b16 %v1128
        %v1911 = vunpack.c.l.b16 %v1129
        %v1912 = vunpack.c.h.b16 %v1129
        %v1913 = vunpack.c.l.b16 %v1130
        %v1914 = vunpack.c.h.b16 %v1130
        %v1915 = vunpack.c.l.b16 %v1131
        %v1916 = vunpack.c.h.b16 %v1131
        %v1917 = vunpack.c.l.b16 %v1132
        %v1918 = vunpack.c.h.b16 %v1132
        %v1919 = vunpack.c.l.b16 %v1133
        %v1920 = vunpack.c.h.b16 %v1133
        %v1921 = vunpack.c.l.b16 %v1134
        %v1922 = vunpack.c.h.b16 %v1134
        %v1923 = vpack.c.b16 %v1419, %v1411
        %v1924 = vpack.c.b16 %v1420, %v1412
        %v1925 = vpack.c.b16 %v1421, %v1413
        %v1926 = vpack.c.b16 %v1422, %v1414
        %v1927 = vpack.c.b16 %v1423, %v1415
        %v1928 = vpack.c.b16 %v1424, %v1416
        %v1929 = vpack.c.b16 %v1425, %v1417
        %v1930 = vpack.c.b16 %v1426, %v1418
        %v1931 = vpack.c.b16 %v1435, %v1427
        %v1932 = vpack.c.b16 %v1436, %v1428
        %v1933 = vpack.c.b16 %v1437, %v1429
        %v1934 = vpack.c.b16 %v1438, %v1430
        %v1935 = vpack.c.b16 %v1439, %v1431
        %v1936 = vpack.c.b16 %v1440, %v1432
        %v1937 = vpack.c.b16 %v1441, %v1433
        %v1938 = vpack.c.b16 %v1442, %v1434
        %v1939 = vpack.c.b16 %v1451, %v1443
        %v1940 = vpack.c.b16 %v1452, %v1444
        %v1941 = vpack.c.b16 %v1453, %v1445
        %v1942 = vpack.c.b16 %v1454, %v1446
        %v1943 = vpack.c.b16 %v1455, %v1447
        %v1944 = vpack.c.b16 %v1456, %v1448
        %v1945 = vpack.c.b16 %v1457, %v1449
        %v1946 = vpack.c.b16 %v1458, %v1450
        %v1947 = vpack.c.b16 %v1467, %v1459
        %v1948 = vpack.c.b16 %v1468, %v1460
        %v1949 = vpack.c.b16 %v1469, %v1461
        %v1950 = vpack.c.b16 %v1470, %v1462
        %v1951 = vpack.c.b16 %v1471, %v1463
        %v1952 = vpack.c.b16 %v1472, %v1464
        %v1953 = vpack.c.b16 %v1473, %v1465
        %v1954 = vpack.c.b16 %v1474, %v1466
        %v1955 = vpack.c.b16 %v1483, %v1475
        %v1956 = vpack.c.b16 %v1484, %v1476
        %v1957 = vpack.c.b16 %v1485, %v1477
        %v1958 = vpack.c.b16 %v1486, %v1478
        %v1959 = vpack.c.b16 %v1487, %v1479
        %v1960 = vpack.c.b16 %v1488, %v1480
        %v1961 = vpack.c.b16 %v1489, %v1481
        %v1962 = vpack.c.b16 %v1490, %v1482
        %v1963 = vpack.c.b16 %v1499, %v1491
        %v1964 = vpack.c.b16 %v1500, %v1492
        %v1965 = vpack.c.b16 %v1501, %v1493
        %v1966 = vpack.c.b16 %v1502, %v1494
        %v1967 = vpack.c.b16 %v1503, %v1495
        %v1968 = vpack.c.b16 %v1504, %v1496
        %v1969 = vpack.c.b16 %v1505, %v1497
        %v1970 = vpack.c.b16 %v1506, %v1498
        %v1971 = vpack.c.b16 %v1515, %v1507
        %v1972 = vpack.c.b16 %v1516, %v1508
        %v1973 = vpack.c.b16 %v1517, %v1509
        %v1974 = vpack.c.b16 %v1518, %v1510
        %v1975 = vpack.c.b16 %v1519, %v1511
        %v1976 = vpack.c.b16 %v1520, %v1512
        %v1977 = vpack.c.b16 %v1521, %v1513
        %v1978 = vpack.c.b16 %v1522, %v1514
        %v1979 = vpack.c.b16 %v1531, %v1523
        %v1980 = vpack.c.b16 %v1532, %v1524
        %v1981 = vpack.c.b16 %v1533, %v1525
        %v1982 = vpack.c.b16 %v1534, %v1526
        %v1983 = vpack.c.b16 %v1535, %v1527
        %v1984 = vpack.c.b16 %v1536, %v1528
        %v1985 = vpack.c.b16 %v1537, %v1529
        %v1986 = vpack.c.b16 %v1538, %v1530
        %v1987 = vpack.c.b16 %v1547, %v1539
        %v1988 = vpack.c.b16 %v1548, %v1540
        %v1989 = vpack.c.b16 %v1549, %v1541
        %v1990 = vpack.c.b16 %v1550, %v1542
        %v1991 = vpack.c.b16 %v1551, %v1543
        %v1992 = vpack.c.b16 %v1552, %v1544
        %v1993 = vpack.c.b16 %v1553, %v1545
        %v1994 = vpack.c.b16 %v1554, %v1546
        %v1995 = vpack.c.b16 %v1563, %v1555
        %v1996 = vpack.c.b16 %v1564, %v1556
        %v1997 = vpack.c.b16 %v1565, %v1557
        %v1998 = vpack.c.b16 %v1566, %v1558
        %v1999 = vpack.c.b16 %v1567, %v1559
        %v2000 = vpack.c.b16 %v1568, %v1560
        %v2001 = vpack.c.b16 %v1569, %v1561
        %v2002 = vpack.c.b16 %v1570, %v1562
        %v2003 = vpack.c.b16 %v1579, %v1571
        %v2004 = vpack.c.b16 %v1580, %v1572
        %v2005 = vpack.c.b16 %v1581, %v1573
        %v2006 = vpack.c.b16 %v1582, %v1574
        %v2007 = vpack.c.b16 %v1583, %v1575
        %v2008 = vpack.c.b16 %v1584, %v1576
        %v2009 = vpack.c.b16 %v1585, %v1577
        %v2010 = vpack.c.b16 %v1586, %v1578
        %v2011 = vpack.c.b16 %v1595, %v1587
        %v2012 = vpack.c.b16 %v1596, %v1588
        %v2013 = vpack.c.b16 %v1597, %v1589
        %v2014 = vpack.c.b16 %v1598, %v1590
        %v2015 = vpack.c.b16 %v1599, %v1591
        %v2016 = vpack.c.b16 %v1600, %v1592
        %v2017 = vpack.c.b16 %v1601, %v1593
        %v2018 = vpack.c.b16 %v1602, %v1594
        %v2019 = vpack.c.b16 %v1611, %v1603
        %v2020 = vpack.c.b16 %v1612, %v1604
        %v2021 = vpack.c.b16 %v1613, %v1605
        %v2022 = vpack.c.b16 %v1614, %v1606
        %v2023 = vpack.c.b16 %v1615, %v1607
        %v2024 = vpack.c.b16 %v1616, %v1608
        %v2025 = vpack.c.b16 %v1617, %v1609
        %v2026 = vpack.c.b16 %v1618, %v1610
        %v2027 = vpack.c.b16 %v1627, %v1619
        %v2028 = vpack.c.b16 %v1628, %v1620
        %v2029 = vpack.c.b16 %v1629, %v1621
        %v2030 = vpack.c.b16 %v1630, %v1622
        %v2031 = vpack.c.b16 %v1631, %v1623
        %v2032 = vpack.c.b16 %v1632, %v1624
        %v2033 = vpack.c.b16 %v1633, %v1625
        %v2034 = vpack.c.b16 %v1634, %v1626
        %v2035 = vpack.c.b16 %v1643, %v1635
        %v2036 = vpack.c.b16 %v1644, %v1636
        %v2037 = vpack.c.b16 %v1645, %v1637
        %v2038 = vpack.c.b16 %v1646, %v1638
        %v2039 = vpack.c.b16 %v1647, %v1639
        %v2040 = vpack.c.b16 %v1648, %v1640
        %v2041 = vpack.c.b16 %v1649, %v1641
        %v2042 = vpack.c.b16 %v1650, %v1642
        %v2043 = vpack.c.b16 %v1659, %v1651
        %v2044 = vpack.c.b16 %v1660, %v1652
        %v2045 = vpack.c.b16 %v1661, %v1653
        %v2046 = vpack.c.b16 %v1662, %v1654
        %v2047 = vpack.c.b16 %v1663, %v1655
        %v2048 = vpack.c.b16 %v1664, %v1656
        %v2049 = vpack.c.b16 %v1665, %v1657
        %v2050 = vpack.c.b16 %v1666, %v1658
        %v2051 = vpack.c.b16 %v1675, %v1667
        %v2052 = vpack.c.b16 %v1676, %v1668
        %v2053 = vpack.c.b16 %v1677, %v1669
        %v2054 = vpack.c.b16 %v1678, %v1670
        %v2055 = vpack.c.b16 %v1679, %v1671
        %v2056 = vpack.c.b16 %v1680, %v1672
        %v2057 = vpack.c.b16 %v1681, %v1673
        %v2058 = vpack.c.b16 %v1682, %v1674
        %v2059 = vpack.c.b16 %v1691, %v1683
        %v2060 = vpack.c.b16 %v1692, %v1684
        %v2061 = vpack.c.b16 %v1693, %v1685
        %v2062 = vpack.c.b16 %v1694, %v1686
        %v2063 = vpack.c.b16 %v1695, %v1687
        %v2064 = vpack.c.b16 %v1696, %v1688
        %v2065 = vpack.c.b16 %v1697, %v1689
        %v2066 = vpack.c.b16 %v1698, %v1690
        %v2067 = vpack.c.b16 %v1707, %v1699
        %v2068 = vpack.c.b16 %v1708, %v1700
        %v2069 = vpack.c.b16 %v1709, %v1701
        %v2070 = vpack.c.b16 %v1710, %v1702
        %v2071 = vpack.c.b16 %v1711, %v1703
        %v2072 = vpack.c.b16 %v1712, %v1704
        %v2073 = vpack.c.b16 %v1713, %v1705
        %v2074 = vpack.c.b16 %v1714, %v1706
        %v2075 = vpack.c.b16 %v1723, %v1715
        %v2076 = vpack.c.b16 %v1724, %v1716
        %v2077 = vpack.c.b16 %v1725, %v1717
        %v2078 = vpack.c.b16 %v1726, %v1718
        %v2079 = vpack.c.b16 %v1727, %v1719
        %v2080 = vpack.c.b16 %v1728, %v1720
        %v2081 = vpack.c.b16 %v1729, %v1721
        %v2082 = vpack.c.b16 %v1730, %v1722
        %v2083 = vpack.c.b16 %v1739, %v1731
        %v2084 = vpack.c.b16 %v1740, %v1732
        %v2085 = vpack.c.b16 %v1741, %v1733
        %v2086 = vpack.c.b16 %v1742, %v1734
        %v2087 = vpack.c.b16 %v1743, %v1735
        %v2088 = vpack.c.b16 %v1744, %v1736
        %v2089 = vpack.c.b16 %v1745, %v1737
        %v2090 = vpack.c.b16 %v1746, %v1738
        %v2091 = vpack.c.b16 %v1755, %v1747
        %v2092 = vpack.c.b16 %v1756, %v1748
        %v2093 = vpack.c.b16 %v1757, %v1749
        %v2094 = vpack.c.b16 %v1758, %v1750
        %v2095 = vpack.c.b16 %v1759, %v1751
        %v2096 = vpack.c.b16 %v1760, %v1752
        %v2097 = vpack.c.b16 %v1761, %v1753
        %v2098 = vpack.c.b16 %v1762, %v1754
        %v2099 = vpack.c.b16 %v1771, %v1763
        %v2100 = vpack.c.b16 %v1772, %v1764
        %v2101 = vpack.c.b16 %v1773, %v1765
        %v2102 = vpack.c.b16 %v1774, %v1766
        %v2103 = vpack.c.b16 %v1775, %v1767
        %v2104 = vpack.c.b16 %v1776, %v1768
        %v2105 = vpack.c.b16 %v1777, %v1769
        %v2106 = vpack.c.b16 %v1778, %v1770
        %v2107 = vpack.c.b16 %v1787, %v1779
        %v2108 = vpack.c.b16 %v1788, %v1780
        %v2109 = vpack.c.b16 %v1789, %v1781
        %v2110 = vpack.c.b16 %v1790, %v1782
        %v2111 = vpack.c.b16 %v1791, %v1783
        %v2112 = vpack.c.b16 %v1792, %v1784
        %v2113 = vpack.c.b16 %v1793, %v1785
        %v2114 = vpack.c.b16 %v1794, %v1786
        %v2115 = vpack.c.b16 %v1803, %v1795
        %v2116 = vpack.c.b16 %v1804, %v1796
        %v2117 = vpack.c.b16 %v1805, %v1797
        %v2118 = vpack.c.b16 %v1806, %v1798
        %v2119 = vpack.c.b16 %v1807, %v1799
        %v2120 = vpack.c.b16 %v1808, %v1800
        %v2121 = vpack.c.b16 %v1809, %v1801
        %v2122 = vpack.c.b16 %v1810, %v1802
        %v2123 = vpack.c.b16 %v1819, %v1811
        %v2124 = vpack.c.b16 %v1820, %v1812
        %v2125 = vpack.c.b16 %v1821, %v1813
        %v2126 = vpack.c.b16 %v1822, %v1814
        %v2127 = vpack.c.b16 %v1823, %v1815
        %v2128 = vpack.c.b16 %v1824, %v1816
        %v2129 = vpack.c.b16 %v1825, %v1817
        %v2130 = vpack.c.b16 %v1826, %v1818
        %v2131 = vpack.c.b16 %v1835, %v1827
        %v2132 = vpack.c.b16 %v1836, %v1828
        %v2133 = vpack.c.b16 %v1837, %v1829
        %v2134 = vpack.c.b16 %v1838, %v1830
        %v2135 = vpack.c.b16 %v1839, %v1831
        %v2136 = vpack.c.b16 %v1840, %v1832
        %v2137 = vpack.c.b16 %v1841, %v1833
        %v2138 = vpack.c.b16 %v1842, %v1834
        %v2139 = vpack.c.b16 %v1851, %v1843
        %v2140 = vpack.c.b16 %v1852, %v1844
        %v2141 = vpack.c.b16 %v1853, %v1845
        %v2142 = vpack.c.b16 %v1854, %v1846
        %v2143 = vpack.c.b16 %v1855, %v1847
        %v2144 = vpack.c.b16 %v1856, %v1848
        %v2145 = vpack.c.b16 %v1857, %v1849
        %v2146 = vpack.c.b16 %v1858, %v1850
        %v2147 = vpack.c.b16 %v1867, %v1859
        %v2148 = vpack.c.b16 %v1868, %v1860
        %v2149 = vpack.c.b16 %v1869, %v1861
        %v2150 = vpack.c.b16 %v1870, %v1862
        %v2151 = vpack.c.b16 %v1871, %v1863
        %v2152 = vpack.c.b16 %v1872, %v1864
        %v2153 = vpack.c.b16 %v1873, %v1865
        %v2154 = vpack.c.b16 %v1874, %v1866
        %v2155 = vpack.c.b16 %v1883, %v1875
        %v2156 = vpack.c.b16 %v1884, %v1876
        %v2157 = vpack.c.b16 %v1885, %v1877
        %v2158 = vpack.c.b16 %v1886, %v1878
        %v2159 = vpack.c.b16 %v1887, %v1879
        %v2160 = vpack.c.b16 %v1888, %v1880
        %v2161 = vpack.c.b16 %v1889, %v1881
        %v2162 = vpack.c.b16 %v1890, %v1882
        %v2163 = vpack.c.b16 %v1899, %v1891
        %v2164 = vpack.c.b16 %v1900, %v1892
        %v2165 = vpack.c.b16 %v1901, %v1893
        %v2166 = vpack.c.b16 %v1902, %v1894
        %v2167 = vpack.c.b16 %v1903, %v1895
        %v2168 = vpack.c.b16 %v1904, %v1896
        %v2169 = vpack.c.b16 %v1905, %v1897
        %v2170 = vpack.c.b16 %v1906, %v1898
        %v2171 = vpack.c.b16 %v1915, %v1907
        %v2172 = vpack.c.b16 %v1916, %v1908
        %v2173 = vpack.c.b16 %v1917, %v1909
        %v2174 = vpack.c.b16 %v1918, %v1910
        %v2175 = vpack.c.b16 %v1919, %v1911
        %v2176 = vpack.c.b16 %v1920, %v1912
        %v2177 = vpack.c.b16 %v1921, %v1913
        %v2178 = vpack.c.b16 %v1922, %v1914
        %2435 = vmatprep.subr.bf16.mxu0 %v1924
        %2436 = vmatpush1.bf16.msra.mxu0 %v1923
        %2437 = vmatprep.subr.bf16.mxu0 %v1932
        %2438 = vmatpush1.bf16.msra.mxu0 %v1931
        %2439 = vmatprep.subr.bf16.mxu0 %v1940
        %2440 = vmatpush1.bf16.msra.mxu0 %v1939
        %2441 = vmatprep.subr.bf16.mxu0 %v1948
        %2442 = vmatpush1.bf16.msra.mxu0 %v1947
        %2443 = vmatprep.subr.bf16.mxu0 %v1956
        %2444 = vmatpush1.bf16.msra.mxu0 %v1955
        %2445 = vmatprep.subr.bf16.mxu0 %v1964
        %2446 = vmatpush1.bf16.msra.mxu0 %v1963
        %2447 = vmatprep.subr.bf16.mxu0 %v1972
        %2448 = vmatpush1.bf16.msra.mxu0 %v1971
        %2449 = vmatprep.subr.bf16.mxu0 %v1980
        %2450 = vmatpush1.bf16.msra.mxu0 %v1979
        %2451 = vmatprep.subr.bf16.mxu0 %v1988
        %2452 = vmatpush1.bf16.msra.mxu0 %v1987
        %2453 = vmatprep.subr.bf16.mxu0 %v1996
        %2454 = vmatpush1.bf16.msra.mxu0 %v1995
        %2455 = vmatprep.subr.bf16.mxu0 %v2004
        %2456 = vmatpush1.bf16.msra.mxu0 %v2003
        %2457 = vmatprep.subr.bf16.mxu0 %v2012
        %2458 = vmatpush1.bf16.msra.mxu0 %v2011
        %2459 = vmatprep.subr.bf16.mxu0 %v2020
        %2460 = vmatpush1.bf16.msra.mxu0 %v2019
        %2461 = vmatprep.subr.bf16.mxu0 %v2028
        %2462 = vmatpush1.bf16.msra.mxu0 %v2027
        %2463 = vmatprep.subr.bf16.mxu0 %v2036
        %2464 = vmatpush1.bf16.msra.mxu0 %v2035
        %2465 = vmatprep.subr.bf16.mxu0 %v2044
        %2466 = vmatpush1.bf16.msra.mxu0 %v2043
        %2467 = vmatprep.mubr.bf16.mxu0 %v1148
        %2468 = vmatmul.mubr.bf16.gmra.mrb[0].mxu0 %v1147
        %v2469 = vpop.f32.mrb[0].mxu0
        %v2470 = vadd.f32 0.0, %v2469
        %v2471 = vpop.f32.mrb[0].mxu0
        %v2472 = vadd.f32 0.0, %v2471
        %v2473 = vpop.f32.mrb[0].mxu0
        %v2474 = vadd.f32 0.0, %v2473
        %v2475 = vpop.f32.mrb[0].mxu0
        %v2476 = vadd.f32 0.0, %v2475
        %2477 = vdwg.mxu0
        %2478 = vmatprep.subr.bf16.mxu0 %v2052
        %2479 = vmatpush1.bf16.msra.mxu0 %v2051
        %2480 = vmatprep.subr.bf16.mxu0 %v2060
        %2481 = vmatpush1.bf16.msra.mxu0 %v2059
        %2482 = vmatprep.subr.bf16.mxu0 %v2068
        %2483 = vmatpush1.bf16.msra.mxu0 %v2067
        %2484 = vmatprep.subr.bf16.mxu0 %v2076
        %2485 = vmatpush1.bf16.msra.mxu0 %v2075
        %2486 = vmatprep.subr.bf16.mxu0 %v2084
        %2487 = vmatpush1.bf16.msra.mxu0 %v2083
        %2488 = vmatprep.subr.bf16.mxu0 %v2092
        %2489 = vmatpush1.bf16.msra.mxu0 %v2091
        %2490 = vmatprep.subr.bf16.mxu0 %v2100
        %2491 = vmatpush1.bf16.msra.mxu0 %v2099
        %2492 = vmatprep.subr.bf16.mxu0 %v2108
        %2493 = vmatpush1.bf16.msra.mxu0 %v2107
        %2494 = vmatprep.subr.bf16.mxu0 %v2116
        %2495 = vmatpush1.bf16.msra.mxu0 %v2115
        %2496 = vmatprep.subr.bf16.mxu0 %v2124
        %2497 = vmatpush1.bf16.msra.mxu0 %v2123
        %2498 = vmatprep.subr.bf16.mxu0 %v2132
        %2499 = vmatpush1.bf16.msra.mxu0 %v2131
        %2500 = vmatprep.subr.bf16.mxu0 %v2140
        %2501 = vmatpush1.bf16.msra.mxu0 %v2139
        %2502 = vmatprep.subr.bf16.mxu0 %v2148
        %2503 = vmatpush1.bf16.msra.mxu0 %v2147
        %2504 = vmatprep.subr.bf16.mxu0 %v2156
        %2505 = vmatpush1.bf16.msra.mxu0 %v2155
        %2506 = vmatprep.subr.bf16.mxu0 %v2164
        %2507 = vmatpush1.bf16.msra.mxu0 %v2163
        %2508 = vmatprep.subr.bf16.mxu0 %v2172
        %2509 = vmatpush1.bf16.msra.mxu0 %v2171
        %2510 = vmatprep.mubr.bf16.mxu0 %v1150
        %2511 = vmatmul.mubr.bf16.gmra.mrb[0].mxu0 %v1149
        %v2512 = vpop.f32.mrb[0].mxu0
        %v2513 = vadd.f32 %v2470, %v2512
        %v2514 = vpop.f32.mrb[0].mxu0
        %v2515 = vadd.f32 %v2472, %v2514
        %v2516 = vpop.f32.mrb[0].mxu0
        %v2517 = vadd.f32 %v2474, %v2516
        %v2518 = vpop.f32.mrb[0].mxu0
        %v2519 = vadd.f32 %v2476, %v2518
        %2520 = vdwg.mxu0
        %2521 = vmatprep.subr.bf16.mxu0 %v1926
        %2522 = vmatpush1.bf16.msra.mxu0 %v1925
        %2523 = vmatprep.subr.bf16.mxu0 %v1934
        %2524 = vmatpush1.bf16.msra.mxu0 %v1933
        %2525 = vmatprep.subr.bf16.mxu0 %v1942
        %2526 = vmatpush1.bf16.msra.mxu0 %v1941
        %2527 = vmatprep.subr.bf16.mxu0 %v1950
        %2528 = vmatpush1.bf16.msra.mxu0 %v1949
        %2529 = vmatprep.subr.bf16.mxu0 %v1958
        %2530 = vmatpush1.bf16.msra.mxu0 %v1957
        %2531 = vmatprep.subr.bf16.mxu0 %v1966
        %2532 = vmatpush1.bf16.msra.mxu0 %v1965
        %2533 = vmatprep.subr.bf16.mxu0 %v1974
        %2534 = vmatpush1.bf16.msra.mxu0 %v1973
        %2535 = vmatprep.subr.bf16.mxu0 %v1982
        %2536 = vmatpush1.bf16.msra.mxu0 %v1981
        %2537 = vmatprep.subr.bf16.mxu0 %v1990
        %2538 = vmatpush1.bf16.msra.mxu0 %v1989
        %2539 = vmatprep.subr.bf16.mxu0 %v1998
        %2540 = vmatpush1.bf16.msra.mxu0 %v1997
        %2541 = vmatprep.subr.bf16.mxu0 %v2006
        %2542 = vmatpush1.bf16.msra.mxu0 %v2005
        %2543 = vmatprep.subr.bf16.mxu0 %v2014
        %2544 = vmatpush1.bf16.msra.mxu0 %v2013
        %2545 = vmatprep.subr.bf16.mxu0 %v2022
        %2546 = vmatpush1.bf16.msra.mxu0 %v2021
        %2547 = vmatprep.subr.bf16.mxu0 %v2030
        %2548 = vmatpush1.bf16.msra.mxu0 %v2029
        %2549 = vmatprep.subr.bf16.mxu0 %v2038
        %2550 = vmatpush1.bf16.msra.mxu0 %v2037
        %2551 = vmatprep.subr.bf16.mxu0 %v2046
        %2552 = vmatpush1.bf16.msra.mxu0 %v2045
        %2553 = vmatprep.mubr.bf16.mxu0 %v1148
        %2554 = vmatmul.mubr.bf16.gmra.mrb[0].mxu0 %v1147
        %v2555 = vpop.f32.mrb[0].mxu0
        %v2556 = vadd.f32 0.0, %v2555
        %v2557 = vpop.f32.mrb[0].mxu0
        %v2558 = vadd.f32 0.0, %v2557
        %v2559 = vpop.f32.mrb[0].mxu0
        %v2560 = vadd.f32 0.0, %v2559
        %v2561 = vpop.f32.mrb[0].mxu0
        %v2562 = vadd.f32 0.0, %v2561
        %2563 = vdwg.mxu0
        %2564 = vmatprep.subr.bf16.mxu0 %v2054
        %2565 = vmatpush1.bf16.msra.mxu0 %v2053
        %2566 = vmatprep.subr.bf16.mxu0 %v2062
        %2567 = vmatpush1.bf16.msra.mxu0 %v2061
        %2568 = vmatprep.subr.bf16.mxu0 %v2070
        %2569 = vmatpush1.bf16.msra.mxu0 %v2069
        %2570 = vmatprep.subr.bf16.mxu0 %v2078
        %2571 = vmatpush1.bf16.msra.mxu0 %v2077
        %2572 = vmatprep.subr.bf16.mxu0 %v2086
        %2573 = vmatpush1.bf16.msra.mxu0 %v2085
        %2574 = vmatprep.subr.bf16.mxu0 %v2094
        %2575 = vmatpush1.bf16.msra.mxu0 %v2093
        %2576 = vmatprep.subr.bf16.mxu0 %v2102
        %2577 = vmatpush1.bf16.msra.mxu0 %v2101
        %2578 = vmatprep.subr.bf16.mxu0 %v2110
        %2579 = vmatpush1.bf16.msra.mxu0 %v2109
        %2580 = vmatprep.subr.bf16.mxu0 %v2118
        %2581 = vmatpush1.bf16.msra.mxu0 %v2117
        %2582 = vmatprep.subr.bf16.mxu0 %v2126
        %2583 = vmatpush1.bf16.msra.mxu0 %v2125
        %2584 = vmatprep.subr.bf16.mxu0 %v2134
        %2585 = vmatpush1.bf16.msra.mxu0 %v2133
        %2586 = vmatprep.subr.bf16.mxu0 %v2142
        %2587 = vmatpush1.bf16.msra.mxu0 %v2141
        %2588 = vmatprep.subr.bf16.mxu0 %v2150
        %2589 = vmatpush1.bf16.msra.mxu0 %v2149
        %2590 = vmatprep.subr.bf16.mxu0 %v2158
        %2591 = vmatpush1.bf16.msra.mxu0 %v2157
        %2592 = vmatprep.subr.bf16.mxu0 %v2166
        %2593 = vmatpush1.bf16.msra.mxu0 %v2165
        %2594 = vmatprep.subr.bf16.mxu0 %v2174
        %2595 = vmatpush1.bf16.msra.mxu0 %v2173
        %2596 = vmatprep.mubr.bf16.mxu0 %v1150
        %2597 = vmatmul.mubr.bf16.gmra.mrb[0].mxu0 %v1149
        %v2598 = vpop.f32.mrb[0].mxu0
        %v2599 = vadd.f32 %v2556, %v2598
        %v2600 = vpop.f32.mrb[0].mxu0
        %v2601 = vadd.f32 %v2558, %v2600
        %v2602 = vpop.f32.mrb[0].mxu0
        %v2603 = vadd.f32 %v2560, %v2602
        %v2604 = vpop.f32.mrb[0].mxu0
        %v2605 = vadd.f32 %v2562, %v2604
        %2606 = vdwg.mxu0
        %2607 = vmatprep.subr.bf16.mxu0 %v1928
        %2608 = vmatpush1.bf16.msra.mxu0 %v1927
        %2609 = vmatprep.subr.bf16.mxu0 %v1936
        %2610 = vmatpush1.bf16.msra.mxu0 %v1935
        %2611 = vmatprep.subr.bf16.mxu0 %v1944
        %2612 = vmatpush1.bf16.msra.mxu0 %v1943
        %2613 = vmatprep.subr.bf16.mxu0 %v1952
        %2614 = vmatpush1.bf16.msra.mxu0 %v1951
        %2615 = vmatprep.subr.bf16.mxu0 %v1960
        %2616 = vmatpush1.bf16.msra.mxu0 %v1959
        %2617 = vmatprep.subr.bf16.mxu0 %v1968
        %2618 = vmatpush1.bf16.msra.mxu0 %v1967
        %2619 = vmatprep.subr.bf16.mxu0 %v1976
        %2620 = vmatpush1.bf16.msra.mxu0 %v1975
        %2621 = vmatprep.subr.bf16.mxu0 %v1984
        %2622 = vmatpush1.bf16.msra.mxu0 %v1983
        %2623 = vmatprep.subr.bf16.mxu0 %v1992
        %2624 = vmatpush1.bf16.msra.mxu0 %v1991
        %2625 = vmatprep.subr.bf16.mxu0 %v2000
        %2626 = vmatpush1.bf16.msra.mxu0 %v1999
        %2627 = vmatprep.subr.bf16.mxu0 %v2008
        %2628 = vmatpush1.bf16.msra.mxu0 %v2007
        %2629 = vmatprep.subr.bf16.mxu0 %v2016
        %2630 = vmatpush1.bf16.msra.mxu0 %v2015
        %2631 = vmatprep.subr.bf16.mxu0 %v2024
        %2632 = vmatpush1.bf16.msra.mxu0 %v2023
        %2633 = vmatprep.subr.bf16.mxu0 %v2032
        %2634 = vmatpush1.bf16.msra.mxu0 %v2031
        %2635 = vmatprep.subr.bf16.mxu0 %v2040
        %2636 = vmatpush1.bf16.msra.mxu0 %v2039
        %2637 = vmatprep.subr.bf16.mxu0 %v2048
        %2638 = vmatpush1.bf16.msra.mxu0 %v2047
        %2639 = vmatprep.mubr.bf16.mxu0 %v1148
        %2640 = vmatmul.mubr.bf16.gmra.mrb[0].mxu0 %v1147
        %v2641 = vpop.f32.mrb[0].mxu0
        %v2642 = vadd.f32 0.0, %v2641
        %v2643 = vpop.f32.mrb[0].mxu0
        %v2644 = vadd.f32 0.0, %v2643
        %v2645 = vpop.f32.mrb[0].mxu0
        %v2646 = vadd.f32 0.0, %v2645
        %v2647 = vpop.f32.mrb[0].mxu0
        %v2648 = vadd.f32 0.0, %v2647
        %2649 = vdwg.mxu0
        %2650 = vmatprep.subr.bf16.mxu0 %v2056
        %2651 = vmatpush1.bf16.msra.mxu0 %v2055
        %2652 = vmatprep.subr.bf16.mxu0 %v2064
        %2653 = vmatpush1.bf16.msra.mxu0 %v2063
        %2654 = vmatprep.subr.bf16.mxu0 %v2072
        %2655 = vmatpush1.bf16.msra.mxu0 %v2071
        %2656 = vmatprep.subr.bf16.mxu0 %v2080
        %2657 = vmatpush1.bf16.msra.mxu0 %v2079
        %2658 = vmatprep.subr.bf16.mxu0 %v2088
        %2659 = vmatpush1.bf16.msra.mxu0 %v2087
        %2660 = vmatprep.subr.bf16.mxu0 %v2096
        %2661 = vmatpush1.bf16.msra.mxu0 %v2095
        %2662 = vmatprep.subr.bf16.mxu0 %v2104
        %2663 = vmatpush1.bf16.msra.mxu0 %v2103
        %2664 = vmatprep.subr.bf16.mxu0 %v2112
        %2665 = vmatpush1.bf16.msra.mxu0 %v2111
        %2666 = vmatprep.subr.bf16.mxu0 %v2120
        %2667 = vmatpush1.bf16.msra.mxu0 %v2119
        %2668 = vmatprep.subr.bf16.mxu0 %v2128
        %2669 = vmatpush1.bf16.msra.mxu0 %v2127
        %2670 = vmatprep.subr.bf16.mxu0 %v2136
        %2671 = vmatpush1.bf16.msra.mxu0 %v2135
        %2672 = vmatprep.subr.bf16.mxu0 %v2144
        %2673 = vmatpush1.bf16.msra.mxu0 %v2143
        %2674 = vmatprep.subr.bf16.mxu0 %v2152
        %2675 = vmatpush1.bf16.msra.mxu0 %v2151
        %2676 = vmatprep.subr.bf16.mxu0 %v2160
        %2677 = vmatpush1.bf16.msra.mxu0 %v2159
        %2678 = vmatprep.subr.bf16.mxu0 %v2168
        %2679 = vmatpush1.bf16.msra.mxu0 %v2167
        %2680 = vmatprep.subr.bf16.mxu0 %v2176
        %2681 = vmatpush1.bf16.msra.mxu0 %v2175
        %2682 = vmatprep.mubr.bf16.mxu0 %v1150
        %2683 = vmatmul.mubr.bf16.gmra.mrb[0].mxu0 %v1149
        %v2684 = vpop.f32.mrb[0].mxu0
        %v2685 = vadd.f32 %v2642, %v2684
        %v2686 = vpop.f32.mrb[0].mxu0
        %v2687 = vadd.f32 %v2644, %v2686
        %v2688 = vpop.f32.mrb[0].mxu0
        %v2689 = vadd.f32 %v2646, %v2688
        %v2690 = vpop.f32.mrb[0].mxu0
        %v2691 = vadd.f32 %v2648, %v2690
        %2692 = vdwg.mxu0
        %2693 = vmatprep.subr.bf16.mxu0 %v1930
        %2694 = vmatpush1.bf16.msra.mxu0 %v1929
        %2695 = vmatprep.subr.bf16.mxu0 %v1938
        %2696 = vmatpush1.bf16.msra.mxu0 %v1937
        %2697 = vmatprep.subr.bf16.mxu0 %v1946
        %2698 = vmatpush1.bf16.msra.mxu0 %v1945
        %2699 = vmatprep.subr.bf16.mxu0 %v1954
        %2700 = vmatpush1.bf16.msra.mxu0 %v1953
        %2701 = vmatprep.subr.bf16.mxu0 %v1962
        %2702 = vmatpush1.bf16.msra.mxu0 %v1961
        %2703 = vmatprep.subr.bf16.mxu0 %v1970
        %2704 = vmatpush1.bf16.msra.mxu0 %v1969
        %2705 = vmatprep.subr.bf16.mxu0 %v1978
        %2706 = vmatpush1.bf16.msra.mxu0 %v1977
        %2707 = vmatprep.subr.bf16.mxu0 %v1986
        %2708 = vmatpush1.bf16.msra.mxu0 %v1985
        %2709 = vmatprep.subr.bf16.mxu0 %v1994
        %2710 = vmatpush1.bf16.msra.mxu0 %v1993
        %2711 = vmatprep.subr.bf16.mxu0 %v2002
        %2712 = vmatpush1.bf16.msra.mxu0 %v2001
        %2713 = vmatprep.subr.bf16.mxu0 %v2010
        %2714 = vmatpush1.bf16.msra.mxu0 %v2009
        %2715 = vmatprep.subr.bf16.mxu0 %v2018
        %2716 = vmatpush1.bf16.msra.mxu0 %v2017
        %2717 = vmatprep.subr.bf16.mxu0 %v2026
        %2718 = vmatpush1.bf16.msra.mxu0 %v2025
        %2719 = vmatprep.subr.bf16.mxu0 %v2034
        %2720 = vmatpush1.bf16.msra.mxu0 %v2033
        %2721 = vmatprep.subr.bf16.mxu0 %v2042
        %2722 = vmatpush1.bf16.msra.mxu0 %v2041
        %2723 = vmatprep.subr.bf16.mxu0 %v2050
        %2724 = vmatpush1.bf16.msra.mxu0 %v2049
        %2725 = vmatprep.mubr.bf16.mxu0 %v1148
        %2726 = vmatmul.mubr.bf16.gmra.mrb[0].mxu0 %v1147
        %v2727 = vpop.f32.mrb[0].mxu0
        %v2728 = vadd.f32 0.0, %v2727
        %v2729 = vpop.f32.mrb[0].mxu0
        %v2730 = vadd.f32 0.0, %v2729
        %v2731 = vpop.f32.mrb[0].mxu0
        %v2732 = vadd.f32 0.0, %v2731
        %v2733 = vpop.f32.mrb[0].mxu0
        %v2734 = vadd.f32 0.0, %v2733
        %2735 = vdwg.mxu0
        %2736 = vmatprep.subr.bf16.mxu0 %v2058
        %2737 = vmatpush1.bf16.msra.mxu0 %v2057
        %2738 = vmatprep.subr.bf16.mxu0 %v2066
        %2739 = vmatpush1.bf16.msra.mxu0 %v2065
        %2740 = vmatprep.subr.bf16.mxu0 %v2074
        %2741 = vmatpush1.bf16.msra.mxu0 %v2073
        %2742 = vmatprep.subr.bf16.mxu0 %v2082
        %2743 = vmatpush1.bf16.msra.mxu0 %v2081
        %2744 = vmatprep.subr.bf16.mxu0 %v2090
        %2745 = vmatpush1.bf16.msra.mxu0 %v2089
        %2746 = vmatprep.subr.bf16.mxu0 %v2098
        %2747 = vmatpush1.bf16.msra.mxu0 %v2097
        %2748 = vmatprep.subr.bf16.mxu0 %v2106
        %2749 = vmatpush1.bf16.msra.mxu0 %v2105
        %2750 = vmatprep.subr.bf16.mxu0 %v2114
        %2751 = vmatpush1.bf16.msra.mxu0 %v2113
        %2752 = vmatprep.subr.bf16.mxu0 %v2122
        %2753 = vmatpush1.bf16.msra.mxu0 %v2121
        %2754 = vmatprep.subr.bf16.mxu0 %v2130
        %2755 = vmatpush1.bf16.msra.mxu0 %v2129
        %2756 = vmatprep.subr.bf16.mxu0 %v2138
        %2757 = vmatpush1.bf16.msra.mxu0 %v2137
        %2758 = vmatprep.subr.bf16.mxu0 %v2146
        %2759 = vmatpush1.bf16.msra.mxu0 %v2145
        %2760 = vmatprep.subr.bf16.mxu0 %v2154
        %2761 = vmatpush1.bf16.msra.mxu0 %v2153
        %2762 = vmatprep.subr.bf16.mxu0 %v2162
        %2763 = vmatpush1.bf16.msra.mxu0 %v2161
        %2764 = vmatprep.subr.bf16.mxu0 %v2170
        %2765 = vmatpush1.bf16.msra.mxu0 %v2169
        %2766 = vmatprep.subr.bf16.mxu0 %v2178
        %2767 = vmatpush1.bf16.msra.mxu0 %v2177
        %2768 = vmatprep.mubr.bf16.mxu0 %v1150
        %2769 = vmatmul.mubr.bf16.gmra.mrb[0].mxu0 %v1149
        %v2770 = vpop.f32.mrb[0].mxu0
        %v2771 = vadd.f32 %v2728, %v2770
        %v2772 = vpop.f32.mrb[0].mxu0
        %v2773 = vadd.f32 %v2730, %v2772
        %v2774 = vpop.f32.mrb[0].mxu0
        %v2775 = vadd.f32 %v2732, %v2774
        %v2776 = vpop.f32.mrb[0].mxu0
        %v2777 = vadd.f32 %v2734, %v2776
        %2778 = vdwg.mxu0
        %v2779 = vadd.f32 %v859, %v2513
        %v2780 = vadd.f32 %v860, %v2515
        %v2781 = vadd.f32 %v861, %v2599
        %v2782 = vadd.f32 %v862, %v2601
        %v2783 = vadd.f32 %v863, %v2685
        %v2784 = vadd.f32 %v864, %v2687
        %v2785 = vadd.f32 %v865, %v2771
        %v2786 = vadd.f32 %v866, %v2773
        %v2787 = vadd.f32 %v867, %v2517
        %v2788 = vadd.f32 %v868, %v2519
        %v2789 = vadd.f32 %v869, %v2603
        %v2790 = vadd.f32 %v870, %v2605
        %v2791 = vadd.f32 %v871, %v2689
        %v2792 = vadd.f32 %v872, %v2691
        %v2793 = vadd.f32 %v873, %v2775
        %v2794 = vadd.f32 %v874, %v2777
        %2795 = vst [vmem:[%s785] sm:$0xff] %v2779
        %2796 = vst [vmem:[%s785 + $0x8] sm:$0xff] %v2780
        %2797 = vst [vmem:[%s785 + $0x10] sm:$0xff] %v2781
        %2798 = vst [vmem:[%s785 + $0x18] sm:$0xff] %v2782
        %2799 = vst [vmem:[%s785 + $0x20] sm:$0xff] %v2783
        %2800 = vst [vmem:[%s785 + $0x28] sm:$0xff] %v2784
        %2801 = vst [vmem:[%s785 + $0x30] sm:$0xff] %v2785
        %2802 = vst [vmem:[%s785 + $0x38] sm:$0xff] %v2786
        %2803 = vst [vmem:[%s785 + $0x40] sm:$0xff] %v2787
        %2804 = vst [vmem:[%s785 + $0x48] sm:$0xff] %v2788
        %2805 = vst [vmem:[%s785 + $0x50] sm:$0xff] %v2789
        %2806 = vst [vmem:[%s785 + $0x58] sm:$0xff] %v2790
        %2807 = vst [vmem:[%s785 + $0x60] sm:$0xff] %v2791
        %2808 = vst [vmem:[%s785 + $0x68] sm:$0xff] %v2792
        %2809 = vst [vmem:[%s785 + $0x70] sm:$0xff] %v2793
        %2810 = vst [vmem:[%s785 + $0x78] sm:$0xff] %v2794
        %p2811 = scmp.eq.s32.totalorder %s21, 3
        // Predicated region
        $region83: #{cnn_forward.10} parent=69 // pred_check
          %p2812 = pneg %p2811
        $region84: #{cnn_forward.10} parent=69 // pred_check_branch
          %2814 = sbr.rel (%p2812) target = $region86
        $region85: #{cnn_forward.10} parent=69 // pred_region
          %v2815 = vld [vmem:[%s785] sm:$0xff]
          %v2816 = vld [vmem:[%s785 + $0x8] sm:$0xff]
          %v2817 = vld [vmem:[%s785 + $0x10] sm:$0xff]
          %v2818 = vld [vmem:[%s785 + $0x18] sm:$0xff]
          %v2819 = vld [vmem:[%s785 + $0x20] sm:$0xff]
          %v2820 = vld [vmem:[%s785 + $0x28] sm:$0xff]
          %v2821 = vld [vmem:[%s785 + $0x30] sm:$0xff]
          %v2822 = vld [vmem:[%s785 + $0x38] sm:$0xff]
          %v2823 = vld [vmem:[%s785 + $0x40] sm:$0xff]
          %v2824 = vld [vmem:[%s785 + $0x48] sm:$0xff]
          %v2825 = vld [vmem:[%s785 + $0x50] sm:$0xff]
          %v2826 = vld [vmem:[%s785 + $0x58] sm:$0xff]
          %v2827 = vld [vmem:[%s785 + $0x60] sm:$0xff]
          %v2828 = vld [vmem:[%s785 + $0x68] sm:$0xff]
          %v2829 = vld [vmem:[%s785 + $0x70] sm:$0xff]
          %v2830 = vld [vmem:[%s785 + $0x78] sm:$0xff]
          %v2831 = vmax.f32 %v2815, 0.0
          %v2832 = vmax.f32 %v2816, 0.0
          %v2833 = vmax.f32 %v2817, 0.0
          %v2834 = vmax.f32 %v2818, 0.0
          %v2835 = vmax.f32 %v2819, 0.0
          %v2836 = vmax.f32 %v2820, 0.0
          %v2837 = vmax.f32 %v2821, 0.0
          %v2838 = vmax.f32 %v2822, 0.0
          %v2839 = vmax.f32 %v2823, 0.0
          %v2840 = vmax.f32 %v2824, 0.0
          %v2841 = vmax.f32 %v2825, 0.0
          %v2842 = vmax.f32 %v2826, 0.0
          %v2843 = vmax.f32 %v2827, 0.0
          %v2844 = vmax.f32 %v2828, 0.0
          %v2845 = vmax.f32 %v2829, 0.0
          %v2846 = vmax.f32 %v2830, 0.0
          %2847 = vst [vmem:[%s785] sm:$0xff] %v2831
          %2848 = vst [vmem:[%s785 + $0x8] sm:$0xff] %v2832
          %2849 = vst [vmem:[%s785 + $0x10] sm:$0xff] %v2833
          %2850 = vst [vmem:[%s785 + $0x18] sm:$0xff] %v2834
          %2851 = vst [vmem:[%s785 + $0x20] sm:$0xff] %v2835
          %2852 = vst [vmem:[%s785 + $0x28] sm:$0xff] %v2836
          %2853 = vst [vmem:[%s785 + $0x30] sm:$0xff] %v2837
          %2854 = vst [vmem:[%s785 + $0x38] sm:$0xff] %v2838
          %2855 = vst [vmem:[%s785 + $0x40] sm:$0xff] %v2839
          %2856 = vst [vmem:[%s785 + $0x48] sm:$0xff] %v2840
          %2857 = vst [vmem:[%s785 + $0x50] sm:$0xff] %v2841
          %2858 = vst [vmem:[%s785 + $0x58] sm:$0xff] %v2842
          %2859 = vst [vmem:[%s785 + $0x60] sm:$0xff] %v2843
          %2860 = vst [vmem:[%s785 + $0x68] sm:$0xff] %v2844
          %2861 = vst [vmem:[%s785 + $0x70] sm:$0xff] %v2845
          %2862 = vst [vmem:[%s785 + $0x78] sm:$0xff] %v2846
        $region86: #{cnn_forward.10} parent=69 // pred_fallthru
          _
        %s2863 = sand.u32 %s125, 1
        %s2864 = sand.u32 %s125, 1
        %s2865 = smul.addr %s2864, 128
        %s2866 = scalar_lea.vmem [#allocation4], %s2865
        // Predicated region
        $region87: #{cnn_forward.10} parent=69 // pred_check
          %p2867 = pneg %p135
        $region88: #{cnn_forward.10} parent=69 // pred_check_branch
          %2869 = sbr.rel (%p2867) target = $region90
        $region89: #{cnn_forward.10} parent=69 // pred_region
          %s2870 = smul.u32 2, %s19
          %s2871 = smul.u32 8, %s20
          %s2872 = smul.addr %s2870, 16
          %s2873 = sadd.s32 %s2871, %s2872
          %s2874 = smul.addr %s2873, 8
          %s2875 = scalar_lea.vmem %s3, %s2874
          // Predicated region
          $region91: #{cnn_forward.10} parent=89 // pred_check
            _
          $region92: #{cnn_forward.10} parent=89 // pred_check_branch
            %2877 = sbr.rel (0) target = $region94
          $region93: #{cnn_forward.10} parent=89 // pred_region
            // Predicated region
            $region95: #{cnn_forward.10} parent=93 // pred_check
              _
            $region96: #{cnn_forward.10} parent=93 // pred_check_branch
              %2879 = sbr.rel (0) target = $region98
            $region97: #{cnn_forward.10} parent=93 // pred_region
              loop: start=0, step=1, limit=1
              $region99: #{cnn_forward.10} parent=97 // loop_pre_header
                _
              $region100: #{cnn_forward.10} parent=97 // loop_header
                %s2881 = sphi 0, %s2885
                %p2882 = scmp.ge.s32.totalorder %s2881, 1
                %s2886 = sphi %s2866, %s2866
                %s2887 = sphi %s2875, %s2875
              $region101: #{cnn_forward.10} parent=97 // loop_header_branch
                %2884 = sbr.rel (%p2882) target = $region105
              $region102: #{cnn_forward.10} parent=97 // loop_body
                %v2888 = vld [vmem:[%s2886] sm:$0xff]
                %2889 = vst [vmem:[%s2887] sm:$0xff] %v2888
                %v2890 = vld [vmem:[%s2886 + $0x8] sm:$0xff]
                %2891 = vst [vmem:[%s2887 + $0x8] sm:$0xff] %v2890
                %v2892 = vld [vmem:[%s2886 + $0x10] sm:$0xff]
                %2893 = vst [vmem:[%s2887 + $0x10] sm:$0xff] %v2892
                %v2894 = vld [vmem:[%s2886 + $0x18] sm:$0xff]
                %2895 = vst [vmem:[%s2887 + $0x18] sm:$0xff] %v2894
                %v2896 = vld [vmem:[%s2886 + $0x20] sm:$0xff]
                %2897 = vst [vmem:[%s2887 + $0x20] sm:$0xff] %v2896
                %v2898 = vld [vmem:[%s2886 + $0x28] sm:$0xff]
                %2899 = vst [vmem:[%s2887 + $0x28] sm:$0xff] %v2898
                %v2900 = vld [vmem:[%s2886 + $0x30] sm:$0xff]
                %2901 = vst [vmem:[%s2887 + $0x30] sm:$0xff] %v2900
                %v2902 = vld [vmem:[%s2886 + $0x38] sm:$0xff]
                %2903 = vst [vmem:[%s2887 + $0x38] sm:$0xff] %v2902
                %v2904 = vld [vmem:[%s2886 + $0x40] sm:$0xff]
                %2905 = vst [vmem:[%s2887 + $0x80] sm:$0xff] %v2904
                %v2906 = vld [vmem:[%s2886 + $0x48] sm:$0xff]
                %2907 = vst [vmem:[%s2887 + $0x88] sm:$0xff] %v2906
                %v2908 = vld [vmem:[%s2886 + $0x50] sm:$0xff]
                %2909 = vst [vmem:[%s2887 + $0x90] sm:$0xff] %v2908
                %v2910 = vld [vmem:[%s2886 + $0x58] sm:$0xff]
                %2911 = vst [vmem:[%s2887 + $0x98] sm:$0xff] %v2910
                %v2912 = vld [vmem:[%s2886 + $0x60] sm:$0xff]
                %2913 = vst [vmem:[%s2887 + $0xa0] sm:$0xff] %v2912
                %v2914 = vld [vmem:[%s2886 + $0x68] sm:$0xff]
                %2915 = vst [vmem:[%s2887 + $0xa8] sm:$0xff] %v2914
                %v2916 = vld [vmem:[%s2886 + $0x70] sm:$0xff]
                %2917 = vst [vmem:[%s2887 + $0xb0] sm:$0xff] %v2916
                %v2918 = vld [vmem:[%s2886 + $0x78] sm:$0xff]
                %2919 = vst [vmem:[%s2887 + $0xb8] sm:$0xff] %v2918
              $region103: #{cnn_forward.10} parent=97 // loop_footer
                %s2885 = sadd.s32 1, %s2881
              $region104: #{cnn_forward.10} parent=97 // loop_footer_branch
                %2880 = sbr.rel target = $region100
              $region105: #{cnn_forward.10} parent=97 // loop_exit
                _
            $region98: #{cnn_forward.10} parent=93 // pred_fallthru
              _
            // Predicated region
            $region106: #{cnn_forward.10} parent=93 // pred_check
              _
            $region107: #{cnn_forward.10} parent=93 // pred_check_branch
              %2921 = sbr.rel target = $region109
            $region108: #{cnn_forward.10} parent=93 // pred_region
              _
            $region109: #{cnn_forward.10} parent=93 // pred_fallthru
              _
          $region94: #{cnn_forward.10} parent=89 // pred_fallthru
            _
          %2922 = vnop
        $region90: #{cnn_forward.10} parent=69 // pred_fallthru
          _
      $region70: #{cnn_forward.10} parent=5 // pred_fallthru
        _
      %p2923 = scmp.le.s32.totalorder 2, %s9
      // Predicated region
      $region110: #{cnn_forward.10} parent=5 // pred_check
        %p2924 = pneg %p2923
      $region111: #{cnn_forward.10} parent=5 // pred_check_branch
        %2926 = sbr.rel (%p2924) target = $region113
      $region112: #{cnn_forward.10} parent=5 // pred_region
        %s2927 = ssub.s32 %s9, 2
        // Predicated region
        $region114: #{cnn_forward.10} parent=112 // pred_check
          %p2928 = pneg %p141
        $region115: #{cnn_forward.10} parent=112 // pred_check_branch
          %2930 = sbr.rel (%p2928) target = $region117
        $region116: #{cnn_forward.10} parent=112 // pred_region
          %s2931 = sand.u32 %s126, 1
          %s2932 = sand.u32 %s126, 1
          %s2933 = smul.addr %s2932, 128
          %s2934 = scalar_lea.vmem [#allocation4], %s2933
        $region117: #{cnn_forward.10} parent=112 // pred_fallthru
          _
      $region113: #{cnn_forward.10} parent=5 // pred_fallthru
        _
    $region6: #{cnn_forward.10} parent=1 // loop_footer
      %s13 = sadd.s32 1, %s9
    $region7: #{cnn_forward.10} parent=1 // loop_footer_branch
      %8 = sbr.rel target = $region3
    $region8: #{cnn_forward.10} parent=1 // loop_exit
      _

// kernel: cnn_forward.9
$region0: #{cnn_forward.9}
  #allocation0 [shape = 'u32[]', space=smem, size = 0x4, offset = 0x4, fixed_abs, tag = 'smem constant byte address 0x4 - core index']
  #allocation1 [shape = 'u32[144,128]{1,0:T(1,128)}', space=vmem, size = 0x12000, scoped, tag = 'internal scratch']
  %s0 = inlined_call_operand.vmem [shape: bf16[16,9216], index: 0, kind: input, shape index: {}]
  %s1 = inlined_call_operand.hbm [shape: bf16[9216,2048], index: 1, kind: input, shape index: {}]
  %s2 = inlined_call_operand.vmem [shape: f32[1,2048], index: 2, kind: input, shape index: {}]
  %s3 = inlined_call_operand.vmem [shape: f32[16,2048], index: 3, kind: output, shape index: {}]
  %s4 = sld [smem:[#allocation0]]
  $region99: #{cnn_forward.9} parent=0
    _
  %s6 = ssub.s32 1, %s4
  %s7 = scalar_select 0, %s6, %s4
  $region1: #{cnn_forward.9} parent=0
    #allocation2 [shape = 'u8[32768]{0}', space=vmem, size = 0x8000, scoped, tag = 'input window, operand 0']
    #allocation3 [shape = 'u8[2097152]{0}', space=vmem, size = 0x200000, scoped, tag = 'input window, operand 1']
    #allocation4 [shape = 's32[2]{0}', space=sflag, size = 0x8, scoped, tag = 'scoped memory for cnn_forward.9']
    #allocation5 [shape = 'u8[131072]{0}', space=vmem, size = 0x20000, scoped, tag = 'output window, operand 0']
    %8 = vsyncpa [#allocation4], 0
    %s9 = scalar_lea.sflag [#allocation4], 1
    %10 = vsyncpa %s9, 0
    loop: start=0, step=1, limit=38
    $region2: #{cnn_forward.9} parent=1 // loop_pre_header
      _
    $region3: #{cnn_forward.9} parent=1 // loop_header
      %s12 = sphi 0, %s16
      %p13 = scmp.ge.s32.totalorder %s12, 38
      %s19 = sphi 0, %s38
      %s20 = sphi 0, %s34
      %s21 = sphi 0, %s30
      %s22 = sphi 0, %s19
      %s23 = sphi 0, %s20
      %s24 = sphi 0, %s21
      %s25 = sphi 0, %s22
      %s26 = sphi 0, %s23
      %s27 = sphi 0, %s24
      %s43 = sphi 0, %s45
      %s46 = sphi 0, %s43
      %s47 = sphi 0, %s46
      %s63 = sphi 0, %s47
      %s71 = sphi 0, %s73
      %s74 = sphi 0, %s71
      %s75 = sphi 0, %s74
      %s91 = sphi 0, %s75
      %s97 = sphi 0, %s99
      %s100 = sphi 0, %s97
      %s101 = sphi 0, %s100
      %s117 = sphi 0, %s101
      %s125 = sphi 0, %s127
      %s128 = sphi 0, %s125
      %s129 = sphi 0, %s128
      %s145 = sphi 0, %s129
    $region4: #{cnn_forward.9} parent=1 // loop_header_branch
      %15 = sbr.rel (%p13) target = $region8
    $region5: #{cnn_forward.9} parent=1 // loop_body
      %s17 = ssub.s32 %s12, 1
      %s18 = ssub.s32 %s12, 2
      %s28 = sadd.s32 1, %s21
      %p29 = scmp.ge.s32.totalorder %s28, 18
      %s30 = scalar_select %p29, 0, %s28
      %s31 = sadd.s32 1, %s20
      %s32 = scalar_select %p29, %s31, %s20
      %p33 = scmp.ge.s32.totalorder %s32, 2
      %s34 = scalar_select %p33, 0, %s32
      %s35 = sadd.s32 1, %s19
      %s36 = scalar_select %p33, %s35, %s19
      %p37 = scmp.ge.s32.totalorder %s36, 1
      %s38 = scalar_select %p37, 0, %s36
      %s39 = ssub.s32 %s19, %s38
      %s40 = ssub.s32 %s21, %s30
      %s41 = sor.u32 %s39, %s40
      %p42 = scmp.eq.s32.totalorder %s41, 0
      %s44 = sadd.s32 %s43, 1
      %s45 = scalar_select %p42, %s43, %s44
      %p48 = pneg %p42
      %p49 = scmp.eq.s32.totalorder %s12, 35
      %p50 = por %p48, %p49
      %p51 = scmp.ne.s32.totalorder %s43, %s46
      %p52 = scmp.eq.s32.totalorder %s12, 0
      %p53 = por %p51, %p52
      %p54 = scmp.ne.s32.totalorder %s43, %s46
      %p55 = scmp.eq.s32.totalorder %s17, 35
      %p56 = por %p54, %p55
      %p57 = scmp.ne.s32.totalorder %s46, %s47
      %p58 = scmp.eq.s32.totalorder %s17, 0
      %p59 = por %p57, %p58
      %p60 = scmp.ne.s32.totalorder %s46, %s47
      %p61 = scmp.eq.s32.totalorder %s18, 35
      %p62 = por %p60, %p61
      %p64 = scmp.ne.s32.totalorder %s47, %s63
      %p65 = scmp.eq.s32.totalorder %s18, 0
      %p66 = por %p64, %p65
      %s67 = ssub.s32 %s21, %s30
      %s68 = ssub.s32 %s20, %s34
      %s69 = sor.u32 %s67, %s68
      %p70 = scmp.eq.s32.totalorder %s69, 0
      %s72 = sadd.s32 %s71, 1
      %s73 = scalar_select %p70, %s71, %s72
      %p76 = pneg %p70
      %p77 = scmp.eq.s32.totalorder %s12, 35
      %p78 = por %p76, %p77
      %p79 = scmp.ne.s32.totalorder %s71, %s74
      %p80 = scmp.eq.s32.totalorder %s12, 0
      %p81 = por %p79, %p80
      %p82 = scmp.ne.s32.totalorder %s71, %s74
      %p83 = scmp.eq.s32.totalorder %s17, 35
      %p84 = por %p82, %p83
      %p85 = scmp.ne.s32.totalorder %s74, %s75
      %p86 = scmp.eq.s32.totalorder %s17, 0
      %p87 = por %p85, %p86
      %p88 = scmp.ne.s32.totalorder %s74, %s75
      %p89 = scmp.eq.s32.totalorder %s18, 35
      %p90 = por %p88, %p89
      %p92 = scmp.ne.s32.totalorder %s75, %s91
      %p93 = scmp.eq.s32.totalorder %s18, 0
      %p94 = por %p92, %p93
      %s95 = ssub.s32 %s20, %s34
      %p96 = scmp.eq.s32.totalorder %s95, 0
      %s98 = sadd.s32 %s97, 1
      %s99 = scalar_select %p96, %s97, %s98
      %p102 = pneg %p96
      %p103 = scmp.eq.s32.totalorder %s12, 35
      %p104 = por %p102, %p103
      %p105 = scmp.ne.s32.totalorder %s97, %s100
      %p106 = scmp.eq.s32.totalorder %s12, 0
      %p107 = por %p105, %p106
      %p108 = scmp.ne.s32.totalorder %s97, %s100
      %p109 = scmp.eq.s32.totalorder %s17, 35
      %p110 = por %p108, %p109
      %p111 = scmp.ne.s32.totalorder %s100, %s101
      %p112 = scmp.eq.s32.totalorder %s17, 0
      %p113 = por %p111, %p112
      %p114 = scmp.ne.s32.totalorder %s100, %s101
      %p115 = scmp.eq.s32.totalorder %s18, 35
      %p116 = por %p114, %p115
      %p118 = scmp.ne.s32.totalorder %s101, %s117
      %p119 = scmp.eq.s32.totalorder %s18, 0
      %p120 = por %p118, %p119
      %s121 = ssub.s32 %s19, %s38
      %s122 = ssub.s32 %s20, %s34
      %s123 = sor.u32 %s121, %s122
      %p124 = scmp.eq.s32.totalorder %s123, 0
      %s126 = sadd.s32 %s125, 1
      %s127 = scalar_select %p124, %s125, %s126
      %p130 = pneg %p124
      %p131 = scmp.eq.s32.totalorder %s12, 35
      %p132 = por %p130, %p131
      %p133 = scmp.ne.s32.totalorder %s125, %s128
      %p134 = scmp.eq.s32.totalorder %s12, 0
      %p135 = por %p133, %p134
      %p136 = scmp.ne.s32.totalorder %s125, %s128
      %p137 = scmp.eq.s32.totalorder %s17, 35
      %p138 = por %p136, %p137
      %p139 = scmp.ne.s32.totalorder %s128, %s129
      %p140 = scmp.eq.s32.totalorder %s17, 0
      %p141 = por %p139, %p140
      %p142 = scmp.ne.s32.totalorder %s128, %s129
      %p143 = scmp.eq.s32.totalorder %s18, 35
      %p144 = por %p142, %p143
      %p146 = scmp.ne.s32.totalorder %s129, %s145
      %p147 = scmp.eq.s32.totalorder %s18, 0
      %p148 = por %p146, %p147
      %p149 = scmp.le.s32.totalorder 1, %s12
      %p150 = scmp.lt.s32.totalorder %s12, 37
      %p151 = pnand %p149, %p150
      %p152 = pneg %p151
      // Predicated region
      $region9: #{cnn_forward.9} parent=5 // pred_check
        _
      $region10: #{cnn_forward.9} parent=5 // pred_check_branch
        %154 = sbr.rel (%p151) target = $region12
      $region11: #{cnn_forward.9} parent=5 // pred_region
        %s155 = ssub.s32 %s12, 1
      $region12: #{cnn_forward.9} parent=5 // pred_fallthru
        _
      %p156 = scmp.lt.s32.totalorder %s12, 36
      // Predicated region
      $region13: #{cnn_forward.9} parent=5 // pred_check
        %p157 = pneg %p156
      $region14: #{cnn_forward.9} parent=5 // pred_check_branch
        %159 = sbr.rel (%p157) target = $region16
      $region15: #{cnn_forward.9} parent=5 // pred_region
        // Predicated region
        $region17: #{cnn_forward.9} parent=15 // pred_check
          %p160 = pneg %p53
        $region18: #{cnn_forward.9} parent=15 // pred_check_branch
          %162 = sbr.rel (%p160) target = $region20
        $region19: #{cnn_forward.9} parent=15 // pred_region
          %s163 = sand.u32 %s43, 1
          %s164 = sand.u32 %s43, 1
          %s165 = smul.addr %s164, 32
          %s166 = scalar_lea.vmem [#allocation2], %s165
          %s167 = smul.u32 2, %s19
          %s168 = smul.u32 4, %s21
          %s169 = smul.addr %s167, 72
          %s170 = sadd.s32 %s168, %s169
          %s171 = smul.addr %s170, 4
          %s172 = scalar_lea.vmem %s0, %s171
          // Predicated region
          $region21: #{cnn_forward.9} parent=19 // pred_check
            _
          $region22: #{cnn_forward.9} parent=19 // pred_check_branch
            %174 = sbr.rel (0) target = $region24
          $region23: #{cnn_forward.9} parent=19 // pred_region
            // Predicated region
            $region25: #{cnn_forward.9} parent=23 // pred_check
              _
            $region26: #{cnn_forward.9} parent=23 // pred_check_branch
              %176 = sbr.rel (0) target = $region28
            $region27: #{cnn_forward.9} parent=23 // pred_region
              loop: start=0, step=1, limit=1
              $region29: #{cnn_forward.9} parent=27 // loop_pre_header
                _
              $region30: #{cnn_forward.9} parent=27 // loop_header
                %s178 = sphi 0, %s182
                %p179 = scmp.ge.s32.totalorder %s178, 1
                %s183 = sphi %s172, %s172
                %s184 = sphi %s166, %s166
              $region31: #{cnn_forward.9} parent=27 // loop_header_branch
                %181 = sbr.rel (%p179) target = $region35
              $region32: #{cnn_forward.9} parent=27 // loop_body
                %v185 = vld [vmem:[%s183] sm:$0xff]
                %186 = vst [vmem:[%s184] sm:$0xff] %v185
                %v187 = vld [vmem:[%s183 + $0x8] sm:$0xff]
                %188 = vst [vmem:[%s184 + $0x8] sm:$0xff] %v187
                %v189 = vld [vmem:[%s183 + $0x120] sm:$0xff]
                %190 = vst [vmem:[%s184 + $0x10] sm:$0xff] %v189
                %v191 = vld [vmem:[%s183 + $0x128] sm:$0xff]
                %192 = vst [vmem:[%s184 + $0x18] sm:$0xff] %v191
              $region33: #{cnn_forward.9} parent=27 // loop_footer
                %s182 = sadd.s32 1, %s178
              $region34: #{cnn_forward.9} parent=27 // loop_footer_branch
                %177 = sbr.rel target = $region30
              $region35: #{cnn_forward.9} parent=27 // loop_exit
                _
            $region28: #{cnn_forward.9} parent=23 // pred_fallthru
              _
            // Predicated region
            $region36: #{cnn_forward.9} parent=23 // pred_check
              _
            $region37: #{cnn_forward.9} parent=23 // pred_check_branch
              %194 = sbr.rel target = $region39
            $region38: #{cnn_forward.9} parent=23 // pred_region
              _
            $region39: #{cnn_forward.9} parent=23 // pred_fallthru
              _
          $region24: #{cnn_forward.9} parent=19 // pred_fallthru
            _
          %195 = vnop
        $region20: #{cnn_forward.9} parent=15 // pred_fallthru
          _
        // Predicated region
        $region40: #{cnn_forward.9} parent=15 // pred_check
          %p196 = pneg %p81
        $region41: #{cnn_forward.9} parent=15 // pred_check_branch
          %198 = sbr.rel (%p196) target = $region43
        $region42: #{cnn_forward.9} parent=15 // pred_region
          %s199 = sand.u32 %s71, 1
          %s200 = scalar_lea.sflag [#allocation4], %s199
          %s201 = sand.u32 %s71, 1
          %s202 = smul.addr %s201, 2048
          %s203 = scalar_lea.vmem [#allocation3], %s202
          %s204 = smul.u32 64, %s21
          %s205 = smul.u32 8, %s20
          %s207 = ssub.s32 32768, 32768
          %208 = vsyncadd %s200, %s207
          %s209 = smul.addr %s204, 16
          %s210 = sadd.s32 %s205, %s209
          %s211 = smul.addr %s210, 64
          %s212 = scalar_lea.hbm %s1, %s211
          %s213 = sshll.u32 %s203, 4
          %s214 = int_to_ptr.vmem [resolvable:$true] %s213
          %219 = dma.hbm_to_vmem [thread:$0]  %s212, 32768, %s214, %s200, 1024, 512, 32
        $region43: #{cnn_forward.9} parent=15 // pred_fallthru
          _
        // Predicated region
        $region44: #{cnn_forward.9} parent=15 // pred_check
          %p220 = pneg %p107
        $region45: #{cnn_forward.9} parent=15 // pred_check_branch
          %222 = sbr.rel (%p220) target = $region47
        $region46: #{cnn_forward.9} parent=15 // pred_region
          %s223 = smul.u32 8, %s20
          %p224 = scmp.lt.s32.totalorder %s223, 15
          %s225 = scalar_select %p224, %s223, 15
          %s226 = scalar_lea.vmem %s2, %s225
          %s227 = smul.u32 8, %s20
        $region47: #{cnn_forward.9} parent=15 // pred_fallthru
          _
      $region16: #{cnn_forward.9} parent=5 // pred_fallthru
        _
      %p228 = scmp.le.s32.totalorder 1, %s12
      %p229 = scmp.lt.s32.totalorder %s12, 37
      %p230 = pnand %p228, %p229
      %p231 = pneg %p230
      // Predicated region
      $region48: #{cnn_forward.9} parent=5 // pred_check
        _
      $region49: #{cnn_forward.9} parent=5 // pred_check_branch
        %233 = sbr.rel (%p230) target = $region51
      $region50: #{cnn_forward.9} parent=5 // pred_region
        %s234 = ssub.s32 %s12, 1
        %s235 = sand.u32 %s46, 1
        %s236 = sand.u32 %s46, 1
        %s237 = smul.addr %s236, 32
        %s238 = scalar_lea.vmem [#allocation2], %s237
        // Predicated region
        $region52: #{cnn_forward.9} parent=50 // pred_check
          %p239 = pneg %p59
        $region53: #{cnn_forward.9} parent=50 // pred_check_branch
          %241 = sbr.rel (%p239) target = $region55
        $region54: #{cnn_forward.9} parent=50 // pred_region
          _
        $region55: #{cnn_forward.9} parent=50 // pred_fallthru
          _
        %s242 = sand.u32 %s74, 1
        %s243 = scalar_lea.sflag [#allocation4], %s242
        %s244 = sand.u32 %s74, 1
        %s245 = smul.addr %s244, 2048
        %s246 = scalar_lea.vmem [#allocation3], %s245
        // Predicated region
        $region56: #{cnn_forward.9} parent=50 // pred_check
          %p247 = pneg %p87
        $region57: #{cnn_forward.9} parent=50 // pred_check_branch
          %249 = sbr.rel (%p247) target = $region59
        $region58: #{cnn_forward.9} parent=50 // pred_region
          %250 = dma.done %s243, 32768
        $region59: #{cnn_forward.9} parent=50 // pred_fallthru
          _
        %s251 = sand.u32 %s46, 1
        %s252 = sand.u32 %s46, 1
        %s253 = smul.addr %s252, 32
        %s254 = scalar_lea.vmem [#allocation2], %s253
        %p255 = pneg %p59
        %p256 = pneg %p56
        %s257 = sand.u32 %s74, 1
        %s258 = scalar_lea.sflag [#allocation4], %s257
        %s259 = sand.u32 %s74, 1
        %s260 = smul.addr %s259, 2048
        %s261 = scalar_lea.vmem [#allocation3], %s260
        %p262 = pneg %p87
        %p263 = pneg %p84
        %s264 = smul.u32 8, %s23
        %p265 = scmp.lt.s32.totalorder %s264, 15
        %s266 = scalar_select %p265, %s264, 15
        %s267 = scalar_lea.vmem %s2, %s266
        %p268 = pneg %p113
        %p269 = pneg %p110
        %p270 = pneg %p141
        %p271 = pneg %p138
        %s272 = sand.u32 %s128, 1
        %s273 = sand.u32 %s128, 1
        %s274 = smul.addr %s273, 128
        %s275 = scalar_lea.vmem [#allocation5], %s274
        %s276 = smul.u32 2, %s22
        %s277 = smul.u32 4, %s24
        %s278 = smul.u32 64, %s24
        %s279 = smul.u32 8, %s23
        %s280 = smul.u32 8, %s23
        %p281 = scmp.lt.s32.totalorder %s280, 15
        %s282 = scalar_select %p281, %s280, 15
        %s283 = scalar_lea.vmem %s2, %s282
        %s284 = smul.u32 8, %s23
        %s285 = smul.u32 2, %s22
        %s286 = smul.u32 8, %s23
        %p287 = scmp.eq.s32.totalorder %s24, 0
        // Predicated region
        $region60: #{cnn_forward.9} parent=50 // pred_check
          %p288 = pneg %p287
        $region61: #{cnn_forward.9} parent=50 // pred_check_branch
          %290 = sbr.rel (%p288) target = $region63
        $region62: #{cnn_forward.9} parent=50 // pred_region
          %v291 = vld [vmem:[%s283] sm:$0xff]
          %v293 = vlaneseq
          %v294 = vshrl.u32 %v293, 7
          %v295 = vsub.s32 0, %v294
          %v296 = vrot.slane %v291, %v295
          %v297 = vlaneseq
          %v298 = vshrl.u32 %v297, 7
          %v299 = vsub.s32 1, %v298
          %v300 = vrot.slane %v291, %v299
          %v301 = vlaneseq
          %v302 = vshrl.u32 %v301, 7
          %v303 = vsub.s32 2, %v302
          %v304 = vrot.slane %v291, %v303
          %v305 = vlaneseq
          %v306 = vshrl.u32 %v305, 7
          %v307 = vsub.s32 3, %v306
          %v308 = vrot.slane %v291, %v307
          %v309 = vlaneseq
          %v310 = vshrl.u32 %v309, 7
          %v311 = vsub.s32 4, %v310
          %v312 = vrot.slane %v291, %v311
          %v313 = vlaneseq
          %v314 = vshrl.u32 %v313, 7
          %v315 = vsub.s32 5, %v314
          %v316 = vrot.slane %v291, %v315
          %v317 = vlaneseq
          %v318 = vshrl.u32 %v317, 7
          %v319 = vsub.s32 6, %v318
          %v320 = vrot.slane %v291, %v319
          %v321 = vlaneseq
          %v322 = vshrl.u32 %v321, 7
          %v323 = vsub.s32 7, %v322
          %v324 = vrot.slane %v291, %v323
          %333 = vst [vmem:[%s275] sm:$0xff] %v296
          %334 = vst [vmem:[%s275 + $0x8] sm:$0xff] %v300
          %335 = vst [vmem:[%s275 + $0x10] sm:$0xff] %v304
          %336 = vst [vmem:[%s275 + $0x18] sm:$0xff] %v308
          %337 = vst [vmem:[%s275 + $0x20] sm:$0xff] %v312
          %338 = vst [vmem:[%s275 + $0x28] sm:$0xff] %v316
          %339 = vst [vmem:[%s275 + $0x30] sm:$0xff] %v320
          %340 = vst [vmem:[%s275 + $0x38] sm:$0xff] %v324
          %341 = vst [vmem:[%s275 + $0x40] sm:$0xff] %v296
          %342 = vst [vmem:[%s275 + $0x48] sm:$0xff] %v300
          %343 = vst [vmem:[%s275 + $0x50] sm:$0xff] %v304
          %344 = vst [vmem:[%s275 + $0x58] sm:$0xff] %v308
          %345 = vst [vmem:[%s275 + $0x60] sm:$0xff] %v312
          %346 = vst [vmem:[%s275 + $0x68] sm:$0xff] %v316
          %347 = vst [vmem:[%s275 + $0x70] sm:$0xff] %v320
          %348 = vst [vmem:[%s275 + $0x78] sm:$0xff] %v324
        $region63: #{cnn_forward.9} parent=50 // pred_fallthru
          _
        %v349 = vld [vmem:[%s275] sm:$0xff]
        %v350 = vld [vmem:[%s275 + $0x8] sm:$0xff]
        %v351 = vld [vmem:[%s275 + $0x10] sm:$0xff]
        %v352 = vld [vmem:[%s275 + $0x18] sm:$0xff]
        %v353 = vld [vmem:[%s275 + $0x20] sm:$0xff]
        %v354 = vld [vmem:[%s275 + $0x28] sm:$0xff]
        %v355 = vld [vmem:[%s275 + $0x30] sm:$0xff]
        %v356 = vld [vmem:[%s275 + $0x38] sm:$0xff]
        %v357 = vld [vmem:[%s275 + $0x40] sm:$0xff]
        %v358 = vld [vmem:[%s275 + $0x48] sm:$0xff]
        %v359 = vld [vmem:[%s275 + $0x50] sm:$0xff]
        %v360 = vld [vmem:[%s275 + $0x58] sm:$0xff]
        %v361 = vld [vmem:[%s275 + $0x60] sm:$0xff]
        %v362 = vld [vmem:[%s275 + $0x68] sm:$0xff]
        %v363 = vld [vmem:[%s275 + $0x70] sm:$0xff]
        %v364 = vld [vmem:[%s275 + $0x78] sm:$0xff]
        %v365 = vld [vmem:[%s238] sm:$0xff]
        %v366 = vld [vmem:[%s238 + $0x8] sm:$0xff]
        %v367 = vld [vmem:[%s238 + $0x10] sm:$0xff]
        %v368 = vld [vmem:[%s238 + $0x18] sm:$0xff]
        %v369 = vld [vmem:[%s246] sm:$0xff]
        %v370 = vld [vmem:[%s246 + $0x8] sm:$0xff]
        %v371 = vld [vmem:[%s246 + $0x10] sm:$0xff]
        %v372 = vld [vmem:[%s246 + $0x18] sm:$0xff]
        %v373 = vld [vmem:[%s246 + $0x20] sm:$0xff]
        %v374 = vld [vmem:[%s246 + $0x28] sm:$0xff]
        %v375 = vld [vmem:[%s246 + $0x30] sm:$0xff]
        %v376 = vld [vmem:[%s246 + $0x38] sm:$0xff]
        %v377 = vld [vmem:[%s246 + $0x40] sm:$0xff]
        %v378 = vld [vmem:[%s246 + $0x48] sm:$0xff]
        %v379 = vld [vmem:[%s246 + $0x50] sm:$0xff]
        %v380 = vld [vmem:[%s246 + $0x58] sm:$0xff]
        %v381 = vld [vmem:[%s246 + $0x60] sm:$0xff]
        %v382 = vld [vmem:[%s246 + $0x68] sm:$0xff]
        %v383 = vld [vmem:[%s246 + $0x70] sm:$0xff]
        %v384 = vld [vmem:[%s246 + $0x78] sm:$0xff]
        %v385 = vld [vmem:[%s246 + $0x80] sm:$0xff]
        %v386 = vld [vmem:[%s246 + $0x88] sm:$0xff]
        %v387 = vld [vmem:[%s246 + $0x90] sm:$0xff]
        %v388 = vld [vmem:[%s246 + $0x98] sm:$0xff]
        %v389 = vld [vmem:[%s246 + $0xa0] sm:$0xff]
        %v390 = vld [vmem:[%s246 + $0xa8] sm:$0xff]
        %v391 = vld [vmem:[%s246 + $0xb0] sm:$0xff]
        %v392 = vld [vmem:[%s246 + $0xb8] sm:$0xff]
        %v393 = vld [vmem:[%s246 + $0xc0] sm:$0xff]
        %v394 = vld [vmem:[%s246 + $0xc8] sm:$0xff]
        %v395 = vld [vmem:[%s246 + $0xd0] sm:$0xff]
        %v396 = vld [vmem:[%s246 + $0xd8] sm:$0xff]
        %v397 = vld [vmem:[%s246 + $0xe0] sm:$0xff]
        %v398 = vld [vmem:[%s246 + $0xe8] sm:$0xff]
        %v399 = vld [vmem:[%s246 + $0xf0] sm:$0xff]
        %v400 = vld [vmem:[%s246 + $0xf8] sm:$0xff]
        %v401 = vld [vmem:[%s246 + $0x100] sm:$0xff]
        %v402 = vld [vmem:[%s246 + $0x108] sm:$0xff]
        %v403 = vld [vmem:[%s246 + $0x110] sm:$0xff]
        %v404 = vld [vmem:[%s246 + $0x118] sm:$0xff]
        %v405 = vld [vmem:[%s246 + $0x120] sm:$0xff]
        %v406 = vld [vmem:[%s246 + $0x128] sm:$0xff]
        %v407 = vld [vmem:[%s246 + $0x130] sm:$0xff]
        %v408 = vld [vmem:[%s246 + $0x138] sm:$0xff]
        %v409 = vld [vmem:[%s246 + $0x140] sm:$0xff]
        %v410 = vld [vmem:[%s246 + $0x148] sm:$0xff]
        %v411 = vld [vmem:[%s246 + $0x150] sm:$0xff]
        %v412 = vld [vmem:[%s246 + $0x158] sm:$0xff]
        %v413 = vld [vmem:[%s246 + $0x160] sm:$0xff]
        %v414 = vld [vmem:[%s246 + $0x168] sm:$0xff]
        %v415 = vld [vmem:[%s246 + $0x170] sm:$0xff]
        %v416 = vld [vmem:[%s246 + $0x178] sm:$0xff]
        %v417 = vld [vmem:[%s246 + $0x180] sm:$0xff]
        %v418 = vld [vmem:[%s246 + $0x188] sm:$0xff]
        %v419 = vld [vmem:[%s246 + $0x190] sm:$0xff]
        %v420 = vld [vmem:[%s246 + $0x198] sm:$0xff]
        %v421 = vld [vmem:[%s246 + $0x1a0] sm:$0xff]
        %v422 = vld [vmem:[%s246 + $0x1a8] sm:$0xff]
        %v423 = vld [vmem:[%s246 + $0x1b0] sm:$0xff]
        %v424 = vld [vmem:[%s246 + $0x1b8] sm:$0xff]
        %v425 = vld [vmem:[%s246 + $0x1c0] sm:$0xff]
        %v426 = vld [vmem:[%s246 + $0x1c8] sm:$0xff]
        %v427 = vld [vmem:[%s246 + $0x1d0] sm:$0xff]
        %v428 = vld [vmem:[%s246 + $0x1d8] sm:$0xff]
        %v429 = vld [vmem:[%s246 + $0x1e0] sm:$0xff]
        %v430 = vld [vmem:[%s246 + $0x1e8] sm:$0xff]
        %v431 = vld [vmem:[%s246 + $0x1f0] sm:$0xff]
        %v432 = vld [vmem:[%s246 + $0x1f8] sm:$0xff]
        %v433 = vld [vmem:[%s246 + $0x200] sm:$0xff]
        %v434 = vld [vmem:[%s246 + $0x208] sm:$0xff]
        %v435 = vld [vmem:[%s246 + $0x210] sm:$0xff]
        %v436 = vld [vmem:[%s246 + $0x218] sm:$0xff]
        %v437 = vld [vmem:[%s246 + $0x220] sm:$0xff]
        %v438 = vld [vmem:[%s246 + $0x228] sm:$0xff]
        %v439 = vld [vmem:[%s246 + $0x230] sm:$0xff]
        %v440 = vld [vmem:[%s246 + $0x238] sm:$0xff]
        %v441 = vld [vmem:[%s246 + $0x240] sm:$0xff]
        %v442 = vld [vmem:[%s246 + $0x248] sm:$0xff]
        %v443 = vld [vmem:[%s246 + $0x250] sm:$0xff]
        %v444 = vld [vmem:[%s246 + $0x258] sm:$0xff]
        %v445 = vld [vmem:[%s246 + $0x260] sm:$0xff]
        %v446 = vld [vmem:[%s246 + $0x268] sm:$0xff]
        %v447 = vld [vmem:[%s246 + $0x270] sm:$0xff]
        %v448 = vld [vmem:[%s246 + $0x278] sm:$0xff]
        %v449 = vld [vmem:[%s246 + $0x280] sm:$0xff]
        %v450 = vld [vmem:[%s246 + $0x288] sm:$0xff]
        %v451 = vld [vmem:[%s246 + $0x290] sm:$0xff]
        %v452 = vld [vmem:[%s246 + $0x298] sm:$0xff]
        %v453 = vld [vmem:[%s246 + $0x2a0] sm:$0xff]
        %v454 = vld [vmem:[%s246 + $0x2a8] sm:$0xff]
        %v455 = vld [vmem:[%s246 + $0x2b0] sm:$0xff]
        %v456 = vld [vmem:[%s246 + $0x2b8] sm:$0xff]
        %v457 = vld [vmem:[%s246 + $0x2c0] sm:$0xff]
        %v458 = vld [vmem:[%s246 + $0x2c8] sm:$0xff]
        %v459 = vld [vmem:[%s246 + $0x2d0] sm:$0xff]
        %v460 = vld [vmem:[%s246 + $0x2d8] sm:$0xff]
        %v461 = vld [vmem:[%s246 + $0x2e0] sm:$0xff]
        %v462 = vld [vmem:[%s246 + $0x2e8] sm:$0xff]
        %v463 = vld [vmem:[%s246 + $0x2f0] sm:$0xff]
        %v464 = vld [vmem:[%s246 + $0x2f8] sm:$0xff]
        %v465 = vld [vmem:[%s246 + $0x300] sm:$0xff]
        %v466 = vld [vmem:[%s246 + $0x308] sm:$0xff]
        %v467 = vld [vmem:[%s246 + $0x310] sm:$0xff]
        %v468 = vld [vmem:[%s246 + $0x318] sm:$0xff]
        %v469 = vld [vmem:[%s246 + $0x320] sm:$0xff]
        %v470 = vld [vmem:[%s246 + $0x328] sm:$0xff]
        %v471 = vld [vmem:[%s246 + $0x330] sm:$0xff]
        %v472 = vld [vmem:[%s246 + $0x338] sm:$0xff]
        %v473 = vld [vmem:[%s246 + $0x340] sm:$0xff]
        %v474 = vld [vmem:[%s246 + $0x348] sm:$0xff]
        %v475 = vld [vmem:[%s246 + $0x350] sm:$0xff]
        %v476 = vld [vmem:[%s246 + $0x358] sm:$0xff]
        %v477 = vld [vmem:[%s246 + $0x360] sm:$0xff]
        %v478 = vld [vmem:[%s246 + $0x368] sm:$0xff]
        %v479 = vld [vmem:[%s246 + $0x370] sm:$0xff]
        %v480 = vld [vmem:[%s246 + $0x378] sm:$0xff]
        %v481 = vld [vmem:[%s246 + $0x380] sm:$0xff]
        %v482 = vld [vmem:[%s246 + $0x388] sm:$0xff]
        %v483 = vld [vmem:[%s246 + $0x390] sm:$0xff]
        %v484 = vld [vmem:[%s246 + $0x398] sm:$0xff]
        %v485 = vld [vmem:[%s246 + $0x3a0] sm:$0xff]
        %v486 = vld [vmem:[%s246 + $0x3a8] sm:$0xff]
        %v487 = vld [vmem:[%s246 + $0x3b0] sm:$0xff]
        %v488 = vld [vmem:[%s246 + $0x3b8] sm:$0xff]
        %v489 = vld [vmem:[%s246 + $0x3c0] sm:$0xff]
        %v490 = vld [vmem:[%s246 + $0x3c8] sm:$0xff]
        %v491 = vld [vmem:[%s246 + $0x3d0] sm:$0xff]
        %v492 = vld [vmem:[%s246 + $0x3d8] sm:$0xff]
        %v493 = vld [vmem:[%s246 + $0x3e0] sm:$0xff]
        %v494 = vld [vmem:[%s246 + $0x3e8] sm:$0xff]
        %v495 = vld [vmem:[%s246 + $0x3f0] sm:$0xff]
        %v496 = vld [vmem:[%s246 + $0x3f8] sm:$0xff]
        %v497 = vld [vmem:[%s246 + $0x400] sm:$0xff]
        %v498 = vld [vmem:[%s246 + $0x408] sm:$0xff]
        %v499 = vld [vmem:[%s246 + $0x410] sm:$0xff]
        %v500 = vld [vmem:[%s246 + $0x418] sm:$0xff]
        %v501 = vld [vmem:[%s246 + $0x420] sm:$0xff]
        %v502 = vld [vmem:[%s246 + $0x428] sm:$0xff]
        %v503 = vld [vmem:[%s246 + $0x430] sm:$0xff]
        %v504 = vld [vmem:[%s246 + $0x438] sm:$0xff]
        %v505 = vld [vmem:[%s246 + $0x440] sm:$0xff]
        %v506 = vld [vmem:[%s246 + $0x448] sm:$0xff]
        %v507 = vld [vmem:[%s246 + $0x450] sm:$0xff]
        %v508 = vld [vmem:[%s246 + $0x458] sm:$0xff]
        %v509 = vld [vmem:[%s246 + $0x460] sm:$0xff]
        %v510 = vld [vmem:[%s246 + $0x468] sm:$0xff]
        %v511 = vld [vmem:[%s246 + $0x470] sm:$0xff]
        %v512 = vld [vmem:[%s246 + $0x478] sm:$0xff]
        %v513 = vld [vmem:[%s246 + $0x480] sm:$0xff]
        %v514 = vld [vmem:[%s246 + $0x488] sm:$0xff]
        %v515 = vld [vmem:[%s246 + $0x490] sm:$0xff]
        %v516 = vld [vmem:[%s246 + $0x498] sm:$0xff]
        %v517 = vld [vmem:[%s246 + $0x4a0] sm:$0xff]
        %v518 = vld [vmem:[%s246 + $0x4a8] sm:$0xff]
        %v519 = vld [vmem:[%s246 + $0x4b0] sm:$0xff]
        %v520 = vld [vmem:[%s246 + $0x4b8] sm:$0xff]
        %v521 = vld [vmem:[%s246 + $0x4c0] sm:$0xff]
        %v522 = vld [vmem:[%s246 + $0x4c8] sm:$0xff]
        %v523 = vld [vmem:[%s246 + $0x4d0] sm:$0xff]
        %v524 = vld [vmem:[%s246 + $0x4d8] sm:$0xff]
        %v525 = vld [vmem:[%s246 + $0x4e0] sm:$0xff]
        %v526 = vld [vmem:[%s246 + $0x4e8] sm:$0xff]
        %v527 = vld [vmem:[%s246 + $0x4f0] sm:$0xff]
        %v528 = vld [vmem:[%s246 + $0x4f8] sm:$0xff]
        %v529 = vld [vmem:[%s246 + $0x500] sm:$0xff]
        %v530 = vld [vmem:[%s246 + $0x508] sm:$0xff]
        %v531 = vld [vmem:[%s246 + $0x510] sm:$0xff]
        %v532 = vld [vmem:[%s246 + $0x518] sm:$0xff]
        %v533 = vld [vmem:[%s246 + $0x520] sm:$0xff]
        %v534 = vld [vmem:[%s246 + $0x528] sm:$0xff]
        %v535 = vld [vmem:[%s246 + $0x530] sm:$0xff]
        %v536 = vld [vmem:[%s246 + $0x538] sm:$0xff]
        %v537 = vld [vmem:[%s246 + $0x540] sm:$0xff]
        %v538 = vld [vmem:[%s246 + $0x548] sm:$0xff]
        %v539 = vld [vmem:[%s246 + $0x550] sm:$0xff]
        %v540 = vld [vmem:[%s246 + $0x558] sm:$0xff]
        %v541 = vld [vmem:[%s246 + $0x560] sm:$0xff]
        %v542 = vld [vmem:[%s246 + $0x568] sm:$0xff]
        %v543 = vld [vmem:[%s246 + $0x570] sm:$0xff]
        %v544 = vld [vmem:[%s246 + $0x578] sm:$0xff]
        %v545 = vld [vmem:[%s246 + $0x580] sm:$0xff]
        %v546 = vld [vmem:[%s246 + $0x588] sm:$0xff]
        %v547 = vld [vmem:[%s246 + $0x590] sm:$0xff]
        %v548 = vld [vmem:[%s246 + $0x598] sm:$0xff]
        %v549 = vld [vmem:[%s246 + $0x5a0] sm:$0xff]
        %v550 = vld [vmem:[%s246 + $0x5a8] sm:$0xff]
        %v551 = vld [vmem:[%s246 + $0x5b0] sm:$0xff]
        %v552 = vld [vmem:[%s246 + $0x5b8] sm:$0xff]
        %v553 = vld [vmem:[%s246 + $0x5c0] sm:$0xff]
        %v554 = vld [vmem:[%s246 + $0x5c8] sm:$0xff]
        %v555 = vld [vmem:[%s246 + $0x5d0] sm:$0xff]
        %v556 = vld [vmem:[%s246 + $0x5d8] sm:$0xff]
        %v557 = vld [vmem:[%s246 + $0x5e0] sm:$0xff]
        %v558 = vld [vmem:[%s246 + $0x5e8] sm:$0xff]
        %v559 = vld [vmem:[%s246 + $0x5f0] sm:$0xff]
        %v560 = vld [vmem:[%s246 + $0x5f8] sm:$0xff]
        %v561 = vld [vmem:[%s246 + $0x600] sm:$0xff]
        %v562 = vld [vmem:[%s246 + $0x608] sm:$0xff]
        %v563 = vld [vmem:[%s246 + $0x610] sm:$0xff]
        %v564 = vld [vmem:[%s246 + $0x618] sm:$0xff]
        %v565 = vld [vmem:[%s246 + $0x620] sm:$0xff]
        %v566 = vld [vmem:[%s246 + $0x628] sm:$0xff]
        %v567 = vld [vmem:[%s246 + $0x630] sm:$0xff]
        %v568 = vld [vmem:[%s246 + $0x638] sm:$0xff]
        %v569 = vld [vmem:[%s246 + $0x640] sm:$0xff]
        %v570 = vld [vmem:[%s246 + $0x648] sm:$0xff]
        %v571 = vld [vmem:[%s246 + $0x650] sm:$0xff]
        %v572 = vld [vmem:[%s246 + $0x658] sm:$0xff]
        %v573 = vld [vmem:[%s246 + $0x660] sm:$0xff]
        %v574 = vld [vmem:[%s246 + $0x668] sm:$0xff]
        %v575 = vld [vmem:[%s246 + $0x670] sm:$0xff]
        %v576 = vld [vmem:[%s246 + $0x678] sm:$0xff]
        %v577 = vld [vmem:[%s246 + $0x680] sm:$0xff]
        %v578 = vld [vmem:[%s246 + $0x688] sm:$0xff]
        %v579 = vld [vmem:[%s246 + $0x690] sm:$0xff]
        %v580 = vld [vmem:[%s246 + $0x698] sm:$0xff]
        %v581 = vld [vmem:[%s246 + $0x6a0] sm:$0xff]
        %v582 = vld [vmem:[%s246 + $0x6a8] sm:$0xff]
        %v583 = vld [vmem:[%s246 + $0x6b0] sm:$0xff]
        %v584 = vld [vmem:[%s246 + $0x6b8] sm:$0xff]
        %v585 = vld [vmem:[%s246 + $0x6c0] sm:$0xff]
        %v586 = vld [vmem:[%s246 + $0x6c8] sm:$0xff]
        %v587 = vld [vmem:[%s246 + $0x6d0] sm:$0xff]
        %v588 = vld [vmem:[%s246 + $0x6d8] sm:$0xff]
        %v589 = vld [vmem:[%s246 + $0x6e0] sm:$0xff]
        %v590 = vld [vmem:[%s246 + $0x6e8] sm:$0xff]
        %v591 = vld [vmem:[%s246 + $0x6f0] sm:$0xff]
        %v592 = vld [vmem:[%s246 + $0x6f8] sm:$0xff]
        %v593 = vld [vmem:[%s246 + $0x700] sm:$0xff]
        %v594 = vld [vmem:[%s246 + $0x708] sm:$0xff]
        %v595 = vld [vmem:[%s246 + $0x710] sm:$0xff]
        %v596 = vld [vmem:[%s246 + $0x718] sm:$0xff]
        %v597 = vld [vmem:[%s246 + $0x720] sm:$0xff]
        %v598 = vld [vmem:[%s246 + $0x728] sm:$0xff]
        %v599 = vld [vmem:[%s246 + $0x730] sm:$0xff]
        %v600 = vld [vmem:[%s246 + $0x738] sm:$0xff]
        %v601 = vld [vmem:[%s246 + $0x740] sm:$0xff]
        %v602 = vld [vmem:[%s246 + $0x748] sm:$0xff]
        %v603 = vld [vmem:[%s246 + $0x750] sm:$0xff]
        %v604 = vld [vmem:[%s246 + $0x758] sm:$0xff]
        %v605 = vld [vmem:[%s246 + $0x760] sm:$0xff]
        %v606 = vld [vmem:[%s246 + $0x768] sm:$0xff]
        %v607 = vld [vmem:[%s246 + $0x770] sm:$0xff]
        %v608 = vld [vmem:[%s246 + $0x778] sm:$0xff]
        %v609 = vld [vmem:[%s246 + $0x780] sm:$0xff]
        %v610 = vld [vmem:[%s246 + $0x788] sm:$0xff]
        %v611 = vld [vmem:[%s246 + $0x790] sm:$0xff]
        %v612 = vld [vmem:[%s246 + $0x798] sm:$0xff]
        %v613 = vld [vmem:[%s246 + $0x7a0] sm:$0xff]
        %v614 = vld [vmem:[%s246 + $0x7a8] sm:$0xff]
        %v615 = vld [vmem:[%s246 + $0x7b0] sm:$0xff]
        %v616 = vld [vmem:[%s246 + $0x7b8] sm:$0xff]
        %v617 = vld [vmem:[%s246 + $0x7c0] sm:$0xff]
        %v618 = vld [vmem:[%s246 + $0x7c8] sm:$0xff]
        %v619 = vld [vmem:[%s246 + $0x7d0] sm:$0xff]
        %v620 = vld [vmem:[%s246 + $0x7d8] sm:$0xff]
        %v621 = vld [vmem:[%s246 + $0x7e0] sm:$0xff]
        %v622 = vld [vmem:[%s246 + $0x7e8] sm:$0xff]
        %v623 = vld [vmem:[%s246 + $0x7f0] sm:$0xff]
        %v624 = vld [vmem:[%s246 + $0x7f8] sm:$0xff]
        %v629 = vunpack.c.l.b16 %v365
        %v630 = vunpack.c.h.b16 %v365
        %v631 = vunpack.c.l.b16 %v366
        %v632 = vunpack.c.h.b16 %v366
        %v633 = vunpack.c.l.b16 %v367
        %v634 = vunpack.c.h.b16 %v367
        %v635 = vunpack.c.l.b16 %v368
        %v636 = vunpack.c.h.b16 %v368
        %v637 = vpack.c.b16 %v633, %v629
        %v638 = vpack.c.b16 %v634, %v630
        %v639 = vpack.c.b16 %v635, %v631
        %v640 = vpack.c.b16 %v636, %v632
        %v901 = vunpack.c.l.b16 %v369
        %v902 = vunpack.c.h.b16 %v369
        %v903 = vunpack.c.l.b16 %v370
        %v904 = vunpack.c.h.b16 %v370
        %v905 = vunpack.c.l.b16 %v371
        %v906 = vunpack.c.h.b16 %v371
        %v907 = vunpack.c.l.b16 %v372
        %v908 = vunpack.c.h.b16 %v372
        %v909 = vunpack.c.l.b16 %v373
        %v910 = vunpack.c.h.b16 %v373
        %v911 = vunpack.c.l.b16 %v374
        %v912 = vunpack.c.h.b16 %v374
        %v913 = vunpack.c.l.b16 %v375
        %v914 = vunpack.c.h.b16 %v375
        %v915 = vunpack.c.l.b16 %v376
        %v916 = vunpack.c.h.b16 %v376
        %v917 = vunpack.c.l.b16 %v377
        %v918 = vunpack.c.h.b16 %v377
        %v919 = vunpack.c.l.b16 %v378
        %v920 = vunpack.c.h.b16 %v378
        %v921 = vunpack.c.l.b16 %v379
        %v922 = vunpack.c.h.b16 %v379
        %v923 = vunpack.c.l.b16 %v380
        %v924 = vunpack.c.h.b16 %v380
        %v925 = vunpack.c.l.b16 %v381
        %v926 = vunpack.c.h.b16 %v381
        %v927 = vunpack.c.l.b16 %v382
        %v928 = vunpack.c.h.b16 %v382
        %v929 = vunpack.c.l.b16 %v383
        %v930 = vunpack.c.h.b16 %v383
        %v931 = vunpack.c.l.b16 %v384
        %v932 = vunpack.c.h.b16 %v384
        %v933 = vunpack.c.l.b16 %v385
        %v934 = vunpack.c.h.b16 %v385
        %v935 = vunpack.c.l.b16 %v386
        %v936 = vunpack.c.h.b16 %v386
        %v937 = vunpack.c.l.b16 %v387
        %v938 = vunpack.c.h.b16 %v387
        %v939 = vunpack.c.l.b16 %v388
        %v940 = vunpack.c.h.b16 %v388
        %v941 = vunpack.c.l.b16 %v389
        %v942 = vunpack.c.h.b16 %v389
        %v943 = vunpack.c.l.b16 %v390
        %v944 = vunpack.c.h.b16 %v390
        %v945 = vunpack.c.l.b16 %v391
        %v946 = vunpack.c.h.b16 %v391
        %v947 = vunpack.c.l.b16 %v392
        %v948 = vunpack.c.h.b16 %v392
        %v949 = vunpack.c.l.b16 %v393
        %v950 = vunpack.c.h.b16 %v393
        %v951 = vunpack.c.l.b16 %v394
        %v952 = vunpack.c.h.b16 %v394
        %v953 = vunpack.c.l.b16 %v395
        %v954 = vunpack.c.h.b16 %v395
        %v955 = vunpack.c.l.b16 %v396
        %v956 = vunpack.c.h.b16 %v396
        %v957 = vunpack.c.l.b16 %v397
        %v958 = vunpack.c.h.b16 %v397
        %v959 = vunpack.c.l.b16 %v398
        %v960 = vunpack.c.h.b16 %v398
        %v961 = vunpack.c.l.b16 %v399
        %v962 = vunpack.c.h.b16 %v399
        %v963 = vunpack.c.l.b16 %v400
        %v964 = vunpack.c.h.b16 %v400
        %v965 = vunpack.c.l.b16 %v401
        %v966 = vunpack.c.h.b16 %v401
        %v967 = vunpack.c.l.b16 %v402
        %v968 = vunpack.c.h.b16 %v402
        %v969 = vunpack.c.l.b16 %v403
        %v970 = vunpack.c.h.b16 %v403
        %v971 = vunpack.c.l.b16 %v404
        %v972 = vunpack.c.h.b16 %v404
        %v973 = vunpack.c.l.b16 %v405
        %v974 = vunpack.c.h.b16 %v405
        %v975 = vunpack.c.l.b16 %v406
        %v976 = vunpack.c.h.b16 %v406
        %v977 = vunpack.c.l.b16 %v407
        %v978 = vunpack.c.h.b16 %v407
        %v979 = vunpack.c.l.b16 %v408
        %v980 = vunpack.c.h.b16 %v408
        %v981 = vunpack.c.l.b16 %v409
        %v982 = vunpack.c.h.b16 %v409
        %v983 = vunpack.c.l.b16 %v410
        %v984 = vunpack.c.h.b16 %v410
        %v985 = vunpack.c.l.b16 %v411
        %v986 = vunpack.c.h.b16 %v411
        %v987 = vunpack.c.l.b16 %v412
        %v988 = vunpack.c.h.b16 %v412
        %v989 = vunpack.c.l.b16 %v413
        %v990 = vunpack.c.h.b16 %v413
        %v991 = vunpack.c.l.b16 %v414
        %v992 = vunpack.c.h.b16 %v414
        %v993 = vunpack.c.l.b16 %v415
        %v994 = vunpack.c.h.b16 %v415
        %v995 = vunpack.c.l.b16 %v416
        %v996 = vunpack.c.h.b16 %v416
        %v997 = vunpack.c.l.b16 %v417
        %v998 = vunpack.c.h.b16 %v417
        %v999 = vunpack.c.l.b16 %v418
        %v1000 = vunpack.c.h.b16 %v418
        %v1001 = vunpack.c.l.b16 %v419
        %v1002 = vunpack.c.h.b16 %v419
        %v1003 = vunpack.c.l.b16 %v420
        %v1004 = vunpack.c.h.b16 %v420
        %v1005 = vunpack.c.l.b16 %v421
        %v1006 = vunpack.c.h.b16 %v421
        %v1007 = vunpack.c.l.b16 %v422
        %v1008 = vunpack.c.h.b16 %v422
        %v1009 = vunpack.c.l.b16 %v423
        %v1010 = vunpack.c.h.b16 %v423
        %v1011 = vunpack.c.l.b16 %v424
        %v1012 = vunpack.c.h.b16 %v424
        %v1013 = vunpack.c.l.b16 %v425
        %v1014 = vunpack.c.h.b16 %v425
        %v1015 = vunpack.c.l.b16 %v426
        %v1016 = vunpack.c.h.b16 %v426
        %v1017 = vunpack.c.l.b16 %v427
        %v1018 = vunpack.c.h.b16 %v427
        %v1019 = vunpack.c.l.b16 %v428
        %v1020 = vunpack.c.h.b16 %v428
        %v1021 = vunpack.c.l.b16 %v429
        %v1022 = vunpack.c.h.b16 %v429
        %v1023 = vunpack.c.l.b16 %v430
        %v1024 = vunpack.c.h.b16 %v430
        %v1025 = vunpack.c.l.b16 %v431
        %v1026 = vunpack.c.h.b16 %v431
        %v1027 = vunpack.c.l.b16 %v432
        %v1028 = vunpack.c.h.b16 %v432
        %v1029 = vunpack.c.l.b16 %v433
        %v1030 = vunpack.c.h.b16 %v433
        %v1031 = vunpack.c.l.b16 %v434
        %v1032 = vunpack.c.h.b16 %v434
        %v1033 = vunpack.c.l.b16 %v435
        %v1034 = vunpack.c.h.b16 %v435
        %v1035 = vunpack.c.l.b16 %v436
        %v1036 = vunpack.c.h.b16 %v436
        %v1037 = vunpack.c.l.b16 %v437
        %v1038 = vunpack.c.h.b16 %v437
        %v1039 = vunpack.c.l.b16 %v438
        %v1040 = vunpack.c.h.b16 %v438
        %v1041 = vunpack.c.l.b16 %v439
        %v1042 = vunpack.c.h.b16 %v439
        %v1043 = vunpack.c.l.b16 %v440
        %v1044 = vunpack.c.h.b16 %v440
        %v1045 = vunpack.c.l.b16 %v441
        %v1046 = vunpack.c.h.b16 %v441
        %v1047 = vunpack.c.l.b16 %v442
        %v1048 = vunpack.c.h.b16 %v442
        %v1049 = vunpack.c.l.b16 %v443
        %v1050 = vunpack.c.h.b16 %v443
        %v1051 = vunpack.c.l.b16 %v444
        %v1052 = vunpack.c.h.b16 %v444
        %v1053 = vunpack.c.l.b16 %v445
        %v1054 = vunpack.c.h.b16 %v445
        %v1055 = vunpack.c.l.b16 %v446
        %v1056 = vunpack.c.h.b16 %v446
        %v1057 = vunpack.c.l.b16 %v447
        %v1058 = vunpack.c.h.b16 %v447
        %v1059 = vunpack.c.l.b16 %v448
        %v1060 = vunpack.c.h.b16 %v448
        %v1061 = vunpack.c.l.b16 %v449
        %v1062 = vunpack.c.h.b16 %v449
        %v1063 = vunpack.c.l.b16 %v450
        %v1064 = vunpack.c.h.b16 %v450
        %v1065 = vunpack.c.l.b16 %v451
        %v1066 = vunpack.c.h.b16 %v451
        %v1067 = vunpack.c.l.b16 %v452
        %v1068 = vunpack.c.h.b16 %v452
        %v1069 = vunpack.c.l.b16 %v453
        %v1070 = vunpack.c.h.b16 %v453
        %v1071 = vunpack.c.l.b16 %v454
        %v1072 = vunpack.c.h.b16 %v454
        %v1073 = vunpack.c.l.b16 %v455
        %v1074 = vunpack.c.h.b16 %v455
        %v1075 = vunpack.c.l.b16 %v456
        %v1076 = vunpack.c.h.b16 %v456
        %v1077 = vunpack.c.l.b16 %v457
        %v1078 = vunpack.c.h.b16 %v457
        %v1079 = vunpack.c.l.b16 %v458
        %v1080 = vunpack.c.h.b16 %v458
        %v1081 = vunpack.c.l.b16 %v459
        %v1082 = vunpack.c.h.b16 %v459
        %v1083 = vunpack.c.l.b16 %v460
        %v1084 = vunpack.c.h.b16 %v460
        %v1085 = vunpack.c.l.b16 %v461
        %v1086 = vunpack.c.h.b16 %v461
        %v1087 = vunpack.c.l.b16 %v462
        %v1088 = vunpack.c.h.b16 %v462
        %v1089 = vunpack.c.l.b16 %v463
        %v1090 = vunpack.c.h.b16 %v463
        %v1091 = vunpack.c.l.b16 %v464
        %v1092 = vunpack.c.h.b16 %v464
        %v1093 = vunpack.c.l.b16 %v465
        %v1094 = vunpack.c.h.b16 %v465
        %v1095 = vunpack.c.l.b16 %v466
        %v1096 = vunpack.c.h.b16 %v466
        %v1097 = vunpack.c.l.b16 %v467
        %v1098 = vunpack.c.h.b16 %v467
        %v1099 = vunpack.c.l.b16 %v468
        %v1100 = vunpack.c.h.b16 %v468
        %v1101 = vunpack.c.l.b16 %v469
        %v1102 = vunpack.c.h.b16 %v469
        %v1103 = vunpack.c.l.b16 %v470
        %v1104 = vunpack.c.h.b16 %v470
        %v1105 = vunpack.c.l.b16 %v471
        %v1106 = vunpack.c.h.b16 %v471
        %v1107 = vunpack.c.l.b16 %v472
        %v1108 = vunpack.c.h.b16 %v472
        %v1109 = vunpack.c.l.b16 %v473
        %v1110 = vunpack.c.h.b16 %v473
        %v1111 = vunpack.c.l.b16 %v474
        %v1112 = vunpack.c.h.b16 %v474
        %v1113 = vunpack.c.l.b16 %v475
        %v1114 = vunpack.c.h.b16 %v475
        %v1115 = vunpack.c.l.b16 %v476
        %v1116 = vunpack.c.h.b16 %v476
        %v1117 = vunpack.c.l.b16 %v477
        %v1118 = vunpack.c.h.b16 %v477
        %v1119 = vunpack.c.l.b16 %v478
        %v1120 = vunpack.c.h.b16 %v478
        %v1121 = vunpack.c.l.b16 %v479
        %v1122 = vunpack.c.h.b16 %v479
        %v1123 = vunpack.c.l.b16 %v480
        %v1124 = vunpack.c.h.b16 %v480
        %v1125 = vunpack.c.l.b16 %v481
        %v1126 = vunpack.c.h.b16 %v481
        %v1127 = vunpack.c.l.b16 %v482
        %v1128 = vunpack.c.h.b16 %v482
        %v1129 = vunpack.c.l.b16 %v483
        %v1130 = vunpack.c.h.b16 %v483
        %v1131 = vunpack.c.l.b16 %v484
        %v1132 = vunpack.c.h.b16 %v484
        %v1133 = vunpack.c.l.b16 %v485
        %v1134 = vunpack.c.h.b16 %v485
        %v1135 = vunpack.c.l.b16 %v486
        %v1136 = vunpack.c.h.b16 %v486
        %v1137 = vunpack.c.l.b16 %v487
        %v1138 = vunpack.c.h.b16 %v487
        %v1139 = vunpack.c.l.b16 %v488
        %v1140 = vunpack.c.h.b16 %v488
        %v1141 = vunpack.c.l.b16 %v489
        %v1142 = vunpack.c.h.b16 %v489
        %v1143 = vunpack.c.l.b16 %v490
        %v1144 = vunpack.c.h.b16 %v490
        %v1145 = vunpack.c.l.b16 %v491
        %v1146 = vunpack.c.h.b16 %v491
        %v1147 = vunpack.c.l.b16 %v492
        %v1148 = vunpack.c.h.b16 %v492
        %v1149 = vunpack.c.l.b16 %v493
        %v1150 = vunpack.c.h.b16 %v493
        %v1151 = vunpack.c.l.b16 %v494
        %v1152 = vunpack.c.h.b16 %v494
        %v1153 = vunpack.c.l.b16 %v495
        %v1154 = vunpack.c.h.b16 %v495
        %v1155 = vunpack.c.l.b16 %v496
        %v1156 = vunpack.c.h.b16 %v496
        %v1157 = vunpack.c.l.b16 %v497
        %v1158 = vunpack.c.h.b16 %v497
        %v1159 = vunpack.c.l.b16 %v498
        %v1160 = vunpack.c.h.b16 %v498
        %v1161 = vunpack.c.l.b16 %v499
        %v1162 = vunpack.c.h.b16 %v499
        %v1163 = vunpack.c.l.b16 %v500
        %v1164 = vunpack.c.h.b16 %v500
        %v1165 = vunpack.c.l.b16 %v501
        %v1166 = vunpack.c.h.b16 %v501
        %v1167 = vunpack.c.l.b16 %v502
        %v1168 = vunpack.c.h.b16 %v502
        %v1169 = vunpack.c.l.b16 %v503
        %v1170 = vunpack.c.h.b16 %v503
        %v1171 = vunpack.c.l.b16 %v504
        %v1172 = vunpack.c.h.b16 %v504
        %v1173 = vunpack.c.l.b16 %v505
        %v1174 = vunpack.c.h.b16 %v505
        %v1175 = vunpack.c.l.b16 %v506
        %v1176 = vunpack.c.h.b16 %v506
        %v1177 = vunpack.c.l.b16 %v507
        %v1178 = vunpack.c.h.b16 %v507
        %v1179 = vunpack.c.l.b16 %v508
        %v1180 = vunpack.c.h.b16 %v508
        %v1181 = vunpack.c.l.b16 %v509
        %v1182 = vunpack.c.h.b16 %v509
        %v1183 = vunpack.c.l.b16 %v510
        %v1184 = vunpack.c.h.b16 %v510
        %v1185 = vunpack.c.l.b16 %v511
        %v1186 = vunpack.c.h.b16 %v511
        %v1187 = vunpack.c.l.b16 %v512
        %v1188 = vunpack.c.h.b16 %v512
        %v1189 = vunpack.c.l.b16 %v513
        %v1190 = vunpack.c.h.b16 %v513
        %v1191 = vunpack.c.l.b16 %v514
        %v1192 = vunpack.c.h.b16 %v514
        %v1193 = vunpack.c.l.b16 %v515
        %v1194 = vunpack.c.h.b16 %v515
        %v1195 = vunpack.c.l.b16 %v516
        %v1196 = vunpack.c.h.b16 %v516
        %v1197 = vunpack.c.l.b16 %v517
        %v1198 = vunpack.c.h.b16 %v517
        %v1199 = vunpack.c.l.b16 %v518
        %v1200 = vunpack.c.h.b16 %v518
        %v1201 = vunpack.c.l.b16 %v519
        %v1202 = vunpack.c.h.b16 %v519
        %v1203 = vunpack.c.l.b16 %v520
        %v1204 = vunpack.c.h.b16 %v520
        %v1205 = vunpack.c.l.b16 %v521
        %v1206 = vunpack.c.h.b16 %v521
        %v1207 = vunpack.c.l.b16 %v522
        %v1208 = vunpack.c.h.b16 %v522
        %v1209 = vunpack.c.l.b16 %v523
        %v1210 = vunpack.c.h.b16 %v523
        %v1211 = vunpack.c.l.b16 %v524
        %v1212 = vunpack.c.h.b16 %v524
        %v1213 = vunpack.c.l.b16 %v525
        %v1214 = vunpack.c.h.b16 %v525
        %v1215 = vunpack.c.l.b16 %v526
        %v1216 = vunpack.c.h.b16 %v526
        %v1217 = vunpack.c.l.b16 %v527
        %v1218 = vunpack.c.h.b16 %v527
        %v1219 = vunpack.c.l.b16 %v528
        %v1220 = vunpack.c.h.b16 %v528
        %v1221 = vunpack.c.l.b16 %v529
        %v1222 = vunpack.c.h.b16 %v529
        %v1223 = vunpack.c.l.b16 %v530
        %v1224 = vunpack.c.h.b16 %v530
        %v1225 = vunpack.c.l.b16 %v531
        %v1226 = vunpack.c.h.b16 %v531
        %v1227 = vunpack.c.l.b16 %v532
        %v1228 = vunpack.c.h.b16 %v532
        %v1229 = vunpack.c.l.b16 %v533
        %v1230 = vunpack.c.h.b16 %v533
        %v1231 = vunpack.c.l.b16 %v534
        %v1232 = vunpack.c.h.b16 %v534
        %v1233 = vunpack.c.l.b16 %v535
        %v1234 = vunpack.c.h.b16 %v535
        %v1235 = vunpack.c.l.b16 %v536
        %v1236 = vunpack.c.h.b16 %v536
        %v1237 = vunpack.c.l.b16 %v537
        %v1238 = vunpack.c.h.b16 %v537
        %v1239 = vunpack.c.l.b16 %v538
        %v1240 = vunpack.c.h.b16 %v538
        %v1241 = vunpack.c.l.b16 %v539
        %v1242 = vunpack.c.h.b16 %v539
        %v1243 = vunpack.c.l.b16 %v540
        %v1244 = vunpack.c.h.b16 %v540
        %v1245 = vunpack.c.l.b16 %v541
        %v1246 = vunpack.c.h.b16 %v541
        %v1247 = vunpack.c.l.b16 %v542
        %v1248 = vunpack.c.h.b16 %v542
        %v1249 = vunpack.c.l.b16 %v543
        %v1250 = vunpack.c.h.b16 %v543
        %v1251 = vunpack.c.l.b16 %v544
        %v1252 = vunpack.c.h.b16 %v544
        %v1253 = vunpack.c.l.b16 %v545
        %v1254 = vunpack.c.h.b16 %v545
        %v1255 = vunpack.c.l.b16 %v546
        %v1256 = vunpack.c.h.b16 %v546
        %v1257 = vunpack.c.l.b16 %v547
        %v1258 = vunpack.c.h.b16 %v547
        %v1259 = vunpack.c.l.b16 %v548
        %v1260 = vunpack.c.h.b16 %v548
        %v1261 = vunpack.c.l.b16 %v549
        %v1262 = vunpack.c.h.b16 %v549
        %v1263 = vunpack.c.l.b16 %v550
        %v1264 = vunpack.c.h.b16 %v550
        %v1265 = vunpack.c.l.b16 %v551
        %v1266 = vunpack.c.h.b16 %v551
        %v1267 = vunpack.c.l.b16 %v552
        %v1268 = vunpack.c.h.b16 %v552
        %v1269 = vunpack.c.l.b16 %v553
        %v1270 = vunpack.c.h.b16 %v553
        %v1271 = vunpack.c.l.b16 %v554
        %v1272 = vunpack.c.h.b16 %v554
        %v1273 = vunpack.c.l.b16 %v555
        %v1274 = vunpack.c.h.b16 %v555
        %v1275 = vunpack.c.l.b16 %v556
        %v1276 = vunpack.c.h.b16 %v556
        %v1277 = vunpack.c.l.b16 %v557
        %v1278 = vunpack.c.h.b16 %v557
        %v1279 = vunpack.c.l.b16 %v558
        %v1280 = vunpack.c.h.b16 %v558
        %v1281 = vunpack.c.l.b16 %v559
        %v1282 = vunpack.c.h.b16 %v559
        %v1283 = vunpack.c.l.b16 %v560
        %v1284 = vunpack.c.h.b16 %v560
        %v1285 = vunpack.c.l.b16 %v561
        %v1286 = vunpack.c.h.b16 %v561
        %v1287 = vunpack.c.l.b16 %v562
        %v1288 = vunpack.c.h.b16 %v562
        %v1289 = vunpack.c.l.b16 %v563
        %v1290 = vunpack.c.h.b16 %v563
        %v1291 = vunpack.c.l.b16 %v564
        %v1292 = vunpack.c.h.b16 %v564
        %v1293 = vunpack.c.l.b16 %v565
        %v1294 = vunpack.c.h.b16 %v565
        %v1295 = vunpack.c.l.b16 %v566
        %v1296 = vunpack.c.h.b16 %v566
        %v1297 = vunpack.c.l.b16 %v567
        %v1298 = vunpack.c.h.b16 %v567
        %v1299 = vunpack.c.l.b16 %v568
        %v1300 = vunpack.c.h.b16 %v568
        %v1301 = vunpack.c.l.b16 %v569
        %v1302 = vunpack.c.h.b16 %v569
        %v1303 = vunpack.c.l.b16 %v570
        %v1304 = vunpack.c.h.b16 %v570
        %v1305 = vunpack.c.l.b16 %v571
        %v1306 = vunpack.c.h.b16 %v571
        %v1307 = vunpack.c.l.b16 %v572
        %v1308 = vunpack.c.h.b16 %v572
        %v1309 = vunpack.c.l.b16 %v573
        %v1310 = vunpack.c.h.b16 %v573
        %v1311 = vunpack.c.l.b16 %v574
        %v1312 = vunpack.c.h.b16 %v574
        %v1313 = vunpack.c.l.b16 %v575
        %v1314 = vunpack.c.h.b16 %v575
        %v1315 = vunpack.c.l.b16 %v576
        %v1316 = vunpack.c.h.b16 %v576
        %v1317 = vunpack.c.l.b16 %v577
        %v1318 = vunpack.c.h.b16 %v577
        %v1319 = vunpack.c.l.b16 %v578
        %v1320 = vunpack.c.h.b16 %v578
        %v1321 = vunpack.c.l.b16 %v579
        %v1322 = vunpack.c.h.b16 %v579
        %v1323 = vunpack.c.l.b16 %v580
        %v1324 = vunpack.c.h.b16 %v580
        %v1325 = vunpack.c.l.b16 %v581
        %v1326 = vunpack.c.h.b16 %v581
        %v1327 = vunpack.c.l.b16 %v582
        %v1328 = vunpack.c.h.b16 %v582
        %v1329 = vunpack.c.l.b16 %v583
        %v1330 = vunpack.c.h.b16 %v583
        %v1331 = vunpack.c.l.b16 %v584
        %v1332 = vunpack.c.h.b16 %v584
        %v1333 = vunpack.c.l.b16 %v585
        %v1334 = vunpack.c.h.b16 %v585
        %v1335 = vunpack.c.l.b16 %v586
        %v1336 = vunpack.c.h.b16 %v586
        %v1337 = vunpack.c.l.b16 %v587
        %v1338 = vunpack.c.h.b16 %v587
        %v1339 = vunpack.c.l.b16 %v588
        %v1340 = vunpack.c.h.b16 %v588
        %v1341 = vunpack.c.l.b16 %v589
        %v1342 = vunpack.c.h.b16 %v589
        %v1343 = vunpack.c.l.b16 %v590
        %v1344 = vunpack.c.h.b16 %v590
        %v1345 = vunpack.c.l.b16 %v591
        %v1346 = vunpack.c.h.b16 %v591
        %v1347 = vunpack.c.l.b16 %v592
        %v1348 = vunpack.c.h.b16 %v592
        %v1349 = vunpack.c.l.b16 %v593
        %v1350 = vunpack.c.h.b16 %v593
        %v1351 = vunpack.c.l.b16 %v594
        %v1352 = vunpack.c.h.b16 %v594
        %v1353 = vunpack.c.l.b16 %v595
        %v1354 = vunpack.c.h.b16 %v595
        %v1355 = vunpack.c.l.b16 %v596
        %v1356 = vunpack.c.h.b16 %v596
        %v1357 = vunpack.c.l.b16 %v597
        %v1358 = vunpack.c.h.b16 %v597
        %v1359 = vunpack.c.l.b16 %v598
        %v1360 = vunpack.c.h.b16 %v598
        %v1361 = vunpack.c.l.b16 %v599
        %v1362 = vunpack.c.h.b16 %v599
        %v1363 = vunpack.c.l.b16 %v600
        %v1364 = vunpack.c.h.b16 %v600
        %v1365 = vunpack.c.l.b16 %v601
        %v1366 = vunpack.c.h.b16 %v601
        %v1367 = vunpack.c.l.b16 %v602
        %v1368 = vunpack.c.h.b16 %v602
        %v1369 = vunpack.c.l.b16 %v603
        %v1370 = vunpack.c.h.b16 %v603
        %v1371 = vunpack.c.l.b16 %v604
        %v1372 = vunpack.c.h.b16 %v604
        %v1373 = vunpack.c.l.b16 %v605
        %v1374 = vunpack.c.h.b16 %v605
        %v1375 = vunpack.c.l.b16 %v606
        %v1376 = vunpack.c.h.b16 %v606
        %v1377 = vunpack.c.l.b16 %v607
        %v1378 = vunpack.c.h.b16 %v607
        %v1379 = vunpack.c.l.b16 %v608
        %v1380 = vunpack.c.h.b16 %v608
        %v1381 = vunpack.c.l.b16 %v609
        %v1382 = vunpack.c.h.b16 %v609
        %v1383 = vunpack.c.l.b16 %v610
        %v1384 = vunpack.c.h.b16 %v610
        %v1385 = vunpack.c.l.b16 %v611
        %v1386 = vunpack.c.h.b16 %v611
        %v1387 = vunpack.c.l.b16 %v612
        %v1388 = vunpack.c.h.b16 %v612
        %v1389 = vunpack.c.l.b16 %v613
        %v1390 = vunpack.c.h.b16 %v613
        %v1391 = vunpack.c.l.b16 %v614
        %v1392 = vunpack.c.h.b16 %v614
        %v1393 = vunpack.c.l.b16 %v615
        %v1394 = vunpack.c.h.b16 %v615
        %v1395 = vunpack.c.l.b16 %v616
        %v1396 = vunpack.c.h.b16 %v616
        %v1397 = vunpack.c.l.b16 %v617
        %v1398 = vunpack.c.h.b16 %v617
        %v1399 = vunpack.c.l.b16 %v618
        %v1400 = vunpack.c.h.b16 %v618
        %v1401 = vunpack.c.l.b16 %v619
        %v1402 = vunpack.c.h.b16 %v619
        %v1403 = vunpack.c.l.b16 %v620
        %v1404 = vunpack.c.h.b16 %v620
        %v1405 = vunpack.c.l.b16 %v621
        %v1406 = vunpack.c.h.b16 %v621
        %v1407 = vunpack.c.l.b16 %v622
        %v1408 = vunpack.c.h.b16 %v622
        %v1409 = vunpack.c.l.b16 %v623
        %v1410 = vunpack.c.h.b16 %v623
        %v1411 = vunpack.c.l.b16 %v624
        %v1412 = vunpack.c.h.b16 %v624
        %v1413 = vpack.c.b16 %v909, %v901
        %v1414 = vpack.c.b16 %v910, %v902
        %v1415 = vpack.c.b16 %v911, %v903
        %v1416 = vpack.c.b16 %v912, %v904
        %v1417 = vpack.c.b16 %v913, %v905
        %v1418 = vpack.c.b16 %v914, %v906
        %v1419 = vpack.c.b16 %v915, %v907
        %v1420 = vpack.c.b16 %v916, %v908
        %v1421 = vpack.c.b16 %v925, %v917
        %v1422 = vpack.c.b16 %v926, %v918
        %v1423 = vpack.c.b16 %v927, %v919
        %v1424 = vpack.c.b16 %v928, %v920
        %v1425 = vpack.c.b16 %v929, %v921
        %v1426 = vpack.c.b16 %v930, %v922
        %v1427 = vpack.c.b16 %v931, %v923
        %v1428 = vpack.c.b16 %v932, %v924
        %v1429 = vpack.c.b16 %v941, %v933
        %v1430 = vpack.c.b16 %v942, %v934
        %v1431 = vpack.c.b16 %v943, %v935
        %v1432 = vpack.c.b16 %v944, %v936
        %v1433 = vpack.c.b16 %v945, %v937
        %v1434 = vpack.c.b16 %v946, %v938
        %v1435 = vpack.c.b16 %v947, %v939
        %v1436 = vpack.c.b16 %v948, %v940
        %v1437 = vpack.c.b16 %v957, %v949
        %v1438 = vpack.c.b16 %v958, %v950
        %v1439 = vpack.c.b16 %v959, %v951
        %v1440 = vpack.c.b16 %v960, %v952
        %v1441 = vpack.c.b16 %v961, %v953
        %v1442 = vpack.c.b16 %v962, %v954
        %v1443 = vpack.c.b16 %v963, %v955
        %v1444 = vpack.c.b16 %v964, %v956
        %v1445 = vpack.c.b16 %v973, %v965
        %v1446 = vpack.c.b16 %v974, %v966
        %v1447 = vpack.c.b16 %v975, %v967
        %v1448 = vpack.c.b16 %v976, %v968
        %v1449 = vpack.c.b16 %v977, %v969
        %v1450 = vpack.c.b16 %v978, %v970
        %v1451 = vpack.c.b16 %v979, %v971
        %v1452 = vpack.c.b16 %v980, %v972
        %v1453 = vpack.c.b16 %v989, %v981
        %v1454 = vpack.c.b16 %v990, %v982
        %v1455 = vpack.c.b16 %v991, %v983
        %v1456 = vpack.c.b16 %v992, %v984
        %v1457 = vpack.c.b16 %v993, %v985
        %v1458 = vpack.c.b16 %v994, %v986
        %v1459 = vpack.c.b16 %v995, %v987
        %v1460 = vpack.c.b16 %v996, %v988
        %v1461 = vpack.c.b16 %v1005, %v997
        %v1462 = vpack.c.b16 %v1006, %v998
        %v1463 = vpack.c.b16 %v1007, %v999
        %v1464 = vpack.c.b16 %v1008, %v1000
        %v1465 = vpack.c.b16 %v1009, %v1001
        %v1466 = vpack.c.b16 %v1010, %v1002
        %v1467 = vpack.c.b16 %v1011, %v1003
        %v1468 = vpack.c.b16 %v1012, %v1004
        %v1469 = vpack.c.b16 %v1021, %v1013
        %v1470 = vpack.c.b16 %v1022, %v1014
        %v1471 = vpack.c.b16 %v1023, %v1015
        %v1472 = vpack.c.b16 %v1024, %v1016
        %v1473 = vpack.c.b16 %v1025, %v1017
        %v1474 = vpack.c.b16 %v1026, %v1018
        %v1475 = vpack.c.b16 %v1027, %v1019
        %v1476 = vpack.c.b16 %v1028, %v1020
        %v1477 = vpack.c.b16 %v1037, %v1029
        %v1478 = vpack.c.b16 %v1038, %v1030
        %v1479 = vpack.c.b16 %v1039, %v1031
        %v1480 = vpack.c.b16 %v1040, %v1032
        %v1481 = vpack.c.b16 %v1041, %v1033
        %v1482 = vpack.c.b16 %v1042, %v1034
        %v1483 = vpack.c.b16 %v1043, %v1035
        %v1484 = vpack.c.b16 %v1044, %v1036
        %v1485 = vpack.c.b16 %v1053, %v1045
        %v1486 = vpack.c.b16 %v1054, %v1046
        %v1487 = vpack.c.b16 %v1055, %v1047
        %v1488 = vpack.c.b16 %v1056, %v1048
        %v1489 = vpack.c.b16 %v1057, %v1049
        %v1490 = vpack.c.b16 %v1058, %v1050
        %v1491 = vpack.c.b16 %v1059, %v1051
        %v1492 = vpack.c.b16 %v1060, %v1052
        %v1493 = vpack.c.b16 %v1069, %v1061
        %v1494 = vpack.c.b16 %v1070, %v1062
        %v1495 = vpack.c.b16 %v1071, %v1063
        %v1496 = vpack.c.b16 %v1072, %v1064
        %v1497 = vpack.c.b16 %v1073, %v1065
        %v1498 = vpack.c.b16 %v1074, %v1066
        %v1499 = vpack.c.b16 %v1075, %v1067
        %v1500 = vpack.c.b16 %v1076, %v1068
        %v1501 = vpack.c.b16 %v1085, %v1077
        %v1502 = vpack.c.b16 %v1086, %v1078
        %v1503 = vpack.c.b16 %v1087, %v1079
        %v1504 = vpack.c.b16 %v1088, %v1080
        %v1505 = vpack.c.b16 %v1089, %v1081
        %v1506 = vpack.c.b16 %v1090, %v1082
        %v1507 = vpack.c.b16 %v1091, %v1083
        %v1508 = vpack.c.b16 %v1092, %v1084
        %v1509 = vpack.c.b16 %v1101, %v1093
        %v1510 = vpack.c.b16 %v1102, %v1094
        %v1511 = vpack.c.b16 %v1103, %v1095
        %v1512 = vpack.c.b16 %v1104, %v1096
        %v1513 = vpack.c.b16 %v1105, %v1097
        %v1514 = vpack.c.b16 %v1106, %v1098
        %v1515 = vpack.c.b16 %v1107, %v1099
        %v1516 = vpack.c.b16 %v1108, %v1100
        %v1517 = vpack.c.b16 %v1117, %v1109
        %v1518 = vpack.c.b16 %v1118, %v1110
        %v1519 = vpack.c.b16 %v1119, %v1111
        %v1520 = vpack.c.b16 %v1120, %v1112
        %v1521 = vpack.c.b16 %v1121, %v1113
        %v1522 = vpack.c.b16 %v1122, %v1114
        %v1523 = vpack.c.b16 %v1123, %v1115
        %v1524 = vpack.c.b16 %v1124, %v1116
        %v1525 = vpack.c.b16 %v1133, %v1125
        %v1526 = vpack.c.b16 %v1134, %v1126
        %v1527 = vpack.c.b16 %v1135, %v1127
        %v1528 = vpack.c.b16 %v1136, %v1128
        %v1529 = vpack.c.b16 %v1137, %v1129
        %v1530 = vpack.c.b16 %v1138, %v1130
        %v1531 = vpack.c.b16 %v1139, %v1131
        %v1532 = vpack.c.b16 %v1140, %v1132
        %v1533 = vpack.c.b16 %v1149, %v1141
        %v1534 = vpack.c.b16 %v1150, %v1142
        %v1535 = vpack.c.b16 %v1151, %v1143
        %v1536 = vpack.c.b16 %v1152, %v1144
        %v1537 = vpack.c.b16 %v1153, %v1145
        %v1538 = vpack.c.b16 %v1154, %v1146
        %v1539 = vpack.c.b16 %v1155, %v1147
        %v1540 = vpack.c.b16 %v1156, %v1148
        %v1541 = vpack.c.b16 %v1165, %v1157
        %v1542 = vpack.c.b16 %v1166, %v1158
        %v1543 = vpack.c.b16 %v1167, %v1159
        %v1544 = vpack.c.b16 %v1168, %v1160
        %v1545 = vpack.c.b16 %v1169, %v1161
        %v1546 = vpack.c.b16 %v1170, %v1162
        %v1547 = vpack.c.b16 %v1171, %v1163
        %v1548 = vpack.c.b16 %v1172, %v1164
        %v1549 = vpack.c.b16 %v1181, %v1173
        %v1550 = vpack.c.b16 %v1182, %v1174
        %v1551 = vpack.c.b16 %v1183, %v1175
        %v1552 = vpack.c.b16 %v1184, %v1176
        %v1553 = vpack.c.b16 %v1185, %v1177
        %v1554 = vpack.c.b16 %v1186, %v1178
        %v1555 = vpack.c.b16 %v1187, %v1179
        %v1556 = vpack.c.b16 %v1188, %v1180
        %v1557 = vpack.c.b16 %v1197, %v1189
        %v1558 = vpack.c.b16 %v1198, %v1190
        %v1559 = vpack.c.b16 %v1199, %v1191
        %v1560 = vpack.c.b16 %v1200, %v1192
        %v1561 = vpack.c.b16 %v1201, %v1193
        %v1562 = vpack.c.b16 %v1202, %v1194
        %v1563 = vpack.c.b16 %v1203, %v1195
        %v1564 = vpack.c.b16 %v1204, %v1196
        %v1565 = vpack.c.b16 %v1213, %v1205
        %v1566 = vpack.c.b16 %v1214, %v1206
        %v1567 = vpack.c.b16 %v1215, %v1207
        %v1568 = vpack.c.b16 %v1216, %v1208
        %v1569 = vpack.c.b16 %v1217, %v1209
        %v1570 = vpack.c.b16 %v1218, %v1210
        %v1571 = vpack.c.b16 %v1219, %v1211
        %v1572 = vpack.c.b16 %v1220, %v1212
        %v1573 = vpack.c.b16 %v1229, %v1221
        %v1574 = vpack.c.b16 %v1230, %v1222
        %v1575 = vpack.c.b16 %v1231, %v1223
        %v1576 = vpack.c.b16 %v1232, %v1224
        %v1577 = vpack.c.b16 %v1233, %v1225
        %v1578 = vpack.c.b16 %v1234, %v1226
        %v1579 = vpack.c.b16 %v1235, %v1227
        %v1580 = vpack.c.b16 %v1236, %v1228
        %v1581 = vpack.c.b16 %v1245, %v1237
        %v1582 = vpack.c.b16 %v1246, %v1238
        %v1583 = vpack.c.b16 %v1247, %v1239
        %v1584 = vpack.c.b16 %v1248, %v1240
        %v1585 = vpack.c.b16 %v1249, %v1241
        %v1586 = vpack.c.b16 %v1250, %v1242
        %v1587 = vpack.c.b16 %v1251, %v1243
        %v1588 = vpack.c.b16 %v1252, %v1244
        %v1589 = vpack.c.b16 %v1261, %v1253
        %v1590 = vpack.c.b16 %v1262, %v1254
        %v1591 = vpack.c.b16 %v1263, %v1255
        %v1592 = vpack.c.b16 %v1264, %v1256
        %v1593 = vpack.c.b16 %v1265, %v1257
        %v1594 = vpack.c.b16 %v1266, %v1258
        %v1595 = vpack.c.b16 %v1267, %v1259
        %v1596 = vpack.c.b16 %v1268, %v1260
        %v1597 = vpack.c.b16 %v1277, %v1269
        %v1598 = vpack.c.b16 %v1278, %v1270
        %v1599 = vpack.c.b16 %v1279, %v1271
        %v1600 = vpack.c.b16 %v1280, %v1272
        %v1601 = vpack.c.b16 %v1281, %v1273
        %v1602 = vpack.c.b16 %v1282, %v1274
        %v1603 = vpack.c.b16 %v1283, %v1275
        %v1604 = vpack.c.b16 %v1284, %v1276
        %v1605 = vpack.c.b16 %v1293, %v1285
        %v1606 = vpack.c.b16 %v1294, %v1286
        %v1607 = vpack.c.b16 %v1295, %v1287
        %v1608 = vpack.c.b16 %v1296, %v1288
        %v1609 = vpack.c.b16 %v1297, %v1289
        %v1610 = vpack.c.b16 %v1298, %v1290
        %v1611 = vpack.c.b16 %v1299, %v1291
        %v1612 = vpack.c.b16 %v1300, %v1292
        %v1613 = vpack.c.b16 %v1309, %v1301
        %v1614 = vpack.c.b16 %v1310, %v1302
        %v1615 = vpack.c.b16 %v1311, %v1303
        %v1616 = vpack.c.b16 %v1312, %v1304
        %v1617 = vpack.c.b16 %v1313, %v1305
        %v1618 = vpack.c.b16 %v1314, %v1306
        %v1619 = vpack.c.b16 %v1315, %v1307
        %v1620 = vpack.c.b16 %v1316, %v1308
        %v1621 = vpack.c.b16 %v1325, %v1317
        %v1622 = vpack.c.b16 %v1326, %v1318
        %v1623 = vpack.c.b16 %v1327, %v1319
        %v1624 = vpack.c.b16 %v1328, %v1320
        %v1625 = vpack.c.b16 %v1329, %v1321
        %v1626 = vpack.c.b16 %v1330, %v1322
        %v1627 = vpack.c.b16 %v1331, %v1323
        %v1628 = vpack.c.b16 %v1332, %v1324
        %v1629 = vpack.c.b16 %v1341, %v1333
        %v1630 = vpack.c.b16 %v1342, %v1334
        %v1631 = vpack.c.b16 %v1343, %v1335
        %v1632 = vpack.c.b16 %v1344, %v1336
        %v1633 = vpack.c.b16 %v1345, %v1337
        %v1634 = vpack.c.b16 %v1346, %v1338
        %v1635 = vpack.c.b16 %v1347, %v1339
        %v1636 = vpack.c.b16 %v1348, %v1340
        %v1637 = vpack.c.b16 %v1357, %v1349
        %v1638 = vpack.c.b16 %v1358, %v1350
        %v1639 = vpack.c.b16 %v1359, %v1351
        %v1640 = vpack.c.b16 %v1360, %v1352
        %v1641 = vpack.c.b16 %v1361, %v1353
        %v1642 = vpack.c.b16 %v1362, %v1354
        %v1643 = vpack.c.b16 %v1363, %v1355
        %v1644 = vpack.c.b16 %v1364, %v1356
        %v1645 = vpack.c.b16 %v1373, %v1365
        %v1646 = vpack.c.b16 %v1374, %v1366
        %v1647 = vpack.c.b16 %v1375, %v1367
        %v1648 = vpack.c.b16 %v1376, %v1368
        %v1649 = vpack.c.b16 %v1377, %v1369
        %v1650 = vpack.c.b16 %v1378, %v1370
        %v1651 = vpack.c.b16 %v1379, %v1371
        %v1652 = vpack.c.b16 %v1380, %v1372
        %v1653 = vpack.c.b16 %v1389, %v1381
        %v1654 = vpack.c.b16 %v1390, %v1382
        %v1655 = vpack.c.b16 %v1391, %v1383
        %v1656 = vpack.c.b16 %v1392, %v1384
        %v1657 = vpack.c.b16 %v1393, %v1385
        %v1658 = vpack.c.b16 %v1394, %v1386
        %v1659 = vpack.c.b16 %v1395, %v1387
        %v1660 = vpack.c.b16 %v1396, %v1388
        %v1661 = vpack.c.b16 %v1405, %v1397
        %v1662 = vpack.c.b16 %v1406, %v1398
        %v1663 = vpack.c.b16 %v1407, %v1399
        %v1664 = vpack.c.b16 %v1408, %v1400
        %v1665 = vpack.c.b16 %v1409, %v1401
        %v1666 = vpack.c.b16 %v1410, %v1402
        %v1667 = vpack.c.b16 %v1411, %v1403
        %v1668 = vpack.c.b16 %v1412, %v1404
        %1925 = vmatprep.subr.bf16.mxu0 %v1414
        %1926 = vmatpush1.bf16.msra.mxu0 %v1413
        %1927 = vmatprep.subr.bf16.mxu0 %v1422
        %1928 = vmatpush1.bf16.msra.mxu0 %v1421
        %1929 = vmatprep.subr.bf16.mxu0 %v1430
        %1930 = vmatpush1.bf16.msra.mxu0 %v1429
        %1931 = vmatprep.subr.bf16.mxu0 %v1438
        %1932 = vmatpush1.bf16.msra.mxu0 %v1437
        %1933 = vmatprep.subr.bf16.mxu0 %v1446
        %1934 = vmatpush1.bf16.msra.mxu0 %v1445
        %1935 = vmatprep.subr.bf16.mxu0 %v1454
        %1936 = vmatpush1.bf16.msra.mxu0 %v1453
        %1937 = vmatprep.subr.bf16.mxu0 %v1462
        %1938 = vmatpush1.bf16.msra.mxu0 %v1461
        %1939 = vmatprep.subr.bf16.mxu0 %v1470
        %1940 = vmatpush1.bf16.msra.mxu0 %v1469
        %1941 = vmatprep.subr.bf16.mxu0 %v1478
        %1942 = vmatpush1.bf16.msra.mxu0 %v1477
        %1943 = vmatprep.subr.bf16.mxu0 %v1486
        %1944 = vmatpush1.bf16.msra.mxu0 %v1485
        %1945 = vmatprep.subr.bf16.mxu0 %v1494
        %1946 = vmatpush1.bf16.msra.mxu0 %v1493
        %1947 = vmatprep.subr.bf16.mxu0 %v1502
        %1948 = vmatpush1.bf16.msra.mxu0 %v1501
        %1949 = vmatprep.subr.bf16.mxu0 %v1510
        %1950 = vmatpush1.bf16.msra.mxu0 %v1509
        %1951 = vmatprep.subr.bf16.mxu0 %v1518
        %1952 = vmatpush1.bf16.msra.mxu0 %v1517
        %1953 = vmatprep.subr.bf16.mxu0 %v1526
        %1954 = vmatpush1.bf16.msra.mxu0 %v1525
        %1955 = vmatprep.subr.bf16.mxu0 %v1534
        %1956 = vmatpush1.bf16.msra.mxu0 %v1533
        %1957 = vmatprep.mubr.bf16.mxu0 %v638
        %1958 = vmatmul.mubr.bf16.gmra.mrb[0].mxu0 %v637
        %v1959 = vpop.f32.mrb[0].mxu0
        %v1960 = vadd.f32 0.0, %v1959
        %v1961 = vpop.f32.mrb[0].mxu0
        %v1962 = vadd.f32 0.0, %v1961
        %v1963 = vpop.f32.mrb[0].mxu0
        %v1964 = vadd.f32 0.0, %v1963
        %v1965 = vpop.f32.mrb[0].mxu0
        %v1966 = vadd.f32 0.0, %v1965
        %1967 = vdwg.mxu0
        %1968 = vmatprep.subr.bf16.mxu0 %v1542
        %1969 = vmatpush1.bf16.msra.mxu0 %v1541
        %1970 = vmatprep.subr.bf16.mxu0 %v1550
        %1971 = vmatpush1.bf16.msra.mxu0 %v1549
        %1972 = vmatprep.subr.bf16.mxu0 %v1558
        %1973 = vmatpush1.bf16.msra.mxu0 %v1557
        %1974 = vmatprep.subr.bf16.mxu0 %v1566
        %1975 = vmatpush1.bf16.msra.mxu0 %v1565
        %1976 = vmatprep.subr.bf16.mxu0 %v1574
        %1977 = vmatpush1.bf16.msra.mxu0 %v1573
        %1978 = vmatprep.subr.bf16.mxu0 %v1582
        %1979 = vmatpush1.bf16.msra.mxu0 %v1581
        %1980 = vmatprep.subr.bf16.mxu0 %v1590
        %1981 = vmatpush1.bf16.msra.mxu0 %v1589
        %1982 = vmatprep.subr.bf16.mxu0 %v1598
        %1983 = vmatpush1.bf16.msra.mxu0 %v1597
        %1984 = vmatprep.subr.bf16.mxu0 %v1606
        %1985 = vmatpush1.bf16.msra.mxu0 %v1605
        %1986 = vmatprep.subr.bf16.mxu0 %v1614
        %1987 = vmatpush1.bf16.msra.mxu0 %v1613
        %1988 = vmatprep.subr.bf16.mxu0 %v1622
        %1989 = vmatpush1.bf16.msra.mxu0 %v1621
        %1990 = vmatprep.subr.bf16.mxu0 %v1630
        %1991 = vmatpush1.bf16.msra.mxu0 %v1629
        %1992 = vmatprep.subr.bf16.mxu0 %v1638
        %1993 = vmatpush1.bf16.msra.mxu0 %v1637
        %1994 = vmatprep.subr.bf16.mxu0 %v1646
        %1995 = vmatpush1.bf16.msra.mxu0 %v1645
        %1996 = vmatprep.subr.bf16.mxu0 %v1654
        %1997 = vmatpush1.bf16.msra.mxu0 %v1653
        %1998 = vmatprep.subr.bf16.mxu0 %v1662
        %1999 = vmatpush1.bf16.msra.mxu0 %v1661
        %2000 = vmatprep.mubr.bf16.mxu0 %v640
        %2001 = vmatmul.mubr.bf16.gmra.mrb[0].mxu0 %v639
        %v2002 = vpop.f32.mrb[0].mxu0
        %v2003 = vadd.f32 %v1960, %v2002
        %v2004 = vpop.f32.mrb[0].mxu0
        %v2005 = vadd.f32 %v1962, %v2004
        %v2006 = vpop.f32.mrb[0].mxu0
        %v2007 = vadd.f32 %v1964, %v2006
        %v2008 = vpop.f32.mrb[0].mxu0
        %v2009 = vadd.f32 %v1966, %v2008
        %2010 = vdwg.mxu0
        %2011 = vmatprep.subr.bf16.mxu0 %v1416
        %2012 = vmatpush1.bf16.msra.mxu0 %v1415
        %2013 = vmatprep.subr.bf16.mxu0 %v1424
        %2014 = vmatpush1.bf16.msra.mxu0 %v1423
        %2015 = vmatprep.subr.bf16.mxu0 %v1432
        %2016 = vmatpush1.bf16.msra.mxu0 %v1431
        %2017 = vmatprep.subr.bf16.mxu0 %v1440
        %2018 = vmatpush1.bf16.msra.mxu0 %v1439
        %2019 = vmatprep.subr.bf16.mxu0 %v1448
        %2020 = vmatpush1.bf16.msra.mxu0 %v1447
        %2021 = vmatprep.subr.bf16.mxu0 %v1456
        %2022 = vmatpush1.bf16.msra.mxu0 %v1455
        %2023 = vmatprep.subr.bf16.mxu0 %v1464
        %2024 = vmatpush1.bf16.msra.mxu0 %v1463
        %2025 = vmatprep.subr.bf16.mxu0 %v1472
        %2026 = vmatpush1.bf16.msra.mxu0 %v1471
        %2027 = vmatprep.subr.bf16.mxu0 %v1480
        %2028 = vmatpush1.bf16.msra.mxu0 %v1479
        %2029 = vmatprep.subr.bf16.mxu0 %v1488
        %2030 = vmatpush1.bf16.msra.mxu0 %v1487
        %2031 = vmatprep.subr.bf16.mxu0 %v1496
        %2032 = vmatpush1.bf16.msra.mxu0 %v1495
        %2033 = vmatprep.subr.bf16.mxu0 %v1504
        %2034 = vmatpush1.bf16.msra.mxu0 %v1503
        %2035 = vmatprep.subr.bf16.mxu0 %v1512
        %2036 = vmatpush1.bf16.msra.mxu0 %v1511
        %2037 = vmatprep.subr.bf16.mxu0 %v1520
        %2038 = vmatpush1.bf16.msra.mxu0 %v1519
        %2039 = vmatprep.subr.bf16.mxu0 %v1528
        %2040 = vmatpush1.bf16.msra.mxu0 %v1527
        %2041 = vmatprep.subr.bf16.mxu0 %v1536
        %2042 = vmatpush1.bf16.msra.mxu0 %v1535
        %2043 = vmatprep.mubr.bf16.mxu0 %v638
        %2044 = vmatmul.mubr.bf16.gmra.mrb[0].mxu0 %v637
        %v2045 = vpop.f32.mrb[0].mxu0
        %v2046 = vadd.f32 0.0, %v2045
        %v2047 = vpop.f32.mrb[0].mxu0
        %v2048 = vadd.f32 0.0, %v2047
        %v2049 = vpop.f32.mrb[0].mxu0
        %v2050 = vadd.f32 0.0, %v2049
        %v2051 = vpop.f32.mrb[0].mxu0
        %v2052 = vadd.f32 0.0, %v2051
        %2053 = vdwg.mxu0
        %2054 = vmatprep.subr.bf16.mxu0 %v1544
        %2055 = vmatpush1.bf16.msra.mxu0 %v1543
        %2056 = vmatprep.subr.bf16.mxu0 %v1552
        %2057 = vmatpush1.bf16.msra.mxu0 %v1551
        %2058 = vmatprep.subr.bf16.mxu0 %v1560
        %2059 = vmatpush1.bf16.msra.mxu0 %v1559
        %2060 = vmatprep.subr.bf16.mxu0 %v1568
        %2061 = vmatpush1.bf16.msra.mxu0 %v1567
        %2062 = vmatprep.subr.bf16.mxu0 %v1576
        %2063 = vmatpush1.bf16.msra.mxu0 %v1575
        %2064 = vmatprep.subr.bf16.mxu0 %v1584
        %2065 = vmatpush1.bf16.msra.mxu0 %v1583
        %2066 = vmatprep.subr.bf16.mxu0 %v1592
        %2067 = vmatpush1.bf16.msra.mxu0 %v1591
        %2068 = vmatprep.subr.bf16.mxu0 %v1600
        %2069 = vmatpush1.bf16.msra.mxu0 %v1599
        %2070 = vmatprep.subr.bf16.mxu0 %v1608
        %2071 = vmatpush1.bf16.msra.mxu0 %v1607
        %2072 = vmatprep.subr.bf16.mxu0 %v1616
        %2073 = vmatpush1.bf16.msra.mxu0 %v1615
        %2074 = vmatprep.subr.bf16.mxu0 %v1624
        %2075 = vmatpush1.bf16.msra.mxu0 %v1623
        %2076 = vmatprep.subr.bf16.mxu0 %v1632
        %2077 = vmatpush1.bf16.msra.mxu0 %v1631
        %2078 = vmatprep.subr.bf16.mxu0 %v1640
        %2079 = vmatpush1.bf16.msra.mxu0 %v1639
        %2080 = vmatprep.subr.bf16.mxu0 %v1648
        %2081 = vmatpush1.bf16.msra.mxu0 %v1647
        %2082 = vmatprep.subr.bf16.mxu0 %v1656
        %2083 = vmatpush1.bf16.msra.mxu0 %v1655
        %2084 = vmatprep.subr.bf16.mxu0 %v1664
        %2085 = vmatpush1.bf16.msra.mxu0 %v1663
        %2086 = vmatprep.mubr.bf16.mxu0 %v640
        %2087 = vmatmul.mubr.bf16.gmra.mrb[0].mxu0 %v639
        %v2088 = vpop.f32.mrb[0].mxu0
        %v2089 = vadd.f32 %v2046, %v2088
        %v2090 = vpop.f32.mrb[0].mxu0
        %v2091 = vadd.f32 %v2048, %v2090
        %v2092 = vpop.f32.mrb[0].mxu0
        %v2093 = vadd.f32 %v2050, %v2092
        %v2094 = vpop.f32.mrb[0].mxu0
        %v2095 = vadd.f32 %v2052, %v2094
        %2096 = vdwg.mxu0
        %2097 = vmatprep.subr.bf16.mxu0 %v1418
        %2098 = vmatpush1.bf16.msra.mxu0 %v1417
        %2099 = vmatprep.subr.bf16.mxu0 %v1426
        %2100 = vmatpush1.bf16.msra.mxu0 %v1425
        %2101 = vmatprep.subr.bf16.mxu0 %v1434
        %2102 = vmatpush1.bf16.msra.mxu0 %v1433
        %2103 = vmatprep.subr.bf16.mxu0 %v1442
        %2104 = vmatpush1.bf16.msra.mxu0 %v1441
        %2105 = vmatprep.subr.bf16.mxu0 %v1450
        %2106 = vmatpush1.bf16.msra.mxu0 %v1449
        %2107 = vmatprep.subr.bf16.mxu0 %v1458
        %2108 = vmatpush1.bf16.msra.mxu0 %v1457
        %2109 = vmatprep.subr.bf16.mxu0 %v1466
        %2110 = vmatpush1.bf16.msra.mxu0 %v1465
        %2111 = vmatprep.subr.bf16.mxu0 %v1474
        %2112 = vmatpush1.bf16.msra.mxu0 %v1473
        %2113 = vmatprep.subr.bf16.mxu0 %v1482
        %2114 = vmatpush1.bf16.msra.mxu0 %v1481
        %2115 = vmatprep.subr.bf16.mxu0 %v1490
        %2116 = vmatpush1.bf16.msra.mxu0 %v1489
        %2117 = vmatprep.subr.bf16.mxu0 %v1498
        %2118 = vmatpush1.bf16.msra.mxu0 %v1497
        %2119 = vmatprep.subr.bf16.mxu0 %v1506
        %2120 = vmatpush1.bf16.msra.mxu0 %v1505
        %2121 = vmatprep.subr.bf16.mxu0 %v1514
        %2122 = vmatpush1.bf16.msra.mxu0 %v1513
        %2123 = vmatprep.subr.bf16.mxu0 %v1522
        %2124 = vmatpush1.bf16.msra.mxu0 %v1521
        %2125 = vmatprep.subr.bf16.mxu0 %v1530
        %2126 = vmatpush1.bf16.msra.mxu0 %v1529
        %2127 = vmatprep.subr.bf16.mxu0 %v1538
        %2128 = vmatpush1.bf16.msra.mxu0 %v1537
        %2129 = vmatprep.mubr.bf16.mxu0 %v638
        %2130 = vmatmul.mubr.bf16.gmra.mrb[0].mxu0 %v637
        %v2131 = vpop.f32.mrb[0].mxu0
        %v2132 = vadd.f32 0.0, %v2131
        %v2133 = vpop.f32.mrb[0].mxu0
        %v2134 = vadd.f32 0.0, %v2133
        %v2135 = vpop.f32.mrb[0].mxu0
        %v2136 = vadd.f32 0.0, %v2135
        %v2137 = vpop.f32.mrb[0].mxu0
        %v2138 = vadd.f32 0.0, %v2137
        %2139 = vdwg.mxu0
        %2140 = vmatprep.subr.bf16.mxu0 %v1546
        %2141 = vmatpush1.bf16.msra.mxu0 %v1545
        %2142 = vmatprep.subr.bf16.mxu0 %v1554
        %2143 = vmatpush1.bf16.msra.mxu0 %v1553
        %2144 = vmatprep.subr.bf16.mxu0 %v1562
        %2145 = vmatpush1.bf16.msra.mxu0 %v1561
        %2146 = vmatprep.subr.bf16.mxu0 %v1570
        %2147 = vmatpush1.bf16.msra.mxu0 %v1569
        %2148 = vmatprep.subr.bf16.mxu0 %v1578
        %2149 = vmatpush1.bf16.msra.mxu0 %v1577
        %2150 = vmatprep.subr.bf16.mxu0 %v1586
        %2151 = vmatpush1.bf16.msra.mxu0 %v1585
        %2152 = vmatprep.subr.bf16.mxu0 %v1594
        %2153 = vmatpush1.bf16.msra.mxu0 %v1593
        %2154 = vmatprep.subr.bf16.mxu0 %v1602
        %2155 = vmatpush1.bf16.msra.mxu0 %v1601
        %2156 = vmatprep.subr.bf16.mxu0 %v1610
        %2157 = vmatpush1.bf16.msra.mxu0 %v1609
        %2158 = vmatprep.subr.bf16.mxu0 %v1618
        %2159 = vmatpush1.bf16.msra.mxu0 %v1617
        %2160 = vmatprep.subr.bf16.mxu0 %v1626
        %2161 = vmatpush1.bf16.msra.mxu0 %v1625
        %2162 = vmatprep.subr.bf16.mxu0 %v1634
        %2163 = vmatpush1.bf16.msra.mxu0 %v1633
        %2164 = vmatprep.subr.bf16.mxu0 %v1642
        %2165 = vmatpush1.bf16.msra.mxu0 %v1641
        %2166 = vmatprep.subr.bf16.mxu0 %v1650
        %2167 = vmatpush1.bf16.msra.mxu0 %v1649
        %2168 = vmatprep.subr.bf16.mxu0 %v1658
        %2169 = vmatpush1.bf16.msra.mxu0 %v1657
        %2170 = vmatprep.subr.bf16.mxu0 %v1666
        %2171 = vmatpush1.bf16.msra.mxu0 %v1665
        %2172 = vmatprep.mubr.bf16.mxu0 %v640
        %2173 = vmatmul.mubr.bf16.gmra.mrb[0].mxu0 %v639
        %v2174 = vpop.f32.mrb[0].mxu0
        %v2175 = vadd.f32 %v2132, %v2174
        %v2176 = vpop.f32.mrb[0].mxu0
        %v2177 = vadd.f32 %v2134, %v2176
        %v2178 = vpop.f32.mrb[0].mxu0
        %v2179 = vadd.f32 %v2136, %v2178
        %v2180 = vpop.f32.mrb[0].mxu0
        %v2181 = vadd.f32 %v2138, %v2180
        %2182 = vdwg.mxu0
        %2183 = vmatprep.subr.bf16.mxu0 %v1420
        %2184 = vmatpush1.bf16.msra.mxu0 %v1419
        %2185 = vmatprep.subr.bf16.mxu0 %v1428
        %2186 = vmatpush1.bf16.msra.mxu0 %v1427
        %2187 = vmatprep.subr.bf16.mxu0 %v1436
        %2188 = vmatpush1.bf16.msra.mxu0 %v1435
        %2189 = vmatprep.subr.bf16.mxu0 %v1444
        %2190 = vmatpush1.bf16.msra.mxu0 %v1443
        %2191 = vmatprep.subr.bf16.mxu0 %v1452
        %2192 = vmatpush1.bf16.msra.mxu0 %v1451
        %2193 = vmatprep.subr.bf16.mxu0 %v1460
        %2194 = vmatpush1.bf16.msra.mxu0 %v1459
        %2195 = vmatprep.subr.bf16.mxu0 %v1468
        %2196 = vmatpush1.bf16.msra.mxu0 %v1467
        %2197 = vmatprep.subr.bf16.mxu0 %v1476
        %2198 = vmatpush1.bf16.msra.mxu0 %v1475
        %2199 = vmatprep.subr.bf16.mxu0 %v1484
        %2200 = vmatpush1.bf16.msra.mxu0 %v1483
        %2201 = vmatprep.subr.bf16.mxu0 %v1492
        %2202 = vmatpush1.bf16.msra.mxu0 %v1491
        %2203 = vmatprep.subr.bf16.mxu0 %v1500
        %2204 = vmatpush1.bf16.msra.mxu0 %v1499
        %2205 = vmatprep.subr.bf16.mxu0 %v1508
        %2206 = vmatpush1.bf16.msra.mxu0 %v1507
        %2207 = vmatprep.subr.bf16.mxu0 %v1516
        %2208 = vmatpush1.bf16.msra.mxu0 %v1515
        %2209 = vmatprep.subr.bf16.mxu0 %v1524
        %2210 = vmatpush1.bf16.msra.mxu0 %v1523
        %2211 = vmatprep.subr.bf16.mxu0 %v1532
        %2212 = vmatpush1.bf16.msra.mxu0 %v1531
        %2213 = vmatprep.subr.bf16.mxu0 %v1540
        %2214 = vmatpush1.bf16.msra.mxu0 %v1539
        %2215 = vmatprep.mubr.bf16.mxu0 %v638
        %2216 = vmatmul.mubr.bf16.gmra.mrb[0].mxu0 %v637
        %v2217 = vpop.f32.mrb[0].mxu0
        %v2218 = vadd.f32 0.0, %v2217
        %v2219 = vpop.f32.mrb[0].mxu0
        %v2220 = vadd.f32 0.0, %v2219
        %v2221 = vpop.f32.mrb[0].mxu0
        %v2222 = vadd.f32 0.0, %v2221
        %v2223 = vpop.f32.mrb[0].mxu0
        %v2224 = vadd.f32 0.0, %v2223
        %2225 = vdwg.mxu0
        %2226 = vmatprep.subr.bf16.mxu0 %v1548
        %2227 = vmatpush1.bf16.msra.mxu0 %v1547
        %2228 = vmatprep.subr.bf16.mxu0 %v1556
        %2229 = vmatpush1.bf16.msra.mxu0 %v1555
        %2230 = vmatprep.subr.bf16.mxu0 %v1564
        %2231 = vmatpush1.bf16.msra.mxu0 %v1563
        %2232 = vmatprep.subr.bf16.mxu0 %v1572
        %2233 = vmatpush1.bf16.msra.mxu0 %v1571
        %2234 = vmatprep.subr.bf16.mxu0 %v1580
        %2235 = vmatpush1.bf16.msra.mxu0 %v1579
        %2236 = vmatprep.subr.bf16.mxu0 %v1588
        %2237 = vmatpush1.bf16.msra.mxu0 %v1587
        %2238 = vmatprep.subr.bf16.mxu0 %v1596
        %2239 = vmatpush1.bf16.msra.mxu0 %v1595
        %2240 = vmatprep.subr.bf16.mxu0 %v1604
        %2241 = vmatpush1.bf16.msra.mxu0 %v1603
        %2242 = vmatprep.subr.bf16.mxu0 %v1612
        %2243 = vmatpush1.bf16.msra.mxu0 %v1611
        %2244 = vmatprep.subr.bf16.mxu0 %v1620
        %2245 = vmatpush1.bf16.msra.mxu0 %v1619
        %2246 = vmatprep.subr.bf16.mxu0 %v1628
        %2247 = vmatpush1.bf16.msra.mxu0 %v1627
        %2248 = vmatprep.subr.bf16.mxu0 %v1636
        %2249 = vmatpush1.bf16.msra.mxu0 %v1635
        %2250 = vmatprep.subr.bf16.mxu0 %v1644
        %2251 = vmatpush1.bf16.msra.mxu0 %v1643
        %2252 = vmatprep.subr.bf16.mxu0 %v1652
        %2253 = vmatpush1.bf16.msra.mxu0 %v1651
        %2254 = vmatprep.subr.bf16.mxu0 %v1660
        %2255 = vmatpush1.bf16.msra.mxu0 %v1659
        %2256 = vmatprep.subr.bf16.mxu0 %v1668
        %2257 = vmatpush1.bf16.msra.mxu0 %v1667
        %2258 = vmatprep.mubr.bf16.mxu0 %v640
        %2259 = vmatmul.mubr.bf16.gmra.mrb[0].mxu0 %v639
        %v2260 = vpop.f32.mrb[0].mxu0
        %v2261 = vadd.f32 %v2218, %v2260
        %v2262 = vpop.f32.mrb[0].mxu0
        %v2263 = vadd.f32 %v2220, %v2262
        %v2264 = vpop.f32.mrb[0].mxu0
        %v2265 = vadd.f32 %v2222, %v2264
        %v2266 = vpop.f32.mrb[0].mxu0
        %v2267 = vadd.f32 %v2224, %v2266
        %2268 = vdwg.mxu0
        %v2269 = vadd.f32 %v349, %v2003
        %v2270 = vadd.f32 %v350, %v2005
        %v2271 = vadd.f32 %v351, %v2089
        %v2272 = vadd.f32 %v352, %v2091
        %v2273 = vadd.f32 %v353, %v2175
        %v2274 = vadd.f32 %v354, %v2177
        %v2275 = vadd.f32 %v355, %v2261
        %v2276 = vadd.f32 %v356, %v2263
        %v2277 = vadd.f32 %v357, %v2007
        %v2278 = vadd.f32 %v358, %v2009
        %v2279 = vadd.f32 %v359, %v2093
        %v2280 = vadd.f32 %v360, %v2095
        %v2281 = vadd.f32 %v361, %v2179
        %v2282 = vadd.f32 %v362, %v2181
        %v2283 = vadd.f32 %v363, %v2265
        %v2284 = vadd.f32 %v364, %v2267
        %2285 = vst [vmem:[%s275] sm:$0xff] %v2269
        %2286 = vst [vmem:[%s275 + $0x8] sm:$0xff] %v2270
        %2287 = vst [vmem:[%s275 + $0x10] sm:$0xff] %v2271
        %2288 = vst [vmem:[%s275 + $0x18] sm:$0xff] %v2272
        %2289 = vst [vmem:[%s275 + $0x20] sm:$0xff] %v2273
        %2290 = vst [vmem:[%s275 + $0x28] sm:$0xff] %v2274
        %2291 = vst [vmem:[%s275 + $0x30] sm:$0xff] %v2275
        %2292 = vst [vmem:[%s275 + $0x38] sm:$0xff] %v2276
        %2293 = vst [vmem:[%s275 + $0x40] sm:$0xff] %v2277
        %2294 = vst [vmem:[%s275 + $0x48] sm:$0xff] %v2278
        %2295 = vst [vmem:[%s275 + $0x50] sm:$0xff] %v2279
        %2296 = vst [vmem:[%s275 + $0x58] sm:$0xff] %v2280
        %2297 = vst [vmem:[%s275 + $0x60] sm:$0xff] %v2281
        %2298 = vst [vmem:[%s275 + $0x68] sm:$0xff] %v2282
        %2299 = vst [vmem:[%s275 + $0x70] sm:$0xff] %v2283
        %2300 = vst [vmem:[%s275 + $0x78] sm:$0xff] %v2284
        %p2301 = scmp.eq.s32.totalorder %s24, 17
        // Predicated region
        $region64: #{cnn_forward.9} parent=50 // pred_check
          %p2302 = pneg %p2301
        $region65: #{cnn_forward.9} parent=50 // pred_check_branch
          %2304 = sbr.rel (%p2302) target = $region67
        $region66: #{cnn_forward.9} parent=50 // pred_region
          %v2305 = vld [vmem:[%s275] sm:$0xff]
          %v2306 = vld [vmem:[%s275 + $0x8] sm:$0xff]
          %v2307 = vld [vmem:[%s275 + $0x10] sm:$0xff]
          %v2308 = vld [vmem:[%s275 + $0x18] sm:$0xff]
          %v2309 = vld [vmem:[%s275 + $0x20] sm:$0xff]
          %v2310 = vld [vmem:[%s275 + $0x28] sm:$0xff]
          %v2311 = vld [vmem:[%s275 + $0x30] sm:$0xff]
          %v2312 = vld [vmem:[%s275 + $0x38] sm:$0xff]
          %v2313 = vld [vmem:[%s275 + $0x40] sm:$0xff]
          %v2314 = vld [vmem:[%s275 + $0x48] sm:$0xff]
          %v2315 = vld [vmem:[%s275 + $0x50] sm:$0xff]
          %v2316 = vld [vmem:[%s275 + $0x58] sm:$0xff]
          %v2317 = vld [vmem:[%s275 + $0x60] sm:$0xff]
          %v2318 = vld [vmem:[%s275 + $0x68] sm:$0xff]
          %v2319 = vld [vmem:[%s275 + $0x70] sm:$0xff]
          %v2320 = vld [vmem:[%s275 + $0x78] sm:$0xff]
          %v2321 = vmax.f32 %v2305, 0.0
          %v2322 = vmax.f32 %v2306, 0.0
          %v2323 = vmax.f32 %v2307, 0.0
          %v2324 = vmax.f32 %v2308, 0.0
          %v2325 = vmax.f32 %v2309, 0.0
          %v2326 = vmax.f32 %v2310, 0.0
          %v2327 = vmax.f32 %v2311, 0.0
          %v2328 = vmax.f32 %v2312, 0.0
          %v2329 = vmax.f32 %v2313, 0.0
          %v2330 = vmax.f32 %v2314, 0.0
          %v2331 = vmax.f32 %v2315, 0.0
          %v2332 = vmax.f32 %v2316, 0.0
          %v2333 = vmax.f32 %v2317, 0.0
          %v2334 = vmax.f32 %v2318, 0.0
          %v2335 = vmax.f32 %v2319, 0.0
          %v2336 = vmax.f32 %v2320, 0.0
          %2337 = vst [vmem:[%s275] sm:$0xff] %v2321
          %2338 = vst [vmem:[%s275 + $0x8] sm:$0xff] %v2322
          %2339 = vst [vmem:[%s275 + $0x10] sm:$0xff] %v2323
          %2340 = vst [vmem:[%s275 + $0x18] sm:$0xff] %v2324
          %2341 = vst [vmem:[%s275 + $0x20] sm:$0xff] %v2325
          %2342 = vst [vmem:[%s275 + $0x28] sm:$0xff] %v2326
          %2343 = vst [vmem:[%s275 + $0x30] sm:$0xff] %v2327
          %2344 = vst [vmem:[%s275 + $0x38] sm:$0xff] %v2328
          %2345 = vst [vmem:[%s275 + $0x40] sm:$0xff] %v2329
          %2346 = vst [vmem:[%s275 + $0x48] sm:$0xff] %v2330
          %2347 = vst [vmem:[%s275 + $0x50] sm:$0xff] %v2331
          %2348 = vst [vmem:[%s275 + $0x58] sm:$0xff] %v2332
          %2349 = vst [vmem:[%s275 + $0x60] sm:$0xff] %v2333
          %2350 = vst [vmem:[%s275 + $0x68] sm:$0xff] %v2334
          %2351 = vst [vmem:[%s275 + $0x70] sm:$0xff] %v2335
          %2352 = vst [vmem:[%s275 + $0x78] sm:$0xff] %v2336
        $region67: #{cnn_forward.9} parent=50 // pred_fallthru
          _
        %s2353 = sand.u32 %s128, 1
        %s2354 = sand.u32 %s128, 1
        %s2355 = smul.addr %s2354, 128
        %s2356 = scalar_lea.vmem [#allocation5], %s2355
        // Predicated region
        $region68: #{cnn_forward.9} parent=50 // pred_check
          %p2357 = pneg %p138
        $region69: #{cnn_forward.9} parent=50 // pred_check_branch
          %2359 = sbr.rel (%p2357) target = $region71
        $region70: #{cnn_forward.9} parent=50 // pred_region
          %s2360 = smul.u32 2, %s22
          %s2361 = smul.u32 8, %s23
          %s2362 = smul.addr %s2360, 16
          %s2363 = sadd.s32 %s2361, %s2362
          %s2364 = smul.addr %s2363, 8
          %s2365 = scalar_lea.vmem %s3, %s2364
          // Predicated region
          $region72: #{cnn_forward.9} parent=70 // pred_check
            _
          $region73: #{cnn_forward.9} parent=70 // pred_check_branch
            %2367 = sbr.rel (0) target = $region75
          $region74: #{cnn_forward.9} parent=70 // pred_region
            // Predicated region
            $region76: #{cnn_forward.9} parent=74 // pred_check
              _
            $region77: #{cnn_forward.9} parent=74 // pred_check_branch
              %2369 = sbr.rel (0) target = $region79
            $region78: #{cnn_forward.9} parent=74 // pred_region
              loop: start=0, step=1, limit=1
              $region80: #{cnn_forward.9} parent=78 // loop_pre_header
                _
              $region81: #{cnn_forward.9} parent=78 // loop_header
                %s2371 = sphi 0, %s2375
                %p2372 = scmp.ge.s32.totalorder %s2371, 1
                %s2376 = sphi %s2356, %s2356
                %s2377 = sphi %s2365, %s2365
              $region82: #{cnn_forward.9} parent=78 // loop_header_branch
                %2374 = sbr.rel (%p2372) target = $region86
              $region83: #{cnn_forward.9} parent=78 // loop_body
                %v2378 = vld [vmem:[%s2376] sm:$0xff]
                %2379 = vst [vmem:[%s2377] sm:$0xff] %v2378
                %v2380 = vld [vmem:[%s2376 + $0x8] sm:$0xff]
                %2381 = vst [vmem:[%s2377 + $0x8] sm:$0xff] %v2380
                %v2382 = vld [vmem:[%s2376 + $0x10] sm:$0xff]
                %2383 = vst [vmem:[%s2377 + $0x10] sm:$0xff] %v2382
                %v2384 = vld [vmem:[%s2376 + $0x18] sm:$0xff]
                %2385 = vst [vmem:[%s2377 + $0x18] sm:$0xff] %v2384
                %v2386 = vld [vmem:[%s2376 + $0x20] sm:$0xff]
                %2387 = vst [vmem:[%s2377 + $0x20] sm:$0xff] %v2386
                %v2388 = vld [vmem:[%s2376 + $0x28] sm:$0xff]
                %2389 = vst [vmem:[%s2377 + $0x28] sm:$0xff] %v2388
                %v2390 = vld [vmem:[%s2376 + $0x30] sm:$0xff]
                %2391 = vst [vmem:[%s2377 + $0x30] sm:$0xff] %v2390
                %v2392 = vld [vmem:[%s2376 + $0x38] sm:$0xff]
                %2393 = vst [vmem:[%s2377 + $0x38] sm:$0xff] %v2392
                %v2394 = vld [vmem:[%s2376 + $0x40] sm:$0xff]
                %2395 = vst [vmem:[%s2377 + $0x80] sm:$0xff] %v2394
                %v2396 = vld [vmem:[%s2376 + $0x48] sm:$0xff]
                %2397 = vst [vmem:[%s2377 + $0x88] sm:$0xff] %v2396
                %v2398 = vld [vmem:[%s2376 + $0x50] sm:$0xff]
                %2399 = vst [vmem:[%s2377 + $0x90] sm:$0xff] %v2398
                %v2400 = vld [vmem:[%s2376 + $0x58] sm:$0xff]
                %2401 = vst [vmem:[%s2377 + $0x98] sm:$0xff] %v2400
                %v2402 = vld [vmem:[%s2376 + $0x60] sm:$0xff]
                %2403 = vst [vmem:[%s2377 + $0xa0] sm:$0xff] %v2402
                %v2404 = vld [vmem:[%s2376 + $0x68] sm:$0xff]
                %2405 = vst [vmem:[%s2377 + $0xa8] sm:$0xff] %v2404
                %v2406 = vld [vmem:[%s2376 + $0x70] sm:$0xff]
                %2407 = vst [vmem:[%s2377 + $0xb0] sm:$0xff] %v2406
                %v2408 = vld [vmem:[%s2376 + $0x78] sm:$0xff]
                %2409 = vst [vmem:[%s2377 + $0xb8] sm:$0xff] %v2408
              $region84: #{cnn_forward.9} parent=78 // loop_footer
                %s2375 = sadd.s32 1, %s2371
              $region85: #{cnn_forward.9} parent=78 // loop_footer_branch
                %2370 = sbr.rel target = $region81
              $region86: #{cnn_forward.9} parent=78 // loop_exit
                _
            $region79: #{cnn_forward.9} parent=74 // pred_fallthru
              _
            // Predicated region
            $region87: #{cnn_forward.9} parent=74 // pred_check
              _
            $region88: #{cnn_forward.9} parent=74 // pred_check_branch
              %2411 = sbr.rel target = $region90
            $region89: #{cnn_forward.9} parent=74 // pred_region
              _
            $region90: #{cnn_forward.9} parent=74 // pred_fallthru
              _
          $region75: #{cnn_forward.9} parent=70 // pred_fallthru
            _
          %2412 = vnop
        $region71: #{cnn_forward.9} parent=50 // pred_fallthru
          _
      $region51: #{cnn_forward.9} parent=5 // pred_fallthru
        _
      %p2413 = scmp.le.s32.totalorder 2, %s12
      // Predicated region
      $region91: #{cnn_forward.9} parent=5 // pred_check
        %p2414 = pneg %p2413
      $region92: #{cnn_forward.9} parent=5 // pred_check_branch
        %2416 = sbr.rel (%p2414) target = $region94
      $region93: #{cnn_forward.9} parent=5 // pred_region
        %s2417 = ssub.s32 %s12, 2
        // Predicated region
        $region95: #{cnn_forward.9} parent=93 // pred_check
          %p2418 = pneg %p144
        $region96: #{cnn_forward.9} parent=93 // pred_check_branch
          %2420 = sbr.rel (%p2418) target = $region98
        $region97: #{cnn_forward.9} parent=93 // pred_region
          %s2421 = sand.u32 %s129, 1
          %s2422 = sand.u32 %s129, 1
          %s2423 = smul.addr %s2422, 128
          %s2424 = scalar_lea.vmem [#allocation5], %s2423
        $region98: #{cnn_forward.9} parent=93 // pred_fallthru
          _
      $region94: #{cnn_forward.9} parent=5 // pred_fallthru
        _
    $region6: #{cnn_forward.9} parent=1 // loop_footer
      %s16 = sadd.s32 1, %s12
    $region7: #{cnn_forward.9} parent=1 // loop_footer_branch
      %11 = sbr.rel target = $region3
    $region8: #{cnn_forward.9} parent=1 // loop_exit
      _
    %2425 = vsyncpa [#allocation4], 1
    %s2426 = scalar_lea.sflag [#allocation4], 1
    %2427 = vsyncpa %s2426, 1

// kernel: cnn_forward.11
$region0: #{cnn_forward.11}
  #allocation0 [shape = 'u32[]', space=smem, size = 0x4, offset = 0x4, fixed_abs, tag = 'smem constant byte address 0x4 - core index']
  #allocation1 [shape = 'u32[144,128]{1,0:T(1,128)}', space=vmem, size = 0x12000, scoped, tag = 'internal scratch']
  %s0 = inlined_call_operand.vmem [shape: bf16[16,2048], index: 0, kind: input, shape index: {}]
  %s1 = inlined_call_operand.vmem [shape: bf16[2048,128], index: 1, kind: input, shape index: {}]
  %s2 = inlined_call_operand.vmem [shape: f32[1,128], index: 2, kind: input, shape index: {}]
  %s3 = inlined_call_operand.vmem [shape: f32[16,128], index: 3, kind: output, shape index: {}]
  %s4 = sld [smem:[#allocation0]]
  $region72: #{cnn_forward.11} parent=0
    _
  %s6 = ssub.s32 1, %s4
  %s7 = scalar_select 0, %s6, %s4
  $region1: #{cnn_forward.11} parent=0
    #allocation2 [shape = 'u8[32768]{0}', space=vmem, size = 0x8000, scoped, tag = 'input window, operand 0']
    loop: start=0, step=1, limit=6
    $region2: #{cnn_forward.11} parent=1 // loop_pre_header
      _
    $region3: #{cnn_forward.11} parent=1 // loop_header
      %s9 = sphi 0, %s13
      %p10 = scmp.ge.s32.totalorder %s9, 6
      %s16 = sphi 0, %s35
      %s17 = sphi 0, %s31
      %s18 = sphi 0, %s27
      %s19 = sphi 0, %s16
      %s20 = sphi 0, %s17
      %s21 = sphi 0, %s18
      %s22 = sphi 0, %s19
      %s23 = sphi 0, %s20
      %s24 = sphi 0, %s21
      %s40 = sphi 0, %s42
      %s43 = sphi 0, %s40
      %s44 = sphi 0, %s43
      %s60 = sphi 0, %s44
      %s68 = sphi 0, %s70
      %s71 = sphi 0, %s68
      %s72 = sphi 0, %s71
      %s88 = sphi 0, %s72
      %s94 = sphi 0, %s96
      %s97 = sphi 0, %s94
      %s98 = sphi 0, %s97
      %s114 = sphi 0, %s98
      %s122 = sphi 0, %s124
      %s125 = sphi 0, %s122
      %s126 = sphi 0, %s125
      %s142 = sphi 0, %s126
    $region4: #{cnn_forward.11} parent=1 // loop_header_branch
      %12 = sbr.rel (%p10) target = $region8
    $region5: #{cnn_forward.11} parent=1 // loop_body
      %s14 = ssub.s32 %s9, 1
      %s15 = ssub.s32 %s9, 2
      %s25 = sadd.s32 1, %s18
      %p26 = scmp.ge.s32.totalorder %s25, 4
      %s27 = scalar_select %p26, 0, %s25
      %s28 = sadd.s32 1, %s17
      %s29 = scalar_select %p26, %s28, %s17
      %p30 = scmp.ge.s32.totalorder %s29, 1
      %s31 = scalar_select %p30, 0, %s29
      %s32 = sadd.s32 1, %s16
      %s33 = scalar_select %p30, %s32, %s16
      %p34 = scmp.ge.s32.totalorder %s33, 1
      %s35 = scalar_select %p34, 0, %s33
      %s36 = ssub.s32 %s16, %s35
      %s37 = ssub.s32 %s18, %s27
      %s38 = sor.u32 %s36, %s37
      %p39 = scmp.eq.s32.totalorder %s38, 0
      %s41 = sadd.s32 %s40, 1
      %s42 = scalar_select %p39, %s40, %s41
      %p45 = pneg %p39
      %p46 = scmp.eq.s32.totalorder %s9, 3
      %p47 = por %p45, %p46
      %p48 = scmp.ne.s32.totalorder %s40, %s43
      %p49 = scmp.eq.s32.totalorder %s9, 0
      %p50 = por %p48, %p49
      %p51 = scmp.ne.s32.totalorder %s40, %s43
      %p52 = scmp.eq.s32.totalorder %s14, 3
      %p53 = por %p51, %p52
      %p54 = scmp.ne.s32.totalorder %s43, %s44
      %p55 = scmp.eq.s32.totalorder %s14, 0
      %p56 = por %p54, %p55
      %p57 = scmp.ne.s32.totalorder %s43, %s44
      %p58 = scmp.eq.s32.totalorder %s15, 3
      %p59 = por %p57, %p58
      %p61 = scmp.ne.s32.totalorder %s44, %s60
      %p62 = scmp.eq.s32.totalorder %s15, 0
      %p63 = por %p61, %p62
      %s64 = ssub.s32 %s18, %s27
      %s65 = ssub.s32 %s17, %s31
      %s66 = sor.u32 %s64, %s65
      %p67 = scmp.eq.s32.totalorder %s66, 0
      %s69 = sadd.s32 %s68, 1
      %s70 = scalar_select %p67, %s68, %s69
      %p73 = pneg %p67
      %p74 = scmp.eq.s32.totalorder %s9, 3
      %p75 = por %p73, %p74
      %p76 = scmp.ne.s32.totalorder %s68, %s71
      %p77 = scmp.eq.s32.totalorder %s9, 0
      %p78 = por %p76, %p77
      %p79 = scmp.ne.s32.totalorder %s68, %s71
      %p80 = scmp.eq.s32.totalorder %s14, 3
      %p81 = por %p79, %p80
      %p82 = scmp.ne.s32.totalorder %s71, %s72
      %p83 = scmp.eq.s32.totalorder %s14, 0
      %p84 = por %p82, %p83
      %p85 = scmp.ne.s32.totalorder %s71, %s72
      %p86 = scmp.eq.s32.totalorder %s15, 3
      %p87 = por %p85, %p86
      %p89 = scmp.ne.s32.totalorder %s72, %s88
      %p90 = scmp.eq.s32.totalorder %s15, 0
      %p91 = por %p89, %p90
      %s92 = ssub.s32 %s17, %s31
      %p93 = scmp.eq.s32.totalorder %s92, 0
      %s95 = sadd.s32 %s94, 1
      %s96 = scalar_select %p93, %s94, %s95
      %p99 = pneg %p93
      %p100 = scmp.eq.s32.totalorder %s9, 3
      %p101 = por %p99, %p100
      %p102 = scmp.ne.s32.totalorder %s94, %s97
      %p103 = scmp.eq.s32.totalorder %s9, 0
      %p104 = por %p102, %p103
      %p105 = scmp.ne.s32.totalorder %s94, %s97
      %p106 = scmp.eq.s32.totalorder %s14, 3
      %p107 = por %p105, %p106
      %p108 = scmp.ne.s32.totalorder %s97, %s98
      %p109 = scmp.eq.s32.totalorder %s14, 0
      %p110 = por %p108, %p109
      %p111 = scmp.ne.s32.totalorder %s97, %s98
      %p112 = scmp.eq.s32.totalorder %s15, 3
      %p113 = por %p111, %p112
      %p115 = scmp.ne.s32.totalorder %s98, %s114
      %p116 = scmp.eq.s32.totalorder %s15, 0
      %p117 = por %p115, %p116
      %s118 = ssub.s32 %s16, %s35
      %s119 = ssub.s32 %s17, %s31
      %s120 = sor.u32 %s118, %s119
      %p121 = scmp.eq.s32.totalorder %s120, 0
      %s123 = sadd.s32 %s122, 1
      %s124 = scalar_select %p121, %s122, %s123
      %p127 = pneg %p121
      %p128 = scmp.eq.s32.totalorder %s9, 3
      %p129 = por %p127, %p128
      %p130 = scmp.ne.s32.totalorder %s122, %s125
      %p131 = scmp.eq.s32.totalorder %s9, 0
      %p132 = por %p130, %p131
      %p133 = scmp.ne.s32.totalorder %s122, %s125
      %p134 = scmp.eq.s32.totalorder %s14, 3
      %p135 = por %p133, %p134
      %p136 = scmp.ne.s32.totalorder %s125, %s126
      %p137 = scmp.eq.s32.totalorder %s14, 0
      %p138 = por %p136, %p137
      %p139 = scmp.ne.s32.totalorder %s125, %s126
      %p140 = scmp.eq.s32.totalorder %s15, 3
      %p141 = por %p139, %p140
      %p143 = scmp.ne.s32.totalorder %s126, %s142
      %p144 = scmp.eq.s32.totalorder %s15, 0
      %p145 = por %p143, %p144
      %p146 = scmp.le.s32.totalorder 1, %s9
      %p147 = scmp.lt.s32.totalorder %s9, 5
      %p148 = pnand %p146, %p147
      %p149 = pneg %p148
      // Predicated region
      $region9: #{cnn_forward.11} parent=5 // pred_check
        _
      $region10: #{cnn_forward.11} parent=5 // pred_check_branch
        %151 = sbr.rel (%p148) target = $region12
      $region11: #{cnn_forward.11} parent=5 // pred_region
        %s152 = ssub.s32 %s9, 1
        // Predicated region
        $region13: #{cnn_forward.11} parent=11 // pred_check
          %p153 = pneg %p110
        $region14: #{cnn_forward.11} parent=11 // pred_check_branch
          %155 = sbr.rel (%p153) target = $region16
        $region15: #{cnn_forward.11} parent=11 // pred_region
          %p156 = scmp.lt.s32.totalorder %s20, 0
          %s157 = scalar_select %p156, %s20, 0
          %s158 = scalar_lea.vmem %s2, %s157
        $region16: #{cnn_forward.11} parent=11 // pred_fallthru
          _
      $region12: #{cnn_forward.11} parent=5 // pred_fallthru
        _
      %p159 = scmp.lt.s32.totalorder %s9, 4
      // Predicated region
      $region17: #{cnn_forward.11} parent=5 // pred_check
        %p160 = pneg %p159
      $region18: #{cnn_forward.11} parent=5 // pred_check_branch
        %162 = sbr.rel (%p160) target = $region20
      $region19: #{cnn_forward.11} parent=5 // pred_region
        // Predicated region
        $region21: #{cnn_forward.11} parent=19 // pred_check
          %p163 = pneg %p50
        $region22: #{cnn_forward.11} parent=19 // pred_check_branch
          %165 = sbr.rel (%p163) target = $region24
        $region23: #{cnn_forward.11} parent=19 // pred_region
          %s166 = sand.u32 %s40, 1
          %s167 = sand.u32 %s40, 1
          %s168 = smul.addr %s167, 32
          %s169 = scalar_lea.vmem [#allocation2], %s168
          %s170 = smul.u32 2, %s16
          %s171 = smul.u32 4, %s18
          %s172 = smul.addr %s170, 16
          %s173 = sadd.s32 %s171, %s172
          %s174 = smul.addr %s173, 4
          %s175 = scalar_lea.vmem %s0, %s174
          // Predicated region
          $region25: #{cnn_forward.11} parent=23 // pred_check
            _
          $region26: #{cnn_forward.11} parent=23 // pred_check_branch
            %177 = sbr.rel (0) target = $region28
          $region27: #{cnn_forward.11} parent=23 // pred_region
            // Predicated region
            $region29: #{cnn_forward.11} parent=27 // pred_check
              _
            $region30: #{cnn_forward.11} parent=27 // pred_check_branch
              %179 = sbr.rel (0) target = $region32
            $region31: #{cnn_forward.11} parent=27 // pred_region
              loop: start=0, step=1, limit=1
              $region33: #{cnn_forward.11} parent=31 // loop_pre_header
                _
              $region34: #{cnn_forward.11} parent=31 // loop_header
                %s181 = sphi 0, %s185
                %p182 = scmp.ge.s32.totalorder %s181, 1
                %s186 = sphi %s175, %s175
                %s187 = sphi %s169, %s169
              $region35: #{cnn_forward.11} parent=31 // loop_header_branch
                %184 = sbr.rel (%p182) target = $region39
              $region36: #{cnn_forward.11} parent=31 // loop_body
                %v188 = vld [vmem:[%s186] sm:$0xff]
                %189 = vst [vmem:[%s187] sm:$0xff] %v188
                %v190 = vld [vmem:[%s186 + $0x8] sm:$0xff]
                %191 = vst [vmem:[%s187 + $0x8] sm:$0xff] %v190
                %v192 = vld [vmem:[%s186 + $0x40] sm:$0xff]
                %193 = vst [vmem:[%s187 + $0x10] sm:$0xff] %v192
                %v194 = vld [vmem:[%s186 + $0x48] sm:$0xff]
                %195 = vst [vmem:[%s187 + $0x18] sm:$0xff] %v194
              $region37: #{cnn_forward.11} parent=31 // loop_footer
                %s185 = sadd.s32 1, %s181
              $region38: #{cnn_forward.11} parent=31 // loop_footer_branch
                %180 = sbr.rel target = $region34
              $region39: #{cnn_forward.11} parent=31 // loop_exit
                _
            $region32: #{cnn_forward.11} parent=27 // pred_fallthru
              _
            // Predicated region
            $region40: #{cnn_forward.11} parent=27 // pred_check
              _
            $region41: #{cnn_forward.11} parent=27 // pred_check_branch
              %197 = sbr.rel target = $region43
            $region42: #{cnn_forward.11} parent=27 // pred_region
              _
            $region43: #{cnn_forward.11} parent=27 // pred_fallthru
              _
          $region28: #{cnn_forward.11} parent=23 // pred_fallthru
            _
          %198 = vnop
        $region24: #{cnn_forward.11} parent=19 // pred_fallthru
          _
        // Predicated region
        $region44: #{cnn_forward.11} parent=19 // pred_check
          %p199 = pneg %p78
        $region45: #{cnn_forward.11} parent=19 // pred_check_branch
          %201 = sbr.rel (%p199) target = $region47
        $region46: #{cnn_forward.11} parent=19 // pred_region
          %s202 = smul.u32 64, %s18
          %p203 = scmp.lt.s32.totalorder %s202, 255
          %s204 = scalar_select %p203, %s202, 255
          %p205 = scmp.lt.s32.totalorder %s17, 0
          %s206 = scalar_select %p205, %s17, 0
          %s207 = sadd.s32 %s206, %s204
          %s208 = smul.addr %s207, 4
          %s209 = scalar_lea.vmem %s1, %s208
          %s210 = smul.u32 64, %s18
        $region47: #{cnn_forward.11} parent=19 // pred_fallthru
          _
      $region20: #{cnn_forward.11} parent=5 // pred_fallthru
        _
      %p211 = scmp.le.s32.totalorder 1, %s9
      %p212 = scmp.lt.s32.totalorder %s9, 5
      %p213 = pnand %p211, %p212
      %p214 = pneg %p213
      // Predicated region
      $region48: #{cnn_forward.11} parent=5 // pred_check
        _
      $region49: #{cnn_forward.11} parent=5 // pred_check_branch
        %216 = sbr.rel (%p213) target = $region51
      $region50: #{cnn_forward.11} parent=5 // pred_region
        %s217 = ssub.s32 %s9, 1
        %s218 = sand.u32 %s43, 1
        %s219 = sand.u32 %s43, 1
        %s220 = smul.addr %s219, 32
        %s221 = scalar_lea.vmem [#allocation2], %s220
        // Predicated region
        $region52: #{cnn_forward.11} parent=50 // pred_check
          %p222 = pneg %p56
        $region53: #{cnn_forward.11} parent=50 // pred_check_branch
          %224 = sbr.rel (%p222) target = $region55
        $region54: #{cnn_forward.11} parent=50 // pred_region
          _
        $region55: #{cnn_forward.11} parent=50 // pred_fallthru
          _
        %s225 = sand.u32 %s43, 1
        %s226 = sand.u32 %s43, 1
        %s227 = smul.addr %s226, 32
        %s228 = scalar_lea.vmem [#allocation2], %s227
        %p229 = pneg %p56
        %p230 = pneg %p53
        %s231 = smul.u32 64, %s21
        %p232 = scmp.lt.s32.totalorder %s231, 255
        %s233 = scalar_select %p232, %s231, 255
        %p234 = scmp.lt.s32.totalorder %s20, 0
        %s235 = scalar_select %p234, %s20, 0
        %s236 = sadd.s32 %s235, %s233
        %s237 = smul.addr %s236, 4
        %s238 = scalar_lea.vmem %s1, %s237
        %p239 = pneg %p84
        %p240 = pneg %p81
        %p241 = scmp.lt.s32.totalorder %s20, 0
        %s242 = scalar_select %p241, %s20, 0
        %s243 = scalar_lea.vmem %s2, %s242
        %p244 = pneg %p110
        %p245 = pneg %p107
        %p246 = pneg %p138
        %p247 = pneg %p135
        %s248 = smul.u32 2, %s19
        %p249 = scmp.lt.s32.totalorder %s248, 1
        %s250 = scalar_select %p249, %s248, 1
        %p251 = scmp.lt.s32.totalorder %s20, 0
        %s252 = scalar_select %p251, %s20, 0
        %s253 = sadd.s32 %s252, %s250
        %s254 = smul.addr %s253, 8
        %s255 = scalar_lea.vmem %s3, %s254
        %s256 = smul.u32 2, %s19
        %s257 = smul.u32 4, %s21
        %s258 = smul.u32 64, %s21
        %p259 = scmp.lt.s32.totalorder %s258, 255
        %s260 = scalar_select %p259, %s258, 255
        %p261 = scmp.lt.s32.totalorder %s20, 0
        %s262 = scalar_select %p261, %s20, 0
        %s263 = sadd.s32 %s262, %s260
        %s264 = smul.addr %s263, 4
        %s265 = scalar_lea.vmem %s1, %s264
        %s266 = smul.u32 64, %s21
        %p267 = scmp.lt.s32.totalorder %s20, 0
        %s268 = scalar_select %p267, %s20, 0
        %s269 = scalar_lea.vmem %s2, %s268
        %s270 = smul.u32 2, %s19
        %p271 = scmp.lt.s32.totalorder %s270, 1
        %s272 = scalar_select %p271, %s270, 1
        %p273 = scmp.lt.s32.totalorder %s20, 0
        %s274 = scalar_select %p273, %s20, 0
        %s275 = sadd.s32 %s274, %s272
        %s276 = smul.addr %s275, 8
        %s277 = scalar_lea.vmem %s3, %s276
        %s278 = smul.u32 2, %s19
        %p280 = scmp.eq.s32.totalorder %s21, 0
        // Predicated region
        $region56: #{cnn_forward.11} parent=50 // pred_check
          %p281 = pneg %p280
        $region57: #{cnn_forward.11} parent=50 // pred_check_branch
          %283 = sbr.rel (%p281) target = $region59
        $region58: #{cnn_forward.11} parent=50 // pred_region
          %v284 = vld [vmem:[%s269] sm:$0x1]
          %v286 = vlaneseq
          %v287 = vshrl.u32 %v286, 7
          %v288 = vsub.s32 0, %v287
          %v289 = vrot.slane %v284, %v288
          %291 = vst [vmem:[%s277] sm:$0xff] %v289
          %292 = vst [vmem:[%s277 + $0x8] sm:$0xff] %v289
        $region59: #{cnn_forward.11} parent=50 // pred_fallthru
          _
        %v293 = vld [vmem:[%s277] sm:$0xff]
        %v294 = vld [vmem:[%s277 + $0x8] sm:$0xff]
        %v295 = vld [vmem:[%s221] sm:$0xff]
        %v296 = vld [vmem:[%s221 + $0x8] sm:$0xff]
        %v297 = vld [vmem:[%s221 + $0x10] sm:$0xff]
        %v298 = vld [vmem:[%s221 + $0x18] sm:$0xff]
        %v299 = vld [vmem:[%s265] sm:$0xf]
        %v300 = vld [vmem:[%s265 + $0x4] sm:$0xf]
        %v301 = vld [vmem:[%s265 + $0x8] sm:$0xf]
        %v302 = vld [vmem:[%s265 + $0xc] sm:$0xf]
        %v303 = vld [vmem:[%s265 + $0x10] sm:$0xf]
        %v304 = vld [vmem:[%s265 + $0x14] sm:$0xf]
        %v305 = vld [vmem:[%s265 + $0x18] sm:$0xf]
        %v306 = vld [vmem:[%s265 + $0x1c] sm:$0xf]
        %v307 = vld [vmem:[%s265 + $0x20] sm:$0xf]
        %v308 = vld [vmem:[%s265 + $0x24] sm:$0xf]
        %v309 = vld [vmem:[%s265 + $0x28] sm:$0xf]
        %v310 = vld [vmem:[%s265 + $0x2c] sm:$0xf]
        %v311 = vld [vmem:[%s265 + $0x30] sm:$0xf]
        %v312 = vld [vmem:[%s265 + $0x34] sm:$0xf]
        %v313 = vld [vmem:[%s265 + $0x38] sm:$0xf]
        %v314 = vld [vmem:[%s265 + $0x3c] sm:$0xf]
        %v315 = vld [vmem:[%s265 + $0x40] sm:$0xf]
        %v316 = vld [vmem:[%s265 + $0x44] sm:$0xf]
        %v317 = vld [vmem:[%s265 + $0x48] sm:$0xf]
        %v318 = vld [vmem:[%s265 + $0x4c] sm:$0xf]
        %v319 = vld [vmem:[%s265 + $0x50] sm:$0xf]
        %v320 = vld [vmem:[%s265 + $0x54] sm:$0xf]
        %v321 = vld [vmem:[%s265 + $0x58] sm:$0xf]
        %v322 = vld [vmem:[%s265 + $0x5c] sm:$0xf]
        %v323 = vld [vmem:[%s265 + $0x60] sm:$0xf]
        %v324 = vld [vmem:[%s265 + $0x64] sm:$0xf]
        %v325 = vld [vmem:[%s265 + $0x68] sm:$0xf]
        %v326 = vld [vmem:[%s265 + $0x6c] sm:$0xf]
        %v327 = vld [vmem:[%s265 + $0x70] sm:$0xf]
        %v328 = vld [vmem:[%s265 + $0x74] sm:$0xf]
        %v329 = vld [vmem:[%s265 + $0x78] sm:$0xf]
        %v330 = vld [vmem:[%s265 + $0x7c] sm:$0xf]
        %v331 = vld [vmem:[%s265 + $0x80] sm:$0xf]
        %v332 = vld [vmem:[%s265 + $0x84] sm:$0xf]
        %v333 = vld [vmem:[%s265 + $0x88] sm:$0xf]
        %v334 = vld [vmem:[%s265 + $0x8c] sm:$0xf]
        %v335 = vld [vmem:[%s265 + $0x90] sm:$0xf]
        %v336 = vld [vmem:[%s265 + $0x94] sm:$0xf]
        %v337 = vld [vmem:[%s265 + $0x98] sm:$0xf]
        %v338 = vld [vmem:[%s265 + $0x9c] sm:$0xf]
        %v339 = vld [vmem:[%s265 + $0xa0] sm:$0xf]
        %v340 = vld [vmem:[%s265 + $0xa4] sm:$0xf]
        %v341 = vld [vmem:[%s265 + $0xa8] sm:$0xf]
        %v342 = vld [vmem:[%s265 + $0xac] sm:$0xf]
        %v343 = vld [vmem:[%s265 + $0xb0] sm:$0xf]
        %v344 = vld [vmem:[%s265 + $0xb4] sm:$0xf]
        %v345 = vld [vmem:[%s265 + $0xb8] sm:$0xf]
        %v346 = vld [vmem:[%s265 + $0xbc] sm:$0xf]
        %v347 = vld [vmem:[%s265 + $0xc0] sm:$0xf]
        %v348 = vld [vmem:[%s265 + $0xc4] sm:$0xf]
        %v349 = vld [vmem:[%s265 + $0xc8] sm:$0xf]
        %v350 = vld [vmem:[%s265 + $0xcc] sm:$0xf]
        %v351 = vld [vmem:[%s265 + $0xd0] sm:$0xf]
        %v352 = vld [vmem:[%s265 + $0xd4] sm:$0xf]
        %v353 = vld [vmem:[%s265 + $0xd8] sm:$0xf]
        %v354 = vld [vmem:[%s265 + $0xdc] sm:$0xf]
        %v355 = vld [vmem:[%s265 + $0xe0] sm:$0xf]
        %v356 = vld [vmem:[%s265 + $0xe4] sm:$0xf]
        %v357 = vld [vmem:[%s265 + $0xe8] sm:$0xf]
        %v358 = vld [vmem:[%s265 + $0xec] sm:$0xf]
        %v359 = vld [vmem:[%s265 + $0xf0] sm:$0xf]
        %v360 = vld [vmem:[%s265 + $0xf4] sm:$0xf]
        %v361 = vld [vmem:[%s265 + $0xf8] sm:$0xf]
        %v362 = vld [vmem:[%s265 + $0xfc] sm:$0xf]
        %v367 = vunpack.c.l.b16 %v295
        %v368 = vunpack.c.h.b16 %v295
        %v369 = vunpack.c.l.b16 %v296
        %v370 = vunpack.c.h.b16 %v296
        %v371 = vunpack.c.l.b16 %v297
        %v372 = vunpack.c.h.b16 %v297
        %v373 = vunpack.c.l.b16 %v298
        %v374 = vunpack.c.h.b16 %v298
        %v375 = vpack.c.b16 %v371, %v367
        %v376 = vpack.c.b16 %v372, %v368
        %v377 = vpack.c.b16 %v373, %v369
        %v378 = vpack.c.b16 %v374, %v370
        %v447 = vunpack.c.l.b16 %v299
        %v448 = vunpack.c.l.b16 %v300
        %v449 = vunpack.c.l.b16 %v301
        %v450 = vunpack.c.l.b16 %v302
        %v451 = vunpack.c.l.b16 %v303
        %v452 = vunpack.c.l.b16 %v304
        %v453 = vunpack.c.l.b16 %v305
        %v454 = vunpack.c.l.b16 %v306
        %v455 = vunpack.c.l.b16 %v307
        %v456 = vunpack.c.l.b16 %v308
        %v457 = vunpack.c.l.b16 %v309
        %v458 = vunpack.c.l.b16 %v310
        %v459 = vunpack.c.l.b16 %v311
        %v460 = vunpack.c.l.b16 %v312
        %v461 = vunpack.c.l.b16 %v313
        %v462 = vunpack.c.l.b16 %v314
        %v463 = vunpack.c.l.b16 %v315
        %v464 = vunpack.c.l.b16 %v316
        %v465 = vunpack.c.l.b16 %v317
        %v466 = vunpack.c.l.b16 %v318
        %v467 = vunpack.c.l.b16 %v319
        %v468 = vunpack.c.l.b16 %v320
        %v469 = vunpack.c.l.b16 %v321
        %v470 = vunpack.c.l.b16 %v322
        %v471 = vunpack.c.l.b16 %v323
        %v472 = vunpack.c.l.b16 %v324
        %v473 = vunpack.c.l.b16 %v325
        %v474 = vunpack.c.l.b16 %v326
        %v475 = vunpack.c.l.b16 %v327
        %v476 = vunpack.c.l.b16 %v328
        %v477 = vunpack.c.l.b16 %v329
        %v478 = vunpack.c.l.b16 %v330
        %v479 = vunpack.c.l.b16 %v331
        %v480 = vunpack.c.l.b16 %v332
        %v481 = vunpack.c.l.b16 %v333
        %v482 = vunpack.c.l.b16 %v334
        %v483 = vunpack.c.l.b16 %v335
        %v484 = vunpack.c.l.b16 %v336
        %v485 = vunpack.c.l.b16 %v337
        %v486 = vunpack.c.l.b16 %v338
        %v487 = vunpack.c.l.b16 %v339
        %v488 = vunpack.c.l.b16 %v340
        %v489 = vunpack.c.l.b16 %v341
        %v490 = vunpack.c.l.b16 %v342
        %v491 = vunpack.c.l.b16 %v343
        %v492 = vunpack.c.l.b16 %v344
        %v493 = vunpack.c.l.b16 %v345
        %v494 = vunpack.c.l.b16 %v346
        %v495 = vunpack.c.l.b16 %v347
        %v496 = vunpack.c.l.b16 %v348
        %v497 = vunpack.c.l.b16 %v349
        %v498 = vunpack.c.l.b16 %v350
        %v499 = vunpack.c.l.b16 %v351
        %v500 = vunpack.c.l.b16 %v352
        %v501 = vunpack.c.l.b16 %v353
        %v502 = vunpack.c.l.b16 %v354
        %v503 = vunpack.c.l.b16 %v355
        %v504 = vunpack.c.l.b16 %v356
        %v505 = vunpack.c.l.b16 %v357
        %v506 = vunpack.c.l.b16 %v358
        %v507 = vunpack.c.l.b16 %v359
        %v508 = vunpack.c.l.b16 %v360
        %v509 = vunpack.c.l.b16 %v361
        %v510 = vunpack.c.l.b16 %v362
        %v511 = vpack.c.b16 %v448, %v447
        %v512 = vpack.c.b16 %v450, %v449
        %v513 = vpack.c.b16 %v452, %v451
        %v514 = vpack.c.b16 %v454, %v453
        %v515 = vpack.c.b16 %v456, %v455
        %v516 = vpack.c.b16 %v458, %v457
        %v517 = vpack.c.b16 %v460, %v459
        %v518 = vpack.c.b16 %v462, %v461
        %v519 = vpack.c.b16 %v464, %v463
        %v520 = vpack.c.b16 %v466, %v465
        %v521 = vpack.c.b16 %v468, %v467
        %v522 = vpack.c.b16 %v470, %v469
        %v523 = vpack.c.b16 %v472, %v471
        %v524 = vpack.c.b16 %v474, %v473
        %v525 = vpack.c.b16 %v476, %v475
        %v526 = vpack.c.b16 %v478, %v477
        %v527 = vpack.c.b16 %v480, %v479
        %v528 = vpack.c.b16 %v482, %v481
        %v529 = vpack.c.b16 %v484, %v483
        %v530 = vpack.c.b16 %v486, %v485
        %v531 = vpack.c.b16 %v488, %v487
        %v532 = vpack.c.b16 %v490, %v489
        %v533 = vpack.c.b16 %v492, %v491
        %v534 = vpack.c.b16 %v494, %v493
        %v535 = vpack.c.b16 %v496, %v495
        %v536 = vpack.c.b16 %v498, %v497
        %v537 = vpack.c.b16 %v500, %v499
        %v538 = vpack.c.b16 %v502, %v501
        %v539 = vpack.c.b16 %v504, %v503
        %v540 = vpack.c.b16 %v506, %v505
        %v541 = vpack.c.b16 %v508, %v507
        %v542 = vpack.c.b16 %v510, %v509
        %575 = vmatprep.subr.bf16.mxu0 0
        %576 = vmatpush1.bf16.msra.mxu0 %v511
        %577 = vmatprep.subr.bf16.mxu0 0
        %578 = vmatpush1.bf16.msra.mxu0 %v512
        %579 = vmatprep.subr.bf16.mxu0 0
        %580 = vmatpush1.bf16.msra.mxu0 %v513
        %581 = vmatprep.subr.bf16.mxu0 0
        %582 = vmatpush1.bf16.msra.mxu0 %v514
        %583 = vmatprep.subr.bf16.mxu0 0
        %584 = vmatpush1.bf16.msra.mxu0 %v515
        %585 = vmatprep.subr.bf16.mxu0 0
        %586 = vmatpush1.bf16.msra.mxu0 %v516
        %587 = vmatprep.subr.bf16.mxu0 0
        %588 = vmatpush1.bf16.msra.mxu0 %v517
        %589 = vmatprep.subr.bf16.mxu0 0
        %590 = vmatpush1.bf16.msra.mxu0 %v518
        %591 = vmatprep.subr.bf16.mxu0 0
        %592 = vmatpush1.bf16.msra.mxu0 %v519
        %593 = vmatprep.subr.bf16.mxu0 0
        %594 = vmatpush1.bf16.msra.mxu0 %v520
        %595 = vmatprep.subr.bf16.mxu0 0
        %596 = vmatpush1.bf16.msra.mxu0 %v521
        %597 = vmatprep.subr.bf16.mxu0 0
        %598 = vmatpush1.bf16.msra.mxu0 %v522
        %599 = vmatprep.subr.bf16.mxu0 0
        %600 = vmatpush1.bf16.msra.mxu0 %v523
        %601 = vmatprep.subr.bf16.mxu0 0
        %602 = vmatpush1.bf16.msra.mxu0 %v524
        %603 = vmatprep.subr.bf16.mxu0 0
        %604 = vmatpush1.bf16.msra.mxu0 %v525
        %605 = vmatprep.subr.bf16.mxu0 0
        %606 = vmatpush1.bf16.msra.mxu0 %v526
        %607 = vmatprep.mubr.bf16.mxu0 %v376
        %608 = vmatmul.mubr.bf16.gmra.mrb[0].mxu0 %v375
        %v609 = vpop.f32.mrb[0].mxu0
        %v610 = vadd.f32 0.0, %v609
        %v611 = vpop.f32.mrb[0].mxu0
        %v612 = vpop.f32.mrb[0].mxu0
        %v613 = vadd.f32 0.0, %v612
        %v614 = vpop.f32.mrb[0].mxu0
        %615 = vdwg.mxu0
        %616 = vmatprep.subr.bf16.mxu0 0
        %617 = vmatpush1.bf16.msra.mxu0 %v527
        %618 = vmatprep.subr.bf16.mxu0 0
        %619 = vmatpush1.bf16.msra.mxu0 %v528
        %620 = vmatprep.subr.bf16.mxu0 0
        %621 = vmatpush1.bf16.msra.mxu0 %v529
        %622 = vmatprep.subr.bf16.mxu0 0
        %623 = vmatpush1.bf16.msra.mxu0 %v530
        %624 = vmatprep.subr.bf16.mxu0 0
        %625 = vmatpush1.bf16.msra.mxu0 %v531
        %626 = vmatprep.subr.bf16.mxu0 0
        %627 = vmatpush1.bf16.msra.mxu0 %v532
        %628 = vmatprep.subr.bf16.mxu0 0
        %629 = vmatpush1.bf16.msra.mxu0 %v533
        %630 = vmatprep.subr.bf16.mxu0 0
        %631 = vmatpush1.bf16.msra.mxu0 %v534
        %632 = vmatprep.subr.bf16.mxu0 0
        %633 = vmatpush1.bf16.msra.mxu0 %v535
        %634 = vmatprep.subr.bf16.mxu0 0
        %635 = vmatpush1.bf16.msra.mxu0 %v536
        %636 = vmatprep.subr.bf16.mxu0 0
        %637 = vmatpush1.bf16.msra.mxu0 %v537
        %638 = vmatprep.subr.bf16.mxu0 0
        %639 = vmatpush1.bf16.msra.mxu0 %v538
        %640 = vmatprep.subr.bf16.mxu0 0
        %641 = vmatpush1.bf16.msra.mxu0 %v539
        %642 = vmatprep.subr.bf16.mxu0 0
        %643 = vmatpush1.bf16.msra.mxu0 %v540
        %644 = vmatprep.subr.bf16.mxu0 0
        %645 = vmatpush1.bf16.msra.mxu0 %v541
        %646 = vmatprep.subr.bf16.mxu0 0
        %647 = vmatpush1.bf16.msra.mxu0 %v542
        %648 = vmatprep.mubr.bf16.mxu0 %v378
        %649 = vmatmul.mubr.bf16.gmra.mrb[0].mxu0 %v377
        %v650 = vpop.f32.mrb[0].mxu0
        %v651 = vadd.f32 %v610, %v650
        %v652 = vpop.f32.mrb[0].mxu0
        %v653 = vpop.f32.mrb[0].mxu0
        %v654 = vadd.f32 %v613, %v653
        %v655 = vpop.f32.mrb[0].mxu0
        %656 = vdwg.mxu0
        %v657 = vadd.f32 %v293, %v651
        %v658 = vadd.f32 %v294, %v654
        %659 = vst [vmem:[%s277] sm:$0xff] %v657
        %660 = vst [vmem:[%s277 + $0x8] sm:$0xff] %v658
        %s661 = smul.u32 2, %s19
        %p662 = scmp.lt.s32.totalorder %s661, 1
        %s663 = scalar_select %p662, %s661, 1
        %p664 = scmp.lt.s32.totalorder %s20, 0
        %s665 = scalar_select %p664, %s20, 0
        %s666 = sadd.s32 %s665, %s663
        %s667 = smul.addr %s666, 8
        %s668 = scalar_lea.vmem %s3, %s667
        // Predicated region
        $region60: #{cnn_forward.11} parent=50 // pred_check
          %p669 = pneg %p135
        $region61: #{cnn_forward.11} parent=50 // pred_check_branch
          %671 = sbr.rel (%p669) target = $region63
        $region62: #{cnn_forward.11} parent=50 // pred_region
          %s672 = smul.u32 2, %s19
        $region63: #{cnn_forward.11} parent=50 // pred_fallthru
          _
        // Predicated region
        $region64: #{cnn_forward.11} parent=50 // pred_check
          %p673 = pneg %p135
        $region65: #{cnn_forward.11} parent=50 // pred_check_branch
          %675 = sbr.rel (%p673) target = $region67
        $region66: #{cnn_forward.11} parent=50 // pred_region
          %s676 = smul.u32 2, %s19
          %p677 = scmp.lt.s32.totalorder %s676, 1
          %s678 = scalar_select %p677, %s676, 1
          %p679 = scmp.lt.s32.totalorder %s20, 0
          %s680 = scalar_select %p679, %s20, 0
          %s681 = sadd.s32 %s680, %s678
          %s682 = smul.addr %s681, 8
          %s683 = scalar_lea.vmem %s3, %s682
        $region67: #{cnn_forward.11} parent=50 // pred_fallthru
          _
      $region51: #{cnn_forward.11} parent=5 // pred_fallthru
        _
      %p684 = scmp.le.s32.totalorder 2, %s9
      // Predicated region
      $region68: #{cnn_forward.11} parent=5 // pred_check
        %p685 = pneg %p684
      $region69: #{cnn_forward.11} parent=5 // pred_check_branch
        %687 = sbr.rel (%p685) target = $region71
      $region70: #{cnn_forward.11} parent=5 // pred_region
        %s688 = ssub.s32 %s9, 2
      $region71: #{cnn_forward.11} parent=5 // pred_fallthru
        _
    $region6: #{cnn_forward.11} parent=1 // loop_footer
      %s13 = sadd.s32 1, %s9
    $region7: #{cnn_forward.11} parent=1 // loop_footer_branch
      %8 = sbr.rel target = $region3
    $region8: #{cnn_forward.11} parent=1 // loop_exit
      _

</llo_original>
